<compile_context>
chip_gen: v7x
topology: tpu7x:2x2x1
jax: 0.10.0
libtpu: 0.0.40
codegen_flags: <defaults>
</compile_context>

<pallas_src>
import jax
import jax.numpy as jnp
import numpy as np
from jax import lax
from jax.experimental import pallas as pl
from jax.experimental.pallas import tpu as pltpu


def _make_kernel(N, H, W, CIN, COUT, K):
    PAD = K // 2
    HW = H * W
    NHW = N * HW
    PCOL = PAD * W + PAD  # max |flat tap shift| (=17 for K=3, W=16)

    def kernel(x_ref, w_ref, b_ref, mask_ref, out_ref):
        # x_ref   : (CIN, PCOL + N*H*W + PCOL)  lane-dense, zero-padded flat input
        # w_ref   : (K*K, COUT, CIN)            per-tap weight matrices
        # b_ref   : (COUT, 1)
        # mask_ref: (K*K, N*H*W)                f32 0/1 border masks per tap
        # out_ref : (N, COUT, H*W)              lane-dense output

        # ---- conv: 9 scratch-free accumulating (COUT,CIN)@(CIN,N*H*W) matmuls ----
        # Each tap is a static lane-offset window of the padded flat input; the
        # border mask zeroes positions whose source pixel falls outside the image
        # (this also kills cross-row / cross-batch wrap of the flat layout).
        acc = None
        for dy in range(K):
            for dx in range(K):
                t = dy * K + dx
                s = (dy - PAD) * W + (dx - PAD)            # flat shift of this tap
                tap = x_ref[:, PCOL + s:PCOL + s + NHW]     # static lane-offset read
                if s != 0:                                  # center tap: no clipping
                    tap = tap * mask_ref[t:t + 1, :]
                contrib = lax.dot_general(
                    w_ref[t], tap,
                    dimension_numbers=(((1,), (0,)), ((), ())),
                    preferred_element_type=jnp.float32,
                    precision=lax.Precision.HIGHEST)
                acc = contrib if acc is None else acc + contrib
        v1 = acc + b_ref[...]                               # (COUT, N*H*W) lane-dense

        # ---- epilogue (stays in vregs): tanh -> softmax over batch -> tanh ----
        t_all = jnp.tanh(v1)                                # v3 == v4
        ts = [t_all[:, n * HW:(n + 1) * HW] for n in range(N)]
        # tanh outputs are in (-1, 1) so exp cannot overflow; softmax is
        # shift-invariant, so the usual running-max subtraction is skipped.
        es = [jnp.exp(tn) for tn in ts]
        den = es[0]
        for n in range(1, N):
            den = den + es[n]
        inv = 1.0 / den                                     # exact divide (1e-5 tol)
        for n in range(N):
            out_ref[n] = jnp.tanh(es[n] * inv + ts[n])      # tanh(v5 + v3), unmasked

    return kernel


@jax.jit
def model_forward(x_nchw, w_oihw, b):
    """x_nchw: (N, CIN, H, W) f32; w_oihw: (COUT, CIN, K, K); b: (COUT,)."""
    N, CIN, H, W = x_nchw.shape
    COUT, _, K, _ = w_oihw.shape
    PAD = K // 2
    HW = H * W
    NHW = N * HW
    PCOL = PAD * W + PAD

    # Boundary glue (tiny, fused under jit):
    #  x -> lane-dense channel-major (CIN, N*H*W), zero-padded so every tap window
    #       is an in-bounds static lane-offset read.
    xf = jnp.transpose(x_nchw, (1, 0, 2, 3)).reshape(CIN, NHW).astype(jnp.float32)
    xf = jnp.pad(xf, ((0, 0), (PCOL, PCOL)))
    #  weights -> per-tap (COUT, CIN) matrices, (dy, dx) order matches kernel loop.
    w_taps = jnp.transpose(w_oihw, (2, 3, 0, 1)).reshape(
        K * K, COUT, CIN).astype(jnp.float32)
    b2 = b.reshape(COUT, 1).astype(jnp.float32)

    # Static 0/1 border masks per tap (compile-time numpy constants).
    ys = (np.arange(NHW) // W) % H
    xs = np.arange(NHW) % W
    rows = []
    for dy in range(K):
        for dx in range(K):
            oy, ox = dy - PAD, dx - PAD
            rows.append(((ys + oy >= 0) & (ys + oy < H) &
                         (xs + ox >= 0) & (xs + ox < W)).astype(np.float32))
    masks = jnp.asarray(np.stack(rows, axis=0))             # (K*K, N*H*W)

    out = pl.pallas_call(
        _make_kernel(N, H, W, CIN, COUT, K),
        out_shape=jax.ShapeDtypeStruct((N, COUT, HW), jnp.float32),
        in_specs=[pl.BlockSpec(memory_space=pltpu.MemorySpace.VMEM)] * 4,
        out_specs=pl.BlockSpec(memory_space=pltpu.MemorySpace.VMEM),
    )(xf, w_taps, b2, masks)

    # Output is already channel-major per batch: free metadata reshape to NCHW.
    return out.reshape(N, COUT, H, W)


def _reference(x_nchw, w_oihw, b):
    """Pure-JAX reference of the PyTorch forward (for verification)."""
    v1 = lax.conv_general_dilated(
        x_nchw, w_oihw, window_strides=(1, 1), padding=((1, 1), (1, 1)),
        dimension_numbers=("NCHW", "OIHW", "NCHW"),
        precision=lax.Precision.HIGHEST)
    v1 = v1 + b.reshape(1, -1, 1, 1)
    v3 = jnp.tanh(v1)
    v5 = jax.nn.softmax(jnp.tanh(v1), axis=0)
    return jnp.tanh(v5 + v3)


if __name__ == "__main__":
    # Small shapes consistent with the module: Conv2d(16,16,3) forces 16 channels;
    # batch=2 so the dim=0 softmax is non-trivial; spatial 16x16.
    N, CIN, COUT, H, W, K = 2, 16, 16, 16, 16, 3

    key = jax.random.PRNGKey(0)
    kx, kw, kb = jax.random.split(key, 3)
    x1 = jax.random.normal(kx, (N, CIN, H, W), dtype=jnp.float32)

    # deterministic conv1 parameters (PyTorch-style kaiming-uniform bound)
    fan_in = CIN * K * K
    bound = 1.0 / np.sqrt(fan_in)
    w1 = jax.random.uniform(kw, (COUT, CIN, K, K), jnp.float32, -bound, bound)
    b1 = jax.random.uniform(kb, (COUT,), jnp.float32, -bound, bound)

    out = jax.block_until_ready(model_forward(x1, w1, b1))
    ref = jax.block_until_ready(_reference(x1, w1, b1))

    assert out.shape == (N, COUT, H, W)
    np.testing.assert_allclose(np.asarray(out), np.asarray(ref), rtol=1e-5, atol=1e-5)
    print("KERNEL_OK")
</pallas_src>

<mosaic_0001>
module attributes {stable_mosaic.version = 11 : i64} {
  func.func @kernel(%arg0: memref<16x546xf32, #tpu.memory_space<vmem>>, %arg1: memref<9x16x16xf32, #tpu.memory_space<vmem>>, %arg2: memref<16x1xf32, #tpu.memory_space<vmem>>, %arg3: memref<9x512xf32, #tpu.memory_space<vmem>>, %arg4: memref<2x16x256xf32, #tpu.memory_space<vmem>>) attributes {dimension_semantics = [], scalar_prefetch = 0 : i64, scratch_operands = 0 : i64, tpu.core_type = #tpu.core_type<tc>} {
    %c0 = arith.constant 0 : index
    %c0_0 = arith.constant 0 : index
    %0 = vector.load %arg0[%c0, %c0_0] : memref<16x546xf32, #tpu.memory_space<vmem>>, vector<16x512xf32>
    %c0_1 = arith.constant 0 : index
    %c0_2 = arith.constant 0 : index
    %1 = vector.load %arg3[%c0_1, %c0_2] : memref<9x512xf32, #tpu.memory_space<vmem>>, vector<1x512xf32>
    %2 = vector.broadcast %1 : vector<1x512xf32> to vector<16x512xf32>
    %3 = arith.mulf %0, %2 : vector<16x512xf32>
    %c0_3 = arith.constant 0 : index
    %c0_4 = arith.constant 0 : index
    %c0_5 = arith.constant 0 : index
    %4 = vector.load %arg1[%c0_3, %c0_4, %c0_5] : memref<9x16x16xf32, #tpu.memory_space<vmem>>, vector<1x16x16xf32>
    %5 = vector.shape_cast %4 : vector<1x16x16xf32> to vector<16x16xf32>
    %cst = arith.constant dense<0.000000e+00> : vector<16x512xf32>
    %6 = tpu.matmul %5, %3, %cst {dimension_numbers = #tpu.dot_dimension_numbers<[1], [0], [0], [1], [0, 0, 1, 1], [], []>, precision = #tpu.contract_precision<fp32>} : vector<16x16xf32>, vector<16x512xf32>, vector<16x512xf32> -> vector<16x512xf32>
    %c0_6 = arith.constant 0 : index
    %c1 = arith.constant 1 : index
    %7 = vector.load %arg0[%c0_6, %c1] : memref<16x546xf32, #tpu.memory_space<vmem>>, vector<16x512xf32>
    %c1_7 = arith.constant 1 : index
    %c0_8 = arith.constant 0 : index
    %8 = vector.load %arg3[%c1_7, %c0_8] : memref<9x512xf32, #tpu.memory_space<vmem>>, vector<1x512xf32>
    %9 = vector.broadcast %8 : vector<1x512xf32> to vector<16x512xf32>
    %10 = arith.mulf %7, %9 : vector<16x512xf32>
    %c1_9 = arith.constant 1 : index
    %c0_10 = arith.constant 0 : index
    %c0_11 = arith.constant 0 : index
    %11 = vector.load %arg1[%c1_9, %c0_10, %c0_11] : memref<9x16x16xf32, #tpu.memory_space<vmem>>, vector<1x16x16xf32>
    %12 = vector.shape_cast %11 : vector<1x16x16xf32> to vector<16x16xf32>
    %cst_12 = arith.constant dense<0.000000e+00> : vector<16x512xf32>
    %13 = tpu.matmul %12, %10, %cst_12 {dimension_numbers = #tpu.dot_dimension_numbers<[1], [0], [0], [1], [0, 0, 1, 1], [], []>, precision = #tpu.contract_precision<fp32>} : vector<16x16xf32>, vector<16x512xf32>, vector<16x512xf32> -> vector<16x512xf32>
    %14 = arith.addf %6, %13 : vector<16x512xf32>
    %c0_13 = arith.constant 0 : index
    %c2 = arith.constant 2 : index
    %15 = vector.load %arg0[%c0_13, %c2] : memref<16x546xf32, #tpu.memory_space<vmem>>, vector<16x512xf32>
    %c2_14 = arith.constant 2 : index
    %c0_15 = arith.constant 0 : index
    %16 = vector.load %arg3[%c2_14, %c0_15] : memref<9x512xf32, #tpu.memory_space<vmem>>, vector<1x512xf32>
    %17 = vector.broadcast %16 : vector<1x512xf32> to vector<16x512xf32>
    %18 = arith.mulf %15, %17 : vector<16x512xf32>
    %c2_16 = arith.constant 2 : index
    %c0_17 = arith.constant 0 : index
    %c0_18 = arith.constant 0 : index
    %19 = vector.load %arg1[%c2_16, %c0_17, %c0_18] : memref<9x16x16xf32, #tpu.memory_space<vmem>>, vector<1x16x16xf32>
    %20 = vector.shape_cast %19 : vector<1x16x16xf32> to vector<16x16xf32>
    %cst_19 = arith.constant dense<0.000000e+00> : vector<16x512xf32>
    %21 = tpu.matmul %20, %18, %cst_19 {dimension_numbers = #tpu.dot_dimension_numbers<[1], [0], [0], [1], [0, 0, 1, 1], [], []>, precision = #tpu.contract_precision<fp32>} : vector<16x16xf32>, vector<16x512xf32>, vector<16x512xf32> -> vector<16x512xf32>
    %22 = arith.addf %14, %21 : vector<16x512xf32>
    %c0_20 = arith.constant 0 : index
    %c16 = arith.constant 16 : index
    %23 = vector.load %arg0[%c0_20, %c16] : memref<16x546xf32, #tpu.memory_space<vmem>>, vector<16x512xf32>
    %c3 = arith.constant 3 : index
    %c0_21 = arith.constant 0 : index
    %24 = vector.load %arg3[%c3, %c0_21] : memref<9x512xf32, #tpu.memory_space<vmem>>, vector<1x512xf32>
    %25 = vector.broadcast %24 : vector<1x512xf32> to vector<16x512xf32>
    %26 = arith.mulf %23, %25 : vector<16x512xf32>
    %c3_22 = arith.constant 3 : index
    %c0_23 = arith.constant 0 : index
    %c0_24 = arith.constant 0 : index
    %27 = vector.load %arg1[%c3_22, %c0_23, %c0_24] : memref<9x16x16xf32, #tpu.memory_space<vmem>>, vector<1x16x16xf32>
    %28 = vector.shape_cast %27 : vector<1x16x16xf32> to vector<16x16xf32>
    %cst_25 = arith.constant dense<0.000000e+00> : vector<16x512xf32>
    %29 = tpu.matmul %28, %26, %cst_25 {dimension_numbers = #tpu.dot_dimension_numbers<[1], [0], [0], [1], [0, 0, 1, 1], [], []>, precision = #tpu.contract_precision<fp32>} : vector<16x16xf32>, vector<16x512xf32>, vector<16x512xf32> -> vector<16x512xf32>
    %30 = arith.addf %22, %29 : vector<16x512xf32>
    %c0_26 = arith.constant 0 : index
    %c17 = arith.constant 17 : index
    %31 = vector.load %arg0[%c0_26, %c17] : memref<16x546xf32, #tpu.memory_space<vmem>>, vector<16x512xf32>
    %c4 = arith.constant 4 : index
    %c0_27 = arith.constant 0 : index
    %c0_28 = arith.constant 0 : index
    %32 = vector.load %arg1[%c4, %c0_27, %c0_28] : memref<9x16x16xf32, #tpu.memory_space<vmem>>, vector<1x16x16xf32>
    %33 = vector.shape_cast %32 : vector<1x16x16xf32> to vector<16x16xf32>
    %cst_29 = arith.constant dense<0.000000e+00> : vector<16x512xf32>
    %34 = tpu.matmul %33, %31, %cst_29 {dimension_numbers = #tpu.dot_dimension_numbers<[1], [0], [0], [1], [0, 0, 1, 1], [], []>, precision = #tpu.contract_precision<fp32>} : vector<16x16xf32>, vector<16x512xf32>, vector<16x512xf32> -> vector<16x512xf32>
    %35 = arith.addf %30, %34 : vector<16x512xf32>
    %c0_30 = arith.constant 0 : index
    %c18 = arith.constant 18 : index
    %36 = vector.load %arg0[%c0_30, %c18] : memref<16x546xf32, #tpu.memory_space<vmem>>, vector<16x512xf32>
    %c5 = arith.constant 5 : index
    %c0_31 = arith.constant 0 : index
    %37 = vector.load %arg3[%c5, %c0_31] : memref<9x512xf32, #tpu.memory_space<vmem>>, vector<1x512xf32>
    %38 = vector.broadcast %37 : vector<1x512xf32> to vector<16x512xf32>
    %39 = arith.mulf %36, %38 : vector<16x512xf32>
    %c5_32 = arith.constant 5 : index
    %c0_33 = arith.constant 0 : index
    %c0_34 = arith.constant 0 : index
    %40 = vector.load %arg1[%c5_32, %c0_33, %c0_34] : memref<9x16x16xf32, #tpu.memory_space<vmem>>, vector<1x16x16xf32>
    %41 = vector.shape_cast %40 : vector<1x16x16xf32> to vector<16x16xf32>
    %cst_35 = arith.constant dense<0.000000e+00> : vector<16x512xf32>
    %42 = tpu.matmul %41, %39, %cst_35 {dimension_numbers = #tpu.dot_dimension_numbers<[1], [0], [0], [1], [0, 0, 1, 1], [], []>, precision = #tpu.contract_precision<fp32>} : vector<16x16xf32>, vector<16x512xf32>, vector<16x512xf32> -> vector<16x512xf32>
    %43 = arith.addf %35, %42 : vector<16x512xf32>
    %c0_36 = arith.constant 0 : index
    %c32 = arith.constant 32 : index
    %44 = vector.load %arg0[%c0_36, %c32] : memref<16x546xf32, #tpu.memory_space<vmem>>, vector<16x512xf32>
    %c6 = arith.constant 6 : index
    %c0_37 = arith.constant 0 : index
    %45 = vector.load %arg3[%c6, %c0_37] : memref<9x512xf32, #tpu.memory_space<vmem>>, vector<1x512xf32>
    %46 = vector.broadcast %45 : vector<1x512xf32> to vector<16x512xf32>
    %47 = arith.mulf %44, %46 : vector<16x512xf32>
    %c6_38 = arith.constant 6 : index
    %c0_39 = arith.constant 0 : index
    %c0_40 = arith.constant 0 : index
    %48 = vector.load %arg1[%c6_38, %c0_39, %c0_40] : memref<9x16x16xf32, #tpu.memory_space<vmem>>, vector<1x16x16xf32>
    %49 = vector.shape_cast %48 : vector<1x16x16xf32> to vector<16x16xf32>
    %cst_41 = arith.constant dense<0.000000e+00> : vector<16x512xf32>
    %50 = tpu.matmul %49, %47, %cst_41 {dimension_numbers = #tpu.dot_dimension_numbers<[1], [0], [0], [1], [0, 0, 1, 1], [], []>, precision = #tpu.contract_precision<fp32>} : vector<16x16xf32>, vector<16x512xf32>, vector<16x512xf32> -> vector<16x512xf32>
    %51 = arith.addf %43, %50 : vector<16x512xf32>
    %c0_42 = arith.constant 0 : index
    %c33 = arith.constant 33 : index
    %52 = vector.load %arg0[%c0_42, %c33] : memref<16x546xf32, #tpu.memory_space<vmem>>, vector<16x512xf32>
    %c7 = arith.constant 7 : index
    %c0_43 = arith.constant 0 : index
    %53 = vector.load %arg3[%c7, %c0_43] : memref<9x512xf32, #tpu.memory_space<vmem>>, vector<1x512xf32>
    %54 = vector.broadcast %53 : vector<1x512xf32> to vector<16x512xf32>
    %55 = arith.mulf %52, %54 : vector<16x512xf32>
    %c7_44 = arith.constant 7 : index
    %c0_45 = arith.constant 0 : index
    %c0_46 = arith.constant 0 : index
    %56 = vector.load %arg1[%c7_44, %c0_45, %c0_46] : memref<9x16x16xf32, #tpu.memory_space<vmem>>, vector<1x16x16xf32>
    %57 = vector.shape_cast %56 : vector<1x16x16xf32> to vector<16x16xf32>
    %cst_47 = arith.constant dense<0.000000e+00> : vector<16x512xf32>
    %58 = tpu.matmul %57, %55, %cst_47 {dimension_numbers = #tpu.dot_dimension_numbers<[1], [0], [0], [1], [0, 0, 1, 1], [], []>, precision = #tpu.contract_precision<fp32>} : vector<16x16xf32>, vector<16x512xf32>, vector<16x512xf32> -> vector<16x512xf32>
    %59 = arith.addf %51, %58 : vector<16x512xf32>
    %c0_48 = arith.constant 0 : index
    %c34 = arith.constant 34 : index
    %60 = vector.load %arg0[%c0_48, %c34] : memref<16x546xf32, #tpu.memory_space<vmem>>, vector<16x512xf32>
    %c8 = arith.constant 8 : index
    %c0_49 = arith.constant 0 : index
    %61 = vector.load %arg3[%c8, %c0_49] : memref<9x512xf32, #tpu.memory_space<vmem>>, vector<1x512xf32>
    %62 = vector.broadcast %61 : vector<1x512xf32> to vector<16x512xf32>
    %63 = arith.mulf %60, %62 : vector<16x512xf32>
    %c8_50 = arith.constant 8 : index
    %c0_51 = arith.constant 0 : index
    %c0_52 = arith.constant 0 : index
    %64 = vector.load %arg1[%c8_50, %c0_51, %c0_52] : memref<9x16x16xf32, #tpu.memory_space<vmem>>, vector<1x16x16xf32>
    %65 = vector.shape_cast %64 : vector<1x16x16xf32> to vector<16x16xf32>
    %cst_53 = arith.constant dense<0.000000e+00> : vector<16x512xf32>
    %66 = tpu.matmul %65, %63, %cst_53 {dimension_numbers = #tpu.dot_dimension_numbers<[1], [0], [0], [1], [0, 0, 1, 1], [], []>, precision = #tpu.contract_precision<fp32>} : vector<16x16xf32>, vector<16x512xf32>, vector<16x512xf32> -> vector<16x512xf32>
    %67 = arith.addf %59, %66 : vector<16x512xf32>
    %c0_54 = arith.constant 0 : index
    %c0_55 = arith.constant 0 : index
    %68 = vector.load %arg2[%c0_54, %c0_55] : memref<16x1xf32, #tpu.memory_space<vmem>>, vector<16x1xf32>
    %69 = vector.broadcast %68 : vector<16x1xf32> to vector<16x512xf32>
    %70 = arith.addf %67, %69 : vector<16x512xf32>
    %71 = math.tanh %70 : vector<16x512xf32>
    %72 = vector.extract_strided_slice %71 {offsets = [0, 0], sizes = [16, 256], strides = [1, 1]} : vector<16x512xf32> to vector<16x256xf32>
    %73 = vector.extract_strided_slice %71 {offsets = [0, 256], sizes = [16, 256], strides = [1, 1]} : vector<16x512xf32> to vector<16x256xf32>
    %74 = math.exp %72 : vector<16x256xf32>
    %75 = math.exp %73 : vector<16x256xf32>
    %76 = arith.addf %74, %75 : vector<16x256xf32>
    %cst_56 = arith.constant 1.000000e+00 : f32
    %77 = vector.broadcast %cst_56 : f32 to vector<16x256xf32>
    %78 = arith.divf %77, %76 : vector<16x256xf32>
    %79 = arith.mulf %74, %78 : vector<16x256xf32>
    %80 = arith.addf %79, %72 : vector<16x256xf32>
    %81 = math.tanh %80 : vector<16x256xf32>
    %c0_57 = arith.constant 0 : index
    %c0_58 = arith.constant 0 : index
    %c0_59 = arith.constant 0 : index
    %82 = vector.load %arg4[%c0_57, %c0_58, %c0_59] : memref<2x16x256xf32, #tpu.memory_space<vmem>>, vector<1x16x256xf32>
    %83 = vector.shape_cast %82 : vector<1x16x256xf32> to vector<16x256xf32>
    %84 = vector.shape_cast %81 : vector<16x256xf32> to vector<1x16x256xf32>
    tpu.vector_store %arg4[%c0_57, %c0_58, %c0_59], %84 {strides = array<i32>} : memref<2x16x256xf32, #tpu.memory_space<vmem>>, vector<1x16x256xf32>,
    %85 = arith.mulf %75, %78 : vector<16x256xf32>
    %86 = arith.addf %85, %73 : vector<16x256xf32>
    %87 = math.tanh %86 : vector<16x256xf32>
    %c1_60 = arith.constant 1 : index
    %c0_61 = arith.constant 0 : index
    %c0_62 = arith.constant 0 : index
    %88 = vector.load %arg4[%c1_60, %c0_61, %c0_62] : memref<2x16x256xf32, #tpu.memory_space<vmem>>, vector<1x16x256xf32>
    %89 = vector.shape_cast %88 : vector<1x16x256xf32> to vector<16x256xf32>
    %90 = vector.shape_cast %87 : vector<16x256xf32> to vector<1x16x256xf32>
    tpu.vector_store %arg4[%c1_60, %c0_61, %c0_62], %90 {strides = array<i32>} : memref<2x16x256xf32, #tpu.memory_space<vmem>>, vector<1x16x256xf32>,
    return
  }
}

</mosaic_0001>

<llo_original>
// kernel: model_forward.1
$region0: #{model_forward.1}
  #allocation0 [shape = 'u32[]', space=smem, size = 0x4, offset = 0x4, fixed_abs, tag = 'smem constant byte address 0x4 - core index']
  #allocation1 [shape = 'u32[144,128]{1,0:T(1,128)}', space=vmem, size = 0x12000, scoped, tag = 'internal scratch']
  %s0 = inlined_call_operand.vmem [shape: f32[16,546], index: 0, kind: input, shape index: {}]
  %s1 = inlined_call_operand.vmem [shape: f32[9,16,16], index: 1, kind: input, shape index: {}]
  %s2 = inlined_call_operand.vmem [shape: f32[16,1], index: 2, kind: input, shape index: {}]
  %s3 = inlined_call_operand.vmem [shape: f32[9,512], index: 3, kind: input, shape index: {}]
  %s4 = inlined_call_operand.vmem [shape: f32[2,16,256], index: 4, kind: output, shape index: {}]
  %s5 = sld [smem:[#allocation0]]
  $region26: #{model_forward.1} parent=0
    _
  %s7 = ssub.s32 1, %s5
  %s8 = scalar_select 0, %s7, %s5
  // Predicated region
  $region2: #{model_forward.1} parent=0 // pred_check
    _
  $region3: #{model_forward.1} parent=0 // pred_check_branch
    %10 = sbr.rel (0) target = $region5
  $region4: #{model_forward.1} parent=0 // pred_region
    _
  $region5: #{model_forward.1} parent=0 // pred_fallthru
    _
  // Predicated region
  $region6: #{model_forward.1} parent=0 // pred_check
    _
  $region7: #{model_forward.1} parent=0 // pred_check_branch
    %12 = sbr.rel (0) target = $region9
  $region8: #{model_forward.1} parent=0 // pred_region
    _
  $region9: #{model_forward.1} parent=0 // pred_fallthru
    _
  // Predicated region
  $region10: #{model_forward.1} parent=0 // pred_check
    _
  $region11: #{model_forward.1} parent=0 // pred_check_branch
    %14 = sbr.rel (0) target = $region13
  $region12: #{model_forward.1} parent=0 // pred_region
    _
  $region13: #{model_forward.1} parent=0 // pred_fallthru
    _
  // Predicated region
  $region14: #{model_forward.1} parent=0 // pred_check
    _
  $region15: #{model_forward.1} parent=0 // pred_check_branch
    %16 = sbr.rel (0) target = $region17
  $region16: #{model_forward.1} parent=0 // pred_region
    _
  $region17: #{model_forward.1} parent=0 // pred_fallthru
    _
  %v17 = vld [vmem:[%s0] sm:$0xff]
  %v18 = vld [vmem:[%s0 + $0x8] sm:$0xff]
  %v19 = vld [vmem:[%s0 + $0x10] sm:$0xff]
  %v20 = vld [vmem:[%s0 + $0x18] sm:$0xff]
  %v21 = vld [vmem:[%s0 + $0x28] sm:$0xff]
  %v22 = vld [vmem:[%s0 + $0x30] sm:$0xff]
  %v23 = vld [vmem:[%s0 + $0x38] sm:$0xff]
  %v24 = vld [vmem:[%s0 + $0x40] sm:$0xff]
  %v25 = vld [vmem:[%s3] ss:$8 sm:$0xf]
  %v27 = vlaneseq
  %v28 = vshrl.u32 %v27, 7
  %v29 = vsub.s32 0, %v28
  %v30 = vrot.slane %v25, %v29
  %v31 = vlaneseq
  %v32 = vshrl.u32 %v31, 7
  %v33 = vsub.s32 1, %v32
  %v34 = vrot.slane %v25, %v33
  %v35 = vlaneseq
  %v36 = vshrl.u32 %v35, 7
  %v37 = vsub.s32 2, %v36
  %v38 = vrot.slane %v25, %v37
  %v39 = vlaneseq
  %v40 = vshrl.u32 %v39, 7
  %v41 = vsub.s32 3, %v40
  %v42 = vrot.slane %v25, %v41
  %v47 = vmul.f32 %v17, %v30
  %v48 = vmul.f32 %v18, %v34
  %v49 = vmul.f32 %v19, %v38
  %v50 = vmul.f32 %v20, %v42
  %v51 = vmul.f32 %v21, %v30
  %v52 = vmul.f32 %v22, %v34
  %v53 = vmul.f32 %v23, %v38
  %v54 = vmul.f32 %v24, %v42
  %v55 = vld [vmem:[%s1] sm:$0xff]
  %v56 = vld [vmem:[%s1 + $0x8] sm:$0xff]
  %v57 = vld [vmem:[%s0 + $0x20] sm:$0xff]
  %v58 = vld [vmem:[%s0 + $0x48] sm:$0xff]
  %s59 = scalar_lea.vmem %s3, 1
  %v60 = vld [vmem:[%s59] ss:$8 sm:$0xf]
  %v62 = vlaneseq
  %v63 = vshrl.u32 %v62, 7
  %v64 = vsub.s32 0, %v63
  %v65 = vrot.slane %v60, %v64
  %v66 = vlaneseq
  %v67 = vshrl.u32 %v66, 7
  %v68 = vsub.s32 1, %v67
  %v69 = vrot.slane %v60, %v68
  %v70 = vlaneseq
  %v71 = vshrl.u32 %v70, 7
  %v72 = vsub.s32 2, %v71
  %v73 = vrot.slane %v60, %v72
  %v74 = vlaneseq
  %v75 = vshrl.u32 %v74, 7
  %v76 = vsub.s32 3, %v75
  %v77 = vrot.slane %v60, %v76
  %78 = vrot.lane.b32.xlu0 %v65, 1
  %v79 = vpop.permute.xlu0 %78
  %80 = vrot.lane.b32.xlu0 %v69, 1
  %v81 = vpop.permute.xlu0 %80
  %82 = vrot.lane.b32.xlu0 %v73, 1
  %v83 = vpop.permute.xlu0 %82
  %84 = vrot.lane.b32.xlu0 %v77, 1
  %v85 = vpop.permute.xlu0 %84
  %vm86 = vcmask 7168
  %v87 = vsel %vm86, %v79, %v81
  %v88 = vsel %vm86, %v81, %v83
  %v89 = vsel %vm86, %v83, %v85
  %v95 = vmul.f32 %v17, %v79
  %v96 = vmul.f32 %v18, %v87
  %v97 = vmul.f32 %v19, %v88
  %v98 = vmul.f32 %v20, %v89
  %v99 = vmul.f32 %v57, %v85
  %v100 = vmul.f32 %v21, %v79
  %v101 = vmul.f32 %v22, %v87
  %v102 = vmul.f32 %v23, %v88
  %v103 = vmul.f32 %v24, %v89
  %v104 = vmul.f32 %v58, %v85
  %s105 = scalar_lea.vmem %s1, 16
  %v106 = vld [vmem:[%s105] sm:$0xff]
  %v107 = vld [vmem:[%s105 + $0x8] sm:$0xff]
  %118 = vrot.lane.b32.xlu0 %v95, 127
  %v119 = vpop.permute.xlu0 %118
  %120 = vrot.lane.b32.xlu0 %v96, 127
  %v121 = vpop.permute.xlu0 %120
  %122 = vrot.lane.b32.xlu0 %v97, 127
  %v123 = vpop.permute.xlu0 %122
  %124 = vrot.lane.b32.xlu0 %v98, 127
  %v125 = vpop.permute.xlu0 %124
  %126 = vrot.lane.b32.xlu0 %v99, 127
  %v127 = vpop.permute.xlu0 %126
  %128 = vrot.lane.b32.xlu0 %v100, 127
  %v129 = vpop.permute.xlu0 %128
  %130 = vrot.lane.b32.xlu0 %v101, 127
  %v131 = vpop.permute.xlu0 %130
  %132 = vrot.lane.b32.xlu0 %v102, 127
  %v133 = vpop.permute.xlu0 %132
  %134 = vrot.lane.b32.xlu0 %v103, 127
  %v135 = vpop.permute.xlu0 %134
  %136 = vrot.lane.b32.xlu0 %v104, 127
  %v137 = vpop.permute.xlu0 %136
  %vm138 = vcmask 1039360
  %v139 = vsel %vm138, %v119, %v121
  %v140 = vsel %vm138, %v121, %v123
  %v141 = vsel %vm138, %v123, %v125
  %v142 = vsel %vm138, %v125, %v127
  %v143 = vsel %vm138, %v129, %v131
  %v144 = vsel %vm138, %v131, %v133
  %v145 = vsel %vm138, %v133, %v135
  %v146 = vsel %vm138, %v135, %v137
  %vm155 = vcmask 130048
  %v157 = vsel %vm155, %v106, 0
  %v160 = vsel %vm155, %v107, 0
  %v162 = vand.u32 %v140, 4294901760
  %163 = vmatprep.subr.mxu0 %v162
  %v164 = vand.u32 %v139, 4294901760
  %165 = vmatpush1.msra.mxu0 %v164
  %v166 = vand.u32 %v144, 4294901760
  %167 = vmatprep.subr.mxu0 %v166
  %v168 = vand.u32 %v143, 4294901760
  %169 = vmatpush1.msra.mxu0 %v168
  %170 = vmatprep.subr.mxu0 0.0
  %171 = vmatpush1.msra.mxu0 0.0
  %172 = vmatprep.subr.mxu0 0.0
  %173 = vmatpush1.msra.mxu0 0.0
  %174 = vmatprep.subr.mxu0 0.0
  %175 = vmatpush1.msra.mxu0 0.0
  %176 = vmatprep.subr.mxu0 0.0
  %177 = vmatpush1.msra.mxu0 0.0
  %178 = vmatprep.subr.mxu0 0.0
  %179 = vmatpush1.msra.mxu0 0.0
  %180 = vmatprep.subr.mxu0 0.0
  %181 = vmatpush1.msra.mxu0 0.0
  %182 = vmatprep.subr.mxu0 0.0
  %183 = vmatpush1.msra.mxu0 0.0
  %184 = vmatprep.subr.mxu0 0.0
  %185 = vmatpush1.msra.mxu0 0.0
  %186 = vmatprep.subr.mxu0 0.0
  %187 = vmatpush1.msra.mxu0 0.0
  %188 = vmatprep.subr.mxu0 0.0
  %189 = vmatpush1.msra.mxu0 0.0
  %190 = vmatprep.subr.mxu0 0.0
  %191 = vmatpush1.msra.mxu0 0.0
  %192 = vmatprep.subr.mxu0 0.0
  %193 = vmatpush1.msra.mxu0 0.0
  %194 = vmatprep.subr.mxu0 0.0
  %195 = vmatpush1.msra.mxu0 0.0
  %196 = vmatprep.subr.mxu0 0.0
  %197 = vmatpush1.msra.mxu0 0.0
  %198 = vmatprep.subr.mxu0 0.0
  %199 = vmatpush1.msra.mxu0 0.0
  %200 = vmatprep.subr.mxu0 0.0
  %201 = vmatpush1.msra.mxu0 0.0
  %202 = vmatprep.subr.mxu0 0.0
  %203 = vmatpush1.msra.mxu0 0.0
  %204 = vmatprep.subr.mxu0 0.0
  %205 = vmatpush1.msra.mxu0 0.0
  %206 = vmatprep.subr.mxu0 0.0
  %207 = vmatpush1.msra.mxu0 0.0
  %208 = vmatprep.subr.mxu0 0.0
  %209 = vmatpush1.msra.mxu0 0.0
  %210 = vmatprep.subr.mxu0 0.0
  %211 = vmatpush1.msra.mxu0 0.0
  %212 = vmatprep.subr.mxu0 0.0
  %213 = vmatpush1.msra.mxu0 0.0
  %214 = vmatprep.subr.mxu0 0.0
  %215 = vmatpush1.msra.mxu0 0.0
  %216 = vmatprep.subr.mxu0 0.0
  %217 = vmatpush1.msra.mxu0 0.0
  %218 = vmatprep.subr.mxu0 0.0
  %219 = vmatpush1.msra.mxu0 0.0
  %220 = vmatprep.subr.mxu0 0.0
  %221 = vmatpush1.msra.mxu0 0.0
  %222 = vmatprep.subr.mxu0 0.0
  %223 = vmatpush1.msra.mxu0 0.0
  %224 = vmatprep.subr.mxu0 0.0
  %225 = vmatpush1.msra.mxu0 0.0
  %226 = vmatprep.subr.mxu0 0.0
  %227 = vmatpush1.msra.mxu0 0.0
  %228 = vmatprep.subr.mxu0 0.0
  %229 = vmatpush1.msra.mxu0 0.0
  %230 = vmatprep.mubr.f32.mxu0 0.0
  %v231 = vand.u32 %v157, 4294901760
  %v232 = vsub.f32 %v157, %v231
  %v233 = vand.u32 %v232, 4294901760
  %v234 = vsub.f32 %v232, %v233
  %v235 = vand.u32 %v234, 4294901760
  %236 = vmatmul.mubr.f32.gmra.mrb[0].mxu0 %v235
  %v237 = vpop.f32.mrb[0].mxu0
  %v238 = vadd.f32 0.0, %v237
  %v239 = vpop.f32.mrb[0].mxu0
  %v240 = vadd.f32 0.0, %v239
  %241 = vmatprep.mubr.f32.mxu0 0.0
  %v242 = vand.u32 %v160, 4294901760
  %v243 = vsub.f32 %v160, %v242
  %v244 = vand.u32 %v243, 4294901760
  %v245 = vsub.f32 %v243, %v244
  %v246 = vand.u32 %v245, 4294901760
  %247 = vmatmul.mubr.f32.gmra.mrb[0].mxu0 %v246
  %v248 = vpop.f32.mrb[0].mxu0
  %v249 = vadd.f32 0.0, %v248
  %v250 = vpop.f32.mrb[0].mxu0
  %v251 = vadd.f32 0.0, %v250
  %252 = vdwg.mxu0
  %v253 = vand.u32 %v140, 4294901760
  %v254 = vsub.f32 %v140, %v253
  %v255 = vand.u32 %v254, 4294901760
  %v256 = vsub.f32 %v254, %v255
  %v257 = vand.u32 %v256, 4294901760
  %258 = vmatprep.subr.mxu0 %v257
  %v259 = vand.u32 %v139, 4294901760
  %v260 = vsub.f32 %v139, %v259
  %v261 = vand.u32 %v260, 4294901760
  %v262 = vsub.f32 %v260, %v261
  %v263 = vand.u32 %v262, 4294901760
  %264 = vmatpush1.msra.mxu0 %v263
  %v265 = vand.u32 %v144, 4294901760
  %v266 = vsub.f32 %v144, %v265
  %v267 = vand.u32 %v266, 4294901760
  %v268 = vsub.f32 %v266, %v267
  %v269 = vand.u32 %v268, 4294901760
  %270 = vmatprep.subr.mxu0 %v269
  %v271 = vand.u32 %v143, 4294901760
  %v272 = vsub.f32 %v143, %v271
  %v273 = vand.u32 %v272, 4294901760
  %v274 = vsub.f32 %v272, %v273
  %v275 = vand.u32 %v274, 4294901760
  %276 = vmatpush1.msra.mxu0 %v275
  %277 = vmatprep.subr.mxu0 0.0
  %278 = vmatpush1.msra.mxu0 0.0
  %279 = vmatprep.subr.mxu0 0.0
  %280 = vmatpush1.msra.mxu0 0.0
  %281 = vmatprep.subr.mxu0 0.0
  %282 = vmatpush1.msra.mxu0 0.0
  %283 = vmatprep.subr.mxu0 0.0
  %284 = vmatpush1.msra.mxu0 0.0
  %285 = vmatprep.subr.mxu0 0.0
  %286 = vmatpush1.msra.mxu0 0.0
  %287 = vmatprep.subr.mxu0 0.0
  %288 = vmatpush1.msra.mxu0 0.0
  %289 = vmatprep.subr.mxu0 0.0
  %290 = vmatpush1.msra.mxu0 0.0
  %291 = vmatprep.subr.mxu0 0.0
  %292 = vmatpush1.msra.mxu0 0.0
  %293 = vmatprep.subr.mxu0 0.0
  %294 = vmatpush1.msra.mxu0 0.0
  %295 = vmatprep.subr.mxu0 0.0
  %296 = vmatpush1.msra.mxu0 0.0
  %297 = vmatprep.subr.mxu0 0.0
  %298 = vmatpush1.msra.mxu0 0.0
  %299 = vmatprep.subr.mxu0 0.0
  %300 = vmatpush1.msra.mxu0 0.0
  %301 = vmatprep.subr.mxu0 0.0
  %302 = vmatpush1.msra.mxu0 0.0
  %303 = vmatprep.subr.mxu0 0.0
  %304 = vmatpush1.msra.mxu0 0.0
  %305 = vmatprep.subr.mxu0 0.0
  %306 = vmatpush1.msra.mxu0 0.0
  %307 = vmatprep.subr.mxu0 0.0
  %308 = vmatpush1.msra.mxu0 0.0
  %309 = vmatprep.subr.mxu0 0.0
  %310 = vmatpush1.msra.mxu0 0.0
  %311 = vmatprep.subr.mxu0 0.0
  %312 = vmatpush1.msra.mxu0 0.0
  %313 = vmatprep.subr.mxu0 0.0
  %314 = vmatpush1.msra.mxu0 0.0
  %315 = vmatprep.subr.mxu0 0.0
  %316 = vmatpush1.msra.mxu0 0.0
  %317 = vmatprep.subr.mxu0 0.0
  %318 = vmatpush1.msra.mxu0 0.0
  %319 = vmatprep.subr.mxu0 0.0
  %320 = vmatpush1.msra.mxu0 0.0
  %321 = vmatprep.subr.mxu0 0.0
  %322 = vmatpush1.msra.mxu0 0.0
  %323 = vmatprep.subr.mxu0 0.0
  %324 = vmatpush1.msra.mxu0 0.0
  %325 = vmatprep.subr.mxu0 0.0
  %326 = vmatpush1.msra.mxu0 0.0
  %327 = vmatprep.subr.mxu0 0.0
  %328 = vmatpush1.msra.mxu0 0.0
  %329 = vmatprep.subr.mxu0 0.0
  %330 = vmatpush1.msra.mxu0 0.0
  %331 = vmatprep.subr.mxu0 0.0
  %332 = vmatpush1.msra.mxu0 0.0
  %333 = vmatprep.subr.mxu0 0.0
  %334 = vmatpush1.msra.mxu0 0.0
  %335 = vmatprep.subr.mxu0 0.0
  %336 = vmatpush1.msra.mxu0 0.0
  %337 = vmatprep.mubr.f32.mxu0 0.0
  %v338 = vand.u32 %v157, 4294901760
  %339 = vmatmul.mubr.f32.gmra.mrb[0].mxu0 %v338
  %v340 = vpop.f32.mrb[0].mxu0
  %v341 = vadd.f32 %v238, %v340
  %v342 = vpop.f32.mrb[0].mxu0
  %v343 = vadd.f32 %v240, %v342
  %344 = vmatprep.mubr.f32.mxu0 0.0
  %v345 = vand.u32 %v160, 4294901760
  %346 = vmatmul.mubr.f32.gmra.mrb[0].mxu0 %v345
  %v347 = vpop.f32.mrb[0].mxu0
  %v348 = vadd.f32 %v249, %v347
  %v349 = vpop.f32.mrb[0].mxu0
  %v350 = vadd.f32 %v251, %v349
  %351 = vdwg.mxu0
  %v352 = vand.u32 %v140, 4294901760
  %v353 = vsub.f32 %v140, %v352
  %354 = vmatprep.subr.mxu0 %v353
  %v355 = vand.u32 %v139, 4294901760
  %v356 = vsub.f32 %v139, %v355
  %357 = vmatpush1.msra.mxu0 %v356
  %v358 = vand.u32 %v144, 4294901760
  %v359 = vsub.f32 %v144, %v358
  %360 = vmatprep.subr.mxu0 %v359
  %v361 = vand.u32 %v143, 4294901760
  %v362 = vsub.f32 %v143, %v361
  %363 = vmatpush1.msra.mxu0 %v362
  %364 = vmatprep.subr.mxu0 0.0
  %365 = vmatpush1.msra.mxu0 0.0
  %366 = vmatprep.subr.mxu0 0.0
  %367 = vmatpush1.msra.mxu0 0.0
  %368 = vmatprep.subr.mxu0 0.0
  %369 = vmatpush1.msra.mxu0 0.0
  %370 = vmatprep.subr.mxu0 0.0
  %371 = vmatpush1.msra.mxu0 0.0
  %372 = vmatprep.subr.mxu0 0.0
  %373 = vmatpush1.msra.mxu0 0.0
  %374 = vmatprep.subr.mxu0 0.0
  %375 = vmatpush1.msra.mxu0 0.0
  %376 = vmatprep.subr.mxu0 0.0
  %377 = vmatpush1.msra.mxu0 0.0
  %378 = vmatprep.subr.mxu0 0.0
  %379 = vmatpush1.msra.mxu0 0.0
  %380 = vmatprep.subr.mxu0 0.0
  %381 = vmatpush1.msra.mxu0 0.0
  %382 = vmatprep.subr.mxu0 0.0
  %383 = vmatpush1.msra.mxu0 0.0
  %384 = vmatprep.subr.mxu0 0.0
  %385 = vmatpush1.msra.mxu0 0.0
  %386 = vmatprep.subr.mxu0 0.0
  %387 = vmatpush1.msra.mxu0 0.0
  %388 = vmatprep.subr.mxu0 0.0
  %389 = vmatpush1.msra.mxu0 0.0
  %390 = vmatprep.subr.mxu0 0.0
  %391 = vmatpush1.msra.mxu0 0.0
  %392 = vmatprep.subr.mxu0 0.0
  %393 = vmatpush1.msra.mxu0 0.0
  %394 = vmatprep.subr.mxu0 0.0
  %395 = vmatpush1.msra.mxu0 0.0
  %396 = vmatprep.subr.mxu0 0.0
  %397 = vmatpush1.msra.mxu0 0.0
  %398 = vmatprep.subr.mxu0 0.0
  %399 = vmatpush1.msra.mxu0 0.0
  %400 = vmatprep.subr.mxu0 0.0
  %401 = vmatpush1.msra.mxu0 0.0
  %402 = vmatprep.subr.mxu0 0.0
  %403 = vmatpush1.msra.mxu0 0.0
  %404 = vmatprep.subr.mxu0 0.0
  %405 = vmatpush1.msra.mxu0 0.0
  %406 = vmatprep.subr.mxu0 0.0
  %407 = vmatpush1.msra.mxu0 0.0
  %408 = vmatprep.subr.mxu0 0.0
  %409 = vmatpush1.msra.mxu0 0.0
  %410 = vmatprep.subr.mxu0 0.0
  %411 = vmatpush1.msra.mxu0 0.0
  %412 = vmatprep.subr.mxu0 0.0
  %413 = vmatpush1.msra.mxu0 0.0
  %414 = vmatprep.subr.mxu0 0.0
  %415 = vmatpush1.msra.mxu0 0.0
  %416 = vmatprep.subr.mxu0 0.0
  %417 = vmatpush1.msra.mxu0 0.0
  %418 = vmatprep.subr.mxu0 0.0
  %419 = vmatpush1.msra.mxu0 0.0
  %420 = vmatprep.subr.mxu0 0.0
  %421 = vmatpush1.msra.mxu0 0.0
  %422 = vmatprep.subr.mxu0 0.0
  %423 = vmatpush1.msra.mxu0 0.0
  %424 = vmatprep.mubr.f32.mxu0 0.0
  %v425 = vand.u32 %v157, 4294901760
  %v426 = vsub.f32 %v157, %v425
  %427 = vmatmul.mubr.f32.gmra.mrb[0].mxu0 %v426
  %v428 = vpop.f32.mrb[0].mxu0
  %v429 = vadd.f32 %v341, %v428
  %v430 = vpop.f32.mrb[0].mxu0
  %v431 = vadd.f32 %v343, %v430
  %432 = vmatprep.mubr.f32.mxu0 0.0
  %v433 = vand.u32 %v160, 4294901760
  %v434 = vsub.f32 %v160, %v433
  %435 = vmatmul.mubr.f32.gmra.mrb[0].mxu0 %v434
  %v436 = vpop.f32.mrb[0].mxu0
  %v437 = vadd.f32 %v348, %v436
  %v438 = vpop.f32.mrb[0].mxu0
  %v439 = vadd.f32 %v350, %v438
  %440 = vdwg.mxu0
  %v441 = vand.u32 %v140, 4294901760
  %442 = vmatprep.subr.mxu0 %v441
  %v443 = vand.u32 %v139, 4294901760
  %444 = vmatpush1.msra.mxu0 %v443
  %v445 = vand.u32 %v144, 4294901760
  %446 = vmatprep.subr.mxu0 %v445
  %v447 = vand.u32 %v143, 4294901760
  %448 = vmatpush1.msra.mxu0 %v447
  %449 = vmatprep.subr.mxu0 0.0
  %450 = vmatpush1.msra.mxu0 0.0
  %451 = vmatprep.subr.mxu0 0.0
  %452 = vmatpush1.msra.mxu0 0.0
  %453 = vmatprep.subr.mxu0 0.0
  %454 = vmatpush1.msra.mxu0 0.0
  %455 = vmatprep.subr.mxu0 0.0
  %456 = vmatpush1.msra.mxu0 0.0
  %457 = vmatprep.subr.mxu0 0.0
  %458 = vmatpush1.msra.mxu0 0.0
  %459 = vmatprep.subr.mxu0 0.0
  %460 = vmatpush1.msra.mxu0 0.0
  %461 = vmatprep.subr.mxu0 0.0
  %462 = vmatpush1.msra.mxu0 0.0
  %463 = vmatprep.subr.mxu0 0.0
  %464 = vmatpush1.msra.mxu0 0.0
  %465 = vmatprep.subr.mxu0 0.0
  %466 = vmatpush1.msra.mxu0 0.0
  %467 = vmatprep.subr.mxu0 0.0
  %468 = vmatpush1.msra.mxu0 0.0
  %469 = vmatprep.subr.mxu0 0.0
  %470 = vmatpush1.msra.mxu0 0.0
  %471 = vmatprep.subr.mxu0 0.0
  %472 = vmatpush1.msra.mxu0 0.0
  %473 = vmatprep.subr.mxu0 0.0
  %474 = vmatpush1.msra.mxu0 0.0
  %475 = vmatprep.subr.mxu0 0.0
  %476 = vmatpush1.msra.mxu0 0.0
  %477 = vmatprep.subr.mxu0 0.0
  %478 = vmatpush1.msra.mxu0 0.0
  %479 = vmatprep.subr.mxu0 0.0
  %480 = vmatpush1.msra.mxu0 0.0
  %481 = vmatprep.subr.mxu0 0.0
  %482 = vmatpush1.msra.mxu0 0.0
  %483 = vmatprep.subr.mxu0 0.0
  %484 = vmatpush1.msra.mxu0 0.0
  %485 = vmatprep.subr.mxu0 0.0
  %486 = vmatpush1.msra.mxu0 0.0
  %487 = vmatprep.subr.mxu0 0.0
  %488 = vmatpush1.msra.mxu0 0.0
  %489 = vmatprep.subr.mxu0 0.0
  %490 = vmatpush1.msra.mxu0 0.0
  %491 = vmatprep.subr.mxu0 0.0
  %492 = vmatpush1.msra.mxu0 0.0
  %493 = vmatprep.subr.mxu0 0.0
  %494 = vmatpush1.msra.mxu0 0.0
  %495 = vmatprep.subr.mxu0 0.0
  %496 = vmatpush1.msra.mxu0 0.0
  %497 = vmatprep.subr.mxu0 0.0
  %498 = vmatpush1.msra.mxu0 0.0
  %499 = vmatprep.subr.mxu0 0.0
  %500 = vmatpush1.msra.mxu0 0.0
  %501 = vmatprep.subr.mxu0 0.0
  %502 = vmatpush1.msra.mxu0 0.0
  %503 = vmatprep.subr.mxu0 0.0
  %504 = vmatpush1.msra.mxu0 0.0
  %505 = vmatprep.subr.mxu0 0.0
  %506 = vmatpush1.msra.mxu0 0.0
  %507 = vmatprep.subr.mxu0 0.0
  %508 = vmatpush1.msra.mxu0 0.0
  %509 = vmatprep.mubr.f32.mxu0 0.0
  %v510 = vand.u32 %v157, 4294901760
  %v511 = vsub.f32 %v157, %v510
  %v512 = vand.u32 %v511, 4294901760
  %513 = vmatmul.mubr.f32.gmra.mrb[0].mxu0 %v512
  %v514 = vpop.f32.mrb[0].mxu0
  %v515 = vadd.f32 %v429, %v514
  %v516 = vpop.f32.mrb[0].mxu0
  %v517 = vadd.f32 %v431, %v516
  %518 = vmatprep.mubr.f32.mxu0 0.0
  %v519 = vand.u32 %v160, 4294901760
  %v520 = vsub.f32 %v160, %v519
  %v521 = vand.u32 %v520, 4294901760
  %522 = vmatmul.mubr.f32.gmra.mrb[0].mxu0 %v521
  %v523 = vpop.f32.mrb[0].mxu0
  %v524 = vadd.f32 %v437, %v523
  %v525 = vpop.f32.mrb[0].mxu0
  %v526 = vadd.f32 %v439, %v525
  %527 = vdwg.mxu0
  %v528 = vand.u32 %v140, 4294901760
  %v529 = vsub.f32 %v140, %v528
  %v530 = vand.u32 %v529, 4294901760
  %531 = vmatprep.subr.mxu0 %v530
  %v532 = vand.u32 %v139, 4294901760
  %v533 = vsub.f32 %v139, %v532
  %v534 = vand.u32 %v533, 4294901760
  %535 = vmatpush1.msra.mxu0 %v534
  %v536 = vand.u32 %v144, 4294901760
  %v537 = vsub.f32 %v144, %v536
  %v538 = vand.u32 %v537, 4294901760
  %539 = vmatprep.subr.mxu0 %v538
  %v540 = vand.u32 %v143, 4294901760
  %v541 = vsub.f32 %v143, %v540
  %v542 = vand.u32 %v541, 4294901760
  %543 = vmatpush1.msra.mxu0 %v542
  %544 = vmatprep.subr.mxu0 0.0
  %545 = vmatpush1.msra.mxu0 0.0
  %546 = vmatprep.subr.mxu0 0.0
  %547 = vmatpush1.msra.mxu0 0.0
  %548 = vmatprep.subr.mxu0 0.0
  %549 = vmatpush1.msra.mxu0 0.0
  %550 = vmatprep.subr.mxu0 0.0
  %551 = vmatpush1.msra.mxu0 0.0
  %552 = vmatprep.subr.mxu0 0.0
  %553 = vmatpush1.msra.mxu0 0.0
  %554 = vmatprep.subr.mxu0 0.0
  %555 = vmatpush1.msra.mxu0 0.0
  %556 = vmatprep.subr.mxu0 0.0
  %557 = vmatpush1.msra.mxu0 0.0
  %558 = vmatprep.subr.mxu0 0.0
  %559 = vmatpush1.msra.mxu0 0.0
  %560 = vmatprep.subr.mxu0 0.0
  %561 = vmatpush1.msra.mxu0 0.0
  %562 = vmatprep.subr.mxu0 0.0
  %563 = vmatpush1.msra.mxu0 0.0
  %564 = vmatprep.subr.mxu0 0.0
  %565 = vmatpush1.msra.mxu0 0.0
  %566 = vmatprep.subr.mxu0 0.0
  %567 = vmatpush1.msra.mxu0 0.0
  %568 = vmatprep.subr.mxu0 0.0
  %569 = vmatpush1.msra.mxu0 0.0
  %570 = vmatprep.subr.mxu0 0.0
  %571 = vmatpush1.msra.mxu0 0.0
  %572 = vmatprep.subr.mxu0 0.0
  %573 = vmatpush1.msra.mxu0 0.0
  %574 = vmatprep.subr.mxu0 0.0
  %575 = vmatpush1.msra.mxu0 0.0
  %576 = vmatprep.subr.mxu0 0.0
  %577 = vmatpush1.msra.mxu0 0.0
  %578 = vmatprep.subr.mxu0 0.0
  %579 = vmatpush1.msra.mxu0 0.0
  %580 = vmatprep.subr.mxu0 0.0
  %581 = vmatpush1.msra.mxu0 0.0
  %582 = vmatprep.subr.mxu0 0.0
  %583 = vmatpush1.msra.mxu0 0.0
  %584 = vmatprep.subr.mxu0 0.0
  %585 = vmatpush1.msra.mxu0 0.0
  %586 = vmatprep.subr.mxu0 0.0
  %587 = vmatpush1.msra.mxu0 0.0
  %588 = vmatprep.subr.mxu0 0.0
  %589 = vmatpush1.msra.mxu0 0.0
  %590 = vmatprep.subr.mxu0 0.0
  %591 = vmatpush1.msra.mxu0 0.0
  %592 = vmatprep.subr.mxu0 0.0
  %593 = vmatpush1.msra.mxu0 0.0
  %594 = vmatprep.subr.mxu0 0.0
  %595 = vmatpush1.msra.mxu0 0.0
  %596 = vmatprep.subr.mxu0 0.0
  %597 = vmatpush1.msra.mxu0 0.0
  %598 = vmatprep.subr.mxu0 0.0
  %599 = vmatpush1.msra.mxu0 0.0
  %600 = vmatprep.subr.mxu0 0.0
  %601 = vmatpush1.msra.mxu0 0.0
  %602 = vmatprep.subr.mxu0 0.0
  %603 = vmatpush1.msra.mxu0 0.0
  %604 = vmatprep.mubr.f32.mxu0 0.0
  %v605 = vand.u32 %v157, 4294901760
  %606 = vmatmul.mubr.f32.gmra.mrb[0].mxu0 %v605
  %v607 = vpop.f32.mrb[0].mxu0
  %v608 = vadd.f32 %v515, %v607
  %v609 = vpop.f32.mrb[0].mxu0
  %v610 = vadd.f32 %v517, %v609
  %611 = vmatprep.mubr.f32.mxu0 0.0
  %v612 = vand.u32 %v160, 4294901760
  %613 = vmatmul.mubr.f32.gmra.mrb[0].mxu0 %v612
  %v614 = vpop.f32.mrb[0].mxu0
  %v615 = vadd.f32 %v524, %v614
  %v616 = vpop.f32.mrb[0].mxu0
  %v617 = vadd.f32 %v526, %v616
  %618 = vdwg.mxu0
  %v619 = vand.u32 %v140, 4294901760
  %620 = vmatprep.subr.mxu0 %v619
  %v621 = vand.u32 %v139, 4294901760
  %622 = vmatpush1.msra.mxu0 %v621
  %v623 = vand.u32 %v144, 4294901760
  %624 = vmatprep.subr.mxu0 %v623
  %v625 = vand.u32 %v143, 4294901760
  %626 = vmatpush1.msra.mxu0 %v625
  %627 = vmatprep.subr.mxu0 0.0
  %628 = vmatpush1.msra.mxu0 0.0
  %629 = vmatprep.subr.mxu0 0.0
  %630 = vmatpush1.msra.mxu0 0.0
  %631 = vmatprep.subr.mxu0 0.0
  %632 = vmatpush1.msra.mxu0 0.0
  %633 = vmatprep.subr.mxu0 0.0
  %634 = vmatpush1.msra.mxu0 0.0
  %635 = vmatprep.subr.mxu0 0.0
  %636 = vmatpush1.msra.mxu0 0.0
  %637 = vmatprep.subr.mxu0 0.0
  %638 = vmatpush1.msra.mxu0 0.0
  %639 = vmatprep.subr.mxu0 0.0
  %640 = vmatpush1.msra.mxu0 0.0
  %641 = vmatprep.subr.mxu0 0.0
  %642 = vmatpush1.msra.mxu0 0.0
  %643 = vmatprep.subr.mxu0 0.0
  %644 = vmatpush1.msra.mxu0 0.0
  %645 = vmatprep.subr.mxu0 0.0
  %646 = vmatpush1.msra.mxu0 0.0
  %647 = vmatprep.subr.mxu0 0.0
  %648 = vmatpush1.msra.mxu0 0.0
  %649 = vmatprep.subr.mxu0 0.0
  %650 = vmatpush1.msra.mxu0 0.0
  %651 = vmatprep.subr.mxu0 0.0
  %652 = vmatpush1.msra.mxu0 0.0
  %653 = vmatprep.subr.mxu0 0.0
  %654 = vmatpush1.msra.mxu0 0.0
  %655 = vmatprep.subr.mxu0 0.0
  %656 = vmatpush1.msra.mxu0 0.0
  %657 = vmatprep.subr.mxu0 0.0
  %658 = vmatpush1.msra.mxu0 0.0
  %659 = vmatprep.subr.mxu0 0.0
  %660 = vmatpush1.msra.mxu0 0.0
  %661 = vmatprep.subr.mxu0 0.0
  %662 = vmatpush1.msra.mxu0 0.0
  %663 = vmatprep.subr.mxu0 0.0
  %664 = vmatpush1.msra.mxu0 0.0
  %665 = vmatprep.subr.mxu0 0.0
  %666 = vmatpush1.msra.mxu0 0.0
  %667 = vmatprep.subr.mxu0 0.0
  %668 = vmatpush1.msra.mxu0 0.0
  %669 = vmatprep.subr.mxu0 0.0
  %670 = vmatpush1.msra.mxu0 0.0
  %671 = vmatprep.subr.mxu0 0.0
  %672 = vmatpush1.msra.mxu0 0.0
  %673 = vmatprep.subr.mxu0 0.0
  %674 = vmatpush1.msra.mxu0 0.0
  %675 = vmatprep.subr.mxu0 0.0
  %676 = vmatpush1.msra.mxu0 0.0
  %677 = vmatprep.subr.mxu0 0.0
  %678 = vmatpush1.msra.mxu0 0.0
  %679 = vmatprep.subr.mxu0 0.0
  %680 = vmatpush1.msra.mxu0 0.0
  %681 = vmatprep.subr.mxu0 0.0
  %682 = vmatpush1.msra.mxu0 0.0
  %683 = vmatprep.subr.mxu0 0.0
  %684 = vmatpush1.msra.mxu0 0.0
  %685 = vmatprep.subr.mxu0 0.0
  %686 = vmatpush1.msra.mxu0 0.0
  %687 = vmatprep.mubr.f32.mxu0 0.0
  %v688 = vand.u32 %v157, 4294901760
  %689 = vmatmul.mubr.f32.gmra.mrb[0].mxu0 %v688
  %v690 = vpop.f32.mrb[0].mxu0
  %v691 = vadd.f32 %v608, %v690
  %v692 = vpop.f32.mrb[0].mxu0
  %v693 = vadd.f32 %v610, %v692
  %694 = vmatprep.mubr.f32.mxu0 0.0
  %v695 = vand.u32 %v160, 4294901760
  %696 = vmatmul.mubr.f32.gmra.mrb[0].mxu0 %v695
  %v697 = vpop.f32.mrb[0].mxu0
  %v698 = vadd.f32 %v615, %v697
  %v699 = vpop.f32.mrb[0].mxu0
  %v700 = vadd.f32 %v617, %v699
  %701 = vdwg.mxu0
  %v702 = vand.u32 %v142, 4294901760
  %703 = vmatprep.subr.mxu0 %v702
  %v704 = vand.u32 %v141, 4294901760
  %705 = vmatpush1.msra.mxu0 %v704
  %v706 = vand.u32 %v146, 4294901760
  %707 = vmatprep.subr.mxu0 %v706
  %v708 = vand.u32 %v145, 4294901760
  %709 = vmatpush1.msra.mxu0 %v708
  %710 = vmatprep.subr.mxu0 0.0
  %711 = vmatpush1.msra.mxu0 0.0
  %712 = vmatprep.subr.mxu0 0.0
  %713 = vmatpush1.msra.mxu0 0.0
  %714 = vmatprep.subr.mxu0 0.0
  %715 = vmatpush1.msra.mxu0 0.0
  %716 = vmatprep.subr.mxu0 0.0
  %717 = vmatpush1.msra.mxu0 0.0
  %718 = vmatprep.subr.mxu0 0.0
  %719 = vmatpush1.msra.mxu0 0.0
  %720 = vmatprep.subr.mxu0 0.0
  %721 = vmatpush1.msra.mxu0 0.0
  %722 = vmatprep.subr.mxu0 0.0
  %723 = vmatpush1.msra.mxu0 0.0
  %724 = vmatprep.subr.mxu0 0.0
  %725 = vmatpush1.msra.mxu0 0.0
  %726 = vmatprep.subr.mxu0 0.0
  %727 = vmatpush1.msra.mxu0 0.0
  %728 = vmatprep.subr.mxu0 0.0
  %729 = vmatpush1.msra.mxu0 0.0
  %730 = vmatprep.subr.mxu0 0.0
  %731 = vmatpush1.msra.mxu0 0.0
  %732 = vmatprep.subr.mxu0 0.0
  %733 = vmatpush1.msra.mxu0 0.0
  %734 = vmatprep.subr.mxu0 0.0
  %735 = vmatpush1.msra.mxu0 0.0
  %736 = vmatprep.subr.mxu0 0.0
  %737 = vmatpush1.msra.mxu0 0.0
  %738 = vmatprep.subr.mxu0 0.0
  %739 = vmatpush1.msra.mxu0 0.0
  %740 = vmatprep.subr.mxu0 0.0
  %741 = vmatpush1.msra.mxu0 0.0
  %742 = vmatprep.subr.mxu0 0.0
  %743 = vmatpush1.msra.mxu0 0.0
  %744 = vmatprep.subr.mxu0 0.0
  %745 = vmatpush1.msra.mxu0 0.0
  %746 = vmatprep.subr.mxu0 0.0
  %747 = vmatpush1.msra.mxu0 0.0
  %748 = vmatprep.subr.mxu0 0.0
  %749 = vmatpush1.msra.mxu0 0.0
  %750 = vmatprep.subr.mxu0 0.0
  %751 = vmatpush1.msra.mxu0 0.0
  %752 = vmatprep.subr.mxu0 0.0
  %753 = vmatpush1.msra.mxu0 0.0
  %754 = vmatprep.subr.mxu0 0.0
  %755 = vmatpush1.msra.mxu0 0.0
  %756 = vmatprep.subr.mxu0 0.0
  %757 = vmatpush1.msra.mxu0 0.0
  %758 = vmatprep.subr.mxu0 0.0
  %759 = vmatpush1.msra.mxu0 0.0
  %760 = vmatprep.subr.mxu0 0.0
  %761 = vmatpush1.msra.mxu0 0.0
  %762 = vmatprep.subr.mxu0 0.0
  %763 = vmatpush1.msra.mxu0 0.0
  %764 = vmatprep.subr.mxu0 0.0
  %765 = vmatpush1.msra.mxu0 0.0
  %766 = vmatprep.subr.mxu0 0.0
  %767 = vmatpush1.msra.mxu0 0.0
  %768 = vmatprep.subr.mxu0 0.0
  %769 = vmatpush1.msra.mxu0 0.0
  %770 = vmatprep.mubr.f32.mxu0 0.0
  %v771 = vand.u32 %v157, 4294901760
  %v772 = vsub.f32 %v157, %v771
  %v773 = vand.u32 %v772, 4294901760
  %v774 = vsub.f32 %v772, %v773
  %v775 = vand.u32 %v774, 4294901760
  %776 = vmatmul.mubr.f32.gmra.mrb[0].mxu0 %v775
  %v777 = vpop.f32.mrb[0].mxu0
  %v778 = vadd.f32 0.0, %v777
  %v779 = vpop.f32.mrb[0].mxu0
  %v780 = vadd.f32 0.0, %v779
  %781 = vmatprep.mubr.f32.mxu0 0.0
  %v782 = vand.u32 %v160, 4294901760
  %v783 = vsub.f32 %v160, %v782
  %v784 = vand.u32 %v783, 4294901760
  %v785 = vsub.f32 %v783, %v784
  %v786 = vand.u32 %v785, 4294901760
  %787 = vmatmul.mubr.f32.gmra.mrb[0].mxu0 %v786
  %v788 = vpop.f32.mrb[0].mxu0
  %v789 = vadd.f32 0.0, %v788
  %v790 = vpop.f32.mrb[0].mxu0
  %v791 = vadd.f32 0.0, %v790
  %792 = vdwg.mxu0
  %v793 = vand.u32 %v142, 4294901760
  %v794 = vsub.f32 %v142, %v793
  %v795 = vand.u32 %v794, 4294901760
  %v796 = vsub.f32 %v794, %v795
  %v797 = vand.u32 %v796, 4294901760
  %798 = vmatprep.subr.mxu0 %v797
  %v799 = vand.u32 %v141, 4294901760
  %v800 = vsub.f32 %v141, %v799
  %v801 = vand.u32 %v800, 4294901760
  %v802 = vsub.f32 %v800, %v801
  %v803 = vand.u32 %v802, 4294901760
  %804 = vmatpush1.msra.mxu0 %v803
  %v805 = vand.u32 %v146, 4294901760
  %v806 = vsub.f32 %v146, %v805
  %v807 = vand.u32 %v806, 4294901760
  %v808 = vsub.f32 %v806, %v807
  %v809 = vand.u32 %v808, 4294901760
  %810 = vmatprep.subr.mxu0 %v809
  %v811 = vand.u32 %v145, 4294901760
  %v812 = vsub.f32 %v145, %v811
  %v813 = vand.u32 %v812, 4294901760
  %v814 = vsub.f32 %v812, %v813
  %v815 = vand.u32 %v814, 4294901760
  %816 = vmatpush1.msra.mxu0 %v815
  %817 = vmatprep.subr.mxu0 0.0
  %818 = vmatpush1.msra.mxu0 0.0
  %819 = vmatprep.subr.mxu0 0.0
  %820 = vmatpush1.msra.mxu0 0.0
  %821 = vmatprep.subr.mxu0 0.0
  %822 = vmatpush1.msra.mxu0 0.0
  %823 = vmatprep.subr.mxu0 0.0
  %824 = vmatpush1.msra.mxu0 0.0
  %825 = vmatprep.subr.mxu0 0.0
  %826 = vmatpush1.msra.mxu0 0.0
  %827 = vmatprep.subr.mxu0 0.0
  %828 = vmatpush1.msra.mxu0 0.0
  %829 = vmatprep.subr.mxu0 0.0
  %830 = vmatpush1.msra.mxu0 0.0
  %831 = vmatprep.subr.mxu0 0.0
  %832 = vmatpush1.msra.mxu0 0.0
  %833 = vmatprep.subr.mxu0 0.0
  %834 = vmatpush1.msra.mxu0 0.0
  %835 = vmatprep.subr.mxu0 0.0
  %836 = vmatpush1.msra.mxu0 0.0
  %837 = vmatprep.subr.mxu0 0.0
  %838 = vmatpush1.msra.mxu0 0.0
  %839 = vmatprep.subr.mxu0 0.0
  %840 = vmatpush1.msra.mxu0 0.0
  %841 = vmatprep.subr.mxu0 0.0
  %842 = vmatpush1.msra.mxu0 0.0
  %843 = vmatprep.subr.mxu0 0.0
  %844 = vmatpush1.msra.mxu0 0.0
  %845 = vmatprep.subr.mxu0 0.0
  %846 = vmatpush1.msra.mxu0 0.0
  %847 = vmatprep.subr.mxu0 0.0
  %848 = vmatpush1.msra.mxu0 0.0
  %849 = vmatprep.subr.mxu0 0.0
  %850 = vmatpush1.msra.mxu0 0.0
  %851 = vmatprep.subr.mxu0 0.0
  %852 = vmatpush1.msra.mxu0 0.0
  %853 = vmatprep.subr.mxu0 0.0
  %854 = vmatpush1.msra.mxu0 0.0
  %855 = vmatprep.subr.mxu0 0.0
  %856 = vmatpush1.msra.mxu0 0.0
  %857 = vmatprep.subr.mxu0 0.0
  %858 = vmatpush1.msra.mxu0 0.0
  %859 = vmatprep.subr.mxu0 0.0
  %860 = vmatpush1.msra.mxu0 0.0
  %861 = vmatprep.subr.mxu0 0.0
  %862 = vmatpush1.msra.mxu0 0.0
  %863 = vmatprep.subr.mxu0 0.0
  %864 = vmatpush1.msra.mxu0 0.0
  %865 = vmatprep.subr.mxu0 0.0
  %866 = vmatpush1.msra.mxu0 0.0
  %867 = vmatprep.subr.mxu0 0.0
  %868 = vmatpush1.msra.mxu0 0.0
  %869 = vmatprep.subr.mxu0 0.0
  %870 = vmatpush1.msra.mxu0 0.0
  %871 = vmatprep.subr.mxu0 0.0
  %872 = vmatpush1.msra.mxu0 0.0
  %873 = vmatprep.subr.mxu0 0.0
  %874 = vmatpush1.msra.mxu0 0.0
  %875 = vmatprep.subr.mxu0 0.0
  %876 = vmatpush1.msra.mxu0 0.0
  %877 = vmatprep.mubr.f32.mxu0 0.0
  %v878 = vand.u32 %v157, 4294901760
  %879 = vmatmul.mubr.f32.gmra.mrb[0].mxu0 %v878
  %v880 = vpop.f32.mrb[0].mxu0
  %v881 = vadd.f32 %v778, %v880
  %v882 = vpop.f32.mrb[0].mxu0
  %v883 = vadd.f32 %v780, %v882
  %884 = vmatprep.mubr.f32.mxu0 0.0
  %v885 = vand.u32 %v160, 4294901760
  %886 = vmatmul.mubr.f32.gmra.mrb[0].mxu0 %v885
  %v887 = vpop.f32.mrb[0].mxu0
  %v888 = vadd.f32 %v789, %v887
  %v889 = vpop.f32.mrb[0].mxu0
  %v890 = vadd.f32 %v791, %v889
  %891 = vdwg.mxu0
  %v892 = vand.u32 %v142, 4294901760
  %v893 = vsub.f32 %v142, %v892
  %894 = vmatprep.subr.mxu0 %v893
  %v895 = vand.u32 %v141, 4294901760
  %v896 = vsub.f32 %v141, %v895
  %897 = vmatpush1.msra.mxu0 %v896
  %v898 = vand.u32 %v146, 4294901760
  %v899 = vsub.f32 %v146, %v898
  %900 = vmatprep.subr.mxu0 %v899
  %v901 = vand.u32 %v145, 4294901760
  %v902 = vsub.f32 %v145, %v901
  %903 = vmatpush1.msra.mxu0 %v902
  %904 = vmatprep.subr.mxu0 0.0
  %905 = vmatpush1.msra.mxu0 0.0
  %906 = vmatprep.subr.mxu0 0.0
  %907 = vmatpush1.msra.mxu0 0.0
  %908 = vmatprep.subr.mxu0 0.0
  %909 = vmatpush1.msra.mxu0 0.0
  %910 = vmatprep.subr.mxu0 0.0
  %911 = vmatpush1.msra.mxu0 0.0
  %912 = vmatprep.subr.mxu0 0.0
  %913 = vmatpush1.msra.mxu0 0.0
  %914 = vmatprep.subr.mxu0 0.0
  %915 = vmatpush1.msra.mxu0 0.0
  %916 = vmatprep.subr.mxu0 0.0
  %917 = vmatpush1.msra.mxu0 0.0
  %918 = vmatprep.subr.mxu0 0.0
  %919 = vmatpush1.msra.mxu0 0.0
  %920 = vmatprep.subr.mxu0 0.0
  %921 = vmatpush1.msra.mxu0 0.0
  %922 = vmatprep.subr.mxu0 0.0
  %923 = vmatpush1.msra.mxu0 0.0
  %924 = vmatprep.subr.mxu0 0.0
  %925 = vmatpush1.msra.mxu0 0.0
  %926 = vmatprep.subr.mxu0 0.0
  %927 = vmatpush1.msra.mxu0 0.0
  %928 = vmatprep.subr.mxu0 0.0
  %929 = vmatpush1.msra.mxu0 0.0
  %930 = vmatprep.subr.mxu0 0.0
  %931 = vmatpush1.msra.mxu0 0.0
  %932 = vmatprep.subr.mxu0 0.0
  %933 = vmatpush1.msra.mxu0 0.0
  %934 = vmatprep.subr.mxu0 0.0
  %935 = vmatpush1.msra.mxu0 0.0
  %936 = vmatprep.subr.mxu0 0.0
  %937 = vmatpush1.msra.mxu0 0.0
  %938 = vmatprep.subr.mxu0 0.0
  %939 = vmatpush1.msra.mxu0 0.0
  %940 = vmatprep.subr.mxu0 0.0
  %941 = vmatpush1.msra.mxu0 0.0
  %942 = vmatprep.subr.mxu0 0.0
  %943 = vmatpush1.msra.mxu0 0.0
  %944 = vmatprep.subr.mxu0 0.0
  %945 = vmatpush1.msra.mxu0 0.0
  %946 = vmatprep.subr.mxu0 0.0
  %947 = vmatpush1.msra.mxu0 0.0
  %948 = vmatprep.subr.mxu0 0.0
  %949 = vmatpush1.msra.mxu0 0.0
  %950 = vmatprep.subr.mxu0 0.0
  %951 = vmatpush1.msra.mxu0 0.0
  %952 = vmatprep.subr.mxu0 0.0
  %953 = vmatpush1.msra.mxu0 0.0
  %954 = vmatprep.subr.mxu0 0.0
  %955 = vmatpush1.msra.mxu0 0.0
  %956 = vmatprep.subr.mxu0 0.0
  %957 = vmatpush1.msra.mxu0 0.0
  %958 = vmatprep.subr.mxu0 0.0
  %959 = vmatpush1.msra.mxu0 0.0
  %960 = vmatprep.subr.mxu0 0.0
  %961 = vmatpush1.msra.mxu0 0.0
  %962 = vmatprep.subr.mxu0 0.0
  %963 = vmatpush1.msra.mxu0 0.0
  %964 = vmatprep.mubr.f32.mxu0 0.0
  %v965 = vand.u32 %v157, 4294901760
  %v966 = vsub.f32 %v157, %v965
  %967 = vmatmul.mubr.f32.gmra.mrb[0].mxu0 %v966
  %v968 = vpop.f32.mrb[0].mxu0
  %v969 = vadd.f32 %v881, %v968
  %v970 = vpop.f32.mrb[0].mxu0
  %v971 = vadd.f32 %v883, %v970
  %972 = vmatprep.mubr.f32.mxu0 0.0
  %v973 = vand.u32 %v160, 4294901760
  %v974 = vsub.f32 %v160, %v973
  %975 = vmatmul.mubr.f32.gmra.mrb[0].mxu0 %v974
  %v976 = vpop.f32.mrb[0].mxu0
  %v977 = vadd.f32 %v888, %v976
  %v978 = vpop.f32.mrb[0].mxu0
  %v979 = vadd.f32 %v890, %v978
  %980 = vdwg.mxu0
  %v981 = vand.u32 %v142, 4294901760
  %982 = vmatprep.subr.mxu0 %v981
  %v983 = vand.u32 %v141, 4294901760
  %984 = vmatpush1.msra.mxu0 %v983
  %v985 = vand.u32 %v146, 4294901760
  %986 = vmatprep.subr.mxu0 %v985
  %v987 = vand.u32 %v145, 4294901760
  %988 = vmatpush1.msra.mxu0 %v987
  %989 = vmatprep.subr.mxu0 0.0
  %990 = vmatpush1.msra.mxu0 0.0
  %991 = vmatprep.subr.mxu0 0.0
  %992 = vmatpush1.msra.mxu0 0.0
  %993 = vmatprep.subr.mxu0 0.0
  %994 = vmatpush1.msra.mxu0 0.0
  %995 = vmatprep.subr.mxu0 0.0
  %996 = vmatpush1.msra.mxu0 0.0
  %997 = vmatprep.subr.mxu0 0.0
  %998 = vmatpush1.msra.mxu0 0.0
  %999 = vmatprep.subr.mxu0 0.0
  %1000 = vmatpush1.msra.mxu0 0.0
  %1001 = vmatprep.subr.mxu0 0.0
  %1002 = vmatpush1.msra.mxu0 0.0
  %1003 = vmatprep.subr.mxu0 0.0
  %1004 = vmatpush1.msra.mxu0 0.0
  %1005 = vmatprep.subr.mxu0 0.0
  %1006 = vmatpush1.msra.mxu0 0.0
  %1007 = vmatprep.subr.mxu0 0.0
  %1008 = vmatpush1.msra.mxu0 0.0
  %1009 = vmatprep.subr.mxu0 0.0
  %1010 = vmatpush1.msra.mxu0 0.0
  %1011 = vmatprep.subr.mxu0 0.0
  %1012 = vmatpush1.msra.mxu0 0.0
  %1013 = vmatprep.subr.mxu0 0.0
  %1014 = vmatpush1.msra.mxu0 0.0
  %1015 = vmatprep.subr.mxu0 0.0
  %1016 = vmatpush1.msra.mxu0 0.0
  %1017 = vmatprep.subr.mxu0 0.0
  %1018 = vmatpush1.msra.mxu0 0.0
  %1019 = vmatprep.subr.mxu0 0.0
  %1020 = vmatpush1.msra.mxu0 0.0
  %1021 = vmatprep.subr.mxu0 0.0
  %1022 = vmatpush1.msra.mxu0 0.0
  %1023 = vmatprep.subr.mxu0 0.0
  %1024 = vmatpush1.msra.mxu0 0.0
  %1025 = vmatprep.subr.mxu0 0.0
  %1026 = vmatpush1.msra.mxu0 0.0
  %1027 = vmatprep.subr.mxu0 0.0
  %1028 = vmatpush1.msra.mxu0 0.0
  %1029 = vmatprep.subr.mxu0 0.0
  %1030 = vmatpush1.msra.mxu0 0.0
  %1031 = vmatprep.subr.mxu0 0.0
  %1032 = vmatpush1.msra.mxu0 0.0
  %1033 = vmatprep.subr.mxu0 0.0
  %1034 = vmatpush1.msra.mxu0 0.0
  %1035 = vmatprep.subr.mxu0 0.0
  %1036 = vmatpush1.msra.mxu0 0.0
  %1037 = vmatprep.subr.mxu0 0.0
  %1038 = vmatpush1.msra.mxu0 0.0
  %1039 = vmatprep.subr.mxu0 0.0
  %1040 = vmatpush1.msra.mxu0 0.0
  %1041 = vmatprep.subr.mxu0 0.0
  %1042 = vmatpush1.msra.mxu0 0.0
  %1043 = vmatprep.subr.mxu0 0.0
  %1044 = vmatpush1.msra.mxu0 0.0
  %1045 = vmatprep.subr.mxu0 0.0
  %1046 = vmatpush1.msra.mxu0 0.0
  %1047 = vmatprep.subr.mxu0 0.0
  %1048 = vmatpush1.msra.mxu0 0.0
  %1049 = vmatprep.mubr.f32.mxu0 0.0
  %v1050 = vand.u32 %v157, 4294901760
  %v1051 = vsub.f32 %v157, %v1050
  %v1052 = vand.u32 %v1051, 4294901760
  %1053 = vmatmul.mubr.f32.gmra.mrb[0].mxu0 %v1052
  %v1054 = vpop.f32.mrb[0].mxu0
  %v1055 = vadd.f32 %v969, %v1054
  %v1056 = vpop.f32.mrb[0].mxu0
  %v1057 = vadd.f32 %v971, %v1056
  %1058 = vmatprep.mubr.f32.mxu0 0.0
  %v1059 = vand.u32 %v160, 4294901760
  %v1060 = vsub.f32 %v160, %v1059
  %v1061 = vand.u32 %v1060, 4294901760
  %1062 = vmatmul.mubr.f32.gmra.mrb[0].mxu0 %v1061
  %v1063 = vpop.f32.mrb[0].mxu0
  %v1064 = vadd.f32 %v977, %v1063
  %v1065 = vpop.f32.mrb[0].mxu0
  %v1066 = vadd.f32 %v979, %v1065
  %1067 = vdwg.mxu0
  %v1068 = vand.u32 %v142, 4294901760
  %v1069 = vsub.f32 %v142, %v1068
  %v1070 = vand.u32 %v1069, 4294901760
  %1071 = vmatprep.subr.mxu0 %v1070
  %v1072 = vand.u32 %v141, 4294901760
  %v1073 = vsub.f32 %v141, %v1072
  %v1074 = vand.u32 %v1073, 4294901760
  %1075 = vmatpush1.msra.mxu0 %v1074
  %v1076 = vand.u32 %v146, 4294901760
  %v1077 = vsub.f32 %v146, %v1076
  %v1078 = vand.u32 %v1077, 4294901760
  %1079 = vmatprep.subr.mxu0 %v1078
  %v1080 = vand.u32 %v145, 4294901760
  %v1081 = vsub.f32 %v145, %v1080
  %v1082 = vand.u32 %v1081, 4294901760
  %1083 = vmatpush1.msra.mxu0 %v1082
  %1084 = vmatprep.subr.mxu0 0.0
  %1085 = vmatpush1.msra.mxu0 0.0
  %1086 = vmatprep.subr.mxu0 0.0
  %1087 = vmatpush1.msra.mxu0 0.0
  %1088 = vmatprep.subr.mxu0 0.0
  %1089 = vmatpush1.msra.mxu0 0.0
  %1090 = vmatprep.subr.mxu0 0.0
  %1091 = vmatpush1.msra.mxu0 0.0
  %1092 = vmatprep.subr.mxu0 0.0
  %1093 = vmatpush1.msra.mxu0 0.0
  %1094 = vmatprep.subr.mxu0 0.0
  %1095 = vmatpush1.msra.mxu0 0.0
  %1096 = vmatprep.subr.mxu0 0.0
  %1097 = vmatpush1.msra.mxu0 0.0
  %1098 = vmatprep.subr.mxu0 0.0
  %1099 = vmatpush1.msra.mxu0 0.0
  %1100 = vmatprep.subr.mxu0 0.0
  %1101 = vmatpush1.msra.mxu0 0.0
  %1102 = vmatprep.subr.mxu0 0.0
  %1103 = vmatpush1.msra.mxu0 0.0
  %1104 = vmatprep.subr.mxu0 0.0
  %1105 = vmatpush1.msra.mxu0 0.0
  %1106 = vmatprep.subr.mxu0 0.0
  %1107 = vmatpush1.msra.mxu0 0.0
  %1108 = vmatprep.subr.mxu0 0.0
  %1109 = vmatpush1.msra.mxu0 0.0
  %1110 = vmatprep.subr.mxu0 0.0
  %1111 = vmatpush1.msra.mxu0 0.0
  %1112 = vmatprep.subr.mxu0 0.0
  %1113 = vmatpush1.msra.mxu0 0.0
  %1114 = vmatprep.subr.mxu0 0.0
  %1115 = vmatpush1.msra.mxu0 0.0
  %1116 = vmatprep.subr.mxu0 0.0
  %1117 = vmatpush1.msra.mxu0 0.0
  %1118 = vmatprep.subr.mxu0 0.0
  %1119 = vmatpush1.msra.mxu0 0.0
  %1120 = vmatprep.subr.mxu0 0.0
  %1121 = vmatpush1.msra.mxu0 0.0
  %1122 = vmatprep.subr.mxu0 0.0
  %1123 = vmatpush1.msra.mxu0 0.0
  %1124 = vmatprep.subr.mxu0 0.0
  %1125 = vmatpush1.msra.mxu0 0.0
  %1126 = vmatprep.subr.mxu0 0.0
  %1127 = vmatpush1.msra.mxu0 0.0
  %1128 = vmatprep.subr.mxu0 0.0
  %1129 = vmatpush1.msra.mxu0 0.0
  %1130 = vmatprep.subr.mxu0 0.0
  %1131 = vmatpush1.msra.mxu0 0.0
  %1132 = vmatprep.subr.mxu0 0.0
  %1133 = vmatpush1.msra.mxu0 0.0
  %1134 = vmatprep.subr.mxu0 0.0
  %1135 = vmatpush1.msra.mxu0 0.0
  %1136 = vmatprep.subr.mxu0 0.0
  %1137 = vmatpush1.msra.mxu0 0.0
  %1138 = vmatprep.subr.mxu0 0.0
  %1139 = vmatpush1.msra.mxu0 0.0
  %1140 = vmatprep.subr.mxu0 0.0
  %1141 = vmatpush1.msra.mxu0 0.0
  %1142 = vmatprep.subr.mxu0 0.0
  %1143 = vmatpush1.msra.mxu0 0.0
  %1144 = vmatprep.mubr.f32.mxu0 0.0
  %v1145 = vand.u32 %v157, 4294901760
  %1146 = vmatmul.mubr.f32.gmra.mrb[0].mxu0 %v1145
  %v1147 = vpop.f32.mrb[0].mxu0
  %v1148 = vadd.f32 %v1055, %v1147
  %v1149 = vpop.f32.mrb[0].mxu0
  %v1150 = vadd.f32 %v1057, %v1149
  %1151 = vmatprep.mubr.f32.mxu0 0.0
  %v1152 = vand.u32 %v160, 4294901760
  %1153 = vmatmul.mubr.f32.gmra.mrb[0].mxu0 %v1152
  %v1154 = vpop.f32.mrb[0].mxu0
  %v1155 = vadd.f32 %v1064, %v1154
  %v1156 = vpop.f32.mrb[0].mxu0
  %v1157 = vadd.f32 %v1066, %v1156
  %1158 = vdwg.mxu0
  %v1159 = vand.u32 %v142, 4294901760
  %1160 = vmatprep.subr.mxu0 %v1159
  %v1161 = vand.u32 %v141, 4294901760
  %1162 = vmatpush1.msra.mxu0 %v1161
  %v1163 = vand.u32 %v146, 4294901760
  %1164 = vmatprep.subr.mxu0 %v1163
  %v1165 = vand.u32 %v145, 4294901760
  %1166 = vmatpush1.msra.mxu0 %v1165
  %1167 = vmatprep.subr.mxu0 0.0
  %1168 = vmatpush1.msra.mxu0 0.0
  %1169 = vmatprep.subr.mxu0 0.0
  %1170 = vmatpush1.msra.mxu0 0.0
  %1171 = vmatprep.subr.mxu0 0.0
  %1172 = vmatpush1.msra.mxu0 0.0
  %1173 = vmatprep.subr.mxu0 0.0
  %1174 = vmatpush1.msra.mxu0 0.0
  %1175 = vmatprep.subr.mxu0 0.0
  %1176 = vmatpush1.msra.mxu0 0.0
  %1177 = vmatprep.subr.mxu0 0.0
  %1178 = vmatpush1.msra.mxu0 0.0
  %1179 = vmatprep.subr.mxu0 0.0
  %1180 = vmatpush1.msra.mxu0 0.0
  %1181 = vmatprep.subr.mxu0 0.0
  %1182 = vmatpush1.msra.mxu0 0.0
  %1183 = vmatprep.subr.mxu0 0.0
  %1184 = vmatpush1.msra.mxu0 0.0
  %1185 = vmatprep.subr.mxu0 0.0
  %1186 = vmatpush1.msra.mxu0 0.0
  %1187 = vmatprep.subr.mxu0 0.0
  %1188 = vmatpush1.msra.mxu0 0.0
  %1189 = vmatprep.subr.mxu0 0.0
  %1190 = vmatpush1.msra.mxu0 0.0
  %1191 = vmatprep.subr.mxu0 0.0
  %1192 = vmatpush1.msra.mxu0 0.0
  %1193 = vmatprep.subr.mxu0 0.0
  %1194 = vmatpush1.msra.mxu0 0.0
  %1195 = vmatprep.subr.mxu0 0.0
  %1196 = vmatpush1.msra.mxu0 0.0
  %1197 = vmatprep.subr.mxu0 0.0
  %1198 = vmatpush1.msra.mxu0 0.0
  %1199 = vmatprep.subr.mxu0 0.0
  %1200 = vmatpush1.msra.mxu0 0.0
  %1201 = vmatprep.subr.mxu0 0.0
  %1202 = vmatpush1.msra.mxu0 0.0
  %1203 = vmatprep.subr.mxu0 0.0
  %1204 = vmatpush1.msra.mxu0 0.0
  %1205 = vmatprep.subr.mxu0 0.0
  %1206 = vmatpush1.msra.mxu0 0.0
  %1207 = vmatprep.subr.mxu0 0.0
  %1208 = vmatpush1.msra.mxu0 0.0
  %1209 = vmatprep.subr.mxu0 0.0
  %1210 = vmatpush1.msra.mxu0 0.0
  %1211 = vmatprep.subr.mxu0 0.0
  %1212 = vmatpush1.msra.mxu0 0.0
  %1213 = vmatprep.subr.mxu0 0.0
  %1214 = vmatpush1.msra.mxu0 0.0
  %1215 = vmatprep.subr.mxu0 0.0
  %1216 = vmatpush1.msra.mxu0 0.0
  %1217 = vmatprep.subr.mxu0 0.0
  %1218 = vmatpush1.msra.mxu0 0.0
  %1219 = vmatprep.subr.mxu0 0.0
  %1220 = vmatpush1.msra.mxu0 0.0
  %1221 = vmatprep.subr.mxu0 0.0
  %1222 = vmatpush1.msra.mxu0 0.0
  %1223 = vmatprep.subr.mxu0 0.0
  %1224 = vmatpush1.msra.mxu0 0.0
  %1225 = vmatprep.subr.mxu0 0.0
  %1226 = vmatpush1.msra.mxu0 0.0
  %1227 = vmatprep.mubr.f32.mxu0 0.0
  %v1228 = vand.u32 %v157, 4294901760
  %1229 = vmatmul.mubr.f32.gmra.mrb[0].mxu0 %v1228
  %v1230 = vpop.f32.mrb[0].mxu0
  %v1231 = vadd.f32 %v1148, %v1230
  %v1232 = vpop.f32.mrb[0].mxu0
  %v1233 = vadd.f32 %v1150, %v1232
  %1234 = vmatprep.mubr.f32.mxu0 0.0
  %v1235 = vand.u32 %v160, 4294901760
  %1236 = vmatmul.mubr.f32.gmra.mrb[0].mxu0 %v1235
  %v1237 = vpop.f32.mrb[0].mxu0
  %v1238 = vadd.f32 %v1155, %v1237
  %v1239 = vpop.f32.mrb[0].mxu0
  %v1240 = vadd.f32 %v1157, %v1239
  %1241 = vdwg.mxu0
  %v1243 = vsel %vm155, %v55, 0
  %v1246 = vsel %vm155, %v56, 0
  %v1248 = vand.u32 %v48, 4294901760
  %1249 = vmatprep.subr.mxu0 %v1248
  %v1250 = vand.u32 %v47, 4294901760
  %1251 = vmatpush1.msra.mxu0 %v1250
  %v1252 = vand.u32 %v52, 4294901760
  %1253 = vmatprep.subr.mxu0 %v1252
  %v1254 = vand.u32 %v51, 4294901760
  %1255 = vmatpush1.msra.mxu0 %v1254
  %1256 = vmatprep.subr.mxu0 0.0
  %1257 = vmatpush1.msra.mxu0 0.0
  %1258 = vmatprep.subr.mxu0 0.0
  %1259 = vmatpush1.msra.mxu0 0.0
  %1260 = vmatprep.subr.mxu0 0.0
  %1261 = vmatpush1.msra.mxu0 0.0
  %1262 = vmatprep.subr.mxu0 0.0
  %1263 = vmatpush1.msra.mxu0 0.0
  %1264 = vmatprep.subr.mxu0 0.0
  %1265 = vmatpush1.msra.mxu0 0.0
  %1266 = vmatprep.subr.mxu0 0.0
  %1267 = vmatpush1.msra.mxu0 0.0
  %1268 = vmatprep.subr.mxu0 0.0
  %1269 = vmatpush1.msra.mxu0 0.0
  %1270 = vmatprep.subr.mxu0 0.0
  %1271 = vmatpush1.msra.mxu0 0.0
  %1272 = vmatprep.subr.mxu0 0.0
  %1273 = vmatpush1.msra.mxu0 0.0
  %1274 = vmatprep.subr.mxu0 0.0
  %1275 = vmatpush1.msra.mxu0 0.0
  %1276 = vmatprep.subr.mxu0 0.0
  %1277 = vmatpush1.msra.mxu0 0.0
  %1278 = vmatprep.subr.mxu0 0.0
  %1279 = vmatpush1.msra.mxu0 0.0
  %1280 = vmatprep.subr.mxu0 0.0
  %1281 = vmatpush1.msra.mxu0 0.0
  %1282 = vmatprep.subr.mxu0 0.0
  %1283 = vmatpush1.msra.mxu0 0.0
  %1284 = vmatprep.subr.mxu0 0.0
  %1285 = vmatpush1.msra.mxu0 0.0
  %1286 = vmatprep.subr.mxu0 0.0
  %1287 = vmatpush1.msra.mxu0 0.0
  %1288 = vmatprep.subr.mxu0 0.0
  %1289 = vmatpush1.msra.mxu0 0.0
  %1290 = vmatprep.subr.mxu0 0.0
  %1291 = vmatpush1.msra.mxu0 0.0
  %1292 = vmatprep.subr.mxu0 0.0
  %1293 = vmatpush1.msra.mxu0 0.0
  %1294 = vmatprep.subr.mxu0 0.0
  %1295 = vmatpush1.msra.mxu0 0.0
  %1296 = vmatprep.subr.mxu0 0.0
  %1297 = vmatpush1.msra.mxu0 0.0
  %1298 = vmatprep.subr.mxu0 0.0
  %1299 = vmatpush1.msra.mxu0 0.0
  %1300 = vmatprep.subr.mxu0 0.0
  %1301 = vmatpush1.msra.mxu0 0.0
  %1302 = vmatprep.subr.mxu0 0.0
  %1303 = vmatpush1.msra.mxu0 0.0
  %1304 = vmatprep.subr.mxu0 0.0
  %1305 = vmatpush1.msra.mxu0 0.0
  %1306 = vmatprep.subr.mxu0 0.0
  %1307 = vmatpush1.msra.mxu0 0.0
  %1308 = vmatprep.subr.mxu0 0.0
  %1309 = vmatpush1.msra.mxu0 0.0
  %1310 = vmatprep.subr.mxu0 0.0
  %1311 = vmatpush1.msra.mxu0 0.0
  %1312 = vmatprep.subr.mxu0 0.0
  %1313 = vmatpush1.msra.mxu0 0.0
  %1314 = vmatprep.subr.mxu0 0.0
  %1315 = vmatpush1.msra.mxu0 0.0
  %1316 = vmatprep.mubr.f32.mxu0 0.0
  %v1317 = vand.u32 %v1243, 4294901760
  %v1318 = vsub.f32 %v1243, %v1317
  %v1319 = vand.u32 %v1318, 4294901760
  %v1320 = vsub.f32 %v1318, %v1319
  %v1321 = vand.u32 %v1320, 4294901760
  %1322 = vmatmul.mubr.f32.gmra.mrb[0].mxu0 %v1321
  %v1323 = vpop.f32.mrb[0].mxu0
  %v1324 = vadd.f32 %v691, %v1323
  %v1325 = vpop.f32.mrb[0].mxu0
  %v1326 = vadd.f32 %v693, %v1325
  %1327 = vmatprep.mubr.f32.mxu0 0.0
  %v1328 = vand.u32 %v1246, 4294901760
  %v1329 = vsub.f32 %v1246, %v1328
  %v1330 = vand.u32 %v1329, 4294901760
  %v1331 = vsub.f32 %v1329, %v1330
  %v1332 = vand.u32 %v1331, 4294901760
  %1333 = vmatmul.mubr.f32.gmra.mrb[0].mxu0 %v1332
  %v1334 = vpop.f32.mrb[0].mxu0
  %v1335 = vadd.f32 %v698, %v1334
  %v1336 = vpop.f32.mrb[0].mxu0
  %v1337 = vadd.f32 %v700, %v1336
  %1338 = vdwg.mxu0
  %v1339 = vand.u32 %v48, 4294901760
  %v1340 = vsub.f32 %v48, %v1339
  %v1341 = vand.u32 %v1340, 4294901760
  %v1342 = vsub.f32 %v1340, %v1341
  %v1343 = vand.u32 %v1342, 4294901760
  %1344 = vmatprep.subr.mxu0 %v1343
  %v1345 = vand.u32 %v47, 4294901760
  %v1346 = vsub.f32 %v47, %v1345
  %v1347 = vand.u32 %v1346, 4294901760
  %v1348 = vsub.f32 %v1346, %v1347
  %v1349 = vand.u32 %v1348, 4294901760
  %1350 = vmatpush1.msra.mxu0 %v1349
  %v1351 = vand.u32 %v52, 4294901760
  %v1352 = vsub.f32 %v52, %v1351
  %v1353 = vand.u32 %v1352, 4294901760
  %v1354 = vsub.f32 %v1352, %v1353
  %v1355 = vand.u32 %v1354, 4294901760
  %1356 = vmatprep.subr.mxu0 %v1355
  %v1357 = vand.u32 %v51, 4294901760
  %v1358 = vsub.f32 %v51, %v1357
  %v1359 = vand.u32 %v1358, 4294901760
  %v1360 = vsub.f32 %v1358, %v1359
  %v1361 = vand.u32 %v1360, 4294901760
  %1362 = vmatpush1.msra.mxu0 %v1361
  %1363 = vmatprep.subr.mxu0 0.0
  %1364 = vmatpush1.msra.mxu0 0.0
  %1365 = vmatprep.subr.mxu0 0.0
  %1366 = vmatpush1.msra.mxu0 0.0
  %1367 = vmatprep.subr.mxu0 0.0
  %1368 = vmatpush1.msra.mxu0 0.0
  %1369 = vmatprep.subr.mxu0 0.0
  %1370 = vmatpush1.msra.mxu0 0.0
  %1371 = vmatprep.subr.mxu0 0.0
  %1372 = vmatpush1.msra.mxu0 0.0
  %1373 = vmatprep.subr.mxu0 0.0
  %1374 = vmatpush1.msra.mxu0 0.0
  %1375 = vmatprep.subr.mxu0 0.0
  %1376 = vmatpush1.msra.mxu0 0.0
  %1377 = vmatprep.subr.mxu0 0.0
  %1378 = vmatpush1.msra.mxu0 0.0
  %1379 = vmatprep.subr.mxu0 0.0
  %1380 = vmatpush1.msra.mxu0 0.0
  %1381 = vmatprep.subr.mxu0 0.0
  %1382 = vmatpush1.msra.mxu0 0.0
  %1383 = vmatprep.subr.mxu0 0.0
  %1384 = vmatpush1.msra.mxu0 0.0
  %1385 = vmatprep.subr.mxu0 0.0
  %1386 = vmatpush1.msra.mxu0 0.0
  %1387 = vmatprep.subr.mxu0 0.0
  %1388 = vmatpush1.msra.mxu0 0.0
  %1389 = vmatprep.subr.mxu0 0.0
  %1390 = vmatpush1.msra.mxu0 0.0
  %1391 = vmatprep.subr.mxu0 0.0
  %1392 = vmatpush1.msra.mxu0 0.0
  %1393 = vmatprep.subr.mxu0 0.0
  %1394 = vmatpush1.msra.mxu0 0.0
  %1395 = vmatprep.subr.mxu0 0.0
  %1396 = vmatpush1.msra.mxu0 0.0
  %1397 = vmatprep.subr.mxu0 0.0
  %1398 = vmatpush1.msra.mxu0 0.0
  %1399 = vmatprep.subr.mxu0 0.0
  %1400 = vmatpush1.msra.mxu0 0.0
  %1401 = vmatprep.subr.mxu0 0.0
  %1402 = vmatpush1.msra.mxu0 0.0
  %1403 = vmatprep.subr.mxu0 0.0
  %1404 = vmatpush1.msra.mxu0 0.0
  %1405 = vmatprep.subr.mxu0 0.0
  %1406 = vmatpush1.msra.mxu0 0.0
  %1407 = vmatprep.subr.mxu0 0.0
  %1408 = vmatpush1.msra.mxu0 0.0
  %1409 = vmatprep.subr.mxu0 0.0
  %1410 = vmatpush1.msra.mxu0 0.0
  %1411 = vmatprep.subr.mxu0 0.0
  %1412 = vmatpush1.msra.mxu0 0.0
  %1413 = vmatprep.subr.mxu0 0.0
  %1414 = vmatpush1.msra.mxu0 0.0
  %1415 = vmatprep.subr.mxu0 0.0
  %1416 = vmatpush1.msra.mxu0 0.0
  %1417 = vmatprep.subr.mxu0 0.0
  %1418 = vmatpush1.msra.mxu0 0.0
  %1419 = vmatprep.subr.mxu0 0.0
  %1420 = vmatpush1.msra.mxu0 0.0
  %1421 = vmatprep.subr.mxu0 0.0
  %1422 = vmatpush1.msra.mxu0 0.0
  %1423 = vmatprep.mubr.f32.mxu0 0.0
  %v1424 = vand.u32 %v1243, 4294901760
  %1425 = vmatmul.mubr.f32.gmra.mrb[0].mxu0 %v1424
  %v1426 = vpop.f32.mrb[0].mxu0
  %v1427 = vadd.f32 %v1324, %v1426
  %v1428 = vpop.f32.mrb[0].mxu0
  %v1429 = vadd.f32 %v1326, %v1428
  %1430 = vmatprep.mubr.f32.mxu0 0.0
  %v1431 = vand.u32 %v1246, 4294901760
  %1432 = vmatmul.mubr.f32.gmra.mrb[0].mxu0 %v1431
  %v1433 = vpop.f32.mrb[0].mxu0
  %v1434 = vadd.f32 %v1335, %v1433
  %v1435 = vpop.f32.mrb[0].mxu0
  %v1436 = vadd.f32 %v1337, %v1435
  %1437 = vdwg.mxu0
  %v1438 = vand.u32 %v48, 4294901760
  %v1439 = vsub.f32 %v48, %v1438
  %1440 = vmatprep.subr.mxu0 %v1439
  %v1441 = vand.u32 %v47, 4294901760
  %v1442 = vsub.f32 %v47, %v1441
  %1443 = vmatpush1.msra.mxu0 %v1442
  %v1444 = vand.u32 %v52, 4294901760
  %v1445 = vsub.f32 %v52, %v1444
  %1446 = vmatprep.subr.mxu0 %v1445
  %v1447 = vand.u32 %v51, 4294901760
  %v1448 = vsub.f32 %v51, %v1447
  %1449 = vmatpush1.msra.mxu0 %v1448
  %1450 = vmatprep.subr.mxu0 0.0
  %1451 = vmatpush1.msra.mxu0 0.0
  %1452 = vmatprep.subr.mxu0 0.0
  %1453 = vmatpush1.msra.mxu0 0.0
  %1454 = vmatprep.subr.mxu0 0.0
  %1455 = vmatpush1.msra.mxu0 0.0
  %1456 = vmatprep.subr.mxu0 0.0
  %1457 = vmatpush1.msra.mxu0 0.0
  %1458 = vmatprep.subr.mxu0 0.0
  %1459 = vmatpush1.msra.mxu0 0.0
  %1460 = vmatprep.subr.mxu0 0.0
  %1461 = vmatpush1.msra.mxu0 0.0
  %1462 = vmatprep.subr.mxu0 0.0
  %1463 = vmatpush1.msra.mxu0 0.0
  %1464 = vmatprep.subr.mxu0 0.0
  %1465 = vmatpush1.msra.mxu0 0.0
  %1466 = vmatprep.subr.mxu0 0.0
  %1467 = vmatpush1.msra.mxu0 0.0
  %1468 = vmatprep.subr.mxu0 0.0
  %1469 = vmatpush1.msra.mxu0 0.0
  %1470 = vmatprep.subr.mxu0 0.0
  %1471 = vmatpush1.msra.mxu0 0.0
  %1472 = vmatprep.subr.mxu0 0.0
  %1473 = vmatpush1.msra.mxu0 0.0
  %1474 = vmatprep.subr.mxu0 0.0
  %1475 = vmatpush1.msra.mxu0 0.0
  %1476 = vmatprep.subr.mxu0 0.0
  %1477 = vmatpush1.msra.mxu0 0.0
  %1478 = vmatprep.subr.mxu0 0.0
  %1479 = vmatpush1.msra.mxu0 0.0
  %1480 = vmatprep.subr.mxu0 0.0
  %1481 = vmatpush1.msra.mxu0 0.0
  %1482 = vmatprep.subr.mxu0 0.0
  %1483 = vmatpush1.msra.mxu0 0.0
  %1484 = vmatprep.subr.mxu0 0.0
  %1485 = vmatpush1.msra.mxu0 0.0
  %1486 = vmatprep.subr.mxu0 0.0
  %1487 = vmatpush1.msra.mxu0 0.0
  %1488 = vmatprep.subr.mxu0 0.0
  %1489 = vmatpush1.msra.mxu0 0.0
  %1490 = vmatprep.subr.mxu0 0.0
  %1491 = vmatpush1.msra.mxu0 0.0
  %1492 = vmatprep.subr.mxu0 0.0
  %1493 = vmatpush1.msra.mxu0 0.0
  %1494 = vmatprep.subr.mxu0 0.0
  %1495 = vmatpush1.msra.mxu0 0.0
  %1496 = vmatprep.subr.mxu0 0.0
  %1497 = vmatpush1.msra.mxu0 0.0
  %1498 = vmatprep.subr.mxu0 0.0
  %1499 = vmatpush1.msra.mxu0 0.0
  %1500 = vmatprep.subr.mxu0 0.0
  %1501 = vmatpush1.msra.mxu0 0.0
  %1502 = vmatprep.subr.mxu0 0.0
  %1503 = vmatpush1.msra.mxu0 0.0
  %1504 = vmatprep.subr.mxu0 0.0
  %1505 = vmatpush1.msra.mxu0 0.0
  %1506 = vmatprep.subr.mxu0 0.0
  %1507 = vmatpush1.msra.mxu0 0.0
  %1508 = vmatprep.subr.mxu0 0.0
  %1509 = vmatpush1.msra.mxu0 0.0
  %1510 = vmatprep.mubr.f32.mxu0 0.0
  %v1511 = vand.u32 %v1243, 4294901760
  %v1512 = vsub.f32 %v1243, %v1511
  %1513 = vmatmul.mubr.f32.gmra.mrb[0].mxu0 %v1512
  %v1514 = vpop.f32.mrb[0].mxu0
  %v1515 = vadd.f32 %v1427, %v1514
  %v1516 = vpop.f32.mrb[0].mxu0
  %v1517 = vadd.f32 %v1429, %v1516
  %1518 = vmatprep.mubr.f32.mxu0 0.0
  %v1519 = vand.u32 %v1246, 4294901760
  %v1520 = vsub.f32 %v1246, %v1519
  %1521 = vmatmul.mubr.f32.gmra.mrb[0].mxu0 %v1520
  %v1522 = vpop.f32.mrb[0].mxu0
  %v1523 = vadd.f32 %v1434, %v1522
  %v1524 = vpop.f32.mrb[0].mxu0
  %v1525 = vadd.f32 %v1436, %v1524
  %1526 = vdwg.mxu0
  %v1527 = vand.u32 %v48, 4294901760
  %1528 = vmatprep.subr.mxu0 %v1527
  %v1529 = vand.u32 %v47, 4294901760
  %1530 = vmatpush1.msra.mxu0 %v1529
  %v1531 = vand.u32 %v52, 4294901760
  %1532 = vmatprep.subr.mxu0 %v1531
  %v1533 = vand.u32 %v51, 4294901760
  %1534 = vmatpush1.msra.mxu0 %v1533
  %1535 = vmatprep.subr.mxu0 0.0
  %1536 = vmatpush1.msra.mxu0 0.0
  %1537 = vmatprep.subr.mxu0 0.0
  %1538 = vmatpush1.msra.mxu0 0.0
  %1539 = vmatprep.subr.mxu0 0.0
  %1540 = vmatpush1.msra.mxu0 0.0
  %1541 = vmatprep.subr.mxu0 0.0
  %1542 = vmatpush1.msra.mxu0 0.0
  %1543 = vmatprep.subr.mxu0 0.0
  %1544 = vmatpush1.msra.mxu0 0.0
  %1545 = vmatprep.subr.mxu0 0.0
  %1546 = vmatpush1.msra.mxu0 0.0
  %1547 = vmatprep.subr.mxu0 0.0
  %1548 = vmatpush1.msra.mxu0 0.0
  %1549 = vmatprep.subr.mxu0 0.0
  %1550 = vmatpush1.msra.mxu0 0.0
  %1551 = vmatprep.subr.mxu0 0.0
  %1552 = vmatpush1.msra.mxu0 0.0
  %1553 = vmatprep.subr.mxu0 0.0
  %1554 = vmatpush1.msra.mxu0 0.0
  %1555 = vmatprep.subr.mxu0 0.0
  %1556 = vmatpush1.msra.mxu0 0.0
  %1557 = vmatprep.subr.mxu0 0.0
  %1558 = vmatpush1.msra.mxu0 0.0
  %1559 = vmatprep.subr.mxu0 0.0
  %1560 = vmatpush1.msra.mxu0 0.0
  %1561 = vmatprep.subr.mxu0 0.0
  %1562 = vmatpush1.msra.mxu0 0.0
  %1563 = vmatprep.subr.mxu0 0.0
  %1564 = vmatpush1.msra.mxu0 0.0
  %1565 = vmatprep.subr.mxu0 0.0
  %1566 = vmatpush1.msra.mxu0 0.0
  %1567 = vmatprep.subr.mxu0 0.0
  %1568 = vmatpush1.msra.mxu0 0.0
  %1569 = vmatprep.subr.mxu0 0.0
  %1570 = vmatpush1.msra.mxu0 0.0
  %1571 = vmatprep.subr.mxu0 0.0
  %1572 = vmatpush1.msra.mxu0 0.0
  %1573 = vmatprep.subr.mxu0 0.0
  %1574 = vmatpush1.msra.mxu0 0.0
  %1575 = vmatprep.subr.mxu0 0.0
  %1576 = vmatpush1.msra.mxu0 0.0
  %1577 = vmatprep.subr.mxu0 0.0
  %1578 = vmatpush1.msra.mxu0 0.0
  %1579 = vmatprep.subr.mxu0 0.0
  %1580 = vmatpush1.msra.mxu0 0.0
  %1581 = vmatprep.subr.mxu0 0.0
  %1582 = vmatpush1.msra.mxu0 0.0
  %1583 = vmatprep.subr.mxu0 0.0
  %1584 = vmatpush1.msra.mxu0 0.0
  %1585 = vmatprep.subr.mxu0 0.0
  %1586 = vmatpush1.msra.mxu0 0.0
  %1587 = vmatprep.subr.mxu0 0.0
  %1588 = vmatpush1.msra.mxu0 0.0
  %1589 = vmatprep.subr.mxu0 0.0
  %1590 = vmatpush1.msra.mxu0 0.0
  %1591 = vmatprep.subr.mxu0 0.0
  %1592 = vmatpush1.msra.mxu0 0.0
  %1593 = vmatprep.subr.mxu0 0.0
  %1594 = vmatpush1.msra.mxu0 0.0
  %1595 = vmatprep.mubr.f32.mxu0 0.0
  %v1596 = vand.u32 %v1243, 4294901760
  %v1597 = vsub.f32 %v1243, %v1596
  %v1598 = vand.u32 %v1597, 4294901760
  %1599 = vmatmul.mubr.f32.gmra.mrb[0].mxu0 %v1598
  %v1600 = vpop.f32.mrb[0].mxu0
  %v1601 = vadd.f32 %v1515, %v1600
  %v1602 = vpop.f32.mrb[0].mxu0
  %v1603 = vadd.f32 %v1517, %v1602
  %1604 = vmatprep.mubr.f32.mxu0 0.0
  %v1605 = vand.u32 %v1246, 4294901760
  %v1606 = vsub.f32 %v1246, %v1605
  %v1607 = vand.u32 %v1606, 4294901760
  %1608 = vmatmul.mubr.f32.gmra.mrb[0].mxu0 %v1607
  %v1609 = vpop.f32.mrb[0].mxu0
  %v1610 = vadd.f32 %v1523, %v1609
  %v1611 = vpop.f32.mrb[0].mxu0
  %v1612 = vadd.f32 %v1525, %v1611
  %1613 = vdwg.mxu0
  %v1614 = vand.u32 %v48, 4294901760
  %v1615 = vsub.f32 %v48, %v1614
  %v1616 = vand.u32 %v1615, 4294901760
  %1617 = vmatprep.subr.mxu0 %v1616
  %v1618 = vand.u32 %v47, 4294901760
  %v1619 = vsub.f32 %v47, %v1618
  %v1620 = vand.u32 %v1619, 4294901760
  %1621 = vmatpush1.msra.mxu0 %v1620
  %v1622 = vand.u32 %v52, 4294901760
  %v1623 = vsub.f32 %v52, %v1622
  %v1624 = vand.u32 %v1623, 4294901760
  %1625 = vmatprep.subr.mxu0 %v1624
  %v1626 = vand.u32 %v51, 4294901760
  %v1627 = vsub.f32 %v51, %v1626
  %v1628 = vand.u32 %v1627, 4294901760
  %1629 = vmatpush1.msra.mxu0 %v1628
  %1630 = vmatprep.subr.mxu0 0.0
  %1631 = vmatpush1.msra.mxu0 0.0
  %1632 = vmatprep.subr.mxu0 0.0
  %1633 = vmatpush1.msra.mxu0 0.0
  %1634 = vmatprep.subr.mxu0 0.0
  %1635 = vmatpush1.msra.mxu0 0.0
  %1636 = vmatprep.subr.mxu0 0.0
  %1637 = vmatpush1.msra.mxu0 0.0
  %1638 = vmatprep.subr.mxu0 0.0
  %1639 = vmatpush1.msra.mxu0 0.0
  %1640 = vmatprep.subr.mxu0 0.0
  %1641 = vmatpush1.msra.mxu0 0.0
  %1642 = vmatprep.subr.mxu0 0.0
  %1643 = vmatpush1.msra.mxu0 0.0
  %1644 = vmatprep.subr.mxu0 0.0
  %1645 = vmatpush1.msra.mxu0 0.0
  %1646 = vmatprep.subr.mxu0 0.0
  %1647 = vmatpush1.msra.mxu0 0.0
  %1648 = vmatprep.subr.mxu0 0.0
  %1649 = vmatpush1.msra.mxu0 0.0
  %1650 = vmatprep.subr.mxu0 0.0
  %1651 = vmatpush1.msra.mxu0 0.0
  %1652 = vmatprep.subr.mxu0 0.0
  %1653 = vmatpush1.msra.mxu0 0.0
  %1654 = vmatprep.subr.mxu0 0.0
  %1655 = vmatpush1.msra.mxu0 0.0
  %1656 = vmatprep.subr.mxu0 0.0
  %1657 = vmatpush1.msra.mxu0 0.0
  %1658 = vmatprep.subr.mxu0 0.0
  %1659 = vmatpush1.msra.mxu0 0.0
  %1660 = vmatprep.subr.mxu0 0.0
  %1661 = vmatpush1.msra.mxu0 0.0
  %1662 = vmatprep.subr.mxu0 0.0
  %1663 = vmatpush1.msra.mxu0 0.0
  %1664 = vmatprep.subr.mxu0 0.0
  %1665 = vmatpush1.msra.mxu0 0.0
  %1666 = vmatprep.subr.mxu0 0.0
  %1667 = vmatpush1.msra.mxu0 0.0
  %1668 = vmatprep.subr.mxu0 0.0
  %1669 = vmatpush1.msra.mxu0 0.0
  %1670 = vmatprep.subr.mxu0 0.0
  %1671 = vmatpush1.msra.mxu0 0.0
  %1672 = vmatprep.subr.mxu0 0.0
  %1673 = vmatpush1.msra.mxu0 0.0
  %1674 = vmatprep.subr.mxu0 0.0
  %1675 = vmatpush1.msra.mxu0 0.0
  %1676 = vmatprep.subr.mxu0 0.0
  %1677 = vmatpush1.msra.mxu0 0.0
  %1678 = vmatprep.subr.mxu0 0.0
  %1679 = vmatpush1.msra.mxu0 0.0
  %1680 = vmatprep.subr.mxu0 0.0
  %1681 = vmatpush1.msra.mxu0 0.0
  %1682 = vmatprep.subr.mxu0 0.0
  %1683 = vmatpush1.msra.mxu0 0.0
  %1684 = vmatprep.subr.mxu0 0.0
  %1685 = vmatpush1.msra.mxu0 0.0
  %1686 = vmatprep.subr.mxu0 0.0
  %1687 = vmatpush1.msra.mxu0 0.0
  %1688 = vmatprep.subr.mxu0 0.0
  %1689 = vmatpush1.msra.mxu0 0.0
  %1690 = vmatprep.mubr.f32.mxu0 0.0
  %v1691 = vand.u32 %v1243, 4294901760
  %1692 = vmatmul.mubr.f32.gmra.mrb[0].mxu0 %v1691
  %v1693 = vpop.f32.mrb[0].mxu0
  %v1694 = vadd.f32 %v1601, %v1693
  %v1695 = vpop.f32.mrb[0].mxu0
  %v1696 = vadd.f32 %v1603, %v1695
  %1697 = vmatprep.mubr.f32.mxu0 0.0
  %v1698 = vand.u32 %v1246, 4294901760
  %1699 = vmatmul.mubr.f32.gmra.mrb[0].mxu0 %v1698
  %v1700 = vpop.f32.mrb[0].mxu0
  %v1701 = vadd.f32 %v1610, %v1700
  %v1702 = vpop.f32.mrb[0].mxu0
  %v1703 = vadd.f32 %v1612, %v1702
  %1704 = vdwg.mxu0
  %v1705 = vand.u32 %v48, 4294901760
  %1706 = vmatprep.subr.mxu0 %v1705
  %v1707 = vand.u32 %v47, 4294901760
  %1708 = vmatpush1.msra.mxu0 %v1707
  %v1709 = vand.u32 %v52, 4294901760
  %1710 = vmatprep.subr.mxu0 %v1709
  %v1711 = vand.u32 %v51, 4294901760
  %1712 = vmatpush1.msra.mxu0 %v1711
  %1713 = vmatprep.subr.mxu0 0.0
  %1714 = vmatpush1.msra.mxu0 0.0
  %1715 = vmatprep.subr.mxu0 0.0
  %1716 = vmatpush1.msra.mxu0 0.0
  %1717 = vmatprep.subr.mxu0 0.0
  %1718 = vmatpush1.msra.mxu0 0.0
  %1719 = vmatprep.subr.mxu0 0.0
  %1720 = vmatpush1.msra.mxu0 0.0
  %1721 = vmatprep.subr.mxu0 0.0
  %1722 = vmatpush1.msra.mxu0 0.0
  %1723 = vmatprep.subr.mxu0 0.0
  %1724 = vmatpush1.msra.mxu0 0.0
  %1725 = vmatprep.subr.mxu0 0.0
  %1726 = vmatpush1.msra.mxu0 0.0
  %1727 = vmatprep.subr.mxu0 0.0
  %1728 = vmatpush1.msra.mxu0 0.0
  %1729 = vmatprep.subr.mxu0 0.0
  %1730 = vmatpush1.msra.mxu0 0.0
  %1731 = vmatprep.subr.mxu0 0.0
  %1732 = vmatpush1.msra.mxu0 0.0
  %1733 = vmatprep.subr.mxu0 0.0
  %1734 = vmatpush1.msra.mxu0 0.0
  %1735 = vmatprep.subr.mxu0 0.0
  %1736 = vmatpush1.msra.mxu0 0.0
  %1737 = vmatprep.subr.mxu0 0.0
  %1738 = vmatpush1.msra.mxu0 0.0
  %1739 = vmatprep.subr.mxu0 0.0
  %1740 = vmatpush1.msra.mxu0 0.0
  %1741 = vmatprep.subr.mxu0 0.0
  %1742 = vmatpush1.msra.mxu0 0.0
  %1743 = vmatprep.subr.mxu0 0.0
  %1744 = vmatpush1.msra.mxu0 0.0
  %1745 = vmatprep.subr.mxu0 0.0
  %1746 = vmatpush1.msra.mxu0 0.0
  %1747 = vmatprep.subr.mxu0 0.0
  %1748 = vmatpush1.msra.mxu0 0.0
  %1749 = vmatprep.subr.mxu0 0.0
  %1750 = vmatpush1.msra.mxu0 0.0
  %1751 = vmatprep.subr.mxu0 0.0
  %1752 = vmatpush1.msra.mxu0 0.0
  %1753 = vmatprep.subr.mxu0 0.0
  %1754 = vmatpush1.msra.mxu0 0.0
  %1755 = vmatprep.subr.mxu0 0.0
  %1756 = vmatpush1.msra.mxu0 0.0
  %1757 = vmatprep.subr.mxu0 0.0
  %1758 = vmatpush1.msra.mxu0 0.0
  %1759 = vmatprep.subr.mxu0 0.0
  %1760 = vmatpush1.msra.mxu0 0.0
  %1761 = vmatprep.subr.mxu0 0.0
  %1762 = vmatpush1.msra.mxu0 0.0
  %1763 = vmatprep.subr.mxu0 0.0
  %1764 = vmatpush1.msra.mxu0 0.0
  %1765 = vmatprep.subr.mxu0 0.0
  %1766 = vmatpush1.msra.mxu0 0.0
  %1767 = vmatprep.subr.mxu0 0.0
  %1768 = vmatpush1.msra.mxu0 0.0
  %1769 = vmatprep.subr.mxu0 0.0
  %1770 = vmatpush1.msra.mxu0 0.0
  %1771 = vmatprep.subr.mxu0 0.0
  %1772 = vmatpush1.msra.mxu0 0.0
  %1773 = vmatprep.mubr.f32.mxu0 0.0
  %v1774 = vand.u32 %v1243, 4294901760
  %1775 = vmatmul.mubr.f32.gmra.mrb[0].mxu0 %v1774
  %v1776 = vpop.f32.mrb[0].mxu0
  %v1777 = vadd.f32 %v1694, %v1776
  %v1778 = vpop.f32.mrb[0].mxu0
  %v1779 = vadd.f32 %v1696, %v1778
  %1780 = vmatprep.mubr.f32.mxu0 0.0
  %v1781 = vand.u32 %v1246, 4294901760
  %1782 = vmatmul.mubr.f32.gmra.mrb[0].mxu0 %v1781
  %v1783 = vpop.f32.mrb[0].mxu0
  %v1784 = vadd.f32 %v1701, %v1783
  %v1785 = vpop.f32.mrb[0].mxu0
  %v1786 = vadd.f32 %v1703, %v1785
  %1787 = vdwg.mxu0
  %v1788 = vand.u32 %v50, 4294901760
  %1789 = vmatprep.subr.mxu0 %v1788
  %v1790 = vand.u32 %v49, 4294901760
  %1791 = vmatpush1.msra.mxu0 %v1790
  %v1792 = vand.u32 %v54, 4294901760
  %1793 = vmatprep.subr.mxu0 %v1792
  %v1794 = vand.u32 %v53, 4294901760
  %1795 = vmatpush1.msra.mxu0 %v1794
  %1796 = vmatprep.subr.mxu0 0.0
  %1797 = vmatpush1.msra.mxu0 0.0
  %1798 = vmatprep.subr.mxu0 0.0
  %1799 = vmatpush1.msra.mxu0 0.0
  %1800 = vmatprep.subr.mxu0 0.0
  %1801 = vmatpush1.msra.mxu0 0.0
  %1802 = vmatprep.subr.mxu0 0.0
  %1803 = vmatpush1.msra.mxu0 0.0
  %1804 = vmatprep.subr.mxu0 0.0
  %1805 = vmatpush1.msra.mxu0 0.0
  %1806 = vmatprep.subr.mxu0 0.0
  %1807 = vmatpush1.msra.mxu0 0.0
  %1808 = vmatprep.subr.mxu0 0.0
  %1809 = vmatpush1.msra.mxu0 0.0
  %1810 = vmatprep.subr.mxu0 0.0
  %1811 = vmatpush1.msra.mxu0 0.0
  %1812 = vmatprep.subr.mxu0 0.0
  %1813 = vmatpush1.msra.mxu0 0.0
  %1814 = vmatprep.subr.mxu0 0.0
  %1815 = vmatpush1.msra.mxu0 0.0
  %1816 = vmatprep.subr.mxu0 0.0
  %1817 = vmatpush1.msra.mxu0 0.0
  %1818 = vmatprep.subr.mxu0 0.0
  %1819 = vmatpush1.msra.mxu0 0.0
  %1820 = vmatprep.subr.mxu0 0.0
  %1821 = vmatpush1.msra.mxu0 0.0
  %1822 = vmatprep.subr.mxu0 0.0
  %1823 = vmatpush1.msra.mxu0 0.0
  %1824 = vmatprep.subr.mxu0 0.0
  %1825 = vmatpush1.msra.mxu0 0.0
  %1826 = vmatprep.subr.mxu0 0.0
  %1827 = vmatpush1.msra.mxu0 0.0
  %1828 = vmatprep.subr.mxu0 0.0
  %1829 = vmatpush1.msra.mxu0 0.0
  %1830 = vmatprep.subr.mxu0 0.0
  %1831 = vmatpush1.msra.mxu0 0.0
  %1832 = vmatprep.subr.mxu0 0.0
  %1833 = vmatpush1.msra.mxu0 0.0
  %1834 = vmatprep.subr.mxu0 0.0
  %1835 = vmatpush1.msra.mxu0 0.0
  %1836 = vmatprep.subr.mxu0 0.0
  %1837 = vmatpush1.msra.mxu0 0.0
  %1838 = vmatprep.subr.mxu0 0.0
  %1839 = vmatpush1.msra.mxu0 0.0
  %1840 = vmatprep.subr.mxu0 0.0
  %1841 = vmatpush1.msra.mxu0 0.0
  %1842 = vmatprep.subr.mxu0 0.0
  %1843 = vmatpush1.msra.mxu0 0.0
  %1844 = vmatprep.subr.mxu0 0.0
  %1845 = vmatpush1.msra.mxu0 0.0
  %1846 = vmatprep.subr.mxu0 0.0
  %1847 = vmatpush1.msra.mxu0 0.0
  %1848 = vmatprep.subr.mxu0 0.0
  %1849 = vmatpush1.msra.mxu0 0.0
  %1850 = vmatprep.subr.mxu0 0.0
  %1851 = vmatpush1.msra.mxu0 0.0
  %1852 = vmatprep.subr.mxu0 0.0
  %1853 = vmatpush1.msra.mxu0 0.0
  %1854 = vmatprep.subr.mxu0 0.0
  %1855 = vmatpush1.msra.mxu0 0.0
  %1856 = vmatprep.mubr.f32.mxu0 0.0
  %v1857 = vand.u32 %v1243, 4294901760
  %v1858 = vsub.f32 %v1243, %v1857
  %v1859 = vand.u32 %v1858, 4294901760
  %v1860 = vsub.f32 %v1858, %v1859
  %v1861 = vand.u32 %v1860, 4294901760
  %1862 = vmatmul.mubr.f32.gmra.mrb[0].mxu0 %v1861
  %v1863 = vpop.f32.mrb[0].mxu0
  %v1864 = vadd.f32 %v1231, %v1863
  %v1865 = vpop.f32.mrb[0].mxu0
  %v1866 = vadd.f32 %v1233, %v1865
  %1867 = vmatprep.mubr.f32.mxu0 0.0
  %v1868 = vand.u32 %v1246, 4294901760
  %v1869 = vsub.f32 %v1246, %v1868
  %v1870 = vand.u32 %v1869, 4294901760
  %v1871 = vsub.f32 %v1869, %v1870
  %v1872 = vand.u32 %v1871, 4294901760
  %1873 = vmatmul.mubr.f32.gmra.mrb[0].mxu0 %v1872
  %v1874 = vpop.f32.mrb[0].mxu0
  %v1875 = vadd.f32 %v1238, %v1874
  %v1876 = vpop.f32.mrb[0].mxu0
  %v1877 = vadd.f32 %v1240, %v1876
  %1878 = vdwg.mxu0
  %v1879 = vand.u32 %v50, 4294901760
  %v1880 = vsub.f32 %v50, %v1879
  %v1881 = vand.u32 %v1880, 4294901760
  %v1882 = vsub.f32 %v1880, %v1881
  %v1883 = vand.u32 %v1882, 4294901760
  %1884 = vmatprep.subr.mxu0 %v1883
  %v1885 = vand.u32 %v49, 4294901760
  %v1886 = vsub.f32 %v49, %v1885
  %v1887 = vand.u32 %v1886, 4294901760
  %v1888 = vsub.f32 %v1886, %v1887
  %v1889 = vand.u32 %v1888, 4294901760
  %1890 = vmatpush1.msra.mxu0 %v1889
  %v1891 = vand.u32 %v54, 4294901760
  %v1892 = vsub.f32 %v54, %v1891
  %v1893 = vand.u32 %v1892, 4294901760
  %v1894 = vsub.f32 %v1892, %v1893
  %v1895 = vand.u32 %v1894, 4294901760
  %1896 = vmatprep.subr.mxu0 %v1895
  %v1897 = vand.u32 %v53, 4294901760
  %v1898 = vsub.f32 %v53, %v1897
  %v1899 = vand.u32 %v1898, 4294901760
  %v1900 = vsub.f32 %v1898, %v1899
  %v1901 = vand.u32 %v1900, 4294901760
  %1902 = vmatpush1.msra.mxu0 %v1901
  %1903 = vmatprep.subr.mxu0 0.0
  %1904 = vmatpush1.msra.mxu0 0.0
  %1905 = vmatprep.subr.mxu0 0.0
  %1906 = vmatpush1.msra.mxu0 0.0
  %1907 = vmatprep.subr.mxu0 0.0
  %1908 = vmatpush1.msra.mxu0 0.0
  %1909 = vmatprep.subr.mxu0 0.0
  %1910 = vmatpush1.msra.mxu0 0.0
  %1911 = vmatprep.subr.mxu0 0.0
  %1912 = vmatpush1.msra.mxu0 0.0
  %1913 = vmatprep.subr.mxu0 0.0
  %1914 = vmatpush1.msra.mxu0 0.0
  %1915 = vmatprep.subr.mxu0 0.0
  %1916 = vmatpush1.msra.mxu0 0.0
  %1917 = vmatprep.subr.mxu0 0.0
  %1918 = vmatpush1.msra.mxu0 0.0
  %1919 = vmatprep.subr.mxu0 0.0
  %1920 = vmatpush1.msra.mxu0 0.0
  %1921 = vmatprep.subr.mxu0 0.0
  %1922 = vmatpush1.msra.mxu0 0.0
  %1923 = vmatprep.subr.mxu0 0.0
  %1924 = vmatpush1.msra.mxu0 0.0
  %1925 = vmatprep.subr.mxu0 0.0
  %1926 = vmatpush1.msra.mxu0 0.0
  %1927 = vmatprep.subr.mxu0 0.0
  %1928 = vmatpush1.msra.mxu0 0.0
  %1929 = vmatprep.subr.mxu0 0.0
  %1930 = vmatpush1.msra.mxu0 0.0
  %1931 = vmatprep.subr.mxu0 0.0
  %1932 = vmatpush1.msra.mxu0 0.0
  %1933 = vmatprep.subr.mxu0 0.0
  %1934 = vmatpush1.msra.mxu0 0.0
  %1935 = vmatprep.subr.mxu0 0.0
  %1936 = vmatpush1.msra.mxu0 0.0
  %1937 = vmatprep.subr.mxu0 0.0
  %1938 = vmatpush1.msra.mxu0 0.0
  %1939 = vmatprep.subr.mxu0 0.0
  %1940 = vmatpush1.msra.mxu0 0.0
  %1941 = vmatprep.subr.mxu0 0.0
  %1942 = vmatpush1.msra.mxu0 0.0
  %1943 = vmatprep.subr.mxu0 0.0
  %1944 = vmatpush1.msra.mxu0 0.0
  %1945 = vmatprep.subr.mxu0 0.0
  %1946 = vmatpush1.msra.mxu0 0.0
  %1947 = vmatprep.subr.mxu0 0.0
  %1948 = vmatpush1.msra.mxu0 0.0
  %1949 = vmatprep.subr.mxu0 0.0
  %1950 = vmatpush1.msra.mxu0 0.0
  %1951 = vmatprep.subr.mxu0 0.0
  %1952 = vmatpush1.msra.mxu0 0.0
  %1953 = vmatprep.subr.mxu0 0.0
  %1954 = vmatpush1.msra.mxu0 0.0
  %1955 = vmatprep.subr.mxu0 0.0
  %1956 = vmatpush1.msra.mxu0 0.0
  %1957 = vmatprep.subr.mxu0 0.0
  %1958 = vmatpush1.msra.mxu0 0.0
  %1959 = vmatprep.subr.mxu0 0.0
  %1960 = vmatpush1.msra.mxu0 0.0
  %1961 = vmatprep.subr.mxu0 0.0
  %1962 = vmatpush1.msra.mxu0 0.0
  %1963 = vmatprep.mubr.f32.mxu0 0.0
  %v1964 = vand.u32 %v1243, 4294901760
  %1965 = vmatmul.mubr.f32.gmra.mrb[0].mxu0 %v1964
  %v1966 = vpop.f32.mrb[0].mxu0
  %v1967 = vadd.f32 %v1864, %v1966
  %v1968 = vpop.f32.mrb[0].mxu0
  %v1969 = vadd.f32 %v1866, %v1968
  %1970 = vmatprep.mubr.f32.mxu0 0.0
  %v1971 = vand.u32 %v1246, 4294901760
  %1972 = vmatmul.mubr.f32.gmra.mrb[0].mxu0 %v1971
  %v1973 = vpop.f32.mrb[0].mxu0
  %v1974 = vadd.f32 %v1875, %v1973
  %v1975 = vpop.f32.mrb[0].mxu0
  %v1976 = vadd.f32 %v1877, %v1975
  %1977 = vdwg.mxu0
  %v1978 = vand.u32 %v50, 4294901760
  %v1979 = vsub.f32 %v50, %v1978
  %1980 = vmatprep.subr.mxu0 %v1979
  %v1981 = vand.u32 %v49, 4294901760
  %v1982 = vsub.f32 %v49, %v1981
  %1983 = vmatpush1.msra.mxu0 %v1982
  %v1984 = vand.u32 %v54, 4294901760
  %v1985 = vsub.f32 %v54, %v1984
  %1986 = vmatprep.subr.mxu0 %v1985
  %v1987 = vand.u32 %v53, 4294901760
  %v1988 = vsub.f32 %v53, %v1987
  %1989 = vmatpush1.msra.mxu0 %v1988
  %1990 = vmatprep.subr.mxu0 0.0
  %1991 = vmatpush1.msra.mxu0 0.0
  %1992 = vmatprep.subr.mxu0 0.0
  %1993 = vmatpush1.msra.mxu0 0.0
  %1994 = vmatprep.subr.mxu0 0.0
  %1995 = vmatpush1.msra.mxu0 0.0
  %1996 = vmatprep.subr.mxu0 0.0
  %1997 = vmatpush1.msra.mxu0 0.0
  %1998 = vmatprep.subr.mxu0 0.0
  %1999 = vmatpush1.msra.mxu0 0.0
  %2000 = vmatprep.subr.mxu0 0.0
  %2001 = vmatpush1.msra.mxu0 0.0
  %2002 = vmatprep.subr.mxu0 0.0
  %2003 = vmatpush1.msra.mxu0 0.0
  %2004 = vmatprep.subr.mxu0 0.0
  %2005 = vmatpush1.msra.mxu0 0.0
  %2006 = vmatprep.subr.mxu0 0.0
  %2007 = vmatpush1.msra.mxu0 0.0
  %2008 = vmatprep.subr.mxu0 0.0
  %2009 = vmatpush1.msra.mxu0 0.0
  %2010 = vmatprep.subr.mxu0 0.0
  %2011 = vmatpush1.msra.mxu0 0.0
  %2012 = vmatprep.subr.mxu0 0.0
  %2013 = vmatpush1.msra.mxu0 0.0
  %2014 = vmatprep.subr.mxu0 0.0
  %2015 = vmatpush1.msra.mxu0 0.0
  %2016 = vmatprep.subr.mxu0 0.0
  %2017 = vmatpush1.msra.mxu0 0.0
  %2018 = vmatprep.subr.mxu0 0.0
  %2019 = vmatpush1.msra.mxu0 0.0
  %2020 = vmatprep.subr.mxu0 0.0
  %2021 = vmatpush1.msra.mxu0 0.0
  %2022 = vmatprep.subr.mxu0 0.0
  %2023 = vmatpush1.msra.mxu0 0.0
  %2024 = vmatprep.subr.mxu0 0.0
  %2025 = vmatpush1.msra.mxu0 0.0
  %2026 = vmatprep.subr.mxu0 0.0
  %2027 = vmatpush1.msra.mxu0 0.0
  %2028 = vmatprep.subr.mxu0 0.0
  %2029 = vmatpush1.msra.mxu0 0.0
  %2030 = vmatprep.subr.mxu0 0.0
  %2031 = vmatpush1.msra.mxu0 0.0
  %2032 = vmatprep.subr.mxu0 0.0
  %2033 = vmatpush1.msra.mxu0 0.0
  %2034 = vmatprep.subr.mxu0 0.0
  %2035 = vmatpush1.msra.mxu0 0.0
  %2036 = vmatprep.subr.mxu0 0.0
  %2037 = vmatpush1.msra.mxu0 0.0
  %2038 = vmatprep.subr.mxu0 0.0
  %2039 = vmatpush1.msra.mxu0 0.0
  %2040 = vmatprep.subr.mxu0 0.0
  %2041 = vmatpush1.msra.mxu0 0.0
  %2042 = vmatprep.subr.mxu0 0.0
  %2043 = vmatpush1.msra.mxu0 0.0
  %2044 = vmatprep.subr.mxu0 0.0
  %2045 = vmatpush1.msra.mxu0 0.0
  %2046 = vmatprep.subr.mxu0 0.0
  %2047 = vmatpush1.msra.mxu0 0.0
  %2048 = vmatprep.subr.mxu0 0.0
  %2049 = vmatpush1.msra.mxu0 0.0
  %2050 = vmatprep.mubr.f32.mxu0 0.0
  %v2051 = vand.u32 %v1243, 4294901760
  %v2052 = vsub.f32 %v1243, %v2051
  %2053 = vmatmul.mubr.f32.gmra.mrb[0].mxu0 %v2052
  %v2054 = vpop.f32.mrb[0].mxu0
  %v2055 = vadd.f32 %v1967, %v2054
  %v2056 = vpop.f32.mrb[0].mxu0
  %v2057 = vadd.f32 %v1969, %v2056
  %2058 = vmatprep.mubr.f32.mxu0 0.0
  %v2059 = vand.u32 %v1246, 4294901760
  %v2060 = vsub.f32 %v1246, %v2059
  %2061 = vmatmul.mubr.f32.gmra.mrb[0].mxu0 %v2060
  %v2062 = vpop.f32.mrb[0].mxu0
  %v2063 = vadd.f32 %v1974, %v2062
  %v2064 = vpop.f32.mrb[0].mxu0
  %v2065 = vadd.f32 %v1976, %v2064
  %2066 = vdwg.mxu0
  %v2067 = vand.u32 %v50, 4294901760
  %2068 = vmatprep.subr.mxu0 %v2067
  %v2069 = vand.u32 %v49, 4294901760
  %2070 = vmatpush1.msra.mxu0 %v2069
  %v2071 = vand.u32 %v54, 4294901760
  %2072 = vmatprep.subr.mxu0 %v2071
  %v2073 = vand.u32 %v53, 4294901760
  %2074 = vmatpush1.msra.mxu0 %v2073
  %2075 = vmatprep.subr.mxu0 0.0
  %2076 = vmatpush1.msra.mxu0 0.0
  %2077 = vmatprep.subr.mxu0 0.0
  %2078 = vmatpush1.msra.mxu0 0.0
  %2079 = vmatprep.subr.mxu0 0.0
  %2080 = vmatpush1.msra.mxu0 0.0
  %2081 = vmatprep.subr.mxu0 0.0
  %2082 = vmatpush1.msra.mxu0 0.0
  %2083 = vmatprep.subr.mxu0 0.0
  %2084 = vmatpush1.msra.mxu0 0.0
  %2085 = vmatprep.subr.mxu0 0.0
  %2086 = vmatpush1.msra.mxu0 0.0
  %2087 = vmatprep.subr.mxu0 0.0
  %2088 = vmatpush1.msra.mxu0 0.0
  %2089 = vmatprep.subr.mxu0 0.0
  %2090 = vmatpush1.msra.mxu0 0.0
  %2091 = vmatprep.subr.mxu0 0.0
  %2092 = vmatpush1.msra.mxu0 0.0
  %2093 = vmatprep.subr.mxu0 0.0
  %2094 = vmatpush1.msra.mxu0 0.0
  %2095 = vmatprep.subr.mxu0 0.0
  %2096 = vmatpush1.msra.mxu0 0.0
  %2097 = vmatprep.subr.mxu0 0.0
  %2098 = vmatpush1.msra.mxu0 0.0
  %2099 = vmatprep.subr.mxu0 0.0
  %2100 = vmatpush1.msra.mxu0 0.0
  %2101 = vmatprep.subr.mxu0 0.0
  %2102 = vmatpush1.msra.mxu0 0.0
  %2103 = vmatprep.subr.mxu0 0.0
  %2104 = vmatpush1.msra.mxu0 0.0
  %2105 = vmatprep.subr.mxu0 0.0
  %2106 = vmatpush1.msra.mxu0 0.0
  %2107 = vmatprep.subr.mxu0 0.0
  %2108 = vmatpush1.msra.mxu0 0.0
  %2109 = vmatprep.subr.mxu0 0.0
  %2110 = vmatpush1.msra.mxu0 0.0
  %2111 = vmatprep.subr.mxu0 0.0
  %2112 = vmatpush1.msra.mxu0 0.0
  %2113 = vmatprep.subr.mxu0 0.0
  %2114 = vmatpush1.msra.mxu0 0.0
  %2115 = vmatprep.subr.mxu0 0.0
  %2116 = vmatpush1.msra.mxu0 0.0
  %2117 = vmatprep.subr.mxu0 0.0
  %2118 = vmatpush1.msra.mxu0 0.0
  %2119 = vmatprep.subr.mxu0 0.0
  %2120 = vmatpush1.msra.mxu0 0.0
  %2121 = vmatprep.subr.mxu0 0.0
  %2122 = vmatpush1.msra.mxu0 0.0
  %2123 = vmatprep.subr.mxu0 0.0
  %2124 = vmatpush1.msra.mxu0 0.0
  %2125 = vmatprep.subr.mxu0 0.0
  %2126 = vmatpush1.msra.mxu0 0.0
  %2127 = vmatprep.subr.mxu0 0.0
  %2128 = vmatpush1.msra.mxu0 0.0
  %2129 = vmatprep.subr.mxu0 0.0
  %2130 = vmatpush1.msra.mxu0 0.0
  %2131 = vmatprep.subr.mxu0 0.0
  %2132 = vmatpush1.msra.mxu0 0.0
  %2133 = vmatprep.subr.mxu0 0.0
  %2134 = vmatpush1.msra.mxu0 0.0
  %2135 = vmatprep.mubr.f32.mxu0 0.0
  %v2136 = vand.u32 %v1243, 4294901760
  %v2137 = vsub.f32 %v1243, %v2136
  %v2138 = vand.u32 %v2137, 4294901760
  %2139 = vmatmul.mubr.f32.gmra.mrb[0].mxu0 %v2138
  %v2140 = vpop.f32.mrb[0].mxu0
  %v2141 = vadd.f32 %v2055, %v2140
  %v2142 = vpop.f32.mrb[0].mxu0
  %v2143 = vadd.f32 %v2057, %v2142
  %2144 = vmatprep.mubr.f32.mxu0 0.0
  %v2145 = vand.u32 %v1246, 4294901760
  %v2146 = vsub.f32 %v1246, %v2145
  %v2147 = vand.u32 %v2146, 4294901760
  %2148 = vmatmul.mubr.f32.gmra.mrb[0].mxu0 %v2147
  %v2149 = vpop.f32.mrb[0].mxu0
  %v2150 = vadd.f32 %v2063, %v2149
  %v2151 = vpop.f32.mrb[0].mxu0
  %v2152 = vadd.f32 %v2065, %v2151
  %2153 = vdwg.mxu0
  %v2154 = vand.u32 %v50, 4294901760
  %v2155 = vsub.f32 %v50, %v2154
  %v2156 = vand.u32 %v2155, 4294901760
  %2157 = vmatprep.subr.mxu0 %v2156
  %v2158 = vand.u32 %v49, 4294901760
  %v2159 = vsub.f32 %v49, %v2158
  %v2160 = vand.u32 %v2159, 4294901760
  %2161 = vmatpush1.msra.mxu0 %v2160
  %v2162 = vand.u32 %v54, 4294901760
  %v2163 = vsub.f32 %v54, %v2162
  %v2164 = vand.u32 %v2163, 4294901760
  %2165 = vmatprep.subr.mxu0 %v2164
  %v2166 = vand.u32 %v53, 4294901760
  %v2167 = vsub.f32 %v53, %v2166
  %v2168 = vand.u32 %v2167, 4294901760
  %2169 = vmatpush1.msra.mxu0 %v2168
  %2170 = vmatprep.subr.mxu0 0.0
  %2171 = vmatpush1.msra.mxu0 0.0
  %2172 = vmatprep.subr.mxu0 0.0
  %2173 = vmatpush1.msra.mxu0 0.0
  %2174 = vmatprep.subr.mxu0 0.0
  %2175 = vmatpush1.msra.mxu0 0.0
  %2176 = vmatprep.subr.mxu0 0.0
  %2177 = vmatpush1.msra.mxu0 0.0
  %2178 = vmatprep.subr.mxu0 0.0
  %2179 = vmatpush1.msra.mxu0 0.0
  %2180 = vmatprep.subr.mxu0 0.0
  %2181 = vmatpush1.msra.mxu0 0.0
  %2182 = vmatprep.subr.mxu0 0.0
  %2183 = vmatpush1.msra.mxu0 0.0
  %2184 = vmatprep.subr.mxu0 0.0
  %2185 = vmatpush1.msra.mxu0 0.0
  %2186 = vmatprep.subr.mxu0 0.0
  %2187 = vmatpush1.msra.mxu0 0.0
  %2188 = vmatprep.subr.mxu0 0.0
  %2189 = vmatpush1.msra.mxu0 0.0
  %2190 = vmatprep.subr.mxu0 0.0
  %2191 = vmatpush1.msra.mxu0 0.0
  %2192 = vmatprep.subr.mxu0 0.0
  %2193 = vmatpush1.msra.mxu0 0.0
  %2194 = vmatprep.subr.mxu0 0.0
  %2195 = vmatpush1.msra.mxu0 0.0
  %2196 = vmatprep.subr.mxu0 0.0
  %2197 = vmatpush1.msra.mxu0 0.0
  %2198 = vmatprep.subr.mxu0 0.0
  %2199 = vmatpush1.msra.mxu0 0.0
  %2200 = vmatprep.subr.mxu0 0.0
  %2201 = vmatpush1.msra.mxu0 0.0
  %2202 = vmatprep.subr.mxu0 0.0
  %2203 = vmatpush1.msra.mxu0 0.0
  %2204 = vmatprep.subr.mxu0 0.0
  %2205 = vmatpush1.msra.mxu0 0.0
  %2206 = vmatprep.subr.mxu0 0.0
  %2207 = vmatpush1.msra.mxu0 0.0
  %2208 = vmatprep.subr.mxu0 0.0
  %2209 = vmatpush1.msra.mxu0 0.0
  %2210 = vmatprep.subr.mxu0 0.0
  %2211 = vmatpush1.msra.mxu0 0.0
  %2212 = vmatprep.subr.mxu0 0.0
  %2213 = vmatpush1.msra.mxu0 0.0
  %2214 = vmatprep.subr.mxu0 0.0
  %2215 = vmatpush1.msra.mxu0 0.0
  %2216 = vmatprep.subr.mxu0 0.0
  %2217 = vmatpush1.msra.mxu0 0.0
  %2218 = vmatprep.subr.mxu0 0.0
  %2219 = vmatpush1.msra.mxu0 0.0
  %2220 = vmatprep.subr.mxu0 0.0
  %2221 = vmatpush1.msra.mxu0 0.0
  %2222 = vmatprep.subr.mxu0 0.0
  %2223 = vmatpush1.msra.mxu0 0.0
  %2224 = vmatprep.subr.mxu0 0.0
  %2225 = vmatpush1.msra.mxu0 0.0
  %2226 = vmatprep.subr.mxu0 0.0
  %2227 = vmatpush1.msra.mxu0 0.0
  %2228 = vmatprep.subr.mxu0 0.0
  %2229 = vmatpush1.msra.mxu0 0.0
  %2230 = vmatprep.mubr.f32.mxu0 0.0
  %v2231 = vand.u32 %v1243, 4294901760
  %2232 = vmatmul.mubr.f32.gmra.mrb[0].mxu0 %v2231
  %v2233 = vpop.f32.mrb[0].mxu0
  %v2234 = vadd.f32 %v2141, %v2233
  %v2235 = vpop.f32.mrb[0].mxu0
  %v2236 = vadd.f32 %v2143, %v2235
  %2237 = vmatprep.mubr.f32.mxu0 0.0
  %v2238 = vand.u32 %v1246, 4294901760
  %2239 = vmatmul.mubr.f32.gmra.mrb[0].mxu0 %v2238
  %v2240 = vpop.f32.mrb[0].mxu0
  %v2241 = vadd.f32 %v2150, %v2240
  %v2242 = vpop.f32.mrb[0].mxu0
  %v2243 = vadd.f32 %v2152, %v2242
  %2244 = vdwg.mxu0
  %v2245 = vand.u32 %v50, 4294901760
  %2246 = vmatprep.subr.mxu0 %v2245
  %v2247 = vand.u32 %v49, 4294901760
  %2248 = vmatpush1.msra.mxu0 %v2247
  %v2249 = vand.u32 %v54, 4294901760
  %2250 = vmatprep.subr.mxu0 %v2249
  %v2251 = vand.u32 %v53, 4294901760
  %2252 = vmatpush1.msra.mxu0 %v2251
  %2253 = vmatprep.subr.mxu0 0.0
  %2254 = vmatpush1.msra.mxu0 0.0
  %2255 = vmatprep.subr.mxu0 0.0
  %2256 = vmatpush1.msra.mxu0 0.0
  %2257 = vmatprep.subr.mxu0 0.0
  %2258 = vmatpush1.msra.mxu0 0.0
  %2259 = vmatprep.subr.mxu0 0.0
  %2260 = vmatpush1.msra.mxu0 0.0
  %2261 = vmatprep.subr.mxu0 0.0
  %2262 = vmatpush1.msra.mxu0 0.0
  %2263 = vmatprep.subr.mxu0 0.0
  %2264 = vmatpush1.msra.mxu0 0.0
  %2265 = vmatprep.subr.mxu0 0.0
  %2266 = vmatpush1.msra.mxu0 0.0
  %2267 = vmatprep.subr.mxu0 0.0
  %2268 = vmatpush1.msra.mxu0 0.0
  %2269 = vmatprep.subr.mxu0 0.0
  %2270 = vmatpush1.msra.mxu0 0.0
  %2271 = vmatprep.subr.mxu0 0.0
  %2272 = vmatpush1.msra.mxu0 0.0
  %2273 = vmatprep.subr.mxu0 0.0
  %2274 = vmatpush1.msra.mxu0 0.0
  %2275 = vmatprep.subr.mxu0 0.0
  %2276 = vmatpush1.msra.mxu0 0.0
  %2277 = vmatprep.subr.mxu0 0.0
  %2278 = vmatpush1.msra.mxu0 0.0
  %2279 = vmatprep.subr.mxu0 0.0
  %2280 = vmatpush1.msra.mxu0 0.0
  %2281 = vmatprep.subr.mxu0 0.0
  %2282 = vmatpush1.msra.mxu0 0.0
  %2283 = vmatprep.subr.mxu0 0.0
  %2284 = vmatpush1.msra.mxu0 0.0
  %2285 = vmatprep.subr.mxu0 0.0
  %2286 = vmatpush1.msra.mxu0 0.0
  %2287 = vmatprep.subr.mxu0 0.0
  %2288 = vmatpush1.msra.mxu0 0.0
  %2289 = vmatprep.subr.mxu0 0.0
  %2290 = vmatpush1.msra.mxu0 0.0
  %2291 = vmatprep.subr.mxu0 0.0
  %2292 = vmatpush1.msra.mxu0 0.0
  %2293 = vmatprep.subr.mxu0 0.0
  %2294 = vmatpush1.msra.mxu0 0.0
  %2295 = vmatprep.subr.mxu0 0.0
  %2296 = vmatpush1.msra.mxu0 0.0
  %2297 = vmatprep.subr.mxu0 0.0
  %2298 = vmatpush1.msra.mxu0 0.0
  %2299 = vmatprep.subr.mxu0 0.0
  %2300 = vmatpush1.msra.mxu0 0.0
  %2301 = vmatprep.subr.mxu0 0.0
  %2302 = vmatpush1.msra.mxu0 0.0
  %2303 = vmatprep.subr.mxu0 0.0
  %2304 = vmatpush1.msra.mxu0 0.0
  %2305 = vmatprep.subr.mxu0 0.0
  %2306 = vmatpush1.msra.mxu0 0.0
  %2307 = vmatprep.subr.mxu0 0.0
  %2308 = vmatpush1.msra.mxu0 0.0
  %2309 = vmatprep.subr.mxu0 0.0
  %2310 = vmatpush1.msra.mxu0 0.0
  %2311 = vmatprep.subr.mxu0 0.0
  %2312 = vmatpush1.msra.mxu0 0.0
  %2313 = vmatprep.mubr.f32.mxu0 0.0
  %v2314 = vand.u32 %v1243, 4294901760
  %2315 = vmatmul.mubr.f32.gmra.mrb[0].mxu0 %v2314
  %v2316 = vpop.f32.mrb[0].mxu0
  %v2317 = vadd.f32 %v2234, %v2316
  %v2318 = vpop.f32.mrb[0].mxu0
  %v2319 = vadd.f32 %v2236, %v2318
  %2320 = vmatprep.mubr.f32.mxu0 0.0
  %v2321 = vand.u32 %v1246, 4294901760
  %2322 = vmatmul.mubr.f32.gmra.mrb[0].mxu0 %v2321
  %v2323 = vpop.f32.mrb[0].mxu0
  %v2324 = vadd.f32 %v2241, %v2323
  %v2325 = vpop.f32.mrb[0].mxu0
  %v2326 = vadd.f32 %v2243, %v2325
  %2327 = vdwg.mxu0
  %s2328 = scalar_lea.vmem %s3, 2
  %v2329 = vld [vmem:[%s2328] ss:$8 sm:$0xf]
  %v2331 = vlaneseq
  %v2332 = vshrl.u32 %v2331, 7
  %v2333 = vsub.s32 0, %v2332
  %v2334 = vrot.slane %v2329, %v2333
  %v2335 = vlaneseq
  %v2336 = vshrl.u32 %v2335, 7
  %v2337 = vsub.s32 1, %v2336
  %v2338 = vrot.slane %v2329, %v2337
  %v2339 = vlaneseq
  %v2340 = vshrl.u32 %v2339, 7
  %v2341 = vsub.s32 2, %v2340
  %v2342 = vrot.slane %v2329, %v2341
  %v2343 = vlaneseq
  %v2344 = vshrl.u32 %v2343, 7
  %v2345 = vsub.s32 3, %v2344
  %v2346 = vrot.slane %v2329, %v2345
  %2347 = vrot.lane.b32.xlu0 %v2334, 2
  %v2348 = vpop.permute.xlu0 %2347
  %2349 = vrot.lane.b32.xlu0 %v2338, 2
  %v2350 = vpop.permute.xlu0 %2349
  %2351 = vrot.lane.b32.xlu0 %v2342, 2
  %v2352 = vpop.permute.xlu0 %2351
  %2353 = vrot.lane.b32.xlu0 %v2346, 2
  %v2354 = vpop.permute.xlu0 %2353
  %vm2355 = vcmask 15360
  %v2356 = vsel %vm2355, %v2348, %v2350
  %v2357 = vsel %vm2355, %v2350, %v2352
  %v2358 = vsel %vm2355, %v2352, %v2354
  %v2364 = vmul.f32 %v17, %v2348
  %v2365 = vmul.f32 %v18, %v2356
  %v2366 = vmul.f32 %v19, %v2357
  %v2367 = vmul.f32 %v20, %v2358
  %v2368 = vmul.f32 %v57, %v2354
  %v2369 = vmul.f32 %v21, %v2348
  %v2370 = vmul.f32 %v22, %v2356
  %v2371 = vmul.f32 %v23, %v2357
  %v2372 = vmul.f32 %v24, %v2358
  %v2373 = vmul.f32 %v58, %v2354
  %s2374 = scalar_lea.vmem %s1, 32
  %v2375 = vld [vmem:[%s2374] sm:$0xff]
  %v2376 = vld [vmem:[%s2374 + $0x8] sm:$0xff]
  %2387 = vrot.lane.b32.xlu0 %v2364, 126
  %v2388 = vpop.permute.xlu0 %2387
  %2389 = vrot.lane.b32.xlu0 %v2365, 126
  %v2390 = vpop.permute.xlu0 %2389
  %2391 = vrot.lane.b32.xlu0 %v2366, 126
  %v2392 = vpop.permute.xlu0 %2391
  %2393 = vrot.lane.b32.xlu0 %v2367, 126
  %v2394 = vpop.permute.xlu0 %2393
  %2395 = vrot.lane.b32.xlu0 %v2368, 126
  %v2396 = vpop.permute.xlu0 %2395
  %2397 = vrot.lane.b32.xlu0 %v2369, 126
  %v2398 = vpop.permute.xlu0 %2397
  %2399 = vrot.lane.b32.xlu0 %v2370, 126
  %v2400 = vpop.permute.xlu0 %2399
  %2401 = vrot.lane.b32.xlu0 %v2371, 126
  %v2402 = vpop.permute.xlu0 %2401
  %2403 = vrot.lane.b32.xlu0 %v2372, 126
  %v2404 = vpop.permute.xlu0 %2403
  %2405 = vrot.lane.b32.xlu0 %v2373, 126
  %v2406 = vpop.permute.xlu0 %2405
  %vm2407 = vcmask 1031168
  %v2408 = vsel %vm2407, %v2388, %v2390
  %v2409 = vsel %vm2407, %v2390, %v2392
  %v2410 = vsel %vm2407, %v2392, %v2394
  %v2411 = vsel %vm2407, %v2394, %v2396
  %v2412 = vsel %vm2407, %v2398, %v2400
  %v2413 = vsel %vm2407, %v2400, %v2402
  %v2414 = vsel %vm2407, %v2402, %v2404
  %v2415 = vsel %vm2407, %v2404, %v2406
  %v2425 = vsel %vm155, %v2375, 0
  %v2428 = vsel %vm155, %v2376, 0
  %v2430 = vand.u32 %v2409, 4294901760
  %2431 = vmatprep.subr.mxu0 %v2430
  %v2432 = vand.u32 %v2408, 4294901760
  %2433 = vmatpush1.msra.mxu0 %v2432
  %v2434 = vand.u32 %v2413, 4294901760
  %2435 = vmatprep.subr.mxu0 %v2434
  %v2436 = vand.u32 %v2412, 4294901760
  %2437 = vmatpush1.msra.mxu0 %v2436
  %2438 = vmatprep.subr.mxu0 0.0
  %2439 = vmatpush1.msra.mxu0 0.0
  %2440 = vmatprep.subr.mxu0 0.0
  %2441 = vmatpush1.msra.mxu0 0.0
  %2442 = vmatprep.subr.mxu0 0.0
  %2443 = vmatpush1.msra.mxu0 0.0
  %2444 = vmatprep.subr.mxu0 0.0
  %2445 = vmatpush1.msra.mxu0 0.0
  %2446 = vmatprep.subr.mxu0 0.0
  %2447 = vmatpush1.msra.mxu0 0.0
  %2448 = vmatprep.subr.mxu0 0.0
  %2449 = vmatpush1.msra.mxu0 0.0
  %2450 = vmatprep.subr.mxu0 0.0
  %2451 = vmatpush1.msra.mxu0 0.0
  %2452 = vmatprep.subr.mxu0 0.0
  %2453 = vmatpush1.msra.mxu0 0.0
  %2454 = vmatprep.subr.mxu0 0.0
  %2455 = vmatpush1.msra.mxu0 0.0
  %2456 = vmatprep.subr.mxu0 0.0
  %2457 = vmatpush1.msra.mxu0 0.0
  %2458 = vmatprep.subr.mxu0 0.0
  %2459 = vmatpush1.msra.mxu0 0.0
  %2460 = vmatprep.subr.mxu0 0.0
  %2461 = vmatpush1.msra.mxu0 0.0
  %2462 = vmatprep.subr.mxu0 0.0
  %2463 = vmatpush1.msra.mxu0 0.0
  %2464 = vmatprep.subr.mxu0 0.0
  %2465 = vmatpush1.msra.mxu0 0.0
  %2466 = vmatprep.subr.mxu0 0.0
  %2467 = vmatpush1.msra.mxu0 0.0
  %2468 = vmatprep.subr.mxu0 0.0
  %2469 = vmatpush1.msra.mxu0 0.0
  %2470 = vmatprep.subr.mxu0 0.0
  %2471 = vmatpush1.msra.mxu0 0.0
  %2472 = vmatprep.subr.mxu0 0.0
  %2473 = vmatpush1.msra.mxu0 0.0
  %2474 = vmatprep.subr.mxu0 0.0
  %2475 = vmatpush1.msra.mxu0 0.0
  %2476 = vmatprep.subr.mxu0 0.0
  %2477 = vmatpush1.msra.mxu0 0.0
  %2478 = vmatprep.subr.mxu0 0.0
  %2479 = vmatpush1.msra.mxu0 0.0
  %2480 = vmatprep.subr.mxu0 0.0
  %2481 = vmatpush1.msra.mxu0 0.0
  %2482 = vmatprep.subr.mxu0 0.0
  %2483 = vmatpush1.msra.mxu0 0.0
  %2484 = vmatprep.subr.mxu0 0.0
  %2485 = vmatpush1.msra.mxu0 0.0
  %2486 = vmatprep.subr.mxu0 0.0
  %2487 = vmatpush1.msra.mxu0 0.0
  %2488 = vmatprep.subr.mxu0 0.0
  %2489 = vmatpush1.msra.mxu0 0.0
  %2490 = vmatprep.subr.mxu0 0.0
  %2491 = vmatpush1.msra.mxu0 0.0
  %2492 = vmatprep.subr.mxu0 0.0
  %2493 = vmatpush1.msra.mxu0 0.0
  %2494 = vmatprep.subr.mxu0 0.0
  %2495 = vmatpush1.msra.mxu0 0.0
  %2496 = vmatprep.subr.mxu0 0.0
  %2497 = vmatpush1.msra.mxu0 0.0
  %2498 = vmatprep.mubr.f32.mxu0 0.0
  %v2499 = vand.u32 %v2425, 4294901760
  %v2500 = vsub.f32 %v2425, %v2499
  %v2501 = vand.u32 %v2500, 4294901760
  %v2502 = vsub.f32 %v2500, %v2501
  %v2503 = vand.u32 %v2502, 4294901760
  %2504 = vmatmul.mubr.f32.gmra.mrb[0].mxu0 %v2503
  %v2505 = vpop.f32.mrb[0].mxu0
  %v2506 = vadd.f32 0.0, %v2505
  %v2507 = vpop.f32.mrb[0].mxu0
  %v2508 = vadd.f32 0.0, %v2507
  %2509 = vmatprep.mubr.f32.mxu0 0.0
  %v2510 = vand.u32 %v2428, 4294901760
  %v2511 = vsub.f32 %v2428, %v2510
  %v2512 = vand.u32 %v2511, 4294901760
  %v2513 = vsub.f32 %v2511, %v2512
  %v2514 = vand.u32 %v2513, 4294901760
  %2515 = vmatmul.mubr.f32.gmra.mrb[0].mxu0 %v2514
  %v2516 = vpop.f32.mrb[0].mxu0
  %v2517 = vadd.f32 0.0, %v2516
  %v2518 = vpop.f32.mrb[0].mxu0
  %v2519 = vadd.f32 0.0, %v2518
  %2520 = vdwg.mxu0
  %v2521 = vand.u32 %v2409, 4294901760
  %v2522 = vsub.f32 %v2409, %v2521
  %v2523 = vand.u32 %v2522, 4294901760
  %v2524 = vsub.f32 %v2522, %v2523
  %v2525 = vand.u32 %v2524, 4294901760
  %2526 = vmatprep.subr.mxu0 %v2525
  %v2527 = vand.u32 %v2408, 4294901760
  %v2528 = vsub.f32 %v2408, %v2527
  %v2529 = vand.u32 %v2528, 4294901760
  %v2530 = vsub.f32 %v2528, %v2529
  %v2531 = vand.u32 %v2530, 4294901760
  %2532 = vmatpush1.msra.mxu0 %v2531
  %v2533 = vand.u32 %v2413, 4294901760
  %v2534 = vsub.f32 %v2413, %v2533
  %v2535 = vand.u32 %v2534, 4294901760
  %v2536 = vsub.f32 %v2534, %v2535
  %v2537 = vand.u32 %v2536, 4294901760
  %2538 = vmatprep.subr.mxu0 %v2537
  %v2539 = vand.u32 %v2412, 4294901760
  %v2540 = vsub.f32 %v2412, %v2539
  %v2541 = vand.u32 %v2540, 4294901760
  %v2542 = vsub.f32 %v2540, %v2541
  %v2543 = vand.u32 %v2542, 4294901760
  %2544 = vmatpush1.msra.mxu0 %v2543
  %2545 = vmatprep.subr.mxu0 0.0
  %2546 = vmatpush1.msra.mxu0 0.0
  %2547 = vmatprep.subr.mxu0 0.0
  %2548 = vmatpush1.msra.mxu0 0.0
  %2549 = vmatprep.subr.mxu0 0.0
  %2550 = vmatpush1.msra.mxu0 0.0
  %2551 = vmatprep.subr.mxu0 0.0
  %2552 = vmatpush1.msra.mxu0 0.0
  %2553 = vmatprep.subr.mxu0 0.0
  %2554 = vmatpush1.msra.mxu0 0.0
  %2555 = vmatprep.subr.mxu0 0.0
  %2556 = vmatpush1.msra.mxu0 0.0
  %2557 = vmatprep.subr.mxu0 0.0
  %2558 = vmatpush1.msra.mxu0 0.0
  %2559 = vmatprep.subr.mxu0 0.0
  %2560 = vmatpush1.msra.mxu0 0.0
  %2561 = vmatprep.subr.mxu0 0.0
  %2562 = vmatpush1.msra.mxu0 0.0
  %2563 = vmatprep.subr.mxu0 0.0
  %2564 = vmatpush1.msra.mxu0 0.0
  %2565 = vmatprep.subr.mxu0 0.0
  %2566 = vmatpush1.msra.mxu0 0.0
  %2567 = vmatprep.subr.mxu0 0.0
  %2568 = vmatpush1.msra.mxu0 0.0
  %2569 = vmatprep.subr.mxu0 0.0
  %2570 = vmatpush1.msra.mxu0 0.0
  %2571 = vmatprep.subr.mxu0 0.0
  %2572 = vmatpush1.msra.mxu0 0.0
  %2573 = vmatprep.subr.mxu0 0.0
  %2574 = vmatpush1.msra.mxu0 0.0
  %2575 = vmatprep.subr.mxu0 0.0
  %2576 = vmatpush1.msra.mxu0 0.0
  %2577 = vmatprep.subr.mxu0 0.0
  %2578 = vmatpush1.msra.mxu0 0.0
  %2579 = vmatprep.subr.mxu0 0.0
  %2580 = vmatpush1.msra.mxu0 0.0
  %2581 = vmatprep.subr.mxu0 0.0
  %2582 = vmatpush1.msra.mxu0 0.0
  %2583 = vmatprep.subr.mxu0 0.0
  %2584 = vmatpush1.msra.mxu0 0.0
  %2585 = vmatprep.subr.mxu0 0.0
  %2586 = vmatpush1.msra.mxu0 0.0
  %2587 = vmatprep.subr.mxu0 0.0
  %2588 = vmatpush1.msra.mxu0 0.0
  %2589 = vmatprep.subr.mxu0 0.0
  %2590 = vmatpush1.msra.mxu0 0.0
  %2591 = vmatprep.subr.mxu0 0.0
  %2592 = vmatpush1.msra.mxu0 0.0
  %2593 = vmatprep.subr.mxu0 0.0
  %2594 = vmatpush1.msra.mxu0 0.0
  %2595 = vmatprep.subr.mxu0 0.0
  %2596 = vmatpush1.msra.mxu0 0.0
  %2597 = vmatprep.subr.mxu0 0.0
  %2598 = vmatpush1.msra.mxu0 0.0
  %2599 = vmatprep.subr.mxu0 0.0
  %2600 = vmatpush1.msra.mxu0 0.0
  %2601 = vmatprep.subr.mxu0 0.0
  %2602 = vmatpush1.msra.mxu0 0.0
  %2603 = vmatprep.subr.mxu0 0.0
  %2604 = vmatpush1.msra.mxu0 0.0
  %2605 = vmatprep.mubr.f32.mxu0 0.0
  %v2606 = vand.u32 %v2425, 4294901760
  %2607 = vmatmul.mubr.f32.gmra.mrb[0].mxu0 %v2606
  %v2608 = vpop.f32.mrb[0].mxu0
  %v2609 = vadd.f32 %v2506, %v2608
  %v2610 = vpop.f32.mrb[0].mxu0
  %v2611 = vadd.f32 %v2508, %v2610
  %2612 = vmatprep.mubr.f32.mxu0 0.0
  %v2613 = vand.u32 %v2428, 4294901760
  %2614 = vmatmul.mubr.f32.gmra.mrb[0].mxu0 %v2613
  %v2615 = vpop.f32.mrb[0].mxu0
  %v2616 = vadd.f32 %v2517, %v2615
  %v2617 = vpop.f32.mrb[0].mxu0
  %v2618 = vadd.f32 %v2519, %v2617
  %2619 = vdwg.mxu0
  %v2620 = vand.u32 %v2409, 4294901760
  %v2621 = vsub.f32 %v2409, %v2620
  %2622 = vmatprep.subr.mxu0 %v2621
  %v2623 = vand.u32 %v2408, 4294901760
  %v2624 = vsub.f32 %v2408, %v2623
  %2625 = vmatpush1.msra.mxu0 %v2624
  %v2626 = vand.u32 %v2413, 4294901760
  %v2627 = vsub.f32 %v2413, %v2626
  %2628 = vmatprep.subr.mxu0 %v2627
  %v2629 = vand.u32 %v2412, 4294901760
  %v2630 = vsub.f32 %v2412, %v2629
  %2631 = vmatpush1.msra.mxu0 %v2630
  %2632 = vmatprep.subr.mxu0 0.0
  %2633 = vmatpush1.msra.mxu0 0.0
  %2634 = vmatprep.subr.mxu0 0.0
  %2635 = vmatpush1.msra.mxu0 0.0
  %2636 = vmatprep.subr.mxu0 0.0
  %2637 = vmatpush1.msra.mxu0 0.0
  %2638 = vmatprep.subr.mxu0 0.0
  %2639 = vmatpush1.msra.mxu0 0.0
  %2640 = vmatprep.subr.mxu0 0.0
  %2641 = vmatpush1.msra.mxu0 0.0
  %2642 = vmatprep.subr.mxu0 0.0
  %2643 = vmatpush1.msra.mxu0 0.0
  %2644 = vmatprep.subr.mxu0 0.0
  %2645 = vmatpush1.msra.mxu0 0.0
  %2646 = vmatprep.subr.mxu0 0.0
  %2647 = vmatpush1.msra.mxu0 0.0
  %2648 = vmatprep.subr.mxu0 0.0
  %2649 = vmatpush1.msra.mxu0 0.0
  %2650 = vmatprep.subr.mxu0 0.0
  %2651 = vmatpush1.msra.mxu0 0.0
  %2652 = vmatprep.subr.mxu0 0.0
  %2653 = vmatpush1.msra.mxu0 0.0
  %2654 = vmatprep.subr.mxu0 0.0
  %2655 = vmatpush1.msra.mxu0 0.0
  %2656 = vmatprep.subr.mxu0 0.0
  %2657 = vmatpush1.msra.mxu0 0.0
  %2658 = vmatprep.subr.mxu0 0.0
  %2659 = vmatpush1.msra.mxu0 0.0
  %2660 = vmatprep.subr.mxu0 0.0
  %2661 = vmatpush1.msra.mxu0 0.0
  %2662 = vmatprep.subr.mxu0 0.0
  %2663 = vmatpush1.msra.mxu0 0.0
  %2664 = vmatprep.subr.mxu0 0.0
  %2665 = vmatpush1.msra.mxu0 0.0
  %2666 = vmatprep.subr.mxu0 0.0
  %2667 = vmatpush1.msra.mxu0 0.0
  %2668 = vmatprep.subr.mxu0 0.0
  %2669 = vmatpush1.msra.mxu0 0.0
  %2670 = vmatprep.subr.mxu0 0.0
  %2671 = vmatpush1.msra.mxu0 0.0
  %2672 = vmatprep.subr.mxu0 0.0
  %2673 = vmatpush1.msra.mxu0 0.0
  %2674 = vmatprep.subr.mxu0 0.0
  %2675 = vmatpush1.msra.mxu0 0.0
  %2676 = vmatprep.subr.mxu0 0.0
  %2677 = vmatpush1.msra.mxu0 0.0
  %2678 = vmatprep.subr.mxu0 0.0
  %2679 = vmatpush1.msra.mxu0 0.0
  %2680 = vmatprep.subr.mxu0 0.0
  %2681 = vmatpush1.msra.mxu0 0.0
  %2682 = vmatprep.subr.mxu0 0.0
  %2683 = vmatpush1.msra.mxu0 0.0
  %2684 = vmatprep.subr.mxu0 0.0
  %2685 = vmatpush1.msra.mxu0 0.0
  %2686 = vmatprep.subr.mxu0 0.0
  %2687 = vmatpush1.msra.mxu0 0.0
  %2688 = vmatprep.subr.mxu0 0.0
  %2689 = vmatpush1.msra.mxu0 0.0
  %2690 = vmatprep.subr.mxu0 0.0
  %2691 = vmatpush1.msra.mxu0 0.0
  %2692 = vmatprep.mubr.f32.mxu0 0.0
  %v2693 = vand.u32 %v2425, 4294901760
  %v2694 = vsub.f32 %v2425, %v2693
  %2695 = vmatmul.mubr.f32.gmra.mrb[0].mxu0 %v2694
  %v2696 = vpop.f32.mrb[0].mxu0
  %v2697 = vadd.f32 %v2609, %v2696
  %v2698 = vpop.f32.mrb[0].mxu0
  %v2699 = vadd.f32 %v2611, %v2698
  %2700 = vmatprep.mubr.f32.mxu0 0.0
  %v2701 = vand.u32 %v2428, 4294901760
  %v2702 = vsub.f32 %v2428, %v2701
  %2703 = vmatmul.mubr.f32.gmra.mrb[0].mxu0 %v2702
  %v2704 = vpop.f32.mrb[0].mxu0
  %v2705 = vadd.f32 %v2616, %v2704
  %v2706 = vpop.f32.mrb[0].mxu0
  %v2707 = vadd.f32 %v2618, %v2706
  %2708 = vdwg.mxu0
  %v2709 = vand.u32 %v2409, 4294901760
  %2710 = vmatprep.subr.mxu0 %v2709
  %v2711 = vand.u32 %v2408, 4294901760
  %2712 = vmatpush1.msra.mxu0 %v2711
  %v2713 = vand.u32 %v2413, 4294901760
  %2714 = vmatprep.subr.mxu0 %v2713
  %v2715 = vand.u32 %v2412, 4294901760
  %2716 = vmatpush1.msra.mxu0 %v2715
  %2717 = vmatprep.subr.mxu0 0.0
  %2718 = vmatpush1.msra.mxu0 0.0
  %2719 = vmatprep.subr.mxu0 0.0
  %2720 = vmatpush1.msra.mxu0 0.0
  %2721 = vmatprep.subr.mxu0 0.0
  %2722 = vmatpush1.msra.mxu0 0.0
  %2723 = vmatprep.subr.mxu0 0.0
  %2724 = vmatpush1.msra.mxu0 0.0
  %2725 = vmatprep.subr.mxu0 0.0
  %2726 = vmatpush1.msra.mxu0 0.0
  %2727 = vmatprep.subr.mxu0 0.0
  %2728 = vmatpush1.msra.mxu0 0.0
  %2729 = vmatprep.subr.mxu0 0.0
  %2730 = vmatpush1.msra.mxu0 0.0
  %2731 = vmatprep.subr.mxu0 0.0
  %2732 = vmatpush1.msra.mxu0 0.0
  %2733 = vmatprep.subr.mxu0 0.0
  %2734 = vmatpush1.msra.mxu0 0.0
  %2735 = vmatprep.subr.mxu0 0.0
  %2736 = vmatpush1.msra.mxu0 0.0
  %2737 = vmatprep.subr.mxu0 0.0
  %2738 = vmatpush1.msra.mxu0 0.0
  %2739 = vmatprep.subr.mxu0 0.0
  %2740 = vmatpush1.msra.mxu0 0.0
  %2741 = vmatprep.subr.mxu0 0.0
  %2742 = vmatpush1.msra.mxu0 0.0
  %2743 = vmatprep.subr.mxu0 0.0
  %2744 = vmatpush1.msra.mxu0 0.0
  %2745 = vmatprep.subr.mxu0 0.0
  %2746 = vmatpush1.msra.mxu0 0.0
  %2747 = vmatprep.subr.mxu0 0.0
  %2748 = vmatpush1.msra.mxu0 0.0
  %2749 = vmatprep.subr.mxu0 0.0
  %2750 = vmatpush1.msra.mxu0 0.0
  %2751 = vmatprep.subr.mxu0 0.0
  %2752 = vmatpush1.msra.mxu0 0.0
  %2753 = vmatprep.subr.mxu0 0.0
  %2754 = vmatpush1.msra.mxu0 0.0
  %2755 = vmatprep.subr.mxu0 0.0
  %2756 = vmatpush1.msra.mxu0 0.0
  %2757 = vmatprep.subr.mxu0 0.0
  %2758 = vmatpush1.msra.mxu0 0.0
  %2759 = vmatprep.subr.mxu0 0.0
  %2760 = vmatpush1.msra.mxu0 0.0
  %2761 = vmatprep.subr.mxu0 0.0
  %2762 = vmatpush1.msra.mxu0 0.0
  %2763 = vmatprep.subr.mxu0 0.0
  %2764 = vmatpush1.msra.mxu0 0.0
  %2765 = vmatprep.subr.mxu0 0.0
  %2766 = vmatpush1.msra.mxu0 0.0
  %2767 = vmatprep.subr.mxu0 0.0
  %2768 = vmatpush1.msra.mxu0 0.0
  %2769 = vmatprep.subr.mxu0 0.0
  %2770 = vmatpush1.msra.mxu0 0.0
  %2771 = vmatprep.subr.mxu0 0.0
  %2772 = vmatpush1.msra.mxu0 0.0
  %2773 = vmatprep.subr.mxu0 0.0
  %2774 = vmatpush1.msra.mxu0 0.0
  %2775 = vmatprep.subr.mxu0 0.0
  %2776 = vmatpush1.msra.mxu0 0.0
  %2777 = vmatprep.mubr.f32.mxu0 0.0
  %v2778 = vand.u32 %v2425, 4294901760
  %v2779 = vsub.f32 %v2425, %v2778
  %v2780 = vand.u32 %v2779, 4294901760
  %2781 = vmatmul.mubr.f32.gmra.mrb[0].mxu0 %v2780
  %v2782 = vpop.f32.mrb[0].mxu0
  %v2783 = vadd.f32 %v2697, %v2782
  %v2784 = vpop.f32.mrb[0].mxu0
  %v2785 = vadd.f32 %v2699, %v2784
  %2786 = vmatprep.mubr.f32.mxu0 0.0
  %v2787 = vand.u32 %v2428, 4294901760
  %v2788 = vsub.f32 %v2428, %v2787
  %v2789 = vand.u32 %v2788, 4294901760
  %2790 = vmatmul.mubr.f32.gmra.mrb[0].mxu0 %v2789
  %v2791 = vpop.f32.mrb[0].mxu0
  %v2792 = vadd.f32 %v2705, %v2791
  %v2793 = vpop.f32.mrb[0].mxu0
  %v2794 = vadd.f32 %v2707, %v2793
  %2795 = vdwg.mxu0
  %v2796 = vand.u32 %v2409, 4294901760
  %v2797 = vsub.f32 %v2409, %v2796
  %v2798 = vand.u32 %v2797, 4294901760
  %2799 = vmatprep.subr.mxu0 %v2798
  %v2800 = vand.u32 %v2408, 4294901760
  %v2801 = vsub.f32 %v2408, %v2800
  %v2802 = vand.u32 %v2801, 4294901760
  %2803 = vmatpush1.msra.mxu0 %v2802
  %v2804 = vand.u32 %v2413, 4294901760
  %v2805 = vsub.f32 %v2413, %v2804
  %v2806 = vand.u32 %v2805, 4294901760
  %2807 = vmatprep.subr.mxu0 %v2806
  %v2808 = vand.u32 %v2412, 4294901760
  %v2809 = vsub.f32 %v2412, %v2808
  %v2810 = vand.u32 %v2809, 4294901760
  %2811 = vmatpush1.msra.mxu0 %v2810
  %2812 = vmatprep.subr.mxu0 0.0
  %2813 = vmatpush1.msra.mxu0 0.0
  %2814 = vmatprep.subr.mxu0 0.0
  %2815 = vmatpush1.msra.mxu0 0.0
  %2816 = vmatprep.subr.mxu0 0.0
  %2817 = vmatpush1.msra.mxu0 0.0
  %2818 = vmatprep.subr.mxu0 0.0
  %2819 = vmatpush1.msra.mxu0 0.0
  %2820 = vmatprep.subr.mxu0 0.0
  %2821 = vmatpush1.msra.mxu0 0.0
  %2822 = vmatprep.subr.mxu0 0.0
  %2823 = vmatpush1.msra.mxu0 0.0
  %2824 = vmatprep.subr.mxu0 0.0
  %2825 = vmatpush1.msra.mxu0 0.0
  %2826 = vmatprep.subr.mxu0 0.0
  %2827 = vmatpush1.msra.mxu0 0.0
  %2828 = vmatprep.subr.mxu0 0.0
  %2829 = vmatpush1.msra.mxu0 0.0
  %2830 = vmatprep.subr.mxu0 0.0
  %2831 = vmatpush1.msra.mxu0 0.0
  %2832 = vmatprep.subr.mxu0 0.0
  %2833 = vmatpush1.msra.mxu0 0.0
  %2834 = vmatprep.subr.mxu0 0.0
  %2835 = vmatpush1.msra.mxu0 0.0
  %2836 = vmatprep.subr.mxu0 0.0
  %2837 = vmatpush1.msra.mxu0 0.0
  %2838 = vmatprep.subr.mxu0 0.0
  %2839 = vmatpush1.msra.mxu0 0.0
  %2840 = vmatprep.subr.mxu0 0.0
  %2841 = vmatpush1.msra.mxu0 0.0
  %2842 = vmatprep.subr.mxu0 0.0
  %2843 = vmatpush1.msra.mxu0 0.0
  %2844 = vmatprep.subr.mxu0 0.0
  %2845 = vmatpush1.msra.mxu0 0.0
  %2846 = vmatprep.subr.mxu0 0.0
  %2847 = vmatpush1.msra.mxu0 0.0
  %2848 = vmatprep.subr.mxu0 0.0
  %2849 = vmatpush1.msra.mxu0 0.0
  %2850 = vmatprep.subr.mxu0 0.0
  %2851 = vmatpush1.msra.mxu0 0.0
  %2852 = vmatprep.subr.mxu0 0.0
  %2853 = vmatpush1.msra.mxu0 0.0
  %2854 = vmatprep.subr.mxu0 0.0
  %2855 = vmatpush1.msra.mxu0 0.0
  %2856 = vmatprep.subr.mxu0 0.0
  %2857 = vmatpush1.msra.mxu0 0.0
  %2858 = vmatprep.subr.mxu0 0.0
  %2859 = vmatpush1.msra.mxu0 0.0
  %2860 = vmatprep.subr.mxu0 0.0
  %2861 = vmatpush1.msra.mxu0 0.0
  %2862 = vmatprep.subr.mxu0 0.0
  %2863 = vmatpush1.msra.mxu0 0.0
  %2864 = vmatprep.subr.mxu0 0.0
  %2865 = vmatpush1.msra.mxu0 0.0
  %2866 = vmatprep.subr.mxu0 0.0
  %2867 = vmatpush1.msra.mxu0 0.0
  %2868 = vmatprep.subr.mxu0 0.0
  %2869 = vmatpush1.msra.mxu0 0.0
  %2870 = vmatprep.subr.mxu0 0.0
  %2871 = vmatpush1.msra.mxu0 0.0
  %2872 = vmatprep.mubr.f32.mxu0 0.0
  %v2873 = vand.u32 %v2425, 4294901760
  %2874 = vmatmul.mubr.f32.gmra.mrb[0].mxu0 %v2873
  %v2875 = vpop.f32.mrb[0].mxu0
  %v2876 = vadd.f32 %v2783, %v2875
  %v2877 = vpop.f32.mrb[0].mxu0
  %v2878 = vadd.f32 %v2785, %v2877
  %2879 = vmatprep.mubr.f32.mxu0 0.0
  %v2880 = vand.u32 %v2428, 4294901760
  %2881 = vmatmul.mubr.f32.gmra.mrb[0].mxu0 %v2880
  %v2882 = vpop.f32.mrb[0].mxu0
  %v2883 = vadd.f32 %v2792, %v2882
  %v2884 = vpop.f32.mrb[0].mxu0
  %v2885 = vadd.f32 %v2794, %v2884
  %2886 = vdwg.mxu0
  %v2887 = vand.u32 %v2409, 4294901760
  %2888 = vmatprep.subr.mxu0 %v2887
  %v2889 = vand.u32 %v2408, 4294901760
  %2890 = vmatpush1.msra.mxu0 %v2889
  %v2891 = vand.u32 %v2413, 4294901760
  %2892 = vmatprep.subr.mxu0 %v2891
  %v2893 = vand.u32 %v2412, 4294901760
  %2894 = vmatpush1.msra.mxu0 %v2893
  %2895 = vmatprep.subr.mxu0 0.0
  %2896 = vmatpush1.msra.mxu0 0.0
  %2897 = vmatprep.subr.mxu0 0.0
  %2898 = vmatpush1.msra.mxu0 0.0
  %2899 = vmatprep.subr.mxu0 0.0
  %2900 = vmatpush1.msra.mxu0 0.0
  %2901 = vmatprep.subr.mxu0 0.0
  %2902 = vmatpush1.msra.mxu0 0.0
  %2903 = vmatprep.subr.mxu0 0.0
  %2904 = vmatpush1.msra.mxu0 0.0
  %2905 = vmatprep.subr.mxu0 0.0
  %2906 = vmatpush1.msra.mxu0 0.0
  %2907 = vmatprep.subr.mxu0 0.0
  %2908 = vmatpush1.msra.mxu0 0.0
  %2909 = vmatprep.subr.mxu0 0.0
  %2910 = vmatpush1.msra.mxu0 0.0
  %2911 = vmatprep.subr.mxu0 0.0
  %2912 = vmatpush1.msra.mxu0 0.0
  %2913 = vmatprep.subr.mxu0 0.0
  %2914 = vmatpush1.msra.mxu0 0.0
  %2915 = vmatprep.subr.mxu0 0.0
  %2916 = vmatpush1.msra.mxu0 0.0
  %2917 = vmatprep.subr.mxu0 0.0
  %2918 = vmatpush1.msra.mxu0 0.0
  %2919 = vmatprep.subr.mxu0 0.0
  %2920 = vmatpush1.msra.mxu0 0.0
  %2921 = vmatprep.subr.mxu0 0.0
  %2922 = vmatpush1.msra.mxu0 0.0
  %2923 = vmatprep.subr.mxu0 0.0
  %2924 = vmatpush1.msra.mxu0 0.0
  %2925 = vmatprep.subr.mxu0 0.0
  %2926 = vmatpush1.msra.mxu0 0.0
  %2927 = vmatprep.subr.mxu0 0.0
  %2928 = vmatpush1.msra.mxu0 0.0
  %2929 = vmatprep.subr.mxu0 0.0
  %2930 = vmatpush1.msra.mxu0 0.0
  %2931 = vmatprep.subr.mxu0 0.0
  %2932 = vmatpush1.msra.mxu0 0.0
  %2933 = vmatprep.subr.mxu0 0.0
  %2934 = vmatpush1.msra.mxu0 0.0
  %2935 = vmatprep.subr.mxu0 0.0
  %2936 = vmatpush1.msra.mxu0 0.0
  %2937 = vmatprep.subr.mxu0 0.0
  %2938 = vmatpush1.msra.mxu0 0.0
  %2939 = vmatprep.subr.mxu0 0.0
  %2940 = vmatpush1.msra.mxu0 0.0
  %2941 = vmatprep.subr.mxu0 0.0
  %2942 = vmatpush1.msra.mxu0 0.0
  %2943 = vmatprep.subr.mxu0 0.0
  %2944 = vmatpush1.msra.mxu0 0.0
  %2945 = vmatprep.subr.mxu0 0.0
  %2946 = vmatpush1.msra.mxu0 0.0
  %2947 = vmatprep.subr.mxu0 0.0
  %2948 = vmatpush1.msra.mxu0 0.0
  %2949 = vmatprep.subr.mxu0 0.0
  %2950 = vmatpush1.msra.mxu0 0.0
  %2951 = vmatprep.subr.mxu0 0.0
  %2952 = vmatpush1.msra.mxu0 0.0
  %2953 = vmatprep.subr.mxu0 0.0
  %2954 = vmatpush1.msra.mxu0 0.0
  %2955 = vmatprep.mubr.f32.mxu0 0.0
  %v2956 = vand.u32 %v2425, 4294901760
  %2957 = vmatmul.mubr.f32.gmra.mrb[0].mxu0 %v2956
  %v2958 = vpop.f32.mrb[0].mxu0
  %v2959 = vadd.f32 %v2876, %v2958
  %v2960 = vpop.f32.mrb[0].mxu0
  %v2961 = vadd.f32 %v2878, %v2960
  %2962 = vmatprep.mubr.f32.mxu0 0.0
  %v2963 = vand.u32 %v2428, 4294901760
  %2964 = vmatmul.mubr.f32.gmra.mrb[0].mxu0 %v2963
  %v2965 = vpop.f32.mrb[0].mxu0
  %v2966 = vadd.f32 %v2883, %v2965
  %v2967 = vpop.f32.mrb[0].mxu0
  %v2968 = vadd.f32 %v2885, %v2967
  %2969 = vdwg.mxu0
  %v2970 = vand.u32 %v2411, 4294901760
  %2971 = vmatprep.subr.mxu0 %v2970
  %v2972 = vand.u32 %v2410, 4294901760
  %2973 = vmatpush1.msra.mxu0 %v2972
  %v2974 = vand.u32 %v2415, 4294901760
  %2975 = vmatprep.subr.mxu0 %v2974
  %v2976 = vand.u32 %v2414, 4294901760
  %2977 = vmatpush1.msra.mxu0 %v2976
  %2978 = vmatprep.subr.mxu0 0.0
  %2979 = vmatpush1.msra.mxu0 0.0
  %2980 = vmatprep.subr.mxu0 0.0
  %2981 = vmatpush1.msra.mxu0 0.0
  %2982 = vmatprep.subr.mxu0 0.0
  %2983 = vmatpush1.msra.mxu0 0.0
  %2984 = vmatprep.subr.mxu0 0.0
  %2985 = vmatpush1.msra.mxu0 0.0
  %2986 = vmatprep.subr.mxu0 0.0
  %2987 = vmatpush1.msra.mxu0 0.0
  %2988 = vmatprep.subr.mxu0 0.0
  %2989 = vmatpush1.msra.mxu0 0.0
  %2990 = vmatprep.subr.mxu0 0.0
  %2991 = vmatpush1.msra.mxu0 0.0
  %2992 = vmatprep.subr.mxu0 0.0
  %2993 = vmatpush1.msra.mxu0 0.0
  %2994 = vmatprep.subr.mxu0 0.0
  %2995 = vmatpush1.msra.mxu0 0.0
  %2996 = vmatprep.subr.mxu0 0.0
  %2997 = vmatpush1.msra.mxu0 0.0
  %2998 = vmatprep.subr.mxu0 0.0
  %2999 = vmatpush1.msra.mxu0 0.0
  %3000 = vmatprep.subr.mxu0 0.0
  %3001 = vmatpush1.msra.mxu0 0.0
  %3002 = vmatprep.subr.mxu0 0.0
  %3003 = vmatpush1.msra.mxu0 0.0
  %3004 = vmatprep.subr.mxu0 0.0
  %3005 = vmatpush1.msra.mxu0 0.0
  %3006 = vmatprep.subr.mxu0 0.0
  %3007 = vmatpush1.msra.mxu0 0.0
  %3008 = vmatprep.subr.mxu0 0.0
  %3009 = vmatpush1.msra.mxu0 0.0
  %3010 = vmatprep.subr.mxu0 0.0
  %3011 = vmatpush1.msra.mxu0 0.0
  %3012 = vmatprep.subr.mxu0 0.0
  %3013 = vmatpush1.msra.mxu0 0.0
  %3014 = vmatprep.subr.mxu0 0.0
  %3015 = vmatpush1.msra.mxu0 0.0
  %3016 = vmatprep.subr.mxu0 0.0
  %3017 = vmatpush1.msra.mxu0 0.0
  %3018 = vmatprep.subr.mxu0 0.0
  %3019 = vmatpush1.msra.mxu0 0.0
  %3020 = vmatprep.subr.mxu0 0.0
  %3021 = vmatpush1.msra.mxu0 0.0
  %3022 = vmatprep.subr.mxu0 0.0
  %3023 = vmatpush1.msra.mxu0 0.0
  %3024 = vmatprep.subr.mxu0 0.0
  %3025 = vmatpush1.msra.mxu0 0.0
  %3026 = vmatprep.subr.mxu0 0.0
  %3027 = vmatpush1.msra.mxu0 0.0
  %3028 = vmatprep.subr.mxu0 0.0
  %3029 = vmatpush1.msra.mxu0 0.0
  %3030 = vmatprep.subr.mxu0 0.0
  %3031 = vmatpush1.msra.mxu0 0.0
  %3032 = vmatprep.subr.mxu0 0.0
  %3033 = vmatpush1.msra.mxu0 0.0
  %3034 = vmatprep.subr.mxu0 0.0
  %3035 = vmatpush1.msra.mxu0 0.0
  %3036 = vmatprep.subr.mxu0 0.0
  %3037 = vmatpush1.msra.mxu0 0.0
  %3038 = vmatprep.mubr.f32.mxu0 0.0
  %v3039 = vand.u32 %v2425, 4294901760
  %v3040 = vsub.f32 %v2425, %v3039
  %v3041 = vand.u32 %v3040, 4294901760
  %v3042 = vsub.f32 %v3040, %v3041
  %v3043 = vand.u32 %v3042, 4294901760
  %3044 = vmatmul.mubr.f32.gmra.mrb[0].mxu0 %v3043
  %v3045 = vpop.f32.mrb[0].mxu0
  %v3046 = vadd.f32 0.0, %v3045
  %v3047 = vpop.f32.mrb[0].mxu0
  %v3048 = vadd.f32 0.0, %v3047
  %3049 = vmatprep.mubr.f32.mxu0 0.0
  %v3050 = vand.u32 %v2428, 4294901760
  %v3051 = vsub.f32 %v2428, %v3050
  %v3052 = vand.u32 %v3051, 4294901760
  %v3053 = vsub.f32 %v3051, %v3052
  %v3054 = vand.u32 %v3053, 4294901760
  %3055 = vmatmul.mubr.f32.gmra.mrb[0].mxu0 %v3054
  %v3056 = vpop.f32.mrb[0].mxu0
  %v3057 = vadd.f32 0.0, %v3056
  %v3058 = vpop.f32.mrb[0].mxu0
  %v3059 = vadd.f32 0.0, %v3058
  %3060 = vdwg.mxu0
  %v3061 = vand.u32 %v2411, 4294901760
  %v3062 = vsub.f32 %v2411, %v3061
  %v3063 = vand.u32 %v3062, 4294901760
  %v3064 = vsub.f32 %v3062, %v3063
  %v3065 = vand.u32 %v3064, 4294901760
  %3066 = vmatprep.subr.mxu0 %v3065
  %v3067 = vand.u32 %v2410, 4294901760
  %v3068 = vsub.f32 %v2410, %v3067
  %v3069 = vand.u32 %v3068, 4294901760
  %v3070 = vsub.f32 %v3068, %v3069
  %v3071 = vand.u32 %v3070, 4294901760
  %3072 = vmatpush1.msra.mxu0 %v3071
  %v3073 = vand.u32 %v2415, 4294901760
  %v3074 = vsub.f32 %v2415, %v3073
  %v3075 = vand.u32 %v3074, 4294901760
  %v3076 = vsub.f32 %v3074, %v3075
  %v3077 = vand.u32 %v3076, 4294901760
  %3078 = vmatprep.subr.mxu0 %v3077
  %v3079 = vand.u32 %v2414, 4294901760
  %v3080 = vsub.f32 %v2414, %v3079
  %v3081 = vand.u32 %v3080, 4294901760
  %v3082 = vsub.f32 %v3080, %v3081
  %v3083 = vand.u32 %v3082, 4294901760
  %3084 = vmatpush1.msra.mxu0 %v3083
  %3085 = vmatprep.subr.mxu0 0.0
  %3086 = vmatpush1.msra.mxu0 0.0
  %3087 = vmatprep.subr.mxu0 0.0
  %3088 = vmatpush1.msra.mxu0 0.0
  %3089 = vmatprep.subr.mxu0 0.0
  %3090 = vmatpush1.msra.mxu0 0.0
  %3091 = vmatprep.subr.mxu0 0.0
  %3092 = vmatpush1.msra.mxu0 0.0
  %3093 = vmatprep.subr.mxu0 0.0
  %3094 = vmatpush1.msra.mxu0 0.0
  %3095 = vmatprep.subr.mxu0 0.0
  %3096 = vmatpush1.msra.mxu0 0.0
  %3097 = vmatprep.subr.mxu0 0.0
  %3098 = vmatpush1.msra.mxu0 0.0
  %3099 = vmatprep.subr.mxu0 0.0
  %3100 = vmatpush1.msra.mxu0 0.0
  %3101 = vmatprep.subr.mxu0 0.0
  %3102 = vmatpush1.msra.mxu0 0.0
  %3103 = vmatprep.subr.mxu0 0.0
  %3104 = vmatpush1.msra.mxu0 0.0
  %3105 = vmatprep.subr.mxu0 0.0
  %3106 = vmatpush1.msra.mxu0 0.0
  %3107 = vmatprep.subr.mxu0 0.0
  %3108 = vmatpush1.msra.mxu0 0.0
  %3109 = vmatprep.subr.mxu0 0.0
  %3110 = vmatpush1.msra.mxu0 0.0
  %3111 = vmatprep.subr.mxu0 0.0
  %3112 = vmatpush1.msra.mxu0 0.0
  %3113 = vmatprep.subr.mxu0 0.0
  %3114 = vmatpush1.msra.mxu0 0.0
  %3115 = vmatprep.subr.mxu0 0.0
  %3116 = vmatpush1.msra.mxu0 0.0
  %3117 = vmatprep.subr.mxu0 0.0
  %3118 = vmatpush1.msra.mxu0 0.0
  %3119 = vmatprep.subr.mxu0 0.0
  %3120 = vmatpush1.msra.mxu0 0.0
  %3121 = vmatprep.subr.mxu0 0.0
  %3122 = vmatpush1.msra.mxu0 0.0
  %3123 = vmatprep.subr.mxu0 0.0
  %3124 = vmatpush1.msra.mxu0 0.0
  %3125 = vmatprep.subr.mxu0 0.0
  %3126 = vmatpush1.msra.mxu0 0.0
  %3127 = vmatprep.subr.mxu0 0.0
  %3128 = vmatpush1.msra.mxu0 0.0
  %3129 = vmatprep.subr.mxu0 0.0
  %3130 = vmatpush1.msra.mxu0 0.0
  %3131 = vmatprep.subr.mxu0 0.0
  %3132 = vmatpush1.msra.mxu0 0.0
  %3133 = vmatprep.subr.mxu0 0.0
  %3134 = vmatpush1.msra.mxu0 0.0
  %3135 = vmatprep.subr.mxu0 0.0
  %3136 = vmatpush1.msra.mxu0 0.0
  %3137 = vmatprep.subr.mxu0 0.0
  %3138 = vmatpush1.msra.mxu0 0.0
  %3139 = vmatprep.subr.mxu0 0.0
  %3140 = vmatpush1.msra.mxu0 0.0
  %3141 = vmatprep.subr.mxu0 0.0
  %3142 = vmatpush1.msra.mxu0 0.0
  %3143 = vmatprep.subr.mxu0 0.0
  %3144 = vmatpush1.msra.mxu0 0.0
  %3145 = vmatprep.mubr.f32.mxu0 0.0
  %v3146 = vand.u32 %v2425, 4294901760
  %3147 = vmatmul.mubr.f32.gmra.mrb[0].mxu0 %v3146
  %v3148 = vpop.f32.mrb[0].mxu0
  %v3149 = vadd.f32 %v3046, %v3148
  %v3150 = vpop.f32.mrb[0].mxu0
  %v3151 = vadd.f32 %v3048, %v3150
  %3152 = vmatprep.mubr.f32.mxu0 0.0
  %v3153 = vand.u32 %v2428, 4294901760
  %3154 = vmatmul.mubr.f32.gmra.mrb[0].mxu0 %v3153
  %v3155 = vpop.f32.mrb[0].mxu0
  %v3156 = vadd.f32 %v3057, %v3155
  %v3157 = vpop.f32.mrb[0].mxu0
  %v3158 = vadd.f32 %v3059, %v3157
  %3159 = vdwg.mxu0
  %v3160 = vand.u32 %v2411, 4294901760
  %v3161 = vsub.f32 %v2411, %v3160
  %3162 = vmatprep.subr.mxu0 %v3161
  %v3163 = vand.u32 %v2410, 4294901760
  %v3164 = vsub.f32 %v2410, %v3163
  %3165 = vmatpush1.msra.mxu0 %v3164
  %v3166 = vand.u32 %v2415, 4294901760
  %v3167 = vsub.f32 %v2415, %v3166
  %3168 = vmatprep.subr.mxu0 %v3167
  %v3169 = vand.u32 %v2414, 4294901760
  %v3170 = vsub.f32 %v2414, %v3169
  %3171 = vmatpush1.msra.mxu0 %v3170
  %3172 = vmatprep.subr.mxu0 0.0
  %3173 = vmatpush1.msra.mxu0 0.0
  %3174 = vmatprep.subr.mxu0 0.0
  %3175 = vmatpush1.msra.mxu0 0.0
  %3176 = vmatprep.subr.mxu0 0.0
  %3177 = vmatpush1.msra.mxu0 0.0
  %3178 = vmatprep.subr.mxu0 0.0
  %3179 = vmatpush1.msra.mxu0 0.0
  %3180 = vmatprep.subr.mxu0 0.0
  %3181 = vmatpush1.msra.mxu0 0.0
  %3182 = vmatprep.subr.mxu0 0.0
  %3183 = vmatpush1.msra.mxu0 0.0
  %3184 = vmatprep.subr.mxu0 0.0
  %3185 = vmatpush1.msra.mxu0 0.0
  %3186 = vmatprep.subr.mxu0 0.0
  %3187 = vmatpush1.msra.mxu0 0.0
  %3188 = vmatprep.subr.mxu0 0.0
  %3189 = vmatpush1.msra.mxu0 0.0
  %3190 = vmatprep.subr.mxu0 0.0
  %3191 = vmatpush1.msra.mxu0 0.0
  %3192 = vmatprep.subr.mxu0 0.0
  %3193 = vmatpush1.msra.mxu0 0.0
  %3194 = vmatprep.subr.mxu0 0.0
  %3195 = vmatpush1.msra.mxu0 0.0
  %3196 = vmatprep.subr.mxu0 0.0
  %3197 = vmatpush1.msra.mxu0 0.0
  %3198 = vmatprep.subr.mxu0 0.0
  %3199 = vmatpush1.msra.mxu0 0.0
  %3200 = vmatprep.subr.mxu0 0.0
  %3201 = vmatpush1.msra.mxu0 0.0
  %3202 = vmatprep.subr.mxu0 0.0
  %3203 = vmatpush1.msra.mxu0 0.0
  %3204 = vmatprep.subr.mxu0 0.0
  %3205 = vmatpush1.msra.mxu0 0.0
  %3206 = vmatprep.subr.mxu0 0.0
  %3207 = vmatpush1.msra.mxu0 0.0
  %3208 = vmatprep.subr.mxu0 0.0
  %3209 = vmatpush1.msra.mxu0 0.0
  %3210 = vmatprep.subr.mxu0 0.0
  %3211 = vmatpush1.msra.mxu0 0.0
  %3212 = vmatprep.subr.mxu0 0.0
  %3213 = vmatpush1.msra.mxu0 0.0
  %3214 = vmatprep.subr.mxu0 0.0
  %3215 = vmatpush1.msra.mxu0 0.0
  %3216 = vmatprep.subr.mxu0 0.0
  %3217 = vmatpush1.msra.mxu0 0.0
  %3218 = vmatprep.subr.mxu0 0.0
  %3219 = vmatpush1.msra.mxu0 0.0
  %3220 = vmatprep.subr.mxu0 0.0
  %3221 = vmatpush1.msra.mxu0 0.0
  %3222 = vmatprep.subr.mxu0 0.0
  %3223 = vmatpush1.msra.mxu0 0.0
  %3224 = vmatprep.subr.mxu0 0.0
  %3225 = vmatpush1.msra.mxu0 0.0
  %3226 = vmatprep.subr.mxu0 0.0
  %3227 = vmatpush1.msra.mxu0 0.0
  %3228 = vmatprep.subr.mxu0 0.0
  %3229 = vmatpush1.msra.mxu0 0.0
  %3230 = vmatprep.subr.mxu0 0.0
  %3231 = vmatpush1.msra.mxu0 0.0
  %3232 = vmatprep.mubr.f32.mxu0 0.0
  %v3233 = vand.u32 %v2425, 4294901760
  %v3234 = vsub.f32 %v2425, %v3233
  %3235 = vmatmul.mubr.f32.gmra.mrb[0].mxu0 %v3234
  %v3236 = vpop.f32.mrb[0].mxu0
  %v3237 = vadd.f32 %v3149, %v3236
  %v3238 = vpop.f32.mrb[0].mxu0
  %v3239 = vadd.f32 %v3151, %v3238
  %3240 = vmatprep.mubr.f32.mxu0 0.0
  %v3241 = vand.u32 %v2428, 4294901760
  %v3242 = vsub.f32 %v2428, %v3241
  %3243 = vmatmul.mubr.f32.gmra.mrb[0].mxu0 %v3242
  %v3244 = vpop.f32.mrb[0].mxu0
  %v3245 = vadd.f32 %v3156, %v3244
  %v3246 = vpop.f32.mrb[0].mxu0
  %v3247 = vadd.f32 %v3158, %v3246
  %3248 = vdwg.mxu0
  %v3249 = vand.u32 %v2411, 4294901760
  %3250 = vmatprep.subr.mxu0 %v3249
  %v3251 = vand.u32 %v2410, 4294901760
  %3252 = vmatpush1.msra.mxu0 %v3251
  %v3253 = vand.u32 %v2415, 4294901760
  %3254 = vmatprep.subr.mxu0 %v3253
  %v3255 = vand.u32 %v2414, 4294901760
  %3256 = vmatpush1.msra.mxu0 %v3255
  %3257 = vmatprep.subr.mxu0 0.0
  %3258 = vmatpush1.msra.mxu0 0.0
  %3259 = vmatprep.subr.mxu0 0.0
  %3260 = vmatpush1.msra.mxu0 0.0
  %3261 = vmatprep.subr.mxu0 0.0
  %3262 = vmatpush1.msra.mxu0 0.0
  %3263 = vmatprep.subr.mxu0 0.0
  %3264 = vmatpush1.msra.mxu0 0.0
  %3265 = vmatprep.subr.mxu0 0.0
  %3266 = vmatpush1.msra.mxu0 0.0
  %3267 = vmatprep.subr.mxu0 0.0
  %3268 = vmatpush1.msra.mxu0 0.0
  %3269 = vmatprep.subr.mxu0 0.0
  %3270 = vmatpush1.msra.mxu0 0.0
  %3271 = vmatprep.subr.mxu0 0.0
  %3272 = vmatpush1.msra.mxu0 0.0
  %3273 = vmatprep.subr.mxu0 0.0
  %3274 = vmatpush1.msra.mxu0 0.0
  %3275 = vmatprep.subr.mxu0 0.0
  %3276 = vmatpush1.msra.mxu0 0.0
  %3277 = vmatprep.subr.mxu0 0.0
  %3278 = vmatpush1.msra.mxu0 0.0
  %3279 = vmatprep.subr.mxu0 0.0
  %3280 = vmatpush1.msra.mxu0 0.0
  %3281 = vmatprep.subr.mxu0 0.0
  %3282 = vmatpush1.msra.mxu0 0.0
  %3283 = vmatprep.subr.mxu0 0.0
  %3284 = vmatpush1.msra.mxu0 0.0
  %3285 = vmatprep.subr.mxu0 0.0
  %3286 = vmatpush1.msra.mxu0 0.0
  %3287 = vmatprep.subr.mxu0 0.0
  %3288 = vmatpush1.msra.mxu0 0.0
  %3289 = vmatprep.subr.mxu0 0.0
  %3290 = vmatpush1.msra.mxu0 0.0
  %3291 = vmatprep.subr.mxu0 0.0
  %3292 = vmatpush1.msra.mxu0 0.0
  %3293 = vmatprep.subr.mxu0 0.0
  %3294 = vmatpush1.msra.mxu0 0.0
  %3295 = vmatprep.subr.mxu0 0.0
  %3296 = vmatpush1.msra.mxu0 0.0
  %3297 = vmatprep.subr.mxu0 0.0
  %3298 = vmatpush1.msra.mxu0 0.0
  %3299 = vmatprep.subr.mxu0 0.0
  %3300 = vmatpush1.msra.mxu0 0.0
  %3301 = vmatprep.subr.mxu0 0.0
  %3302 = vmatpush1.msra.mxu0 0.0
  %3303 = vmatprep.subr.mxu0 0.0
  %3304 = vmatpush1.msra.mxu0 0.0
  %3305 = vmatprep.subr.mxu0 0.0
  %3306 = vmatpush1.msra.mxu0 0.0
  %3307 = vmatprep.subr.mxu0 0.0
  %3308 = vmatpush1.msra.mxu0 0.0
  %3309 = vmatprep.subr.mxu0 0.0
  %3310 = vmatpush1.msra.mxu0 0.0
  %3311 = vmatprep.subr.mxu0 0.0
  %3312 = vmatpush1.msra.mxu0 0.0
  %3313 = vmatprep.subr.mxu0 0.0
  %3314 = vmatpush1.msra.mxu0 0.0
  %3315 = vmatprep.subr.mxu0 0.0
  %3316 = vmatpush1.msra.mxu0 0.0
  %3317 = vmatprep.mubr.f32.mxu0 0.0
  %v3318 = vand.u32 %v2425, 4294901760
  %v3319 = vsub.f32 %v2425, %v3318
  %v3320 = vand.u32 %v3319, 4294901760
  %3321 = vmatmul.mubr.f32.gmra.mrb[0].mxu0 %v3320
  %v3322 = vpop.f32.mrb[0].mxu0
  %v3323 = vadd.f32 %v3237, %v3322
  %v3324 = vpop.f32.mrb[0].mxu0
  %v3325 = vadd.f32 %v3239, %v3324
  %3326 = vmatprep.mubr.f32.mxu0 0.0
  %v3327 = vand.u32 %v2428, 4294901760
  %v3328 = vsub.f32 %v2428, %v3327
  %v3329 = vand.u32 %v3328, 4294901760
  %3330 = vmatmul.mubr.f32.gmra.mrb[0].mxu0 %v3329
  %v3331 = vpop.f32.mrb[0].mxu0
  %v3332 = vadd.f32 %v3245, %v3331
  %v3333 = vpop.f32.mrb[0].mxu0
  %v3334 = vadd.f32 %v3247, %v3333
  %3335 = vdwg.mxu0
  %v3336 = vand.u32 %v2411, 4294901760
  %v3337 = vsub.f32 %v2411, %v3336
  %v3338 = vand.u32 %v3337, 4294901760
  %3339 = vmatprep.subr.mxu0 %v3338
  %v3340 = vand.u32 %v2410, 4294901760
  %v3341 = vsub.f32 %v2410, %v3340
  %v3342 = vand.u32 %v3341, 4294901760
  %3343 = vmatpush1.msra.mxu0 %v3342
  %v3344 = vand.u32 %v2415, 4294901760
  %v3345 = vsub.f32 %v2415, %v3344
  %v3346 = vand.u32 %v3345, 4294901760
  %3347 = vmatprep.subr.mxu0 %v3346
  %v3348 = vand.u32 %v2414, 4294901760
  %v3349 = vsub.f32 %v2414, %v3348
  %v3350 = vand.u32 %v3349, 4294901760
  %3351 = vmatpush1.msra.mxu0 %v3350
  %3352 = vmatprep.subr.mxu0 0.0
  %3353 = vmatpush1.msra.mxu0 0.0
  %3354 = vmatprep.subr.mxu0 0.0
  %3355 = vmatpush1.msra.mxu0 0.0
  %3356 = vmatprep.subr.mxu0 0.0
  %3357 = vmatpush1.msra.mxu0 0.0
  %3358 = vmatprep.subr.mxu0 0.0
  %3359 = vmatpush1.msra.mxu0 0.0
  %3360 = vmatprep.subr.mxu0 0.0
  %3361 = vmatpush1.msra.mxu0 0.0
  %3362 = vmatprep.subr.mxu0 0.0
  %3363 = vmatpush1.msra.mxu0 0.0
  %3364 = vmatprep.subr.mxu0 0.0
  %3365 = vmatpush1.msra.mxu0 0.0
  %3366 = vmatprep.subr.mxu0 0.0
  %3367 = vmatpush1.msra.mxu0 0.0
  %3368 = vmatprep.subr.mxu0 0.0
  %3369 = vmatpush1.msra.mxu0 0.0
  %3370 = vmatprep.subr.mxu0 0.0
  %3371 = vmatpush1.msra.mxu0 0.0
  %3372 = vmatprep.subr.mxu0 0.0
  %3373 = vmatpush1.msra.mxu0 0.0
  %3374 = vmatprep.subr.mxu0 0.0
  %3375 = vmatpush1.msra.mxu0 0.0
  %3376 = vmatprep.subr.mxu0 0.0
  %3377 = vmatpush1.msra.mxu0 0.0
  %3378 = vmatprep.subr.mxu0 0.0
  %3379 = vmatpush1.msra.mxu0 0.0
  %3380 = vmatprep.subr.mxu0 0.0
  %3381 = vmatpush1.msra.mxu0 0.0
  %3382 = vmatprep.subr.mxu0 0.0
  %3383 = vmatpush1.msra.mxu0 0.0
  %3384 = vmatprep.subr.mxu0 0.0
  %3385 = vmatpush1.msra.mxu0 0.0
  %3386 = vmatprep.subr.mxu0 0.0
  %3387 = vmatpush1.msra.mxu0 0.0
  %3388 = vmatprep.subr.mxu0 0.0
  %3389 = vmatpush1.msra.mxu0 0.0
  %3390 = vmatprep.subr.mxu0 0.0
  %3391 = vmatpush1.msra.mxu0 0.0
  %3392 = vmatprep.subr.mxu0 0.0
  %3393 = vmatpush1.msra.mxu0 0.0
  %3394 = vmatprep.subr.mxu0 0.0
  %3395 = vmatpush1.msra.mxu0 0.0
  %3396 = vmatprep.subr.mxu0 0.0
  %3397 = vmatpush1.msra.mxu0 0.0
  %3398 = vmatprep.subr.mxu0 0.0
  %3399 = vmatpush1.msra.mxu0 0.0
  %3400 = vmatprep.subr.mxu0 0.0
  %3401 = vmatpush1.msra.mxu0 0.0
  %3402 = vmatprep.subr.mxu0 0.0
  %3403 = vmatpush1.msra.mxu0 0.0
  %3404 = vmatprep.subr.mxu0 0.0
  %3405 = vmatpush1.msra.mxu0 0.0
  %3406 = vmatprep.subr.mxu0 0.0
  %3407 = vmatpush1.msra.mxu0 0.0
  %3408 = vmatprep.subr.mxu0 0.0
  %3409 = vmatpush1.msra.mxu0 0.0
  %3410 = vmatprep.subr.mxu0 0.0
  %3411 = vmatpush1.msra.mxu0 0.0
  %3412 = vmatprep.mubr.f32.mxu0 0.0
  %v3413 = vand.u32 %v2425, 4294901760
  %3414 = vmatmul.mubr.f32.gmra.mrb[0].mxu0 %v3413
  %v3415 = vpop.f32.mrb[0].mxu0
  %v3416 = vadd.f32 %v3323, %v3415
  %v3417 = vpop.f32.mrb[0].mxu0
  %v3418 = vadd.f32 %v3325, %v3417
  %3419 = vmatprep.mubr.f32.mxu0 0.0
  %v3420 = vand.u32 %v2428, 4294901760
  %3421 = vmatmul.mubr.f32.gmra.mrb[0].mxu0 %v3420
  %v3422 = vpop.f32.mrb[0].mxu0
  %v3423 = vadd.f32 %v3332, %v3422
  %v3424 = vpop.f32.mrb[0].mxu0
  %v3425 = vadd.f32 %v3334, %v3424
  %3426 = vdwg.mxu0
  %v3427 = vand.u32 %v2411, 4294901760
  %3428 = vmatprep.subr.mxu0 %v3427
  %v3429 = vand.u32 %v2410, 4294901760
  %3430 = vmatpush1.msra.mxu0 %v3429
  %v3431 = vand.u32 %v2415, 4294901760
  %3432 = vmatprep.subr.mxu0 %v3431
  %v3433 = vand.u32 %v2414, 4294901760
  %3434 = vmatpush1.msra.mxu0 %v3433
  %3435 = vmatprep.subr.mxu0 0.0
  %3436 = vmatpush1.msra.mxu0 0.0
  %3437 = vmatprep.subr.mxu0 0.0
  %3438 = vmatpush1.msra.mxu0 0.0
  %3439 = vmatprep.subr.mxu0 0.0
  %3440 = vmatpush1.msra.mxu0 0.0
  %3441 = vmatprep.subr.mxu0 0.0
  %3442 = vmatpush1.msra.mxu0 0.0
  %3443 = vmatprep.subr.mxu0 0.0
  %3444 = vmatpush1.msra.mxu0 0.0
  %3445 = vmatprep.subr.mxu0 0.0
  %3446 = vmatpush1.msra.mxu0 0.0
  %3447 = vmatprep.subr.mxu0 0.0
  %3448 = vmatpush1.msra.mxu0 0.0
  %3449 = vmatprep.subr.mxu0 0.0
  %3450 = vmatpush1.msra.mxu0 0.0
  %3451 = vmatprep.subr.mxu0 0.0
  %3452 = vmatpush1.msra.mxu0 0.0
  %3453 = vmatprep.subr.mxu0 0.0
  %3454 = vmatpush1.msra.mxu0 0.0
  %3455 = vmatprep.subr.mxu0 0.0
  %3456 = vmatpush1.msra.mxu0 0.0
  %3457 = vmatprep.subr.mxu0 0.0
  %3458 = vmatpush1.msra.mxu0 0.0
  %3459 = vmatprep.subr.mxu0 0.0
  %3460 = vmatpush1.msra.mxu0 0.0
  %3461 = vmatprep.subr.mxu0 0.0
  %3462 = vmatpush1.msra.mxu0 0.0
  %3463 = vmatprep.subr.mxu0 0.0
  %3464 = vmatpush1.msra.mxu0 0.0
  %3465 = vmatprep.subr.mxu0 0.0
  %3466 = vmatpush1.msra.mxu0 0.0
  %3467 = vmatprep.subr.mxu0 0.0
  %3468 = vmatpush1.msra.mxu0 0.0
  %3469 = vmatprep.subr.mxu0 0.0
  %3470 = vmatpush1.msra.mxu0 0.0
  %3471 = vmatprep.subr.mxu0 0.0
  %3472 = vmatpush1.msra.mxu0 0.0
  %3473 = vmatprep.subr.mxu0 0.0
  %3474 = vmatpush1.msra.mxu0 0.0
  %3475 = vmatprep.subr.mxu0 0.0
  %3476 = vmatpush1.msra.mxu0 0.0
  %3477 = vmatprep.subr.mxu0 0.0
  %3478 = vmatpush1.msra.mxu0 0.0
  %3479 = vmatprep.subr.mxu0 0.0
  %3480 = vmatpush1.msra.mxu0 0.0
  %3481 = vmatprep.subr.mxu0 0.0
  %3482 = vmatpush1.msra.mxu0 0.0
  %3483 = vmatprep.subr.mxu0 0.0
  %3484 = vmatpush1.msra.mxu0 0.0
  %3485 = vmatprep.subr.mxu0 0.0
  %3486 = vmatpush1.msra.mxu0 0.0
  %3487 = vmatprep.subr.mxu0 0.0
  %3488 = vmatpush1.msra.mxu0 0.0
  %3489 = vmatprep.subr.mxu0 0.0
  %3490 = vmatpush1.msra.mxu0 0.0
  %3491 = vmatprep.subr.mxu0 0.0
  %3492 = vmatpush1.msra.mxu0 0.0
  %3493 = vmatprep.subr.mxu0 0.0
  %3494 = vmatpush1.msra.mxu0 0.0
  %3495 = vmatprep.mubr.f32.mxu0 0.0
  %v3496 = vand.u32 %v2425, 4294901760
  %3497 = vmatmul.mubr.f32.gmra.mrb[0].mxu0 %v3496
  %v3498 = vpop.f32.mrb[0].mxu0
  %v3499 = vadd.f32 %v3416, %v3498
  %v3500 = vpop.f32.mrb[0].mxu0
  %v3501 = vadd.f32 %v3418, %v3500
  %3502 = vmatprep.mubr.f32.mxu0 0.0
  %v3503 = vand.u32 %v2428, 4294901760
  %3504 = vmatmul.mubr.f32.gmra.mrb[0].mxu0 %v3503
  %v3505 = vpop.f32.mrb[0].mxu0
  %v3506 = vadd.f32 %v3423, %v3505
  %v3507 = vpop.f32.mrb[0].mxu0
  %v3508 = vadd.f32 %v3425, %v3507
  %3509 = vdwg.mxu0
  %v3510 = vadd.f32 %v1777, %v2959
  %v3511 = vadd.f32 %v1779, %v2961
  %v3512 = vadd.f32 %v2317, %v3499
  %v3513 = vadd.f32 %v2319, %v3501
  %v3514 = vadd.f32 %v1784, %v2966
  %v3515 = vadd.f32 %v1786, %v2968
  %v3516 = vadd.f32 %v2324, %v3506
  %v3517 = vadd.f32 %v2326, %v3508
  %s3518 = scalar_lea.vmem %s3, 3
  %v3519 = vld [vmem:[%s3518] ss:$8 sm:$0xf]
  %v3521 = vlaneseq
  %v3522 = vshrl.u32 %v3521, 7
  %v3523 = vsub.s32 0, %v3522
  %v3524 = vrot.slane %v3519, %v3523
  %v3525 = vlaneseq
  %v3526 = vshrl.u32 %v3525, 7
  %v3527 = vsub.s32 1, %v3526
  %v3528 = vrot.slane %v3519, %v3527
  %v3529 = vlaneseq
  %v3530 = vshrl.u32 %v3529, 7
  %v3531 = vsub.s32 2, %v3530
  %v3532 = vrot.slane %v3519, %v3531
  %v3533 = vlaneseq
  %v3534 = vshrl.u32 %v3533, 7
  %v3535 = vsub.s32 3, %v3534
  %v3536 = vrot.slane %v3519, %v3535
  %3537 = vrot.lane.b32.xlu0 %v3524, 16
  %v3538 = vpop.permute.xlu0 %3537
  %3539 = vrot.lane.b32.xlu0 %v3528, 16
  %v3540 = vpop.permute.xlu0 %3539
  %3541 = vrot.lane.b32.xlu0 %v3532, 16
  %v3542 = vpop.permute.xlu0 %3541
  %3543 = vrot.lane.b32.xlu0 %v3536, 16
  %v3544 = vpop.permute.xlu0 %3543
  %v3545 = vsel %vm155, %v3538, %v3540
  %v3546 = vsel %vm155, %v3540, %v3542
  %v3547 = vsel %vm155, %v3542, %v3544
  %v3553 = vmul.f32 %v17, %v3538
  %v3554 = vmul.f32 %v18, %v3545
  %v3555 = vmul.f32 %v19, %v3546
  %v3556 = vmul.f32 %v20, %v3547
  %v3557 = vmul.f32 %v57, %v3544
  %v3558 = vmul.f32 %v21, %v3538
  %v3559 = vmul.f32 %v22, %v3545
  %v3560 = vmul.f32 %v23, %v3546
  %v3561 = vmul.f32 %v24, %v3547
  %v3562 = vmul.f32 %v58, %v3544
  %s3563 = scalar_lea.vmem %s1, 48
  %v3564 = vld [vmem:[%s3563] sm:$0xff]
  %v3565 = vld [vmem:[%s3563 + $0x8] sm:$0xff]
  %3576 = vrot.lane.b32.xlu0 %v3553, 112
  %v3577 = vpop.permute.xlu0 %3576
  %3578 = vrot.lane.b32.xlu0 %v3554, 112
  %v3579 = vpop.permute.xlu0 %3578
  %3580 = vrot.lane.b32.xlu0 %v3555, 112
  %v3581 = vpop.permute.xlu0 %3580
  %3582 = vrot.lane.b32.xlu0 %v3556, 112
  %v3583 = vpop.permute.xlu0 %3582
  %3584 = vrot.lane.b32.xlu0 %v3557, 112
  %v3585 = vpop.permute.xlu0 %3584
  %3586 = vrot.lane.b32.xlu0 %v3558, 112
  %v3587 = vpop.permute.xlu0 %3586
  %3588 = vrot.lane.b32.xlu0 %v3559, 112
  %v3589 = vpop.permute.xlu0 %3588
  %3590 = vrot.lane.b32.xlu0 %v3560, 112
  %v3591 = vpop.permute.xlu0 %3590
  %3592 = vrot.lane.b32.xlu0 %v3561, 112
  %v3593 = vpop.permute.xlu0 %3592
  %3594 = vrot.lane.b32.xlu0 %v3562, 112
  %v3595 = vpop.permute.xlu0 %3594
  %vm3596 = vcmask 916480
  %v3597 = vsel %vm3596, %v3577, %v3579
  %v3598 = vsel %vm3596, %v3579, %v3581
  %v3599 = vsel %vm3596, %v3581, %v3583
  %v3600 = vsel %vm3596, %v3583, %v3585
  %v3601 = vsel %vm3596, %v3587, %v3589
  %v3602 = vsel %vm3596, %v3589, %v3591
  %v3603 = vsel %vm3596, %v3591, %v3593
  %v3604 = vsel %vm3596, %v3593, %v3595
  %v3614 = vsel %vm155, %v3564, 0
  %v3617 = vsel %vm155, %v3565, 0
  %v3619 = vand.u32 %v3598, 4294901760
  %3620 = vmatprep.subr.mxu0 %v3619
  %v3621 = vand.u32 %v3597, 4294901760
  %3622 = vmatpush1.msra.mxu0 %v3621
  %v3623 = vand.u32 %v3602, 4294901760
  %3624 = vmatprep.subr.mxu0 %v3623
  %v3625 = vand.u32 %v3601, 4294901760
  %3626 = vmatpush1.msra.mxu0 %v3625
  %3627 = vmatprep.subr.mxu0 0.0
  %3628 = vmatpush1.msra.mxu0 0.0
  %3629 = vmatprep.subr.mxu0 0.0
  %3630 = vmatpush1.msra.mxu0 0.0
  %3631 = vmatprep.subr.mxu0 0.0
  %3632 = vmatpush1.msra.mxu0 0.0
  %3633 = vmatprep.subr.mxu0 0.0
  %3634 = vmatpush1.msra.mxu0 0.0
  %3635 = vmatprep.subr.mxu0 0.0
  %3636 = vmatpush1.msra.mxu0 0.0
  %3637 = vmatprep.subr.mxu0 0.0
  %3638 = vmatpush1.msra.mxu0 0.0
  %3639 = vmatprep.subr.mxu0 0.0
  %3640 = vmatpush1.msra.mxu0 0.0
  %3641 = vmatprep.subr.mxu0 0.0
  %3642 = vmatpush1.msra.mxu0 0.0
  %3643 = vmatprep.subr.mxu0 0.0
  %3644 = vmatpush1.msra.mxu0 0.0
  %3645 = vmatprep.subr.mxu0 0.0
  %3646 = vmatpush1.msra.mxu0 0.0
  %3647 = vmatprep.subr.mxu0 0.0
  %3648 = vmatpush1.msra.mxu0 0.0
  %3649 = vmatprep.subr.mxu0 0.0
  %3650 = vmatpush1.msra.mxu0 0.0
  %3651 = vmatprep.subr.mxu0 0.0
  %3652 = vmatpush1.msra.mxu0 0.0
  %3653 = vmatprep.subr.mxu0 0.0
  %3654 = vmatpush1.msra.mxu0 0.0
  %3655 = vmatprep.subr.mxu0 0.0
  %3656 = vmatpush1.msra.mxu0 0.0
  %3657 = vmatprep.subr.mxu0 0.0
  %3658 = vmatpush1.msra.mxu0 0.0
  %3659 = vmatprep.subr.mxu0 0.0
  %3660 = vmatpush1.msra.mxu0 0.0
  %3661 = vmatprep.subr.mxu0 0.0
  %3662 = vmatpush1.msra.mxu0 0.0
  %3663 = vmatprep.subr.mxu0 0.0
  %3664 = vmatpush1.msra.mxu0 0.0
  %3665 = vmatprep.subr.mxu0 0.0
  %3666 = vmatpush1.msra.mxu0 0.0
  %3667 = vmatprep.subr.mxu0 0.0
  %3668 = vmatpush1.msra.mxu0 0.0
  %3669 = vmatprep.subr.mxu0 0.0
  %3670 = vmatpush1.msra.mxu0 0.0
  %3671 = vmatprep.subr.mxu0 0.0
  %3672 = vmatpush1.msra.mxu0 0.0
  %3673 = vmatprep.subr.mxu0 0.0
  %3674 = vmatpush1.msra.mxu0 0.0
  %3675 = vmatprep.subr.mxu0 0.0
  %3676 = vmatpush1.msra.mxu0 0.0
  %3677 = vmatprep.subr.mxu0 0.0
  %3678 = vmatpush1.msra.mxu0 0.0
  %3679 = vmatprep.subr.mxu0 0.0
  %3680 = vmatpush1.msra.mxu0 0.0
  %3681 = vmatprep.subr.mxu0 0.0
  %3682 = vmatpush1.msra.mxu0 0.0
  %3683 = vmatprep.subr.mxu0 0.0
  %3684 = vmatpush1.msra.mxu0 0.0
  %3685 = vmatprep.subr.mxu0 0.0
  %3686 = vmatpush1.msra.mxu0 0.0
  %3687 = vmatprep.mubr.f32.mxu0 0.0
  %v3688 = vand.u32 %v3614, 4294901760
  %v3689 = vsub.f32 %v3614, %v3688
  %v3690 = vand.u32 %v3689, 4294901760
  %v3691 = vsub.f32 %v3689, %v3690
  %v3692 = vand.u32 %v3691, 4294901760
  %3693 = vmatmul.mubr.f32.gmra.mrb[0].mxu0 %v3692
  %v3694 = vpop.f32.mrb[0].mxu0
  %v3695 = vadd.f32 0.0, %v3694
  %v3696 = vpop.f32.mrb[0].mxu0
  %v3697 = vadd.f32 0.0, %v3696
  %3698 = vmatprep.mubr.f32.mxu0 0.0
  %v3699 = vand.u32 %v3617, 4294901760
  %v3700 = vsub.f32 %v3617, %v3699
  %v3701 = vand.u32 %v3700, 4294901760
  %v3702 = vsub.f32 %v3700, %v3701
  %v3703 = vand.u32 %v3702, 4294901760
  %3704 = vmatmul.mubr.f32.gmra.mrb[0].mxu0 %v3703
  %v3705 = vpop.f32.mrb[0].mxu0
  %v3706 = vadd.f32 0.0, %v3705
  %v3707 = vpop.f32.mrb[0].mxu0
  %v3708 = vadd.f32 0.0, %v3707
  %3709 = vdwg.mxu0
  %v3710 = vand.u32 %v3598, 4294901760
  %v3711 = vsub.f32 %v3598, %v3710
  %v3712 = vand.u32 %v3711, 4294901760
  %v3713 = vsub.f32 %v3711, %v3712
  %v3714 = vand.u32 %v3713, 4294901760
  %3715 = vmatprep.subr.mxu0 %v3714
  %v3716 = vand.u32 %v3597, 4294901760
  %v3717 = vsub.f32 %v3597, %v3716
  %v3718 = vand.u32 %v3717, 4294901760
  %v3719 = vsub.f32 %v3717, %v3718
  %v3720 = vand.u32 %v3719, 4294901760
  %3721 = vmatpush1.msra.mxu0 %v3720
  %v3722 = vand.u32 %v3602, 4294901760
  %v3723 = vsub.f32 %v3602, %v3722
  %v3724 = vand.u32 %v3723, 4294901760
  %v3725 = vsub.f32 %v3723, %v3724
  %v3726 = vand.u32 %v3725, 4294901760
  %3727 = vmatprep.subr.mxu0 %v3726
  %v3728 = vand.u32 %v3601, 4294901760
  %v3729 = vsub.f32 %v3601, %v3728
  %v3730 = vand.u32 %v3729, 4294901760
  %v3731 = vsub.f32 %v3729, %v3730
  %v3732 = vand.u32 %v3731, 4294901760
  %3733 = vmatpush1.msra.mxu0 %v3732
  %3734 = vmatprep.subr.mxu0 0.0
  %3735 = vmatpush1.msra.mxu0 0.0
  %3736 = vmatprep.subr.mxu0 0.0
  %3737 = vmatpush1.msra.mxu0 0.0
  %3738 = vmatprep.subr.mxu0 0.0
  %3739 = vmatpush1.msra.mxu0 0.0
  %3740 = vmatprep.subr.mxu0 0.0
  %3741 = vmatpush1.msra.mxu0 0.0
  %3742 = vmatprep.subr.mxu0 0.0
  %3743 = vmatpush1.msra.mxu0 0.0
  %3744 = vmatprep.subr.mxu0 0.0
  %3745 = vmatpush1.msra.mxu0 0.0
  %3746 = vmatprep.subr.mxu0 0.0
  %3747 = vmatpush1.msra.mxu0 0.0
  %3748 = vmatprep.subr.mxu0 0.0
  %3749 = vmatpush1.msra.mxu0 0.0
  %3750 = vmatprep.subr.mxu0 0.0
  %3751 = vmatpush1.msra.mxu0 0.0
  %3752 = vmatprep.subr.mxu0 0.0
  %3753 = vmatpush1.msra.mxu0 0.0
  %3754 = vmatprep.subr.mxu0 0.0
  %3755 = vmatpush1.msra.mxu0 0.0
  %3756 = vmatprep.subr.mxu0 0.0
  %3757 = vmatpush1.msra.mxu0 0.0
  %3758 = vmatprep.subr.mxu0 0.0
  %3759 = vmatpush1.msra.mxu0 0.0
  %3760 = vmatprep.subr.mxu0 0.0
  %3761 = vmatpush1.msra.mxu0 0.0
  %3762 = vmatprep.subr.mxu0 0.0
  %3763 = vmatpush1.msra.mxu0 0.0
  %3764 = vmatprep.subr.mxu0 0.0
  %3765 = vmatpush1.msra.mxu0 0.0
  %3766 = vmatprep.subr.mxu0 0.0
  %3767 = vmatpush1.msra.mxu0 0.0
  %3768 = vmatprep.subr.mxu0 0.0
  %3769 = vmatpush1.msra.mxu0 0.0
  %3770 = vmatprep.subr.mxu0 0.0
  %3771 = vmatpush1.msra.mxu0 0.0
  %3772 = vmatprep.subr.mxu0 0.0
  %3773 = vmatpush1.msra.mxu0 0.0
  %3774 = vmatprep.subr.mxu0 0.0
  %3775 = vmatpush1.msra.mxu0 0.0
  %3776 = vmatprep.subr.mxu0 0.0
  %3777 = vmatpush1.msra.mxu0 0.0
  %3778 = vmatprep.subr.mxu0 0.0
  %3779 = vmatpush1.msra.mxu0 0.0
  %3780 = vmatprep.subr.mxu0 0.0
  %3781 = vmatpush1.msra.mxu0 0.0
  %3782 = vmatprep.subr.mxu0 0.0
  %3783 = vmatpush1.msra.mxu0 0.0
  %3784 = vmatprep.subr.mxu0 0.0
  %3785 = vmatpush1.msra.mxu0 0.0
  %3786 = vmatprep.subr.mxu0 0.0
  %3787 = vmatpush1.msra.mxu0 0.0
  %3788 = vmatprep.subr.mxu0 0.0
  %3789 = vmatpush1.msra.mxu0 0.0
  %3790 = vmatprep.subr.mxu0 0.0
  %3791 = vmatpush1.msra.mxu0 0.0
  %3792 = vmatprep.subr.mxu0 0.0
  %3793 = vmatpush1.msra.mxu0 0.0
  %3794 = vmatprep.mubr.f32.mxu0 0.0
  %v3795 = vand.u32 %v3614, 4294901760
  %3796 = vmatmul.mubr.f32.gmra.mrb[0].mxu0 %v3795
  %v3797 = vpop.f32.mrb[0].mxu0
  %v3798 = vadd.f32 %v3695, %v3797
  %v3799 = vpop.f32.mrb[0].mxu0
  %v3800 = vadd.f32 %v3697, %v3799
  %3801 = vmatprep.mubr.f32.mxu0 0.0
  %v3802 = vand.u32 %v3617, 4294901760
  %3803 = vmatmul.mubr.f32.gmra.mrb[0].mxu0 %v3802
  %v3804 = vpop.f32.mrb[0].mxu0
  %v3805 = vadd.f32 %v3706, %v3804
  %v3806 = vpop.f32.mrb[0].mxu0
  %v3807 = vadd.f32 %v3708, %v3806
  %3808 = vdwg.mxu0
  %v3809 = vand.u32 %v3598, 4294901760
  %v3810 = vsub.f32 %v3598, %v3809
  %3811 = vmatprep.subr.mxu0 %v3810
  %v3812 = vand.u32 %v3597, 4294901760
  %v3813 = vsub.f32 %v3597, %v3812
  %3814 = vmatpush1.msra.mxu0 %v3813
  %v3815 = vand.u32 %v3602, 4294901760
  %v3816 = vsub.f32 %v3602, %v3815
  %3817 = vmatprep.subr.mxu0 %v3816
  %v3818 = vand.u32 %v3601, 4294901760
  %v3819 = vsub.f32 %v3601, %v3818
  %3820 = vmatpush1.msra.mxu0 %v3819
  %3821 = vmatprep.subr.mxu0 0.0
  %3822 = vmatpush1.msra.mxu0 0.0
  %3823 = vmatprep.subr.mxu0 0.0
  %3824 = vmatpush1.msra.mxu0 0.0
  %3825 = vmatprep.subr.mxu0 0.0
  %3826 = vmatpush1.msra.mxu0 0.0
  %3827 = vmatprep.subr.mxu0 0.0
  %3828 = vmatpush1.msra.mxu0 0.0
  %3829 = vmatprep.subr.mxu0 0.0
  %3830 = vmatpush1.msra.mxu0 0.0
  %3831 = vmatprep.subr.mxu0 0.0
  %3832 = vmatpush1.msra.mxu0 0.0
  %3833 = vmatprep.subr.mxu0 0.0
  %3834 = vmatpush1.msra.mxu0 0.0
  %3835 = vmatprep.subr.mxu0 0.0
  %3836 = vmatpush1.msra.mxu0 0.0
  %3837 = vmatprep.subr.mxu0 0.0
  %3838 = vmatpush1.msra.mxu0 0.0
  %3839 = vmatprep.subr.mxu0 0.0
  %3840 = vmatpush1.msra.mxu0 0.0
  %3841 = vmatprep.subr.mxu0 0.0
  %3842 = vmatpush1.msra.mxu0 0.0
  %3843 = vmatprep.subr.mxu0 0.0
  %3844 = vmatpush1.msra.mxu0 0.0
  %3845 = vmatprep.subr.mxu0 0.0
  %3846 = vmatpush1.msra.mxu0 0.0
  %3847 = vmatprep.subr.mxu0 0.0
  %3848 = vmatpush1.msra.mxu0 0.0
  %3849 = vmatprep.subr.mxu0 0.0
  %3850 = vmatpush1.msra.mxu0 0.0
  %3851 = vmatprep.subr.mxu0 0.0
  %3852 = vmatpush1.msra.mxu0 0.0
  %3853 = vmatprep.subr.mxu0 0.0
  %3854 = vmatpush1.msra.mxu0 0.0
  %3855 = vmatprep.subr.mxu0 0.0
  %3856 = vmatpush1.msra.mxu0 0.0
  %3857 = vmatprep.subr.mxu0 0.0
  %3858 = vmatpush1.msra.mxu0 0.0
  %3859 = vmatprep.subr.mxu0 0.0
  %3860 = vmatpush1.msra.mxu0 0.0
  %3861 = vmatprep.subr.mxu0 0.0
  %3862 = vmatpush1.msra.mxu0 0.0
  %3863 = vmatprep.subr.mxu0 0.0
  %3864 = vmatpush1.msra.mxu0 0.0
  %3865 = vmatprep.subr.mxu0 0.0
  %3866 = vmatpush1.msra.mxu0 0.0
  %3867 = vmatprep.subr.mxu0 0.0
  %3868 = vmatpush1.msra.mxu0 0.0
  %3869 = vmatprep.subr.mxu0 0.0
  %3870 = vmatpush1.msra.mxu0 0.0
  %3871 = vmatprep.subr.mxu0 0.0
  %3872 = vmatpush1.msra.mxu0 0.0
  %3873 = vmatprep.subr.mxu0 0.0
  %3874 = vmatpush1.msra.mxu0 0.0
  %3875 = vmatprep.subr.mxu0 0.0
  %3876 = vmatpush1.msra.mxu0 0.0
  %3877 = vmatprep.subr.mxu0 0.0
  %3878 = vmatpush1.msra.mxu0 0.0
  %3879 = vmatprep.subr.mxu0 0.0
  %3880 = vmatpush1.msra.mxu0 0.0
  %3881 = vmatprep.mubr.f32.mxu0 0.0
  %v3882 = vand.u32 %v3614, 4294901760
  %v3883 = vsub.f32 %v3614, %v3882
  %3884 = vmatmul.mubr.f32.gmra.mrb[0].mxu0 %v3883
  %v3885 = vpop.f32.mrb[0].mxu0
  %v3886 = vadd.f32 %v3798, %v3885
  %v3887 = vpop.f32.mrb[0].mxu0
  %v3888 = vadd.f32 %v3800, %v3887
  %3889 = vmatprep.mubr.f32.mxu0 0.0
  %v3890 = vand.u32 %v3617, 4294901760
  %v3891 = vsub.f32 %v3617, %v3890
  %3892 = vmatmul.mubr.f32.gmra.mrb[0].mxu0 %v3891
  %v3893 = vpop.f32.mrb[0].mxu0
  %v3894 = vadd.f32 %v3805, %v3893
  %v3895 = vpop.f32.mrb[0].mxu0
  %v3896 = vadd.f32 %v3807, %v3895
  %3897 = vdwg.mxu0
  %v3898 = vand.u32 %v3598, 4294901760
  %3899 = vmatprep.subr.mxu0 %v3898
  %v3900 = vand.u32 %v3597, 4294901760
  %3901 = vmatpush1.msra.mxu0 %v3900
  %v3902 = vand.u32 %v3602, 4294901760
  %3903 = vmatprep.subr.mxu0 %v3902
  %v3904 = vand.u32 %v3601, 4294901760
  %3905 = vmatpush1.msra.mxu0 %v3904
  %3906 = vmatprep.subr.mxu0 0.0
  %3907 = vmatpush1.msra.mxu0 0.0
  %3908 = vmatprep.subr.mxu0 0.0
  %3909 = vmatpush1.msra.mxu0 0.0
  %3910 = vmatprep.subr.mxu0 0.0
  %3911 = vmatpush1.msra.mxu0 0.0
  %3912 = vmatprep.subr.mxu0 0.0
  %3913 = vmatpush1.msra.mxu0 0.0
  %3914 = vmatprep.subr.mxu0 0.0
  %3915 = vmatpush1.msra.mxu0 0.0
  %3916 = vmatprep.subr.mxu0 0.0
  %3917 = vmatpush1.msra.mxu0 0.0
  %3918 = vmatprep.subr.mxu0 0.0
  %3919 = vmatpush1.msra.mxu0 0.0
  %3920 = vmatprep.subr.mxu0 0.0
  %3921 = vmatpush1.msra.mxu0 0.0
  %3922 = vmatprep.subr.mxu0 0.0
  %3923 = vmatpush1.msra.mxu0 0.0
  %3924 = vmatprep.subr.mxu0 0.0
  %3925 = vmatpush1.msra.mxu0 0.0
  %3926 = vmatprep.subr.mxu0 0.0
  %3927 = vmatpush1.msra.mxu0 0.0
  %3928 = vmatprep.subr.mxu0 0.0
  %3929 = vmatpush1.msra.mxu0 0.0
  %3930 = vmatprep.subr.mxu0 0.0
  %3931 = vmatpush1.msra.mxu0 0.0
  %3932 = vmatprep.subr.mxu0 0.0
  %3933 = vmatpush1.msra.mxu0 0.0
  %3934 = vmatprep.subr.mxu0 0.0
  %3935 = vmatpush1.msra.mxu0 0.0
  %3936 = vmatprep.subr.mxu0 0.0
  %3937 = vmatpush1.msra.mxu0 0.0
  %3938 = vmatprep.subr.mxu0 0.0
  %3939 = vmatpush1.msra.mxu0 0.0
  %3940 = vmatprep.subr.mxu0 0.0
  %3941 = vmatpush1.msra.mxu0 0.0
  %3942 = vmatprep.subr.mxu0 0.0
  %3943 = vmatpush1.msra.mxu0 0.0
  %3944 = vmatprep.subr.mxu0 0.0
  %3945 = vmatpush1.msra.mxu0 0.0
  %3946 = vmatprep.subr.mxu0 0.0
  %3947 = vmatpush1.msra.mxu0 0.0
  %3948 = vmatprep.subr.mxu0 0.0
  %3949 = vmatpush1.msra.mxu0 0.0
  %3950 = vmatprep.subr.mxu0 0.0
  %3951 = vmatpush1.msra.mxu0 0.0
  %3952 = vmatprep.subr.mxu0 0.0
  %3953 = vmatpush1.msra.mxu0 0.0
  %3954 = vmatprep.subr.mxu0 0.0
  %3955 = vmatpush1.msra.mxu0 0.0
  %3956 = vmatprep.subr.mxu0 0.0
  %3957 = vmatpush1.msra.mxu0 0.0
  %3958 = vmatprep.subr.mxu0 0.0
  %3959 = vmatpush1.msra.mxu0 0.0
  %3960 = vmatprep.subr.mxu0 0.0
  %3961 = vmatpush1.msra.mxu0 0.0
  %3962 = vmatprep.subr.mxu0 0.0
  %3963 = vmatpush1.msra.mxu0 0.0
  %3964 = vmatprep.subr.mxu0 0.0
  %3965 = vmatpush1.msra.mxu0 0.0
  %3966 = vmatprep.mubr.f32.mxu0 0.0
  %v3967 = vand.u32 %v3614, 4294901760
  %v3968 = vsub.f32 %v3614, %v3967
  %v3969 = vand.u32 %v3968, 4294901760
  %3970 = vmatmul.mubr.f32.gmra.mrb[0].mxu0 %v3969
  %v3971 = vpop.f32.mrb[0].mxu0
  %v3972 = vadd.f32 %v3886, %v3971
  %v3973 = vpop.f32.mrb[0].mxu0
  %v3974 = vadd.f32 %v3888, %v3973
  %3975 = vmatprep.mubr.f32.mxu0 0.0
  %v3976 = vand.u32 %v3617, 4294901760
  %v3977 = vsub.f32 %v3617, %v3976
  %v3978 = vand.u32 %v3977, 4294901760
  %3979 = vmatmul.mubr.f32.gmra.mrb[0].mxu0 %v3978
  %v3980 = vpop.f32.mrb[0].mxu0
  %v3981 = vadd.f32 %v3894, %v3980
  %v3982 = vpop.f32.mrb[0].mxu0
  %v3983 = vadd.f32 %v3896, %v3982
  %3984 = vdwg.mxu0
  %v3985 = vand.u32 %v3598, 4294901760
  %v3986 = vsub.f32 %v3598, %v3985
  %v3987 = vand.u32 %v3986, 4294901760
  %3988 = vmatprep.subr.mxu0 %v3987
  %v3989 = vand.u32 %v3597, 4294901760
  %v3990 = vsub.f32 %v3597, %v3989
  %v3991 = vand.u32 %v3990, 4294901760
  %3992 = vmatpush1.msra.mxu0 %v3991
  %v3993 = vand.u32 %v3602, 4294901760
  %v3994 = vsub.f32 %v3602, %v3993
  %v3995 = vand.u32 %v3994, 4294901760
  %3996 = vmatprep.subr.mxu0 %v3995
  %v3997 = vand.u32 %v3601, 4294901760
  %v3998 = vsub.f32 %v3601, %v3997
  %v3999 = vand.u32 %v3998, 4294901760
  %4000 = vmatpush1.msra.mxu0 %v3999
  %4001 = vmatprep.subr.mxu0 0.0
  %4002 = vmatpush1.msra.mxu0 0.0
  %4003 = vmatprep.subr.mxu0 0.0
  %4004 = vmatpush1.msra.mxu0 0.0
  %4005 = vmatprep.subr.mxu0 0.0
  %4006 = vmatpush1.msra.mxu0 0.0
  %4007 = vmatprep.subr.mxu0 0.0
  %4008 = vmatpush1.msra.mxu0 0.0
  %4009 = vmatprep.subr.mxu0 0.0
  %4010 = vmatpush1.msra.mxu0 0.0
  %4011 = vmatprep.subr.mxu0 0.0
  %4012 = vmatpush1.msra.mxu0 0.0
  %4013 = vmatprep.subr.mxu0 0.0
  %4014 = vmatpush1.msra.mxu0 0.0
  %4015 = vmatprep.subr.mxu0 0.0
  %4016 = vmatpush1.msra.mxu0 0.0
  %4017 = vmatprep.subr.mxu0 0.0
  %4018 = vmatpush1.msra.mxu0 0.0
  %4019 = vmatprep.subr.mxu0 0.0
  %4020 = vmatpush1.msra.mxu0 0.0
  %4021 = vmatprep.subr.mxu0 0.0
  %4022 = vmatpush1.msra.mxu0 0.0
  %4023 = vmatprep.subr.mxu0 0.0
  %4024 = vmatpush1.msra.mxu0 0.0
  %4025 = vmatprep.subr.mxu0 0.0
  %4026 = vmatpush1.msra.mxu0 0.0
  %4027 = vmatprep.subr.mxu0 0.0
  %4028 = vmatpush1.msra.mxu0 0.0
  %4029 = vmatprep.subr.mxu0 0.0
  %4030 = vmatpush1.msra.mxu0 0.0
  %4031 = vmatprep.subr.mxu0 0.0
  %4032 = vmatpush1.msra.mxu0 0.0
  %4033 = vmatprep.subr.mxu0 0.0
  %4034 = vmatpush1.msra.mxu0 0.0
  %4035 = vmatprep.subr.mxu0 0.0
  %4036 = vmatpush1.msra.mxu0 0.0
  %4037 = vmatprep.subr.mxu0 0.0
  %4038 = vmatpush1.msra.mxu0 0.0
  %4039 = vmatprep.subr.mxu0 0.0
  %4040 = vmatpush1.msra.mxu0 0.0
  %4041 = vmatprep.subr.mxu0 0.0
  %4042 = vmatpush1.msra.mxu0 0.0
  %4043 = vmatprep.subr.mxu0 0.0
  %4044 = vmatpush1.msra.mxu0 0.0
  %4045 = vmatprep.subr.mxu0 0.0
  %4046 = vmatpush1.msra.mxu0 0.0
  %4047 = vmatprep.subr.mxu0 0.0
  %4048 = vmatpush1.msra.mxu0 0.0
  %4049 = vmatprep.subr.mxu0 0.0
  %4050 = vmatpush1.msra.mxu0 0.0
  %4051 = vmatprep.subr.mxu0 0.0
  %4052 = vmatpush1.msra.mxu0 0.0
  %4053 = vmatprep.subr.mxu0 0.0
  %4054 = vmatpush1.msra.mxu0 0.0
  %4055 = vmatprep.subr.mxu0 0.0
  %4056 = vmatpush1.msra.mxu0 0.0
  %4057 = vmatprep.subr.mxu0 0.0
  %4058 = vmatpush1.msra.mxu0 0.0
  %4059 = vmatprep.subr.mxu0 0.0
  %4060 = vmatpush1.msra.mxu0 0.0
  %4061 = vmatprep.mubr.f32.mxu0 0.0
  %v4062 = vand.u32 %v3614, 4294901760
  %4063 = vmatmul.mubr.f32.gmra.mrb[0].mxu0 %v4062
  %v4064 = vpop.f32.mrb[0].mxu0
  %v4065 = vadd.f32 %v3972, %v4064
  %v4066 = vpop.f32.mrb[0].mxu0
  %v4067 = vadd.f32 %v3974, %v4066
  %4068 = vmatprep.mubr.f32.mxu0 0.0
  %v4069 = vand.u32 %v3617, 4294901760
  %4070 = vmatmul.mubr.f32.gmra.mrb[0].mxu0 %v4069
  %v4071 = vpop.f32.mrb[0].mxu0
  %v4072 = vadd.f32 %v3981, %v4071
  %v4073 = vpop.f32.mrb[0].mxu0
  %v4074 = vadd.f32 %v3983, %v4073
  %4075 = vdwg.mxu0
  %v4076 = vand.u32 %v3598, 4294901760
  %4077 = vmatprep.subr.mxu0 %v4076
  %v4078 = vand.u32 %v3597, 4294901760
  %4079 = vmatpush1.msra.mxu0 %v4078
  %v4080 = vand.u32 %v3602, 4294901760
  %4081 = vmatprep.subr.mxu0 %v4080
  %v4082 = vand.u32 %v3601, 4294901760
  %4083 = vmatpush1.msra.mxu0 %v4082
  %4084 = vmatprep.subr.mxu0 0.0
  %4085 = vmatpush1.msra.mxu0 0.0
  %4086 = vmatprep.subr.mxu0 0.0
  %4087 = vmatpush1.msra.mxu0 0.0
  %4088 = vmatprep.subr.mxu0 0.0
  %4089 = vmatpush1.msra.mxu0 0.0
  %4090 = vmatprep.subr.mxu0 0.0
  %4091 = vmatpush1.msra.mxu0 0.0
  %4092 = vmatprep.subr.mxu0 0.0
  %4093 = vmatpush1.msra.mxu0 0.0
  %4094 = vmatprep.subr.mxu0 0.0
  %4095 = vmatpush1.msra.mxu0 0.0
  %4096 = vmatprep.subr.mxu0 0.0
  %4097 = vmatpush1.msra.mxu0 0.0
  %4098 = vmatprep.subr.mxu0 0.0
  %4099 = vmatpush1.msra.mxu0 0.0
  %4100 = vmatprep.subr.mxu0 0.0
  %4101 = vmatpush1.msra.mxu0 0.0
  %4102 = vmatprep.subr.mxu0 0.0
  %4103 = vmatpush1.msra.mxu0 0.0
  %4104 = vmatprep.subr.mxu0 0.0
  %4105 = vmatpush1.msra.mxu0 0.0
  %4106 = vmatprep.subr.mxu0 0.0
  %4107 = vmatpush1.msra.mxu0 0.0
  %4108 = vmatprep.subr.mxu0 0.0
  %4109 = vmatpush1.msra.mxu0 0.0
  %4110 = vmatprep.subr.mxu0 0.0
  %4111 = vmatpush1.msra.mxu0 0.0
  %4112 = vmatprep.subr.mxu0 0.0
  %4113 = vmatpush1.msra.mxu0 0.0
  %4114 = vmatprep.subr.mxu0 0.0
  %4115 = vmatpush1.msra.mxu0 0.0
  %4116 = vmatprep.subr.mxu0 0.0
  %4117 = vmatpush1.msra.mxu0 0.0
  %4118 = vmatprep.subr.mxu0 0.0
  %4119 = vmatpush1.msra.mxu0 0.0
  %4120 = vmatprep.subr.mxu0 0.0
  %4121 = vmatpush1.msra.mxu0 0.0
  %4122 = vmatprep.subr.mxu0 0.0
  %4123 = vmatpush1.msra.mxu0 0.0
  %4124 = vmatprep.subr.mxu0 0.0
  %4125 = vmatpush1.msra.mxu0 0.0
  %4126 = vmatprep.subr.mxu0 0.0
  %4127 = vmatpush1.msra.mxu0 0.0
  %4128 = vmatprep.subr.mxu0 0.0
  %4129 = vmatpush1.msra.mxu0 0.0
  %4130 = vmatprep.subr.mxu0 0.0
  %4131 = vmatpush1.msra.mxu0 0.0
  %4132 = vmatprep.subr.mxu0 0.0
  %4133 = vmatpush1.msra.mxu0 0.0
  %4134 = vmatprep.subr.mxu0 0.0
  %4135 = vmatpush1.msra.mxu0 0.0
  %4136 = vmatprep.subr.mxu0 0.0
  %4137 = vmatpush1.msra.mxu0 0.0
  %4138 = vmatprep.subr.mxu0 0.0
  %4139 = vmatpush1.msra.mxu0 0.0
  %4140 = vmatprep.subr.mxu0 0.0
  %4141 = vmatpush1.msra.mxu0 0.0
  %4142 = vmatprep.subr.mxu0 0.0
  %4143 = vmatpush1.msra.mxu0 0.0
  %4144 = vmatprep.mubr.f32.mxu0 0.0
  %v4145 = vand.u32 %v3614, 4294901760
  %4146 = vmatmul.mubr.f32.gmra.mrb[0].mxu0 %v4145
  %v4147 = vpop.f32.mrb[0].mxu0
  %v4148 = vadd.f32 %v4065, %v4147
  %v4149 = vpop.f32.mrb[0].mxu0
  %v4150 = vadd.f32 %v4067, %v4149
  %4151 = vmatprep.mubr.f32.mxu0 0.0
  %v4152 = vand.u32 %v3617, 4294901760
  %4153 = vmatmul.mubr.f32.gmra.mrb[0].mxu0 %v4152
  %v4154 = vpop.f32.mrb[0].mxu0
  %v4155 = vadd.f32 %v4072, %v4154
  %v4156 = vpop.f32.mrb[0].mxu0
  %v4157 = vadd.f32 %v4074, %v4156
  %4158 = vdwg.mxu0
  %v4159 = vand.u32 %v3600, 4294901760
  %4160 = vmatprep.subr.mxu0 %v4159
  %v4161 = vand.u32 %v3599, 4294901760
  %4162 = vmatpush1.msra.mxu0 %v4161
  %v4163 = vand.u32 %v3604, 4294901760
  %4164 = vmatprep.subr.mxu0 %v4163
  %v4165 = vand.u32 %v3603, 4294901760
  %4166 = vmatpush1.msra.mxu0 %v4165
  %4167 = vmatprep.subr.mxu0 0.0
  %4168 = vmatpush1.msra.mxu0 0.0
  %4169 = vmatprep.subr.mxu0 0.0
  %4170 = vmatpush1.msra.mxu0 0.0
  %4171 = vmatprep.subr.mxu0 0.0
  %4172 = vmatpush1.msra.mxu0 0.0
  %4173 = vmatprep.subr.mxu0 0.0
  %4174 = vmatpush1.msra.mxu0 0.0
  %4175 = vmatprep.subr.mxu0 0.0
  %4176 = vmatpush1.msra.mxu0 0.0
  %4177 = vmatprep.subr.mxu0 0.0
  %4178 = vmatpush1.msra.mxu0 0.0
  %4179 = vmatprep.subr.mxu0 0.0
  %4180 = vmatpush1.msra.mxu0 0.0
  %4181 = vmatprep.subr.mxu0 0.0
  %4182 = vmatpush1.msra.mxu0 0.0
  %4183 = vmatprep.subr.mxu0 0.0
  %4184 = vmatpush1.msra.mxu0 0.0
  %4185 = vmatprep.subr.mxu0 0.0
  %4186 = vmatpush1.msra.mxu0 0.0
  %4187 = vmatprep.subr.mxu0 0.0
  %4188 = vmatpush1.msra.mxu0 0.0
  %4189 = vmatprep.subr.mxu0 0.0
  %4190 = vmatpush1.msra.mxu0 0.0
  %4191 = vmatprep.subr.mxu0 0.0
  %4192 = vmatpush1.msra.mxu0 0.0
  %4193 = vmatprep.subr.mxu0 0.0
  %4194 = vmatpush1.msra.mxu0 0.0
  %4195 = vmatprep.subr.mxu0 0.0
  %4196 = vmatpush1.msra.mxu0 0.0
  %4197 = vmatprep.subr.mxu0 0.0
  %4198 = vmatpush1.msra.mxu0 0.0
  %4199 = vmatprep.subr.mxu0 0.0
  %4200 = vmatpush1.msra.mxu0 0.0
  %4201 = vmatprep.subr.mxu0 0.0
  %4202 = vmatpush1.msra.mxu0 0.0
  %4203 = vmatprep.subr.mxu0 0.0
  %4204 = vmatpush1.msra.mxu0 0.0
  %4205 = vmatprep.subr.mxu0 0.0
  %4206 = vmatpush1.msra.mxu0 0.0
  %4207 = vmatprep.subr.mxu0 0.0
  %4208 = vmatpush1.msra.mxu0 0.0
  %4209 = vmatprep.subr.mxu0 0.0
  %4210 = vmatpush1.msra.mxu0 0.0
  %4211 = vmatprep.subr.mxu0 0.0
  %4212 = vmatpush1.msra.mxu0 0.0
  %4213 = vmatprep.subr.mxu0 0.0
  %4214 = vmatpush1.msra.mxu0 0.0
  %4215 = vmatprep.subr.mxu0 0.0
  %4216 = vmatpush1.msra.mxu0 0.0
  %4217 = vmatprep.subr.mxu0 0.0
  %4218 = vmatpush1.msra.mxu0 0.0
  %4219 = vmatprep.subr.mxu0 0.0
  %4220 = vmatpush1.msra.mxu0 0.0
  %4221 = vmatprep.subr.mxu0 0.0
  %4222 = vmatpush1.msra.mxu0 0.0
  %4223 = vmatprep.subr.mxu0 0.0
  %4224 = vmatpush1.msra.mxu0 0.0
  %4225 = vmatprep.subr.mxu0 0.0
  %4226 = vmatpush1.msra.mxu0 0.0
  %4227 = vmatprep.mubr.f32.mxu0 0.0
  %v4228 = vand.u32 %v3614, 4294901760
  %v4229 = vsub.f32 %v3614, %v4228
  %v4230 = vand.u32 %v4229, 4294901760
  %v4231 = vsub.f32 %v4229, %v4230
  %v4232 = vand.u32 %v4231, 4294901760
  %4233 = vmatmul.mubr.f32.gmra.mrb[0].mxu0 %v4232
  %v4234 = vpop.f32.mrb[0].mxu0
  %v4235 = vadd.f32 0.0, %v4234
  %v4236 = vpop.f32.mrb[0].mxu0
  %v4237 = vadd.f32 0.0, %v4236
  %4238 = vmatprep.mubr.f32.mxu0 0.0
  %v4239 = vand.u32 %v3617, 4294901760
  %v4240 = vsub.f32 %v3617, %v4239
  %v4241 = vand.u32 %v4240, 4294901760
  %v4242 = vsub.f32 %v4240, %v4241
  %v4243 = vand.u32 %v4242, 4294901760
  %4244 = vmatmul.mubr.f32.gmra.mrb[0].mxu0 %v4243
  %v4245 = vpop.f32.mrb[0].mxu0
  %v4246 = vadd.f32 0.0, %v4245
  %v4247 = vpop.f32.mrb[0].mxu0
  %v4248 = vadd.f32 0.0, %v4247
  %4249 = vdwg.mxu0
  %v4250 = vand.u32 %v3600, 4294901760
  %v4251 = vsub.f32 %v3600, %v4250
  %v4252 = vand.u32 %v4251, 4294901760
  %v4253 = vsub.f32 %v4251, %v4252
  %v4254 = vand.u32 %v4253, 4294901760
  %4255 = vmatprep.subr.mxu0 %v4254
  %v4256 = vand.u32 %v3599, 4294901760
  %v4257 = vsub.f32 %v3599, %v4256
  %v4258 = vand.u32 %v4257, 4294901760
  %v4259 = vsub.f32 %v4257, %v4258
  %v4260 = vand.u32 %v4259, 4294901760
  %4261 = vmatpush1.msra.mxu0 %v4260
  %v4262 = vand.u32 %v3604, 4294901760
  %v4263 = vsub.f32 %v3604, %v4262
  %v4264 = vand.u32 %v4263, 4294901760
  %v4265 = vsub.f32 %v4263, %v4264
  %v4266 = vand.u32 %v4265, 4294901760
  %4267 = vmatprep.subr.mxu0 %v4266
  %v4268 = vand.u32 %v3603, 4294901760
  %v4269 = vsub.f32 %v3603, %v4268
  %v4270 = vand.u32 %v4269, 4294901760
  %v4271 = vsub.f32 %v4269, %v4270
  %v4272 = vand.u32 %v4271, 4294901760
  %4273 = vmatpush1.msra.mxu0 %v4272
  %4274 = vmatprep.subr.mxu0 0.0
  %4275 = vmatpush1.msra.mxu0 0.0
  %4276 = vmatprep.subr.mxu0 0.0
  %4277 = vmatpush1.msra.mxu0 0.0
  %4278 = vmatprep.subr.mxu0 0.0
  %4279 = vmatpush1.msra.mxu0 0.0
  %4280 = vmatprep.subr.mxu0 0.0
  %4281 = vmatpush1.msra.mxu0 0.0
  %4282 = vmatprep.subr.mxu0 0.0
  %4283 = vmatpush1.msra.mxu0 0.0
  %4284 = vmatprep.subr.mxu0 0.0
  %4285 = vmatpush1.msra.mxu0 0.0
  %4286 = vmatprep.subr.mxu0 0.0
  %4287 = vmatpush1.msra.mxu0 0.0
  %4288 = vmatprep.subr.mxu0 0.0
  %4289 = vmatpush1.msra.mxu0 0.0
  %4290 = vmatprep.subr.mxu0 0.0
  %4291 = vmatpush1.msra.mxu0 0.0
  %4292 = vmatprep.subr.mxu0 0.0
  %4293 = vmatpush1.msra.mxu0 0.0
  %4294 = vmatprep.subr.mxu0 0.0
  %4295 = vmatpush1.msra.mxu0 0.0
  %4296 = vmatprep.subr.mxu0 0.0
  %4297 = vmatpush1.msra.mxu0 0.0
  %4298 = vmatprep.subr.mxu0 0.0
  %4299 = vmatpush1.msra.mxu0 0.0
  %4300 = vmatprep.subr.mxu0 0.0
  %4301 = vmatpush1.msra.mxu0 0.0
  %4302 = vmatprep.subr.mxu0 0.0
  %4303 = vmatpush1.msra.mxu0 0.0
  %4304 = vmatprep.subr.mxu0 0.0
  %4305 = vmatpush1.msra.mxu0 0.0
  %4306 = vmatprep.subr.mxu0 0.0
  %4307 = vmatpush1.msra.mxu0 0.0
  %4308 = vmatprep.subr.mxu0 0.0
  %4309 = vmatpush1.msra.mxu0 0.0
  %4310 = vmatprep.subr.mxu0 0.0
  %4311 = vmatpush1.msra.mxu0 0.0
  %4312 = vmatprep.subr.mxu0 0.0
  %4313 = vmatpush1.msra.mxu0 0.0
  %4314 = vmatprep.subr.mxu0 0.0
  %4315 = vmatpush1.msra.mxu0 0.0
  %4316 = vmatprep.subr.mxu0 0.0
  %4317 = vmatpush1.msra.mxu0 0.0
  %4318 = vmatprep.subr.mxu0 0.0
  %4319 = vmatpush1.msra.mxu0 0.0
  %4320 = vmatprep.subr.mxu0 0.0
  %4321 = vmatpush1.msra.mxu0 0.0
  %4322 = vmatprep.subr.mxu0 0.0
  %4323 = vmatpush1.msra.mxu0 0.0
  %4324 = vmatprep.subr.mxu0 0.0
  %4325 = vmatpush1.msra.mxu0 0.0
  %4326 = vmatprep.subr.mxu0 0.0
  %4327 = vmatpush1.msra.mxu0 0.0
  %4328 = vmatprep.subr.mxu0 0.0
  %4329 = vmatpush1.msra.mxu0 0.0
  %4330 = vmatprep.subr.mxu0 0.0
  %4331 = vmatpush1.msra.mxu0 0.0
  %4332 = vmatprep.subr.mxu0 0.0
  %4333 = vmatpush1.msra.mxu0 0.0
  %4334 = vmatprep.mubr.f32.mxu0 0.0
  %v4335 = vand.u32 %v3614, 4294901760
  %4336 = vmatmul.mubr.f32.gmra.mrb[0].mxu0 %v4335
  %v4337 = vpop.f32.mrb[0].mxu0
  %v4338 = vadd.f32 %v4235, %v4337
  %v4339 = vpop.f32.mrb[0].mxu0
  %v4340 = vadd.f32 %v4237, %v4339
  %4341 = vmatprep.mubr.f32.mxu0 0.0
  %v4342 = vand.u32 %v3617, 4294901760
  %4343 = vmatmul.mubr.f32.gmra.mrb[0].mxu0 %v4342
  %v4344 = vpop.f32.mrb[0].mxu0
  %v4345 = vadd.f32 %v4246, %v4344
  %v4346 = vpop.f32.mrb[0].mxu0
  %v4347 = vadd.f32 %v4248, %v4346
  %4348 = vdwg.mxu0
  %v4349 = vand.u32 %v3600, 4294901760
  %v4350 = vsub.f32 %v3600, %v4349
  %4351 = vmatprep.subr.mxu0 %v4350
  %v4352 = vand.u32 %v3599, 4294901760
  %v4353 = vsub.f32 %v3599, %v4352
  %4354 = vmatpush1.msra.mxu0 %v4353
  %v4355 = vand.u32 %v3604, 4294901760
  %v4356 = vsub.f32 %v3604, %v4355
  %4357 = vmatprep.subr.mxu0 %v4356
  %v4358 = vand.u32 %v3603, 4294901760
  %v4359 = vsub.f32 %v3603, %v4358
  %4360 = vmatpush1.msra.mxu0 %v4359
  %4361 = vmatprep.subr.mxu0 0.0
  %4362 = vmatpush1.msra.mxu0 0.0
  %4363 = vmatprep.subr.mxu0 0.0
  %4364 = vmatpush1.msra.mxu0 0.0
  %4365 = vmatprep.subr.mxu0 0.0
  %4366 = vmatpush1.msra.mxu0 0.0
  %4367 = vmatprep.subr.mxu0 0.0
  %4368 = vmatpush1.msra.mxu0 0.0
  %4369 = vmatprep.subr.mxu0 0.0
  %4370 = vmatpush1.msra.mxu0 0.0
  %4371 = vmatprep.subr.mxu0 0.0
  %4372 = vmatpush1.msra.mxu0 0.0
  %4373 = vmatprep.subr.mxu0 0.0
  %4374 = vmatpush1.msra.mxu0 0.0
  %4375 = vmatprep.subr.mxu0 0.0
  %4376 = vmatpush1.msra.mxu0 0.0
  %4377 = vmatprep.subr.mxu0 0.0
  %4378 = vmatpush1.msra.mxu0 0.0
  %4379 = vmatprep.subr.mxu0 0.0
  %4380 = vmatpush1.msra.mxu0 0.0
  %4381 = vmatprep.subr.mxu0 0.0
  %4382 = vmatpush1.msra.mxu0 0.0
  %4383 = vmatprep.subr.mxu0 0.0
  %4384 = vmatpush1.msra.mxu0 0.0
  %4385 = vmatprep.subr.mxu0 0.0
  %4386 = vmatpush1.msra.mxu0 0.0
  %4387 = vmatprep.subr.mxu0 0.0
  %4388 = vmatpush1.msra.mxu0 0.0
  %4389 = vmatprep.subr.mxu0 0.0
  %4390 = vmatpush1.msra.mxu0 0.0
  %4391 = vmatprep.subr.mxu0 0.0
  %4392 = vmatpush1.msra.mxu0 0.0
  %4393 = vmatprep.subr.mxu0 0.0
  %4394 = vmatpush1.msra.mxu0 0.0
  %4395 = vmatprep.subr.mxu0 0.0
  %4396 = vmatpush1.msra.mxu0 0.0
  %4397 = vmatprep.subr.mxu0 0.0
  %4398 = vmatpush1.msra.mxu0 0.0
  %4399 = vmatprep.subr.mxu0 0.0
  %4400 = vmatpush1.msra.mxu0 0.0
  %4401 = vmatprep.subr.mxu0 0.0
  %4402 = vmatpush1.msra.mxu0 0.0
  %4403 = vmatprep.subr.mxu0 0.0
  %4404 = vmatpush1.msra.mxu0 0.0
  %4405 = vmatprep.subr.mxu0 0.0
  %4406 = vmatpush1.msra.mxu0 0.0
  %4407 = vmatprep.subr.mxu0 0.0
  %4408 = vmatpush1.msra.mxu0 0.0
  %4409 = vmatprep.subr.mxu0 0.0
  %4410 = vmatpush1.msra.mxu0 0.0
  %4411 = vmatprep.subr.mxu0 0.0
  %4412 = vmatpush1.msra.mxu0 0.0
  %4413 = vmatprep.subr.mxu0 0.0
  %4414 = vmatpush1.msra.mxu0 0.0
  %4415 = vmatprep.subr.mxu0 0.0
  %4416 = vmatpush1.msra.mxu0 0.0
  %4417 = vmatprep.subr.mxu0 0.0
  %4418 = vmatpush1.msra.mxu0 0.0
  %4419 = vmatprep.subr.mxu0 0.0
  %4420 = vmatpush1.msra.mxu0 0.0
  %4421 = vmatprep.mubr.f32.mxu0 0.0
  %v4422 = vand.u32 %v3614, 4294901760
  %v4423 = vsub.f32 %v3614, %v4422
  %4424 = vmatmul.mubr.f32.gmra.mrb[0].mxu0 %v4423
  %v4425 = vpop.f32.mrb[0].mxu0
  %v4426 = vadd.f32 %v4338, %v4425
  %v4427 = vpop.f32.mrb[0].mxu0
  %v4428 = vadd.f32 %v4340, %v4427
  %4429 = vmatprep.mubr.f32.mxu0 0.0
  %v4430 = vand.u32 %v3617, 4294901760
  %v4431 = vsub.f32 %v3617, %v4430
  %4432 = vmatmul.mubr.f32.gmra.mrb[0].mxu0 %v4431
  %v4433 = vpop.f32.mrb[0].mxu0
  %v4434 = vadd.f32 %v4345, %v4433
  %v4435 = vpop.f32.mrb[0].mxu0
  %v4436 = vadd.f32 %v4347, %v4435
  %4437 = vdwg.mxu0
  %v4438 = vand.u32 %v3600, 4294901760
  %4439 = vmatprep.subr.mxu0 %v4438
  %v4440 = vand.u32 %v3599, 4294901760
  %4441 = vmatpush1.msra.mxu0 %v4440
  %v4442 = vand.u32 %v3604, 4294901760
  %4443 = vmatprep.subr.mxu0 %v4442
  %v4444 = vand.u32 %v3603, 4294901760
  %4445 = vmatpush1.msra.mxu0 %v4444
  %4446 = vmatprep.subr.mxu0 0.0
  %4447 = vmatpush1.msra.mxu0 0.0
  %4448 = vmatprep.subr.mxu0 0.0
  %4449 = vmatpush1.msra.mxu0 0.0
  %4450 = vmatprep.subr.mxu0 0.0
  %4451 = vmatpush1.msra.mxu0 0.0
  %4452 = vmatprep.subr.mxu0 0.0
  %4453 = vmatpush1.msra.mxu0 0.0
  %4454 = vmatprep.subr.mxu0 0.0
  %4455 = vmatpush1.msra.mxu0 0.0
  %4456 = vmatprep.subr.mxu0 0.0
  %4457 = vmatpush1.msra.mxu0 0.0
  %4458 = vmatprep.subr.mxu0 0.0
  %4459 = vmatpush1.msra.mxu0 0.0
  %4460 = vmatprep.subr.mxu0 0.0
  %4461 = vmatpush1.msra.mxu0 0.0
  %4462 = vmatprep.subr.mxu0 0.0
  %4463 = vmatpush1.msra.mxu0 0.0
  %4464 = vmatprep.subr.mxu0 0.0
  %4465 = vmatpush1.msra.mxu0 0.0
  %4466 = vmatprep.subr.mxu0 0.0
  %4467 = vmatpush1.msra.mxu0 0.0
  %4468 = vmatprep.subr.mxu0 0.0
  %4469 = vmatpush1.msra.mxu0 0.0
  %4470 = vmatprep.subr.mxu0 0.0
  %4471 = vmatpush1.msra.mxu0 0.0
  %4472 = vmatprep.subr.mxu0 0.0
  %4473 = vmatpush1.msra.mxu0 0.0
  %4474 = vmatprep.subr.mxu0 0.0
  %4475 = vmatpush1.msra.mxu0 0.0
  %4476 = vmatprep.subr.mxu0 0.0
  %4477 = vmatpush1.msra.mxu0 0.0
  %4478 = vmatprep.subr.mxu0 0.0
  %4479 = vmatpush1.msra.mxu0 0.0
  %4480 = vmatprep.subr.mxu0 0.0
  %4481 = vmatpush1.msra.mxu0 0.0
  %4482 = vmatprep.subr.mxu0 0.0
  %4483 = vmatpush1.msra.mxu0 0.0
  %4484 = vmatprep.subr.mxu0 0.0
  %4485 = vmatpush1.msra.mxu0 0.0
  %4486 = vmatprep.subr.mxu0 0.0
  %4487 = vmatpush1.msra.mxu0 0.0
  %4488 = vmatprep.subr.mxu0 0.0
  %4489 = vmatpush1.msra.mxu0 0.0
  %4490 = vmatprep.subr.mxu0 0.0
  %4491 = vmatpush1.msra.mxu0 0.0
  %4492 = vmatprep.subr.mxu0 0.0
  %4493 = vmatpush1.msra.mxu0 0.0
  %4494 = vmatprep.subr.mxu0 0.0
  %4495 = vmatpush1.msra.mxu0 0.0
  %4496 = vmatprep.subr.mxu0 0.0
  %4497 = vmatpush1.msra.mxu0 0.0
  %4498 = vmatprep.subr.mxu0 0.0
  %4499 = vmatpush1.msra.mxu0 0.0
  %4500 = vmatprep.subr.mxu0 0.0
  %4501 = vmatpush1.msra.mxu0 0.0
  %4502 = vmatprep.subr.mxu0 0.0
  %4503 = vmatpush1.msra.mxu0 0.0
  %4504 = vmatprep.subr.mxu0 0.0
  %4505 = vmatpush1.msra.mxu0 0.0
  %4506 = vmatprep.mubr.f32.mxu0 0.0
  %v4507 = vand.u32 %v3614, 4294901760
  %v4508 = vsub.f32 %v3614, %v4507
  %v4509 = vand.u32 %v4508, 4294901760
  %4510 = vmatmul.mubr.f32.gmra.mrb[0].mxu0 %v4509
  %v4511 = vpop.f32.mrb[0].mxu0
  %v4512 = vadd.f32 %v4426, %v4511
  %v4513 = vpop.f32.mrb[0].mxu0
  %v4514 = vadd.f32 %v4428, %v4513
  %4515 = vmatprep.mubr.f32.mxu0 0.0
  %v4516 = vand.u32 %v3617, 4294901760
  %v4517 = vsub.f32 %v3617, %v4516
  %v4518 = vand.u32 %v4517, 4294901760
  %4519 = vmatmul.mubr.f32.gmra.mrb[0].mxu0 %v4518
  %v4520 = vpop.f32.mrb[0].mxu0
  %v4521 = vadd.f32 %v4434, %v4520
  %v4522 = vpop.f32.mrb[0].mxu0
  %v4523 = vadd.f32 %v4436, %v4522
  %4524 = vdwg.mxu0
  %v4525 = vand.u32 %v3600, 4294901760
  %v4526 = vsub.f32 %v3600, %v4525
  %v4527 = vand.u32 %v4526, 4294901760
  %4528 = vmatprep.subr.mxu0 %v4527
  %v4529 = vand.u32 %v3599, 4294901760
  %v4530 = vsub.f32 %v3599, %v4529
  %v4531 = vand.u32 %v4530, 4294901760
  %4532 = vmatpush1.msra.mxu0 %v4531
  %v4533 = vand.u32 %v3604, 4294901760
  %v4534 = vsub.f32 %v3604, %v4533
  %v4535 = vand.u32 %v4534, 4294901760
  %4536 = vmatprep.subr.mxu0 %v4535
  %v4537 = vand.u32 %v3603, 4294901760
  %v4538 = vsub.f32 %v3603, %v4537
  %v4539 = vand.u32 %v4538, 4294901760
  %4540 = vmatpush1.msra.mxu0 %v4539
  %4541 = vmatprep.subr.mxu0 0.0
  %4542 = vmatpush1.msra.mxu0 0.0
  %4543 = vmatprep.subr.mxu0 0.0
  %4544 = vmatpush1.msra.mxu0 0.0
  %4545 = vmatprep.subr.mxu0 0.0
  %4546 = vmatpush1.msra.mxu0 0.0
  %4547 = vmatprep.subr.mxu0 0.0
  %4548 = vmatpush1.msra.mxu0 0.0
  %4549 = vmatprep.subr.mxu0 0.0
  %4550 = vmatpush1.msra.mxu0 0.0
  %4551 = vmatprep.subr.mxu0 0.0
  %4552 = vmatpush1.msra.mxu0 0.0
  %4553 = vmatprep.subr.mxu0 0.0
  %4554 = vmatpush1.msra.mxu0 0.0
  %4555 = vmatprep.subr.mxu0 0.0
  %4556 = vmatpush1.msra.mxu0 0.0
  %4557 = vmatprep.subr.mxu0 0.0
  %4558 = vmatpush1.msra.mxu0 0.0
  %4559 = vmatprep.subr.mxu0 0.0
  %4560 = vmatpush1.msra.mxu0 0.0
  %4561 = vmatprep.subr.mxu0 0.0
  %4562 = vmatpush1.msra.mxu0 0.0
  %4563 = vmatprep.subr.mxu0 0.0
  %4564 = vmatpush1.msra.mxu0 0.0
  %4565 = vmatprep.subr.mxu0 0.0
  %4566 = vmatpush1.msra.mxu0 0.0
  %4567 = vmatprep.subr.mxu0 0.0
  %4568 = vmatpush1.msra.mxu0 0.0
  %4569 = vmatprep.subr.mxu0 0.0
  %4570 = vmatpush1.msra.mxu0 0.0
  %4571 = vmatprep.subr.mxu0 0.0
  %4572 = vmatpush1.msra.mxu0 0.0
  %4573 = vmatprep.subr.mxu0 0.0
  %4574 = vmatpush1.msra.mxu0 0.0
  %4575 = vmatprep.subr.mxu0 0.0
  %4576 = vmatpush1.msra.mxu0 0.0
  %4577 = vmatprep.subr.mxu0 0.0
  %4578 = vmatpush1.msra.mxu0 0.0
  %4579 = vmatprep.subr.mxu0 0.0
  %4580 = vmatpush1.msra.mxu0 0.0
  %4581 = vmatprep.subr.mxu0 0.0
  %4582 = vmatpush1.msra.mxu0 0.0
  %4583 = vmatprep.subr.mxu0 0.0
  %4584 = vmatpush1.msra.mxu0 0.0
  %4585 = vmatprep.subr.mxu0 0.0
  %4586 = vmatpush1.msra.mxu0 0.0
  %4587 = vmatprep.subr.mxu0 0.0
  %4588 = vmatpush1.msra.mxu0 0.0
  %4589 = vmatprep.subr.mxu0 0.0
  %4590 = vmatpush1.msra.mxu0 0.0
  %4591 = vmatprep.subr.mxu0 0.0
  %4592 = vmatpush1.msra.mxu0 0.0
  %4593 = vmatprep.subr.mxu0 0.0
  %4594 = vmatpush1.msra.mxu0 0.0
  %4595 = vmatprep.subr.mxu0 0.0
  %4596 = vmatpush1.msra.mxu0 0.0
  %4597 = vmatprep.subr.mxu0 0.0
  %4598 = vmatpush1.msra.mxu0 0.0
  %4599 = vmatprep.subr.mxu0 0.0
  %4600 = vmatpush1.msra.mxu0 0.0
  %4601 = vmatprep.mubr.f32.mxu0 0.0
  %v4602 = vand.u32 %v3614, 4294901760
  %4603 = vmatmul.mubr.f32.gmra.mrb[0].mxu0 %v4602
  %v4604 = vpop.f32.mrb[0].mxu0
  %v4605 = vadd.f32 %v4512, %v4604
  %v4606 = vpop.f32.mrb[0].mxu0
  %v4607 = vadd.f32 %v4514, %v4606
  %4608 = vmatprep.mubr.f32.mxu0 0.0
  %v4609 = vand.u32 %v3617, 4294901760
  %4610 = vmatmul.mubr.f32.gmra.mrb[0].mxu0 %v4609
  %v4611 = vpop.f32.mrb[0].mxu0
  %v4612 = vadd.f32 %v4521, %v4611
  %v4613 = vpop.f32.mrb[0].mxu0
  %v4614 = vadd.f32 %v4523, %v4613
  %4615 = vdwg.mxu0
  %v4616 = vand.u32 %v3600, 4294901760
  %4617 = vmatprep.subr.mxu0 %v4616
  %v4618 = vand.u32 %v3599, 4294901760
  %4619 = vmatpush1.msra.mxu0 %v4618
  %v4620 = vand.u32 %v3604, 4294901760
  %4621 = vmatprep.subr.mxu0 %v4620
  %v4622 = vand.u32 %v3603, 4294901760
  %4623 = vmatpush1.msra.mxu0 %v4622
  %4624 = vmatprep.subr.mxu0 0.0
  %4625 = vmatpush1.msra.mxu0 0.0
  %4626 = vmatprep.subr.mxu0 0.0
  %4627 = vmatpush1.msra.mxu0 0.0
  %4628 = vmatprep.subr.mxu0 0.0
  %4629 = vmatpush1.msra.mxu0 0.0
  %4630 = vmatprep.subr.mxu0 0.0
  %4631 = vmatpush1.msra.mxu0 0.0
  %4632 = vmatprep.subr.mxu0 0.0
  %4633 = vmatpush1.msra.mxu0 0.0
  %4634 = vmatprep.subr.mxu0 0.0
  %4635 = vmatpush1.msra.mxu0 0.0
  %4636 = vmatprep.subr.mxu0 0.0
  %4637 = vmatpush1.msra.mxu0 0.0
  %4638 = vmatprep.subr.mxu0 0.0
  %4639 = vmatpush1.msra.mxu0 0.0
  %4640 = vmatprep.subr.mxu0 0.0
  %4641 = vmatpush1.msra.mxu0 0.0
  %4642 = vmatprep.subr.mxu0 0.0
  %4643 = vmatpush1.msra.mxu0 0.0
  %4644 = vmatprep.subr.mxu0 0.0
  %4645 = vmatpush1.msra.mxu0 0.0
  %4646 = vmatprep.subr.mxu0 0.0
  %4647 = vmatpush1.msra.mxu0 0.0
  %4648 = vmatprep.subr.mxu0 0.0
  %4649 = vmatpush1.msra.mxu0 0.0
  %4650 = vmatprep.subr.mxu0 0.0
  %4651 = vmatpush1.msra.mxu0 0.0
  %4652 = vmatprep.subr.mxu0 0.0
  %4653 = vmatpush1.msra.mxu0 0.0
  %4654 = vmatprep.subr.mxu0 0.0
  %4655 = vmatpush1.msra.mxu0 0.0
  %4656 = vmatprep.subr.mxu0 0.0
  %4657 = vmatpush1.msra.mxu0 0.0
  %4658 = vmatprep.subr.mxu0 0.0
  %4659 = vmatpush1.msra.mxu0 0.0
  %4660 = vmatprep.subr.mxu0 0.0
  %4661 = vmatpush1.msra.mxu0 0.0
  %4662 = vmatprep.subr.mxu0 0.0
  %4663 = vmatpush1.msra.mxu0 0.0
  %4664 = vmatprep.subr.mxu0 0.0
  %4665 = vmatpush1.msra.mxu0 0.0
  %4666 = vmatprep.subr.mxu0 0.0
  %4667 = vmatpush1.msra.mxu0 0.0
  %4668 = vmatprep.subr.mxu0 0.0
  %4669 = vmatpush1.msra.mxu0 0.0
  %4670 = vmatprep.subr.mxu0 0.0
  %4671 = vmatpush1.msra.mxu0 0.0
  %4672 = vmatprep.subr.mxu0 0.0
  %4673 = vmatpush1.msra.mxu0 0.0
  %4674 = vmatprep.subr.mxu0 0.0
  %4675 = vmatpush1.msra.mxu0 0.0
  %4676 = vmatprep.subr.mxu0 0.0
  %4677 = vmatpush1.msra.mxu0 0.0
  %4678 = vmatprep.subr.mxu0 0.0
  %4679 = vmatpush1.msra.mxu0 0.0
  %4680 = vmatprep.subr.mxu0 0.0
  %4681 = vmatpush1.msra.mxu0 0.0
  %4682 = vmatprep.subr.mxu0 0.0
  %4683 = vmatpush1.msra.mxu0 0.0
  %4684 = vmatprep.mubr.f32.mxu0 0.0
  %v4685 = vand.u32 %v3614, 4294901760
  %4686 = vmatmul.mubr.f32.gmra.mrb[0].mxu0 %v4685
  %v4687 = vpop.f32.mrb[0].mxu0
  %v4688 = vadd.f32 %v4605, %v4687
  %v4689 = vpop.f32.mrb[0].mxu0
  %v4690 = vadd.f32 %v4607, %v4689
  %4691 = vmatprep.mubr.f32.mxu0 0.0
  %v4692 = vand.u32 %v3617, 4294901760
  %4693 = vmatmul.mubr.f32.gmra.mrb[0].mxu0 %v4692
  %v4694 = vpop.f32.mrb[0].mxu0
  %v4695 = vadd.f32 %v4612, %v4694
  %v4696 = vpop.f32.mrb[0].mxu0
  %v4697 = vadd.f32 %v4614, %v4696
  %4698 = vdwg.mxu0
  %v4699 = vadd.f32 %v3510, %v4148
  %v4700 = vadd.f32 %v3511, %v4150
  %v4701 = vadd.f32 %v3512, %v4688
  %v4702 = vadd.f32 %v3513, %v4690
  %v4703 = vadd.f32 %v3514, %v4155
  %v4704 = vadd.f32 %v3515, %v4157
  %v4705 = vadd.f32 %v3516, %v4695
  %v4706 = vadd.f32 %v3517, %v4697
  %s4707 = scalar_lea.vmem %s1, 64
  %v4708 = vld [vmem:[%s4707] sm:$0xff]
  %v4709 = vld [vmem:[%s4707 + $0x8] sm:$0xff]
  %4720 = vrot.lane.b32.xlu0 %v17, 111
  %v4721 = vpop.permute.xlu0 %4720
  %4722 = vrot.lane.b32.xlu0 %v18, 111
  %v4723 = vpop.permute.xlu0 %4722
  %4724 = vrot.lane.b32.xlu0 %v19, 111
  %v4725 = vpop.permute.xlu0 %4724
  %4726 = vrot.lane.b32.xlu0 %v20, 111
  %v4727 = vpop.permute.xlu0 %4726
  %4728 = vrot.lane.b32.xlu0 %v57, 111
  %v4729 = vpop.permute.xlu0 %4728
  %4730 = vrot.lane.b32.xlu0 %v21, 111
  %v4731 = vpop.permute.xlu0 %4730
  %4732 = vrot.lane.b32.xlu0 %v22, 111
  %v4733 = vpop.permute.xlu0 %4732
  %4734 = vrot.lane.b32.xlu0 %v23, 111
  %v4735 = vpop.permute.xlu0 %4734
  %4736 = vrot.lane.b32.xlu0 %v24, 111
  %v4737 = vpop.permute.xlu0 %4736
  %4738 = vrot.lane.b32.xlu0 %v58, 111
  %v4739 = vpop.permute.xlu0 %4738
  %vm4740 = vcmask 908288
  %v4741 = vsel %vm4740, %v4721, %v4723
  %v4742 = vsel %vm4740, %v4723, %v4725
  %v4743 = vsel %vm4740, %v4725, %v4727
  %v4744 = vsel %vm4740, %v4727, %v4729
  %v4745 = vsel %vm4740, %v4731, %v4733
  %v4746 = vsel %vm4740, %v4733, %v4735
  %v4747 = vsel %vm4740, %v4735, %v4737
  %v4748 = vsel %vm4740, %v4737, %v4739
  %v4758 = vsel %vm155, %v4708, 0
  %v4761 = vsel %vm155, %v4709, 0
  %v4763 = vand.u32 %v4742, 4294901760
  %4764 = vmatprep.subr.mxu0 %v4763
  %v4765 = vand.u32 %v4741, 4294901760
  %4766 = vmatpush1.msra.mxu0 %v4765
  %v4767 = vand.u32 %v4746, 4294901760
  %4768 = vmatprep.subr.mxu0 %v4767
  %v4769 = vand.u32 %v4745, 4294901760
  %4770 = vmatpush1.msra.mxu0 %v4769
  %4771 = vmatprep.subr.mxu0 0.0
  %4772 = vmatpush1.msra.mxu0 0.0
  %4773 = vmatprep.subr.mxu0 0.0
  %4774 = vmatpush1.msra.mxu0 0.0
  %4775 = vmatprep.subr.mxu0 0.0
  %4776 = vmatpush1.msra.mxu0 0.0
  %4777 = vmatprep.subr.mxu0 0.0
  %4778 = vmatpush1.msra.mxu0 0.0
  %4779 = vmatprep.subr.mxu0 0.0
  %4780 = vmatpush1.msra.mxu0 0.0
  %4781 = vmatprep.subr.mxu0 0.0
  %4782 = vmatpush1.msra.mxu0 0.0
  %4783 = vmatprep.subr.mxu0 0.0
  %4784 = vmatpush1.msra.mxu0 0.0
  %4785 = vmatprep.subr.mxu0 0.0
  %4786 = vmatpush1.msra.mxu0 0.0
  %4787 = vmatprep.subr.mxu0 0.0
  %4788 = vmatpush1.msra.mxu0 0.0
  %4789 = vmatprep.subr.mxu0 0.0
  %4790 = vmatpush1.msra.mxu0 0.0
  %4791 = vmatprep.subr.mxu0 0.0
  %4792 = vmatpush1.msra.mxu0 0.0
  %4793 = vmatprep.subr.mxu0 0.0
  %4794 = vmatpush1.msra.mxu0 0.0
  %4795 = vmatprep.subr.mxu0 0.0
  %4796 = vmatpush1.msra.mxu0 0.0
  %4797 = vmatprep.subr.mxu0 0.0
  %4798 = vmatpush1.msra.mxu0 0.0
  %4799 = vmatprep.subr.mxu0 0.0
  %4800 = vmatpush1.msra.mxu0 0.0
  %4801 = vmatprep.subr.mxu0 0.0
  %4802 = vmatpush1.msra.mxu0 0.0
  %4803 = vmatprep.subr.mxu0 0.0
  %4804 = vmatpush1.msra.mxu0 0.0
  %4805 = vmatprep.subr.mxu0 0.0
  %4806 = vmatpush1.msra.mxu0 0.0
  %4807 = vmatprep.subr.mxu0 0.0
  %4808 = vmatpush1.msra.mxu0 0.0
  %4809 = vmatprep.subr.mxu0 0.0
  %4810 = vmatpush1.msra.mxu0 0.0
  %4811 = vmatprep.subr.mxu0 0.0
  %4812 = vmatpush1.msra.mxu0 0.0
  %4813 = vmatprep.subr.mxu0 0.0
  %4814 = vmatpush1.msra.mxu0 0.0
  %4815 = vmatprep.subr.mxu0 0.0
  %4816 = vmatpush1.msra.mxu0 0.0
  %4817 = vmatprep.subr.mxu0 0.0
  %4818 = vmatpush1.msra.mxu0 0.0
  %4819 = vmatprep.subr.mxu0 0.0
  %4820 = vmatpush1.msra.mxu0 0.0
  %4821 = vmatprep.subr.mxu0 0.0
  %4822 = vmatpush1.msra.mxu0 0.0
  %4823 = vmatprep.subr.mxu0 0.0
  %4824 = vmatpush1.msra.mxu0 0.0
  %4825 = vmatprep.subr.mxu0 0.0
  %4826 = vmatpush1.msra.mxu0 0.0
  %4827 = vmatprep.subr.mxu0 0.0
  %4828 = vmatpush1.msra.mxu0 0.0
  %4829 = vmatprep.subr.mxu0 0.0
  %4830 = vmatpush1.msra.mxu0 0.0
  %4831 = vmatprep.mubr.f32.mxu0 0.0
  %v4832 = vand.u32 %v4758, 4294901760
  %v4833 = vsub.f32 %v4758, %v4832
  %v4834 = vand.u32 %v4833, 4294901760
  %v4835 = vsub.f32 %v4833, %v4834
  %v4836 = vand.u32 %v4835, 4294901760
  %4837 = vmatmul.mubr.f32.gmra.mrb[0].mxu0 %v4836
  %v4838 = vpop.f32.mrb[0].mxu0
  %v4839 = vadd.f32 0.0, %v4838
  %v4840 = vpop.f32.mrb[0].mxu0
  %v4841 = vadd.f32 0.0, %v4840
  %4842 = vmatprep.mubr.f32.mxu0 0.0
  %v4843 = vand.u32 %v4761, 4294901760
  %v4844 = vsub.f32 %v4761, %v4843
  %v4845 = vand.u32 %v4844, 4294901760
  %v4846 = vsub.f32 %v4844, %v4845
  %v4847 = vand.u32 %v4846, 4294901760
  %4848 = vmatmul.mubr.f32.gmra.mrb[0].mxu0 %v4847
  %v4849 = vpop.f32.mrb[0].mxu0
  %v4850 = vadd.f32 0.0, %v4849
  %v4851 = vpop.f32.mrb[0].mxu0
  %v4852 = vadd.f32 0.0, %v4851
  %4853 = vdwg.mxu0
  %v4854 = vand.u32 %v4742, 4294901760
  %v4855 = vsub.f32 %v4742, %v4854
  %v4856 = vand.u32 %v4855, 4294901760
  %v4857 = vsub.f32 %v4855, %v4856
  %v4858 = vand.u32 %v4857, 4294901760
  %4859 = vmatprep.subr.mxu0 %v4858
  %v4860 = vand.u32 %v4741, 4294901760
  %v4861 = vsub.f32 %v4741, %v4860
  %v4862 = vand.u32 %v4861, 4294901760
  %v4863 = vsub.f32 %v4861, %v4862
  %v4864 = vand.u32 %v4863, 4294901760
  %4865 = vmatpush1.msra.mxu0 %v4864
  %v4866 = vand.u32 %v4746, 4294901760
  %v4867 = vsub.f32 %v4746, %v4866
  %v4868 = vand.u32 %v4867, 4294901760
  %v4869 = vsub.f32 %v4867, %v4868
  %v4870 = vand.u32 %v4869, 4294901760
  %4871 = vmatprep.subr.mxu0 %v4870
  %v4872 = vand.u32 %v4745, 4294901760
  %v4873 = vsub.f32 %v4745, %v4872
  %v4874 = vand.u32 %v4873, 4294901760
  %v4875 = vsub.f32 %v4873, %v4874
  %v4876 = vand.u32 %v4875, 4294901760
  %4877 = vmatpush1.msra.mxu0 %v4876
  %4878 = vmatprep.subr.mxu0 0.0
  %4879 = vmatpush1.msra.mxu0 0.0
  %4880 = vmatprep.subr.mxu0 0.0
  %4881 = vmatpush1.msra.mxu0 0.0
  %4882 = vmatprep.subr.mxu0 0.0
  %4883 = vmatpush1.msra.mxu0 0.0
  %4884 = vmatprep.subr.mxu0 0.0
  %4885 = vmatpush1.msra.mxu0 0.0
  %4886 = vmatprep.subr.mxu0 0.0
  %4887 = vmatpush1.msra.mxu0 0.0
  %4888 = vmatprep.subr.mxu0 0.0
  %4889 = vmatpush1.msra.mxu0 0.0
  %4890 = vmatprep.subr.mxu0 0.0
  %4891 = vmatpush1.msra.mxu0 0.0
  %4892 = vmatprep.subr.mxu0 0.0
  %4893 = vmatpush1.msra.mxu0 0.0
  %4894 = vmatprep.subr.mxu0 0.0
  %4895 = vmatpush1.msra.mxu0 0.0
  %4896 = vmatprep.subr.mxu0 0.0
  %4897 = vmatpush1.msra.mxu0 0.0
  %4898 = vmatprep.subr.mxu0 0.0
  %4899 = vmatpush1.msra.mxu0 0.0
  %4900 = vmatprep.subr.mxu0 0.0
  %4901 = vmatpush1.msra.mxu0 0.0
  %4902 = vmatprep.subr.mxu0 0.0
  %4903 = vmatpush1.msra.mxu0 0.0
  %4904 = vmatprep.subr.mxu0 0.0
  %4905 = vmatpush1.msra.mxu0 0.0
  %4906 = vmatprep.subr.mxu0 0.0
  %4907 = vmatpush1.msra.mxu0 0.0
  %4908 = vmatprep.subr.mxu0 0.0
  %4909 = vmatpush1.msra.mxu0 0.0
  %4910 = vmatprep.subr.mxu0 0.0
  %4911 = vmatpush1.msra.mxu0 0.0
  %4912 = vmatprep.subr.mxu0 0.0
  %4913 = vmatpush1.msra.mxu0 0.0
  %4914 = vmatprep.subr.mxu0 0.0
  %4915 = vmatpush1.msra.mxu0 0.0
  %4916 = vmatprep.subr.mxu0 0.0
  %4917 = vmatpush1.msra.mxu0 0.0
  %4918 = vmatprep.subr.mxu0 0.0
  %4919 = vmatpush1.msra.mxu0 0.0
  %4920 = vmatprep.subr.mxu0 0.0
  %4921 = vmatpush1.msra.mxu0 0.0
  %4922 = vmatprep.subr.mxu0 0.0
  %4923 = vmatpush1.msra.mxu0 0.0
  %4924 = vmatprep.subr.mxu0 0.0
  %4925 = vmatpush1.msra.mxu0 0.0
  %4926 = vmatprep.subr.mxu0 0.0
  %4927 = vmatpush1.msra.mxu0 0.0
  %4928 = vmatprep.subr.mxu0 0.0
  %4929 = vmatpush1.msra.mxu0 0.0
  %4930 = vmatprep.subr.mxu0 0.0
  %4931 = vmatpush1.msra.mxu0 0.0
  %4932 = vmatprep.subr.mxu0 0.0
  %4933 = vmatpush1.msra.mxu0 0.0
  %4934 = vmatprep.subr.mxu0 0.0
  %4935 = vmatpush1.msra.mxu0 0.0
  %4936 = vmatprep.subr.mxu0 0.0
  %4937 = vmatpush1.msra.mxu0 0.0
  %4938 = vmatprep.mubr.f32.mxu0 0.0
  %v4939 = vand.u32 %v4758, 4294901760
  %4940 = vmatmul.mubr.f32.gmra.mrb[0].mxu0 %v4939
  %v4941 = vpop.f32.mrb[0].mxu0
  %v4942 = vadd.f32 %v4839, %v4941
  %v4943 = vpop.f32.mrb[0].mxu0
  %v4944 = vadd.f32 %v4841, %v4943
  %4945 = vmatprep.mubr.f32.mxu0 0.0
  %v4946 = vand.u32 %v4761, 4294901760
  %4947 = vmatmul.mubr.f32.gmra.mrb[0].mxu0 %v4946
  %v4948 = vpop.f32.mrb[0].mxu0
  %v4949 = vadd.f32 %v4850, %v4948
  %v4950 = vpop.f32.mrb[0].mxu0
  %v4951 = vadd.f32 %v4852, %v4950
  %4952 = vdwg.mxu0
  %v4953 = vand.u32 %v4742, 4294901760
  %v4954 = vsub.f32 %v4742, %v4953
  %4955 = vmatprep.subr.mxu0 %v4954
  %v4956 = vand.u32 %v4741, 4294901760
  %v4957 = vsub.f32 %v4741, %v4956
  %4958 = vmatpush1.msra.mxu0 %v4957
  %v4959 = vand.u32 %v4746, 4294901760
  %v4960 = vsub.f32 %v4746, %v4959
  %4961 = vmatprep.subr.mxu0 %v4960
  %v4962 = vand.u32 %v4745, 4294901760
  %v4963 = vsub.f32 %v4745, %v4962
  %4964 = vmatpush1.msra.mxu0 %v4963
  %4965 = vmatprep.subr.mxu0 0.0
  %4966 = vmatpush1.msra.mxu0 0.0
  %4967 = vmatprep.subr.mxu0 0.0
  %4968 = vmatpush1.msra.mxu0 0.0
  %4969 = vmatprep.subr.mxu0 0.0
  %4970 = vmatpush1.msra.mxu0 0.0
  %4971 = vmatprep.subr.mxu0 0.0
  %4972 = vmatpush1.msra.mxu0 0.0
  %4973 = vmatprep.subr.mxu0 0.0
  %4974 = vmatpush1.msra.mxu0 0.0
  %4975 = vmatprep.subr.mxu0 0.0
  %4976 = vmatpush1.msra.mxu0 0.0
  %4977 = vmatprep.subr.mxu0 0.0
  %4978 = vmatpush1.msra.mxu0 0.0
  %4979 = vmatprep.subr.mxu0 0.0
  %4980 = vmatpush1.msra.mxu0 0.0
  %4981 = vmatprep.subr.mxu0 0.0
  %4982 = vmatpush1.msra.mxu0 0.0
  %4983 = vmatprep.subr.mxu0 0.0
  %4984 = vmatpush1.msra.mxu0 0.0
  %4985 = vmatprep.subr.mxu0 0.0
  %4986 = vmatpush1.msra.mxu0 0.0
  %4987 = vmatprep.subr.mxu0 0.0
  %4988 = vmatpush1.msra.mxu0 0.0
  %4989 = vmatprep.subr.mxu0 0.0
  %4990 = vmatpush1.msra.mxu0 0.0
  %4991 = vmatprep.subr.mxu0 0.0
  %4992 = vmatpush1.msra.mxu0 0.0
  %4993 = vmatprep.subr.mxu0 0.0
  %4994 = vmatpush1.msra.mxu0 0.0
  %4995 = vmatprep.subr.mxu0 0.0
  %4996 = vmatpush1.msra.mxu0 0.0
  %4997 = vmatprep.subr.mxu0 0.0
  %4998 = vmatpush1.msra.mxu0 0.0
  %4999 = vmatprep.subr.mxu0 0.0
  %5000 = vmatpush1.msra.mxu0 0.0
  %5001 = vmatprep.subr.mxu0 0.0
  %5002 = vmatpush1.msra.mxu0 0.0
  %5003 = vmatprep.subr.mxu0 0.0
  %5004 = vmatpush1.msra.mxu0 0.0
  %5005 = vmatprep.subr.mxu0 0.0
  %5006 = vmatpush1.msra.mxu0 0.0
  %5007 = vmatprep.subr.mxu0 0.0
  %5008 = vmatpush1.msra.mxu0 0.0
  %5009 = vmatprep.subr.mxu0 0.0
  %5010 = vmatpush1.msra.mxu0 0.0
  %5011 = vmatprep.subr.mxu0 0.0
  %5012 = vmatpush1.msra.mxu0 0.0
  %5013 = vmatprep.subr.mxu0 0.0
  %5014 = vmatpush1.msra.mxu0 0.0
  %5015 = vmatprep.subr.mxu0 0.0
  %5016 = vmatpush1.msra.mxu0 0.0
  %5017 = vmatprep.subr.mxu0 0.0
  %5018 = vmatpush1.msra.mxu0 0.0
  %5019 = vmatprep.subr.mxu0 0.0
  %5020 = vmatpush1.msra.mxu0 0.0
  %5021 = vmatprep.subr.mxu0 0.0
  %5022 = vmatpush1.msra.mxu0 0.0
  %5023 = vmatprep.subr.mxu0 0.0
  %5024 = vmatpush1.msra.mxu0 0.0
  %5025 = vmatprep.mubr.f32.mxu0 0.0
  %v5026 = vand.u32 %v4758, 4294901760
  %v5027 = vsub.f32 %v4758, %v5026
  %5028 = vmatmul.mubr.f32.gmra.mrb[0].mxu0 %v5027
  %v5029 = vpop.f32.mrb[0].mxu0
  %v5030 = vadd.f32 %v4942, %v5029
  %v5031 = vpop.f32.mrb[0].mxu0
  %v5032 = vadd.f32 %v4944, %v5031
  %5033 = vmatprep.mubr.f32.mxu0 0.0
  %v5034 = vand.u32 %v4761, 4294901760
  %v5035 = vsub.f32 %v4761, %v5034
  %5036 = vmatmul.mubr.f32.gmra.mrb[0].mxu0 %v5035
  %v5037 = vpop.f32.mrb[0].mxu0
  %v5038 = vadd.f32 %v4949, %v5037
  %v5039 = vpop.f32.mrb[0].mxu0
  %v5040 = vadd.f32 %v4951, %v5039
  %5041 = vdwg.mxu0
  %v5042 = vand.u32 %v4742, 4294901760
  %5043 = vmatprep.subr.mxu0 %v5042
  %v5044 = vand.u32 %v4741, 4294901760
  %5045 = vmatpush1.msra.mxu0 %v5044
  %v5046 = vand.u32 %v4746, 4294901760
  %5047 = vmatprep.subr.mxu0 %v5046
  %v5048 = vand.u32 %v4745, 4294901760
  %5049 = vmatpush1.msra.mxu0 %v5048
  %5050 = vmatprep.subr.mxu0 0.0
  %5051 = vmatpush1.msra.mxu0 0.0
  %5052 = vmatprep.subr.mxu0 0.0
  %5053 = vmatpush1.msra.mxu0 0.0
  %5054 = vmatprep.subr.mxu0 0.0
  %5055 = vmatpush1.msra.mxu0 0.0
  %5056 = vmatprep.subr.mxu0 0.0
  %5057 = vmatpush1.msra.mxu0 0.0
  %5058 = vmatprep.subr.mxu0 0.0
  %5059 = vmatpush1.msra.mxu0 0.0
  %5060 = vmatprep.subr.mxu0 0.0
  %5061 = vmatpush1.msra.mxu0 0.0
  %5062 = vmatprep.subr.mxu0 0.0
  %5063 = vmatpush1.msra.mxu0 0.0
  %5064 = vmatprep.subr.mxu0 0.0
  %5065 = vmatpush1.msra.mxu0 0.0
  %5066 = vmatprep.subr.mxu0 0.0
  %5067 = vmatpush1.msra.mxu0 0.0
  %5068 = vmatprep.subr.mxu0 0.0
  %5069 = vmatpush1.msra.mxu0 0.0
  %5070 = vmatprep.subr.mxu0 0.0
  %5071 = vmatpush1.msra.mxu0 0.0
  %5072 = vmatprep.subr.mxu0 0.0
  %5073 = vmatpush1.msra.mxu0 0.0
  %5074 = vmatprep.subr.mxu0 0.0
  %5075 = vmatpush1.msra.mxu0 0.0
  %5076 = vmatprep.subr.mxu0 0.0
  %5077 = vmatpush1.msra.mxu0 0.0
  %5078 = vmatprep.subr.mxu0 0.0
  %5079 = vmatpush1.msra.mxu0 0.0
  %5080 = vmatprep.subr.mxu0 0.0
  %5081 = vmatpush1.msra.mxu0 0.0
  %5082 = vmatprep.subr.mxu0 0.0
  %5083 = vmatpush1.msra.mxu0 0.0
  %5084 = vmatprep.subr.mxu0 0.0
  %5085 = vmatpush1.msra.mxu0 0.0
  %5086 = vmatprep.subr.mxu0 0.0
  %5087 = vmatpush1.msra.mxu0 0.0
  %5088 = vmatprep.subr.mxu0 0.0
  %5089 = vmatpush1.msra.mxu0 0.0
  %5090 = vmatprep.subr.mxu0 0.0
  %5091 = vmatpush1.msra.mxu0 0.0
  %5092 = vmatprep.subr.mxu0 0.0
  %5093 = vmatpush1.msra.mxu0 0.0
  %5094 = vmatprep.subr.mxu0 0.0
  %5095 = vmatpush1.msra.mxu0 0.0
  %5096 = vmatprep.subr.mxu0 0.0
  %5097 = vmatpush1.msra.mxu0 0.0
  %5098 = vmatprep.subr.mxu0 0.0
  %5099 = vmatpush1.msra.mxu0 0.0
  %5100 = vmatprep.subr.mxu0 0.0
  %5101 = vmatpush1.msra.mxu0 0.0
  %5102 = vmatprep.subr.mxu0 0.0
  %5103 = vmatpush1.msra.mxu0 0.0
  %5104 = vmatprep.subr.mxu0 0.0
  %5105 = vmatpush1.msra.mxu0 0.0
  %5106 = vmatprep.subr.mxu0 0.0
  %5107 = vmatpush1.msra.mxu0 0.0
  %5108 = vmatprep.subr.mxu0 0.0
  %5109 = vmatpush1.msra.mxu0 0.0
  %5110 = vmatprep.mubr.f32.mxu0 0.0
  %v5111 = vand.u32 %v4758, 4294901760
  %v5112 = vsub.f32 %v4758, %v5111
  %v5113 = vand.u32 %v5112, 4294901760
  %5114 = vmatmul.mubr.f32.gmra.mrb[0].mxu0 %v5113
  %v5115 = vpop.f32.mrb[0].mxu0
  %v5116 = vadd.f32 %v5030, %v5115
  %v5117 = vpop.f32.mrb[0].mxu0
  %v5118 = vadd.f32 %v5032, %v5117
  %5119 = vmatprep.mubr.f32.mxu0 0.0
  %v5120 = vand.u32 %v4761, 4294901760
  %v5121 = vsub.f32 %v4761, %v5120
  %v5122 = vand.u32 %v5121, 4294901760
  %5123 = vmatmul.mubr.f32.gmra.mrb[0].mxu0 %v5122
  %v5124 = vpop.f32.mrb[0].mxu0
  %v5125 = vadd.f32 %v5038, %v5124
  %v5126 = vpop.f32.mrb[0].mxu0
  %v5127 = vadd.f32 %v5040, %v5126
  %5128 = vdwg.mxu0
  %v5129 = vand.u32 %v4742, 4294901760
  %v5130 = vsub.f32 %v4742, %v5129
  %v5131 = vand.u32 %v5130, 4294901760
  %5132 = vmatprep.subr.mxu0 %v5131
  %v5133 = vand.u32 %v4741, 4294901760
  %v5134 = vsub.f32 %v4741, %v5133
  %v5135 = vand.u32 %v5134, 4294901760
  %5136 = vmatpush1.msra.mxu0 %v5135
  %v5137 = vand.u32 %v4746, 4294901760
  %v5138 = vsub.f32 %v4746, %v5137
  %v5139 = vand.u32 %v5138, 4294901760
  %5140 = vmatprep.subr.mxu0 %v5139
  %v5141 = vand.u32 %v4745, 4294901760
  %v5142 = vsub.f32 %v4745, %v5141
  %v5143 = vand.u32 %v5142, 4294901760
  %5144 = vmatpush1.msra.mxu0 %v5143
  %5145 = vmatprep.subr.mxu0 0.0
  %5146 = vmatpush1.msra.mxu0 0.0
  %5147 = vmatprep.subr.mxu0 0.0
  %5148 = vmatpush1.msra.mxu0 0.0
  %5149 = vmatprep.subr.mxu0 0.0
  %5150 = vmatpush1.msra.mxu0 0.0
  %5151 = vmatprep.subr.mxu0 0.0
  %5152 = vmatpush1.msra.mxu0 0.0
  %5153 = vmatprep.subr.mxu0 0.0
  %5154 = vmatpush1.msra.mxu0 0.0
  %5155 = vmatprep.subr.mxu0 0.0
  %5156 = vmatpush1.msra.mxu0 0.0
  %5157 = vmatprep.subr.mxu0 0.0
  %5158 = vmatpush1.msra.mxu0 0.0
  %5159 = vmatprep.subr.mxu0 0.0
  %5160 = vmatpush1.msra.mxu0 0.0
  %5161 = vmatprep.subr.mxu0 0.0
  %5162 = vmatpush1.msra.mxu0 0.0
  %5163 = vmatprep.subr.mxu0 0.0
  %5164 = vmatpush1.msra.mxu0 0.0
  %5165 = vmatprep.subr.mxu0 0.0
  %5166 = vmatpush1.msra.mxu0 0.0
  %5167 = vmatprep.subr.mxu0 0.0
  %5168 = vmatpush1.msra.mxu0 0.0
  %5169 = vmatprep.subr.mxu0 0.0
  %5170 = vmatpush1.msra.mxu0 0.0
  %5171 = vmatprep.subr.mxu0 0.0
  %5172 = vmatpush1.msra.mxu0 0.0
  %5173 = vmatprep.subr.mxu0 0.0
  %5174 = vmatpush1.msra.mxu0 0.0
  %5175 = vmatprep.subr.mxu0 0.0
  %5176 = vmatpush1.msra.mxu0 0.0
  %5177 = vmatprep.subr.mxu0 0.0
  %5178 = vmatpush1.msra.mxu0 0.0
  %5179 = vmatprep.subr.mxu0 0.0
  %5180 = vmatpush1.msra.mxu0 0.0
  %5181 = vmatprep.subr.mxu0 0.0
  %5182 = vmatpush1.msra.mxu0 0.0
  %5183 = vmatprep.subr.mxu0 0.0
  %5184 = vmatpush1.msra.mxu0 0.0
  %5185 = vmatprep.subr.mxu0 0.0
  %5186 = vmatpush1.msra.mxu0 0.0
  %5187 = vmatprep.subr.mxu0 0.0
  %5188 = vmatpush1.msra.mxu0 0.0
  %5189 = vmatprep.subr.mxu0 0.0
  %5190 = vmatpush1.msra.mxu0 0.0
  %5191 = vmatprep.subr.mxu0 0.0
  %5192 = vmatpush1.msra.mxu0 0.0
  %5193 = vmatprep.subr.mxu0 0.0
  %5194 = vmatpush1.msra.mxu0 0.0
  %5195 = vmatprep.subr.mxu0 0.0
  %5196 = vmatpush1.msra.mxu0 0.0
  %5197 = vmatprep.subr.mxu0 0.0
  %5198 = vmatpush1.msra.mxu0 0.0
  %5199 = vmatprep.subr.mxu0 0.0
  %5200 = vmatpush1.msra.mxu0 0.0
  %5201 = vmatprep.subr.mxu0 0.0
  %5202 = vmatpush1.msra.mxu0 0.0
  %5203 = vmatprep.subr.mxu0 0.0
  %5204 = vmatpush1.msra.mxu0 0.0
  %5205 = vmatprep.mubr.f32.mxu0 0.0
  %v5206 = vand.u32 %v4758, 4294901760
  %5207 = vmatmul.mubr.f32.gmra.mrb[0].mxu0 %v5206
  %v5208 = vpop.f32.mrb[0].mxu0
  %v5209 = vadd.f32 %v5116, %v5208
  %v5210 = vpop.f32.mrb[0].mxu0
  %v5211 = vadd.f32 %v5118, %v5210
  %5212 = vmatprep.mubr.f32.mxu0 0.0
  %v5213 = vand.u32 %v4761, 4294901760
  %5214 = vmatmul.mubr.f32.gmra.mrb[0].mxu0 %v5213
  %v5215 = vpop.f32.mrb[0].mxu0
  %v5216 = vadd.f32 %v5125, %v5215
  %v5217 = vpop.f32.mrb[0].mxu0
  %v5218 = vadd.f32 %v5127, %v5217
  %5219 = vdwg.mxu0
  %v5220 = vand.u32 %v4742, 4294901760
  %5221 = vmatprep.subr.mxu0 %v5220
  %v5222 = vand.u32 %v4741, 4294901760
  %5223 = vmatpush1.msra.mxu0 %v5222
  %v5224 = vand.u32 %v4746, 4294901760
  %5225 = vmatprep.subr.mxu0 %v5224
  %v5226 = vand.u32 %v4745, 4294901760
  %5227 = vmatpush1.msra.mxu0 %v5226
  %5228 = vmatprep.subr.mxu0 0.0
  %5229 = vmatpush1.msra.mxu0 0.0
  %5230 = vmatprep.subr.mxu0 0.0
  %5231 = vmatpush1.msra.mxu0 0.0
  %5232 = vmatprep.subr.mxu0 0.0
  %5233 = vmatpush1.msra.mxu0 0.0
  %5234 = vmatprep.subr.mxu0 0.0
  %5235 = vmatpush1.msra.mxu0 0.0
  %5236 = vmatprep.subr.mxu0 0.0
  %5237 = vmatpush1.msra.mxu0 0.0
  %5238 = vmatprep.subr.mxu0 0.0
  %5239 = vmatpush1.msra.mxu0 0.0
  %5240 = vmatprep.subr.mxu0 0.0
  %5241 = vmatpush1.msra.mxu0 0.0
  %5242 = vmatprep.subr.mxu0 0.0
  %5243 = vmatpush1.msra.mxu0 0.0
  %5244 = vmatprep.subr.mxu0 0.0
  %5245 = vmatpush1.msra.mxu0 0.0
  %5246 = vmatprep.subr.mxu0 0.0
  %5247 = vmatpush1.msra.mxu0 0.0
  %5248 = vmatprep.subr.mxu0 0.0
  %5249 = vmatpush1.msra.mxu0 0.0
  %5250 = vmatprep.subr.mxu0 0.0
  %5251 = vmatpush1.msra.mxu0 0.0
  %5252 = vmatprep.subr.mxu0 0.0
  %5253 = vmatpush1.msra.mxu0 0.0
  %5254 = vmatprep.subr.mxu0 0.0
  %5255 = vmatpush1.msra.mxu0 0.0
  %5256 = vmatprep.subr.mxu0 0.0
  %5257 = vmatpush1.msra.mxu0 0.0
  %5258 = vmatprep.subr.mxu0 0.0
  %5259 = vmatpush1.msra.mxu0 0.0
  %5260 = vmatprep.subr.mxu0 0.0
  %5261 = vmatpush1.msra.mxu0 0.0
  %5262 = vmatprep.subr.mxu0 0.0
  %5263 = vmatpush1.msra.mxu0 0.0
  %5264 = vmatprep.subr.mxu0 0.0
  %5265 = vmatpush1.msra.mxu0 0.0
  %5266 = vmatprep.subr.mxu0 0.0
  %5267 = vmatpush1.msra.mxu0 0.0
  %5268 = vmatprep.subr.mxu0 0.0
  %5269 = vmatpush1.msra.mxu0 0.0
  %5270 = vmatprep.subr.mxu0 0.0
  %5271 = vmatpush1.msra.mxu0 0.0
  %5272 = vmatprep.subr.mxu0 0.0
  %5273 = vmatpush1.msra.mxu0 0.0
  %5274 = vmatprep.subr.mxu0 0.0
  %5275 = vmatpush1.msra.mxu0 0.0
  %5276 = vmatprep.subr.mxu0 0.0
  %5277 = vmatpush1.msra.mxu0 0.0
  %5278 = vmatprep.subr.mxu0 0.0
  %5279 = vmatpush1.msra.mxu0 0.0
  %5280 = vmatprep.subr.mxu0 0.0
  %5281 = vmatpush1.msra.mxu0 0.0
  %5282 = vmatprep.subr.mxu0 0.0
  %5283 = vmatpush1.msra.mxu0 0.0
  %5284 = vmatprep.subr.mxu0 0.0
  %5285 = vmatpush1.msra.mxu0 0.0
  %5286 = vmatprep.subr.mxu0 0.0
  %5287 = vmatpush1.msra.mxu0 0.0
  %5288 = vmatprep.mubr.f32.mxu0 0.0
  %v5289 = vand.u32 %v4758, 4294901760
  %5290 = vmatmul.mubr.f32.gmra.mrb[0].mxu0 %v5289
  %v5291 = vpop.f32.mrb[0].mxu0
  %v5292 = vadd.f32 %v5209, %v5291
  %v5293 = vpop.f32.mrb[0].mxu0
  %v5294 = vadd.f32 %v5211, %v5293
  %5295 = vmatprep.mubr.f32.mxu0 0.0
  %v5296 = vand.u32 %v4761, 4294901760
  %5297 = vmatmul.mubr.f32.gmra.mrb[0].mxu0 %v5296
  %v5298 = vpop.f32.mrb[0].mxu0
  %v5299 = vadd.f32 %v5216, %v5298
  %v5300 = vpop.f32.mrb[0].mxu0
  %v5301 = vadd.f32 %v5218, %v5300
  %5302 = vdwg.mxu0
  %v5303 = vand.u32 %v4744, 4294901760
  %5304 = vmatprep.subr.mxu0 %v5303
  %v5305 = vand.u32 %v4743, 4294901760
  %5306 = vmatpush1.msra.mxu0 %v5305
  %v5307 = vand.u32 %v4748, 4294901760
  %5308 = vmatprep.subr.mxu0 %v5307
  %v5309 = vand.u32 %v4747, 4294901760
  %5310 = vmatpush1.msra.mxu0 %v5309
  %5311 = vmatprep.subr.mxu0 0.0
  %5312 = vmatpush1.msra.mxu0 0.0
  %5313 = vmatprep.subr.mxu0 0.0
  %5314 = vmatpush1.msra.mxu0 0.0
  %5315 = vmatprep.subr.mxu0 0.0
  %5316 = vmatpush1.msra.mxu0 0.0
  %5317 = vmatprep.subr.mxu0 0.0
  %5318 = vmatpush1.msra.mxu0 0.0
  %5319 = vmatprep.subr.mxu0 0.0
  %5320 = vmatpush1.msra.mxu0 0.0
  %5321 = vmatprep.subr.mxu0 0.0
  %5322 = vmatpush1.msra.mxu0 0.0
  %5323 = vmatprep.subr.mxu0 0.0
  %5324 = vmatpush1.msra.mxu0 0.0
  %5325 = vmatprep.subr.mxu0 0.0
  %5326 = vmatpush1.msra.mxu0 0.0
  %5327 = vmatprep.subr.mxu0 0.0
  %5328 = vmatpush1.msra.mxu0 0.0
  %5329 = vmatprep.subr.mxu0 0.0
  %5330 = vmatpush1.msra.mxu0 0.0
  %5331 = vmatprep.subr.mxu0 0.0
  %5332 = vmatpush1.msra.mxu0 0.0
  %5333 = vmatprep.subr.mxu0 0.0
  %5334 = vmatpush1.msra.mxu0 0.0
  %5335 = vmatprep.subr.mxu0 0.0
  %5336 = vmatpush1.msra.mxu0 0.0
  %5337 = vmatprep.subr.mxu0 0.0
  %5338 = vmatpush1.msra.mxu0 0.0
  %5339 = vmatprep.subr.mxu0 0.0
  %5340 = vmatpush1.msra.mxu0 0.0
  %5341 = vmatprep.subr.mxu0 0.0
  %5342 = vmatpush1.msra.mxu0 0.0
  %5343 = vmatprep.subr.mxu0 0.0
  %5344 = vmatpush1.msra.mxu0 0.0
  %5345 = vmatprep.subr.mxu0 0.0
  %5346 = vmatpush1.msra.mxu0 0.0
  %5347 = vmatprep.subr.mxu0 0.0
  %5348 = vmatpush1.msra.mxu0 0.0
  %5349 = vmatprep.subr.mxu0 0.0
  %5350 = vmatpush1.msra.mxu0 0.0
  %5351 = vmatprep.subr.mxu0 0.0
  %5352 = vmatpush1.msra.mxu0 0.0
  %5353 = vmatprep.subr.mxu0 0.0
  %5354 = vmatpush1.msra.mxu0 0.0
  %5355 = vmatprep.subr.mxu0 0.0
  %5356 = vmatpush1.msra.mxu0 0.0
  %5357 = vmatprep.subr.mxu0 0.0
  %5358 = vmatpush1.msra.mxu0 0.0
  %5359 = vmatprep.subr.mxu0 0.0
  %5360 = vmatpush1.msra.mxu0 0.0
  %5361 = vmatprep.subr.mxu0 0.0
  %5362 = vmatpush1.msra.mxu0 0.0
  %5363 = vmatprep.subr.mxu0 0.0
  %5364 = vmatpush1.msra.mxu0 0.0
  %5365 = vmatprep.subr.mxu0 0.0
  %5366 = vmatpush1.msra.mxu0 0.0
  %5367 = vmatprep.subr.mxu0 0.0
  %5368 = vmatpush1.msra.mxu0 0.0
  %5369 = vmatprep.subr.mxu0 0.0
  %5370 = vmatpush1.msra.mxu0 0.0
  %5371 = vmatprep.mubr.f32.mxu0 0.0
  %v5372 = vand.u32 %v4758, 4294901760
  %v5373 = vsub.f32 %v4758, %v5372
  %v5374 = vand.u32 %v5373, 4294901760
  %v5375 = vsub.f32 %v5373, %v5374
  %v5376 = vand.u32 %v5375, 4294901760
  %5377 = vmatmul.mubr.f32.gmra.mrb[0].mxu0 %v5376
  %v5378 = vpop.f32.mrb[0].mxu0
  %v5379 = vadd.f32 0.0, %v5378
  %v5380 = vpop.f32.mrb[0].mxu0
  %v5381 = vadd.f32 0.0, %v5380
  %5382 = vmatprep.mubr.f32.mxu0 0.0
  %v5383 = vand.u32 %v4761, 4294901760
  %v5384 = vsub.f32 %v4761, %v5383
  %v5385 = vand.u32 %v5384, 4294901760
  %v5386 = vsub.f32 %v5384, %v5385
  %v5387 = vand.u32 %v5386, 4294901760
  %5388 = vmatmul.mubr.f32.gmra.mrb[0].mxu0 %v5387
  %v5389 = vpop.f32.mrb[0].mxu0
  %v5390 = vadd.f32 0.0, %v5389
  %v5391 = vpop.f32.mrb[0].mxu0
  %v5392 = vadd.f32 0.0, %v5391
  %5393 = vdwg.mxu0
  %v5394 = vand.u32 %v4744, 4294901760
  %v5395 = vsub.f32 %v4744, %v5394
  %v5396 = vand.u32 %v5395, 4294901760
  %v5397 = vsub.f32 %v5395, %v5396
  %v5398 = vand.u32 %v5397, 4294901760
  %5399 = vmatprep.subr.mxu0 %v5398
  %v5400 = vand.u32 %v4743, 4294901760
  %v5401 = vsub.f32 %v4743, %v5400
  %v5402 = vand.u32 %v5401, 4294901760
  %v5403 = vsub.f32 %v5401, %v5402
  %v5404 = vand.u32 %v5403, 4294901760
  %5405 = vmatpush1.msra.mxu0 %v5404
  %v5406 = vand.u32 %v4748, 4294901760
  %v5407 = vsub.f32 %v4748, %v5406
  %v5408 = vand.u32 %v5407, 4294901760
  %v5409 = vsub.f32 %v5407, %v5408
  %v5410 = vand.u32 %v5409, 4294901760
  %5411 = vmatprep.subr.mxu0 %v5410
  %v5412 = vand.u32 %v4747, 4294901760
  %v5413 = vsub.f32 %v4747, %v5412
  %v5414 = vand.u32 %v5413, 4294901760
  %v5415 = vsub.f32 %v5413, %v5414
  %v5416 = vand.u32 %v5415, 4294901760
  %5417 = vmatpush1.msra.mxu0 %v5416
  %5418 = vmatprep.subr.mxu0 0.0
  %5419 = vmatpush1.msra.mxu0 0.0
  %5420 = vmatprep.subr.mxu0 0.0
  %5421 = vmatpush1.msra.mxu0 0.0
  %5422 = vmatprep.subr.mxu0 0.0
  %5423 = vmatpush1.msra.mxu0 0.0
  %5424 = vmatprep.subr.mxu0 0.0
  %5425 = vmatpush1.msra.mxu0 0.0
  %5426 = vmatprep.subr.mxu0 0.0
  %5427 = vmatpush1.msra.mxu0 0.0
  %5428 = vmatprep.subr.mxu0 0.0
  %5429 = vmatpush1.msra.mxu0 0.0
  %5430 = vmatprep.subr.mxu0 0.0
  %5431 = vmatpush1.msra.mxu0 0.0
  %5432 = vmatprep.subr.mxu0 0.0
  %5433 = vmatpush1.msra.mxu0 0.0
  %5434 = vmatprep.subr.mxu0 0.0
  %5435 = vmatpush1.msra.mxu0 0.0
  %5436 = vmatprep.subr.mxu0 0.0
  %5437 = vmatpush1.msra.mxu0 0.0
  %5438 = vmatprep.subr.mxu0 0.0
  %5439 = vmatpush1.msra.mxu0 0.0
  %5440 = vmatprep.subr.mxu0 0.0
  %5441 = vmatpush1.msra.mxu0 0.0
  %5442 = vmatprep.subr.mxu0 0.0
  %5443 = vmatpush1.msra.mxu0 0.0
  %5444 = vmatprep.subr.mxu0 0.0
  %5445 = vmatpush1.msra.mxu0 0.0
  %5446 = vmatprep.subr.mxu0 0.0
  %5447 = vmatpush1.msra.mxu0 0.0
  %5448 = vmatprep.subr.mxu0 0.0
  %5449 = vmatpush1.msra.mxu0 0.0
  %5450 = vmatprep.subr.mxu0 0.0
  %5451 = vmatpush1.msra.mxu0 0.0
  %5452 = vmatprep.subr.mxu0 0.0
  %5453 = vmatpush1.msra.mxu0 0.0
  %5454 = vmatprep.subr.mxu0 0.0
  %5455 = vmatpush1.msra.mxu0 0.0
  %5456 = vmatprep.subr.mxu0 0.0
  %5457 = vmatpush1.msra.mxu0 0.0
  %5458 = vmatprep.subr.mxu0 0.0
  %5459 = vmatpush1.msra.mxu0 0.0
  %5460 = vmatprep.subr.mxu0 0.0
  %5461 = vmatpush1.msra.mxu0 0.0
  %5462 = vmatprep.subr.mxu0 0.0
  %5463 = vmatpush1.msra.mxu0 0.0
  %5464 = vmatprep.subr.mxu0 0.0
  %5465 = vmatpush1.msra.mxu0 0.0
  %5466 = vmatprep.subr.mxu0 0.0
  %5467 = vmatpush1.msra.mxu0 0.0
  %5468 = vmatprep.subr.mxu0 0.0
  %5469 = vmatpush1.msra.mxu0 0.0
  %5470 = vmatprep.subr.mxu0 0.0
  %5471 = vmatpush1.msra.mxu0 0.0
  %5472 = vmatprep.subr.mxu0 0.0
  %5473 = vmatpush1.msra.mxu0 0.0
  %5474 = vmatprep.subr.mxu0 0.0
  %5475 = vmatpush1.msra.mxu0 0.0
  %5476 = vmatprep.subr.mxu0 0.0
  %5477 = vmatpush1.msra.mxu0 0.0
  %5478 = vmatprep.mubr.f32.mxu0 0.0
  %v5479 = vand.u32 %v4758, 4294901760
  %5480 = vmatmul.mubr.f32.gmra.mrb[0].mxu0 %v5479
  %v5481 = vpop.f32.mrb[0].mxu0
  %v5482 = vadd.f32 %v5379, %v5481
  %v5483 = vpop.f32.mrb[0].mxu0
  %v5484 = vadd.f32 %v5381, %v5483
  %5485 = vmatprep.mubr.f32.mxu0 0.0
  %v5486 = vand.u32 %v4761, 4294901760
  %5487 = vmatmul.mubr.f32.gmra.mrb[0].mxu0 %v5486
  %v5488 = vpop.f32.mrb[0].mxu0
  %v5489 = vadd.f32 %v5390, %v5488
  %v5490 = vpop.f32.mrb[0].mxu0
  %v5491 = vadd.f32 %v5392, %v5490
  %5492 = vdwg.mxu0
  %v5493 = vand.u32 %v4744, 4294901760
  %v5494 = vsub.f32 %v4744, %v5493
  %5495 = vmatprep.subr.mxu0 %v5494
  %v5496 = vand.u32 %v4743, 4294901760
  %v5497 = vsub.f32 %v4743, %v5496
  %5498 = vmatpush1.msra.mxu0 %v5497
  %v5499 = vand.u32 %v4748, 4294901760
  %v5500 = vsub.f32 %v4748, %v5499
  %5501 = vmatprep.subr.mxu0 %v5500
  %v5502 = vand.u32 %v4747, 4294901760
  %v5503 = vsub.f32 %v4747, %v5502
  %5504 = vmatpush1.msra.mxu0 %v5503
  %5505 = vmatprep.subr.mxu0 0.0
  %5506 = vmatpush1.msra.mxu0 0.0
  %5507 = vmatprep.subr.mxu0 0.0
  %5508 = vmatpush1.msra.mxu0 0.0
  %5509 = vmatprep.subr.mxu0 0.0
  %5510 = vmatpush1.msra.mxu0 0.0
  %5511 = vmatprep.subr.mxu0 0.0
  %5512 = vmatpush1.msra.mxu0 0.0
  %5513 = vmatprep.subr.mxu0 0.0
  %5514 = vmatpush1.msra.mxu0 0.0
  %5515 = vmatprep.subr.mxu0 0.0
  %5516 = vmatpush1.msra.mxu0 0.0
  %5517 = vmatprep.subr.mxu0 0.0
  %5518 = vmatpush1.msra.mxu0 0.0
  %5519 = vmatprep.subr.mxu0 0.0
  %5520 = vmatpush1.msra.mxu0 0.0
  %5521 = vmatprep.subr.mxu0 0.0
  %5522 = vmatpush1.msra.mxu0 0.0
  %5523 = vmatprep.subr.mxu0 0.0
  %5524 = vmatpush1.msra.mxu0 0.0
  %5525 = vmatprep.subr.mxu0 0.0
  %5526 = vmatpush1.msra.mxu0 0.0
  %5527 = vmatprep.subr.mxu0 0.0
  %5528 = vmatpush1.msra.mxu0 0.0
  %5529 = vmatprep.subr.mxu0 0.0
  %5530 = vmatpush1.msra.mxu0 0.0
  %5531 = vmatprep.subr.mxu0 0.0
  %5532 = vmatpush1.msra.mxu0 0.0
  %5533 = vmatprep.subr.mxu0 0.0
  %5534 = vmatpush1.msra.mxu0 0.0
  %5535 = vmatprep.subr.mxu0 0.0
  %5536 = vmatpush1.msra.mxu0 0.0
  %5537 = vmatprep.subr.mxu0 0.0
  %5538 = vmatpush1.msra.mxu0 0.0
  %5539 = vmatprep.subr.mxu0 0.0
  %5540 = vmatpush1.msra.mxu0 0.0
  %5541 = vmatprep.subr.mxu0 0.0
  %5542 = vmatpush1.msra.mxu0 0.0
  %5543 = vmatprep.subr.mxu0 0.0
  %5544 = vmatpush1.msra.mxu0 0.0
  %5545 = vmatprep.subr.mxu0 0.0
  %5546 = vmatpush1.msra.mxu0 0.0
  %5547 = vmatprep.subr.mxu0 0.0
  %5548 = vmatpush1.msra.mxu0 0.0
  %5549 = vmatprep.subr.mxu0 0.0
  %5550 = vmatpush1.msra.mxu0 0.0
  %5551 = vmatprep.subr.mxu0 0.0
  %5552 = vmatpush1.msra.mxu0 0.0
  %5553 = vmatprep.subr.mxu0 0.0
  %5554 = vmatpush1.msra.mxu0 0.0
  %5555 = vmatprep.subr.mxu0 0.0
  %5556 = vmatpush1.msra.mxu0 0.0
  %5557 = vmatprep.subr.mxu0 0.0
  %5558 = vmatpush1.msra.mxu0 0.0
  %5559 = vmatprep.subr.mxu0 0.0
  %5560 = vmatpush1.msra.mxu0 0.0
  %5561 = vmatprep.subr.mxu0 0.0
  %5562 = vmatpush1.msra.mxu0 0.0
  %5563 = vmatprep.subr.mxu0 0.0
  %5564 = vmatpush1.msra.mxu0 0.0
  %5565 = vmatprep.mubr.f32.mxu0 0.0
  %v5566 = vand.u32 %v4758, 4294901760
  %v5567 = vsub.f32 %v4758, %v5566
  %5568 = vmatmul.mubr.f32.gmra.mrb[0].mxu0 %v5567
  %v5569 = vpop.f32.mrb[0].mxu0
  %v5570 = vadd.f32 %v5482, %v5569
  %v5571 = vpop.f32.mrb[0].mxu0
  %v5572 = vadd.f32 %v5484, %v5571
  %5573 = vmatprep.mubr.f32.mxu0 0.0
  %v5574 = vand.u32 %v4761, 4294901760
  %v5575 = vsub.f32 %v4761, %v5574
  %5576 = vmatmul.mubr.f32.gmra.mrb[0].mxu0 %v5575
  %v5577 = vpop.f32.mrb[0].mxu0
  %v5578 = vadd.f32 %v5489, %v5577
  %v5579 = vpop.f32.mrb[0].mxu0
  %v5580 = vadd.f32 %v5491, %v5579
  %5581 = vdwg.mxu0
  %v5582 = vand.u32 %v4744, 4294901760
  %5583 = vmatprep.subr.mxu0 %v5582
  %v5584 = vand.u32 %v4743, 4294901760
  %5585 = vmatpush1.msra.mxu0 %v5584
  %v5586 = vand.u32 %v4748, 4294901760
  %5587 = vmatprep.subr.mxu0 %v5586
  %v5588 = vand.u32 %v4747, 4294901760
  %5589 = vmatpush1.msra.mxu0 %v5588
  %5590 = vmatprep.subr.mxu0 0.0
  %5591 = vmatpush1.msra.mxu0 0.0
  %5592 = vmatprep.subr.mxu0 0.0
  %5593 = vmatpush1.msra.mxu0 0.0
  %5594 = vmatprep.subr.mxu0 0.0
  %5595 = vmatpush1.msra.mxu0 0.0
  %5596 = vmatprep.subr.mxu0 0.0
  %5597 = vmatpush1.msra.mxu0 0.0
  %5598 = vmatprep.subr.mxu0 0.0
  %5599 = vmatpush1.msra.mxu0 0.0
  %5600 = vmatprep.subr.mxu0 0.0
  %5601 = vmatpush1.msra.mxu0 0.0
  %5602 = vmatprep.subr.mxu0 0.0
  %5603 = vmatpush1.msra.mxu0 0.0
  %5604 = vmatprep.subr.mxu0 0.0
  %5605 = vmatpush1.msra.mxu0 0.0
  %5606 = vmatprep.subr.mxu0 0.0
  %5607 = vmatpush1.msra.mxu0 0.0
  %5608 = vmatprep.subr.mxu0 0.0
  %5609 = vmatpush1.msra.mxu0 0.0
  %5610 = vmatprep.subr.mxu0 0.0
  %5611 = vmatpush1.msra.mxu0 0.0
  %5612 = vmatprep.subr.mxu0 0.0
  %5613 = vmatpush1.msra.mxu0 0.0
  %5614 = vmatprep.subr.mxu0 0.0
  %5615 = vmatpush1.msra.mxu0 0.0
  %5616 = vmatprep.subr.mxu0 0.0
  %5617 = vmatpush1.msra.mxu0 0.0
  %5618 = vmatprep.subr.mxu0 0.0
  %5619 = vmatpush1.msra.mxu0 0.0
  %5620 = vmatprep.subr.mxu0 0.0
  %5621 = vmatpush1.msra.mxu0 0.0
  %5622 = vmatprep.subr.mxu0 0.0
  %5623 = vmatpush1.msra.mxu0 0.0
  %5624 = vmatprep.subr.mxu0 0.0
  %5625 = vmatpush1.msra.mxu0 0.0
  %5626 = vmatprep.subr.mxu0 0.0
  %5627 = vmatpush1.msra.mxu0 0.0
  %5628 = vmatprep.subr.mxu0 0.0
  %5629 = vmatpush1.msra.mxu0 0.0
  %5630 = vmatprep.subr.mxu0 0.0
  %5631 = vmatpush1.msra.mxu0 0.0
  %5632 = vmatprep.subr.mxu0 0.0
  %5633 = vmatpush1.msra.mxu0 0.0
  %5634 = vmatprep.subr.mxu0 0.0
  %5635 = vmatpush1.msra.mxu0 0.0
  %5636 = vmatprep.subr.mxu0 0.0
  %5637 = vmatpush1.msra.mxu0 0.0
  %5638 = vmatprep.subr.mxu0 0.0
  %5639 = vmatpush1.msra.mxu0 0.0
  %5640 = vmatprep.subr.mxu0 0.0
  %5641 = vmatpush1.msra.mxu0 0.0
  %5642 = vmatprep.subr.mxu0 0.0
  %5643 = vmatpush1.msra.mxu0 0.0
  %5644 = vmatprep.subr.mxu0 0.0
  %5645 = vmatpush1.msra.mxu0 0.0
  %5646 = vmatprep.subr.mxu0 0.0
  %5647 = vmatpush1.msra.mxu0 0.0
  %5648 = vmatprep.subr.mxu0 0.0
  %5649 = vmatpush1.msra.mxu0 0.0
  %5650 = vmatprep.mubr.f32.mxu0 0.0
  %v5651 = vand.u32 %v4758, 4294901760
  %v5652 = vsub.f32 %v4758, %v5651
  %v5653 = vand.u32 %v5652, 4294901760
  %5654 = vmatmul.mubr.f32.gmra.mrb[0].mxu0 %v5653
  %v5655 = vpop.f32.mrb[0].mxu0
  %v5656 = vadd.f32 %v5570, %v5655
  %v5657 = vpop.f32.mrb[0].mxu0
  %v5658 = vadd.f32 %v5572, %v5657
  %5659 = vmatprep.mubr.f32.mxu0 0.0
  %v5660 = vand.u32 %v4761, 4294901760
  %v5661 = vsub.f32 %v4761, %v5660
  %v5662 = vand.u32 %v5661, 4294901760
  %5663 = vmatmul.mubr.f32.gmra.mrb[0].mxu0 %v5662
  %v5664 = vpop.f32.mrb[0].mxu0
  %v5665 = vadd.f32 %v5578, %v5664
  %v5666 = vpop.f32.mrb[0].mxu0
  %v5667 = vadd.f32 %v5580, %v5666
  %5668 = vdwg.mxu0
  %v5669 = vand.u32 %v4744, 4294901760
  %v5670 = vsub.f32 %v4744, %v5669
  %v5671 = vand.u32 %v5670, 4294901760
  %5672 = vmatprep.subr.mxu0 %v5671
  %v5673 = vand.u32 %v4743, 4294901760
  %v5674 = vsub.f32 %v4743, %v5673
  %v5675 = vand.u32 %v5674, 4294901760
  %5676 = vmatpush1.msra.mxu0 %v5675
  %v5677 = vand.u32 %v4748, 4294901760
  %v5678 = vsub.f32 %v4748, %v5677
  %v5679 = vand.u32 %v5678, 4294901760
  %5680 = vmatprep.subr.mxu0 %v5679
  %v5681 = vand.u32 %v4747, 4294901760
  %v5682 = vsub.f32 %v4747, %v5681
  %v5683 = vand.u32 %v5682, 4294901760
  %5684 = vmatpush1.msra.mxu0 %v5683
  %5685 = vmatprep.subr.mxu0 0.0
  %5686 = vmatpush1.msra.mxu0 0.0
  %5687 = vmatprep.subr.mxu0 0.0
  %5688 = vmatpush1.msra.mxu0 0.0
  %5689 = vmatprep.subr.mxu0 0.0
  %5690 = vmatpush1.msra.mxu0 0.0
  %5691 = vmatprep.subr.mxu0 0.0
  %5692 = vmatpush1.msra.mxu0 0.0
  %5693 = vmatprep.subr.mxu0 0.0
  %5694 = vmatpush1.msra.mxu0 0.0
  %5695 = vmatprep.subr.mxu0 0.0
  %5696 = vmatpush1.msra.mxu0 0.0
  %5697 = vmatprep.subr.mxu0 0.0
  %5698 = vmatpush1.msra.mxu0 0.0
  %5699 = vmatprep.subr.mxu0 0.0
  %5700 = vmatpush1.msra.mxu0 0.0
  %5701 = vmatprep.subr.mxu0 0.0
  %5702 = vmatpush1.msra.mxu0 0.0
  %5703 = vmatprep.subr.mxu0 0.0
  %5704 = vmatpush1.msra.mxu0 0.0
  %5705 = vmatprep.subr.mxu0 0.0
  %5706 = vmatpush1.msra.mxu0 0.0
  %5707 = vmatprep.subr.mxu0 0.0
  %5708 = vmatpush1.msra.mxu0 0.0
  %5709 = vmatprep.subr.mxu0 0.0
  %5710 = vmatpush1.msra.mxu0 0.0
  %5711 = vmatprep.subr.mxu0 0.0
  %5712 = vmatpush1.msra.mxu0 0.0
  %5713 = vmatprep.subr.mxu0 0.0
  %5714 = vmatpush1.msra.mxu0 0.0
  %5715 = vmatprep.subr.mxu0 0.0
  %5716 = vmatpush1.msra.mxu0 0.0
  %5717 = vmatprep.subr.mxu0 0.0
  %5718 = vmatpush1.msra.mxu0 0.0
  %5719 = vmatprep.subr.mxu0 0.0
  %5720 = vmatpush1.msra.mxu0 0.0
  %5721 = vmatprep.subr.mxu0 0.0
  %5722 = vmatpush1.msra.mxu0 0.0
  %5723 = vmatprep.subr.mxu0 0.0
  %5724 = vmatpush1.msra.mxu0 0.0
  %5725 = vmatprep.subr.mxu0 0.0
  %5726 = vmatpush1.msra.mxu0 0.0
  %5727 = vmatprep.subr.mxu0 0.0
  %5728 = vmatpush1.msra.mxu0 0.0
  %5729 = vmatprep.subr.mxu0 0.0
  %5730 = vmatpush1.msra.mxu0 0.0
  %5731 = vmatprep.subr.mxu0 0.0
  %5732 = vmatpush1.msra.mxu0 0.0
  %5733 = vmatprep.subr.mxu0 0.0
  %5734 = vmatpush1.msra.mxu0 0.0
  %5735 = vmatprep.subr.mxu0 0.0
  %5736 = vmatpush1.msra.mxu0 0.0
  %5737 = vmatprep.subr.mxu0 0.0
  %5738 = vmatpush1.msra.mxu0 0.0
  %5739 = vmatprep.subr.mxu0 0.0
  %5740 = vmatpush1.msra.mxu0 0.0
  %5741 = vmatprep.subr.mxu0 0.0
  %5742 = vmatpush1.msra.mxu0 0.0
  %5743 = vmatprep.subr.mxu0 0.0
  %5744 = vmatpush1.msra.mxu0 0.0
  %5745 = vmatprep.mubr.f32.mxu0 0.0
  %v5746 = vand.u32 %v4758, 4294901760
  %5747 = vmatmul.mubr.f32.gmra.mrb[0].mxu0 %v5746
  %v5748 = vpop.f32.mrb[0].mxu0
  %v5749 = vadd.f32 %v5656, %v5748
  %v5750 = vpop.f32.mrb[0].mxu0
  %v5751 = vadd.f32 %v5658, %v5750
  %5752 = vmatprep.mubr.f32.mxu0 0.0
  %v5753 = vand.u32 %v4761, 4294901760
  %5754 = vmatmul.mubr.f32.gmra.mrb[0].mxu0 %v5753
  %v5755 = vpop.f32.mrb[0].mxu0
  %v5756 = vadd.f32 %v5665, %v5755
  %v5757 = vpop.f32.mrb[0].mxu0
  %v5758 = vadd.f32 %v5667, %v5757
  %5759 = vdwg.mxu0
  %v5760 = vand.u32 %v4744, 4294901760
  %5761 = vmatprep.subr.mxu0 %v5760
  %v5762 = vand.u32 %v4743, 4294901760
  %5763 = vmatpush1.msra.mxu0 %v5762
  %v5764 = vand.u32 %v4748, 4294901760
  %5765 = vmatprep.subr.mxu0 %v5764
  %v5766 = vand.u32 %v4747, 4294901760
  %5767 = vmatpush1.msra.mxu0 %v5766
  %5768 = vmatprep.subr.mxu0 0.0
  %5769 = vmatpush1.msra.mxu0 0.0
  %5770 = vmatprep.subr.mxu0 0.0
  %5771 = vmatpush1.msra.mxu0 0.0
  %5772 = vmatprep.subr.mxu0 0.0
  %5773 = vmatpush1.msra.mxu0 0.0
  %5774 = vmatprep.subr.mxu0 0.0
  %5775 = vmatpush1.msra.mxu0 0.0
  %5776 = vmatprep.subr.mxu0 0.0
  %5777 = vmatpush1.msra.mxu0 0.0
  %5778 = vmatprep.subr.mxu0 0.0
  %5779 = vmatpush1.msra.mxu0 0.0
  %5780 = vmatprep.subr.mxu0 0.0
  %5781 = vmatpush1.msra.mxu0 0.0
  %5782 = vmatprep.subr.mxu0 0.0
  %5783 = vmatpush1.msra.mxu0 0.0
  %5784 = vmatprep.subr.mxu0 0.0
  %5785 = vmatpush1.msra.mxu0 0.0
  %5786 = vmatprep.subr.mxu0 0.0
  %5787 = vmatpush1.msra.mxu0 0.0
  %5788 = vmatprep.subr.mxu0 0.0
  %5789 = vmatpush1.msra.mxu0 0.0
  %5790 = vmatprep.subr.mxu0 0.0
  %5791 = vmatpush1.msra.mxu0 0.0
  %5792 = vmatprep.subr.mxu0 0.0
  %5793 = vmatpush1.msra.mxu0 0.0
  %5794 = vmatprep.subr.mxu0 0.0
  %5795 = vmatpush1.msra.mxu0 0.0
  %5796 = vmatprep.subr.mxu0 0.0
  %5797 = vmatpush1.msra.mxu0 0.0
  %5798 = vmatprep.subr.mxu0 0.0
  %5799 = vmatpush1.msra.mxu0 0.0
  %5800 = vmatprep.subr.mxu0 0.0
  %5801 = vmatpush1.msra.mxu0 0.0
  %5802 = vmatprep.subr.mxu0 0.0
  %5803 = vmatpush1.msra.mxu0 0.0
  %5804 = vmatprep.subr.mxu0 0.0
  %5805 = vmatpush1.msra.mxu0 0.0
  %5806 = vmatprep.subr.mxu0 0.0
  %5807 = vmatpush1.msra.mxu0 0.0
  %5808 = vmatprep.subr.mxu0 0.0
  %5809 = vmatpush1.msra.mxu0 0.0
  %5810 = vmatprep.subr.mxu0 0.0
  %5811 = vmatpush1.msra.mxu0 0.0
  %5812 = vmatprep.subr.mxu0 0.0
  %5813 = vmatpush1.msra.mxu0 0.0
  %5814 = vmatprep.subr.mxu0 0.0
  %5815 = vmatpush1.msra.mxu0 0.0
  %5816 = vmatprep.subr.mxu0 0.0
  %5817 = vmatpush1.msra.mxu0 0.0
  %5818 = vmatprep.subr.mxu0 0.0
  %5819 = vmatpush1.msra.mxu0 0.0
  %5820 = vmatprep.subr.mxu0 0.0
  %5821 = vmatpush1.msra.mxu0 0.0
  %5822 = vmatprep.subr.mxu0 0.0
  %5823 = vmatpush1.msra.mxu0 0.0
  %5824 = vmatprep.subr.mxu0 0.0
  %5825 = vmatpush1.msra.mxu0 0.0
  %5826 = vmatprep.subr.mxu0 0.0
  %5827 = vmatpush1.msra.mxu0 0.0
  %5828 = vmatprep.mubr.f32.mxu0 0.0
  %v5829 = vand.u32 %v4758, 4294901760
  %5830 = vmatmul.mubr.f32.gmra.mrb[0].mxu0 %v5829
  %v5831 = vpop.f32.mrb[0].mxu0
  %v5832 = vadd.f32 %v5749, %v5831
  %v5833 = vpop.f32.mrb[0].mxu0
  %v5834 = vadd.f32 %v5751, %v5833
  %5835 = vmatprep.mubr.f32.mxu0 0.0
  %v5836 = vand.u32 %v4761, 4294901760
  %5837 = vmatmul.mubr.f32.gmra.mrb[0].mxu0 %v5836
  %v5838 = vpop.f32.mrb[0].mxu0
  %v5839 = vadd.f32 %v5756, %v5838
  %v5840 = vpop.f32.mrb[0].mxu0
  %v5841 = vadd.f32 %v5758, %v5840
  %5842 = vdwg.mxu0
  %v5843 = vadd.f32 %v4699, %v5292
  %v5844 = vadd.f32 %v4700, %v5294
  %v5845 = vadd.f32 %v4701, %v5832
  %v5846 = vadd.f32 %v4702, %v5834
  %v5847 = vadd.f32 %v4703, %v5299
  %v5848 = vadd.f32 %v4704, %v5301
  %v5849 = vadd.f32 %v4705, %v5839
  %v5850 = vadd.f32 %v4706, %v5841
  %s5851 = scalar_lea.vmem %s3, 5
  %v5852 = vld [vmem:[%s5851] ss:$8 sm:$0xf]
  %v5854 = vlaneseq
  %v5855 = vshrl.u32 %v5854, 7
  %v5856 = vsub.s32 0, %v5855
  %v5857 = vrot.slane %v5852, %v5856
  %v5858 = vlaneseq
  %v5859 = vshrl.u32 %v5858, 7
  %v5860 = vsub.s32 1, %v5859
  %v5861 = vrot.slane %v5852, %v5860
  %v5862 = vlaneseq
  %v5863 = vshrl.u32 %v5862, 7
  %v5864 = vsub.s32 2, %v5863
  %v5865 = vrot.slane %v5852, %v5864
  %v5866 = vlaneseq
  %v5867 = vshrl.u32 %v5866, 7
  %v5868 = vsub.s32 3, %v5867
  %v5869 = vrot.slane %v5852, %v5868
  %5870 = vrot.lane.b32.xlu0 %v5857, 18
  %v5871 = vpop.permute.xlu0 %5870
  %5872 = vrot.lane.b32.xlu0 %v5861, 18
  %v5873 = vpop.permute.xlu0 %5872
  %5874 = vrot.lane.b32.xlu0 %v5865, 18
  %v5875 = vpop.permute.xlu0 %5874
  %5876 = vrot.lane.b32.xlu0 %v5869, 18
  %v5877 = vpop.permute.xlu0 %5876
  %vm5878 = vcmask 146432
  %v5879 = vsel %vm5878, %v5871, %v5873
  %v5880 = vsel %vm5878, %v5873, %v5875
  %v5881 = vsel %vm5878, %v5875, %v5877
  %v5887 = vmul.f32 %v17, %v5871
  %v5888 = vmul.f32 %v18, %v5879
  %v5889 = vmul.f32 %v19, %v5880
  %v5890 = vmul.f32 %v20, %v5881
  %v5891 = vmul.f32 %v57, %v5877
  %v5892 = vmul.f32 %v21, %v5871
  %v5893 = vmul.f32 %v22, %v5879
  %v5894 = vmul.f32 %v23, %v5880
  %v5895 = vmul.f32 %v24, %v5881
  %v5896 = vmul.f32 %v58, %v5877
  %s5897 = scalar_lea.vmem %s1, 80
  %v5898 = vld [vmem:[%s5897] sm:$0xff]
  %v5899 = vld [vmem:[%s5897 + $0x8] sm:$0xff]
  %5910 = vrot.lane.b32.xlu0 %v5887, 110
  %v5911 = vpop.permute.xlu0 %5910
  %5912 = vrot.lane.b32.xlu0 %v5888, 110
  %v5913 = vpop.permute.xlu0 %5912
  %5914 = vrot.lane.b32.xlu0 %v5889, 110
  %v5915 = vpop.permute.xlu0 %5914
  %5916 = vrot.lane.b32.xlu0 %v5890, 110
  %v5917 = vpop.permute.xlu0 %5916
  %5918 = vrot.lane.b32.xlu0 %v5891, 110
  %v5919 = vpop.permute.xlu0 %5918
  %5920 = vrot.lane.b32.xlu0 %v5892, 110
  %v5921 = vpop.permute.xlu0 %5920
  %5922 = vrot.lane.b32.xlu0 %v5893, 110
  %v5923 = vpop.permute.xlu0 %5922
  %5924 = vrot.lane.b32.xlu0 %v5894, 110
  %v5925 = vpop.permute.xlu0 %5924
  %5926 = vrot.lane.b32.xlu0 %v5895, 110
  %v5927 = vpop.permute.xlu0 %5926
  %5928 = vrot.lane.b32.xlu0 %v5896, 110
  %v5929 = vpop.permute.xlu0 %5928
  %vm5930 = vcmask 900096
  %v5931 = vsel %vm5930, %v5911, %v5913
  %v5932 = vsel %vm5930, %v5913, %v5915
  %v5933 = vsel %vm5930, %v5915, %v5917
  %v5934 = vsel %vm5930, %v5917, %v5919
  %v5935 = vsel %vm5930, %v5921, %v5923
  %v5936 = vsel %vm5930, %v5923, %v5925
  %v5937 = vsel %vm5930, %v5925, %v5927
  %v5938 = vsel %vm5930, %v5927, %v5929
  %v5948 = vsel %vm155, %v5898, 0
  %v5951 = vsel %vm155, %v5899, 0
  %v5953 = vand.u32 %v5932, 4294901760
  %5954 = vmatprep.subr.mxu0 %v5953
  %v5955 = vand.u32 %v5931, 4294901760
  %5956 = vmatpush1.msra.mxu0 %v5955
  %v5957 = vand.u32 %v5936, 4294901760
  %5958 = vmatprep.subr.mxu0 %v5957
  %v5959 = vand.u32 %v5935, 4294901760
  %5960 = vmatpush1.msra.mxu0 %v5959
  %5961 = vmatprep.subr.mxu0 0.0
  %5962 = vmatpush1.msra.mxu0 0.0
  %5963 = vmatprep.subr.mxu0 0.0
  %5964 = vmatpush1.msra.mxu0 0.0
  %5965 = vmatprep.subr.mxu0 0.0
  %5966 = vmatpush1.msra.mxu0 0.0
  %5967 = vmatprep.subr.mxu0 0.0
  %5968 = vmatpush1.msra.mxu0 0.0
  %5969 = vmatprep.subr.mxu0 0.0
  %5970 = vmatpush1.msra.mxu0 0.0
  %5971 = vmatprep.subr.mxu0 0.0
  %5972 = vmatpush1.msra.mxu0 0.0
  %5973 = vmatprep.subr.mxu0 0.0
  %5974 = vmatpush1.msra.mxu0 0.0
  %5975 = vmatprep.subr.mxu0 0.0
  %5976 = vmatpush1.msra.mxu0 0.0
  %5977 = vmatprep.subr.mxu0 0.0
  %5978 = vmatpush1.msra.mxu0 0.0
  %5979 = vmatprep.subr.mxu0 0.0
  %5980 = vmatpush1.msra.mxu0 0.0
  %5981 = vmatprep.subr.mxu0 0.0
  %5982 = vmatpush1.msra.mxu0 0.0
  %5983 = vmatprep.subr.mxu0 0.0
  %5984 = vmatpush1.msra.mxu0 0.0
  %5985 = vmatprep.subr.mxu0 0.0
  %5986 = vmatpush1.msra.mxu0 0.0
  %5987 = vmatprep.subr.mxu0 0.0
  %5988 = vmatpush1.msra.mxu0 0.0
  %5989 = vmatprep.subr.mxu0 0.0
  %5990 = vmatpush1.msra.mxu0 0.0
  %5991 = vmatprep.subr.mxu0 0.0
  %5992 = vmatpush1.msra.mxu0 0.0
  %5993 = vmatprep.subr.mxu0 0.0
  %5994 = vmatpush1.msra.mxu0 0.0
  %5995 = vmatprep.subr.mxu0 0.0
  %5996 = vmatpush1.msra.mxu0 0.0
  %5997 = vmatprep.subr.mxu0 0.0
  %5998 = vmatpush1.msra.mxu0 0.0
  %5999 = vmatprep.subr.mxu0 0.0
  %6000 = vmatpush1.msra.mxu0 0.0
  %6001 = vmatprep.subr.mxu0 0.0
  %6002 = vmatpush1.msra.mxu0 0.0
  %6003 = vmatprep.subr.mxu0 0.0
  %6004 = vmatpush1.msra.mxu0 0.0
  %6005 = vmatprep.subr.mxu0 0.0
  %6006 = vmatpush1.msra.mxu0 0.0
  %6007 = vmatprep.subr.mxu0 0.0
  %6008 = vmatpush1.msra.mxu0 0.0
  %6009 = vmatprep.subr.mxu0 0.0
  %6010 = vmatpush1.msra.mxu0 0.0
  %6011 = vmatprep.subr.mxu0 0.0
  %6012 = vmatpush1.msra.mxu0 0.0
  %6013 = vmatprep.subr.mxu0 0.0
  %6014 = vmatpush1.msra.mxu0 0.0
  %6015 = vmatprep.subr.mxu0 0.0
  %6016 = vmatpush1.msra.mxu0 0.0
  %6017 = vmatprep.subr.mxu0 0.0
  %6018 = vmatpush1.msra.mxu0 0.0
  %6019 = vmatprep.subr.mxu0 0.0
  %6020 = vmatpush1.msra.mxu0 0.0
  %6021 = vmatprep.mubr.f32.mxu0 0.0
  %v6022 = vand.u32 %v5948, 4294901760
  %v6023 = vsub.f32 %v5948, %v6022
  %v6024 = vand.u32 %v6023, 4294901760
  %v6025 = vsub.f32 %v6023, %v6024
  %v6026 = vand.u32 %v6025, 4294901760
  %6027 = vmatmul.mubr.f32.gmra.mrb[0].mxu0 %v6026
  %v6028 = vpop.f32.mrb[0].mxu0
  %v6029 = vadd.f32 0.0, %v6028
  %v6030 = vpop.f32.mrb[0].mxu0
  %v6031 = vadd.f32 0.0, %v6030
  %6032 = vmatprep.mubr.f32.mxu0 0.0
  %v6033 = vand.u32 %v5951, 4294901760
  %v6034 = vsub.f32 %v5951, %v6033
  %v6035 = vand.u32 %v6034, 4294901760
  %v6036 = vsub.f32 %v6034, %v6035
  %v6037 = vand.u32 %v6036, 4294901760
  %6038 = vmatmul.mubr.f32.gmra.mrb[0].mxu0 %v6037
  %v6039 = vpop.f32.mrb[0].mxu0
  %v6040 = vadd.f32 0.0, %v6039
  %v6041 = vpop.f32.mrb[0].mxu0
  %v6042 = vadd.f32 0.0, %v6041
  %6043 = vdwg.mxu0
  %v6044 = vand.u32 %v5932, 4294901760
  %v6045 = vsub.f32 %v5932, %v6044
  %v6046 = vand.u32 %v6045, 4294901760
  %v6047 = vsub.f32 %v6045, %v6046
  %v6048 = vand.u32 %v6047, 4294901760
  %6049 = vmatprep.subr.mxu0 %v6048
  %v6050 = vand.u32 %v5931, 4294901760
  %v6051 = vsub.f32 %v5931, %v6050
  %v6052 = vand.u32 %v6051, 4294901760
  %v6053 = vsub.f32 %v6051, %v6052
  %v6054 = vand.u32 %v6053, 4294901760
  %6055 = vmatpush1.msra.mxu0 %v6054
  %v6056 = vand.u32 %v5936, 4294901760
  %v6057 = vsub.f32 %v5936, %v6056
  %v6058 = vand.u32 %v6057, 4294901760
  %v6059 = vsub.f32 %v6057, %v6058
  %v6060 = vand.u32 %v6059, 4294901760
  %6061 = vmatprep.subr.mxu0 %v6060
  %v6062 = vand.u32 %v5935, 4294901760
  %v6063 = vsub.f32 %v5935, %v6062
  %v6064 = vand.u32 %v6063, 4294901760
  %v6065 = vsub.f32 %v6063, %v6064
  %v6066 = vand.u32 %v6065, 4294901760
  %6067 = vmatpush1.msra.mxu0 %v6066
  %6068 = vmatprep.subr.mxu0 0.0
  %6069 = vmatpush1.msra.mxu0 0.0
  %6070 = vmatprep.subr.mxu0 0.0
  %6071 = vmatpush1.msra.mxu0 0.0
  %6072 = vmatprep.subr.mxu0 0.0
  %6073 = vmatpush1.msra.mxu0 0.0
  %6074 = vmatprep.subr.mxu0 0.0
  %6075 = vmatpush1.msra.mxu0 0.0
  %6076 = vmatprep.subr.mxu0 0.0
  %6077 = vmatpush1.msra.mxu0 0.0
  %6078 = vmatprep.subr.mxu0 0.0
  %6079 = vmatpush1.msra.mxu0 0.0
  %6080 = vmatprep.subr.mxu0 0.0
  %6081 = vmatpush1.msra.mxu0 0.0
  %6082 = vmatprep.subr.mxu0 0.0
  %6083 = vmatpush1.msra.mxu0 0.0
  %6084 = vmatprep.subr.mxu0 0.0
  %6085 = vmatpush1.msra.mxu0 0.0
  %6086 = vmatprep.subr.mxu0 0.0
  %6087 = vmatpush1.msra.mxu0 0.0
  %6088 = vmatprep.subr.mxu0 0.0
  %6089 = vmatpush1.msra.mxu0 0.0
  %6090 = vmatprep.subr.mxu0 0.0
  %6091 = vmatpush1.msra.mxu0 0.0
  %6092 = vmatprep.subr.mxu0 0.0
  %6093 = vmatpush1.msra.mxu0 0.0
  %6094 = vmatprep.subr.mxu0 0.0
  %6095 = vmatpush1.msra.mxu0 0.0
  %6096 = vmatprep.subr.mxu0 0.0
  %6097 = vmatpush1.msra.mxu0 0.0
  %6098 = vmatprep.subr.mxu0 0.0
  %6099 = vmatpush1.msra.mxu0 0.0
  %6100 = vmatprep.subr.mxu0 0.0
  %6101 = vmatpush1.msra.mxu0 0.0
  %6102 = vmatprep.subr.mxu0 0.0
  %6103 = vmatpush1.msra.mxu0 0.0
  %6104 = vmatprep.subr.mxu0 0.0
  %6105 = vmatpush1.msra.mxu0 0.0
  %6106 = vmatprep.subr.mxu0 0.0
  %6107 = vmatpush1.msra.mxu0 0.0
  %6108 = vmatprep.subr.mxu0 0.0
  %6109 = vmatpush1.msra.mxu0 0.0
  %6110 = vmatprep.subr.mxu0 0.0
  %6111 = vmatpush1.msra.mxu0 0.0
  %6112 = vmatprep.subr.mxu0 0.0
  %6113 = vmatpush1.msra.mxu0 0.0
  %6114 = vmatprep.subr.mxu0 0.0
  %6115 = vmatpush1.msra.mxu0 0.0
  %6116 = vmatprep.subr.mxu0 0.0
  %6117 = vmatpush1.msra.mxu0 0.0
  %6118 = vmatprep.subr.mxu0 0.0
  %6119 = vmatpush1.msra.mxu0 0.0
  %6120 = vmatprep.subr.mxu0 0.0
  %6121 = vmatpush1.msra.mxu0 0.0
  %6122 = vmatprep.subr.mxu0 0.0
  %6123 = vmatpush1.msra.mxu0 0.0
  %6124 = vmatprep.subr.mxu0 0.0
  %6125 = vmatpush1.msra.mxu0 0.0
  %6126 = vmatprep.subr.mxu0 0.0
  %6127 = vmatpush1.msra.mxu0 0.0
  %6128 = vmatprep.mubr.f32.mxu0 0.0
  %v6129 = vand.u32 %v5948, 4294901760
  %6130 = vmatmul.mubr.f32.gmra.mrb[0].mxu0 %v6129
  %v6131 = vpop.f32.mrb[0].mxu0
  %v6132 = vadd.f32 %v6029, %v6131
  %v6133 = vpop.f32.mrb[0].mxu0
  %v6134 = vadd.f32 %v6031, %v6133
  %6135 = vmatprep.mubr.f32.mxu0 0.0
  %v6136 = vand.u32 %v5951, 4294901760
  %6137 = vmatmul.mubr.f32.gmra.mrb[0].mxu0 %v6136
  %v6138 = vpop.f32.mrb[0].mxu0
  %v6139 = vadd.f32 %v6040, %v6138
  %v6140 = vpop.f32.mrb[0].mxu0
  %v6141 = vadd.f32 %v6042, %v6140
  %6142 = vdwg.mxu0
  %v6143 = vand.u32 %v5932, 4294901760
  %v6144 = vsub.f32 %v5932, %v6143
  %6145 = vmatprep.subr.mxu0 %v6144
  %v6146 = vand.u32 %v5931, 4294901760
  %v6147 = vsub.f32 %v5931, %v6146
  %6148 = vmatpush1.msra.mxu0 %v6147
  %v6149 = vand.u32 %v5936, 4294901760
  %v6150 = vsub.f32 %v5936, %v6149
  %6151 = vmatprep.subr.mxu0 %v6150
  %v6152 = vand.u32 %v5935, 4294901760
  %v6153 = vsub.f32 %v5935, %v6152
  %6154 = vmatpush1.msra.mxu0 %v6153
  %6155 = vmatprep.subr.mxu0 0.0
  %6156 = vmatpush1.msra.mxu0 0.0
  %6157 = vmatprep.subr.mxu0 0.0
  %6158 = vmatpush1.msra.mxu0 0.0
  %6159 = vmatprep.subr.mxu0 0.0
  %6160 = vmatpush1.msra.mxu0 0.0
  %6161 = vmatprep.subr.mxu0 0.0
  %6162 = vmatpush1.msra.mxu0 0.0
  %6163 = vmatprep.subr.mxu0 0.0
  %6164 = vmatpush1.msra.mxu0 0.0
  %6165 = vmatprep.subr.mxu0 0.0
  %6166 = vmatpush1.msra.mxu0 0.0
  %6167 = vmatprep.subr.mxu0 0.0
  %6168 = vmatpush1.msra.mxu0 0.0
  %6169 = vmatprep.subr.mxu0 0.0
  %6170 = vmatpush1.msra.mxu0 0.0
  %6171 = vmatprep.subr.mxu0 0.0
  %6172 = vmatpush1.msra.mxu0 0.0
  %6173 = vmatprep.subr.mxu0 0.0
  %6174 = vmatpush1.msra.mxu0 0.0
  %6175 = vmatprep.subr.mxu0 0.0
  %6176 = vmatpush1.msra.mxu0 0.0
  %6177 = vmatprep.subr.mxu0 0.0
  %6178 = vmatpush1.msra.mxu0 0.0
  %6179 = vmatprep.subr.mxu0 0.0
  %6180 = vmatpush1.msra.mxu0 0.0
  %6181 = vmatprep.subr.mxu0 0.0
  %6182 = vmatpush1.msra.mxu0 0.0
  %6183 = vmatprep.subr.mxu0 0.0
  %6184 = vmatpush1.msra.mxu0 0.0
  %6185 = vmatprep.subr.mxu0 0.0
  %6186 = vmatpush1.msra.mxu0 0.0
  %6187 = vmatprep.subr.mxu0 0.0
  %6188 = vmatpush1.msra.mxu0 0.0
  %6189 = vmatprep.subr.mxu0 0.0
  %6190 = vmatpush1.msra.mxu0 0.0
  %6191 = vmatprep.subr.mxu0 0.0
  %6192 = vmatpush1.msra.mxu0 0.0
  %6193 = vmatprep.subr.mxu0 0.0
  %6194 = vmatpush1.msra.mxu0 0.0
  %6195 = vmatprep.subr.mxu0 0.0
  %6196 = vmatpush1.msra.mxu0 0.0
  %6197 = vmatprep.subr.mxu0 0.0
  %6198 = vmatpush1.msra.mxu0 0.0
  %6199 = vmatprep.subr.mxu0 0.0
  %6200 = vmatpush1.msra.mxu0 0.0
  %6201 = vmatprep.subr.mxu0 0.0
  %6202 = vmatpush1.msra.mxu0 0.0
  %6203 = vmatprep.subr.mxu0 0.0
  %6204 = vmatpush1.msra.mxu0 0.0
  %6205 = vmatprep.subr.mxu0 0.0
  %6206 = vmatpush1.msra.mxu0 0.0
  %6207 = vmatprep.subr.mxu0 0.0
  %6208 = vmatpush1.msra.mxu0 0.0
  %6209 = vmatprep.subr.mxu0 0.0
  %6210 = vmatpush1.msra.mxu0 0.0
  %6211 = vmatprep.subr.mxu0 0.0
  %6212 = vmatpush1.msra.mxu0 0.0
  %6213 = vmatprep.subr.mxu0 0.0
  %6214 = vmatpush1.msra.mxu0 0.0
  %6215 = vmatprep.mubr.f32.mxu0 0.0
  %v6216 = vand.u32 %v5948, 4294901760
  %v6217 = vsub.f32 %v5948, %v6216
  %6218 = vmatmul.mubr.f32.gmra.mrb[0].mxu0 %v6217
  %v6219 = vpop.f32.mrb[0].mxu0
  %v6220 = vadd.f32 %v6132, %v6219
  %v6221 = vpop.f32.mrb[0].mxu0
  %v6222 = vadd.f32 %v6134, %v6221
  %6223 = vmatprep.mubr.f32.mxu0 0.0
  %v6224 = vand.u32 %v5951, 4294901760
  %v6225 = vsub.f32 %v5951, %v6224
  %6226 = vmatmul.mubr.f32.gmra.mrb[0].mxu0 %v6225
  %v6227 = vpop.f32.mrb[0].mxu0
  %v6228 = vadd.f32 %v6139, %v6227
  %v6229 = vpop.f32.mrb[0].mxu0
  %v6230 = vadd.f32 %v6141, %v6229
  %6231 = vdwg.mxu0
  %v6232 = vand.u32 %v5932, 4294901760
  %6233 = vmatprep.subr.mxu0 %v6232
  %v6234 = vand.u32 %v5931, 4294901760
  %6235 = vmatpush1.msra.mxu0 %v6234
  %v6236 = vand.u32 %v5936, 4294901760
  %6237 = vmatprep.subr.mxu0 %v6236
  %v6238 = vand.u32 %v5935, 4294901760
  %6239 = vmatpush1.msra.mxu0 %v6238
  %6240 = vmatprep.subr.mxu0 0.0
  %6241 = vmatpush1.msra.mxu0 0.0
  %6242 = vmatprep.subr.mxu0 0.0
  %6243 = vmatpush1.msra.mxu0 0.0
  %6244 = vmatprep.subr.mxu0 0.0
  %6245 = vmatpush1.msra.mxu0 0.0
  %6246 = vmatprep.subr.mxu0 0.0
  %6247 = vmatpush1.msra.mxu0 0.0
  %6248 = vmatprep.subr.mxu0 0.0
  %6249 = vmatpush1.msra.mxu0 0.0
  %6250 = vmatprep.subr.mxu0 0.0
  %6251 = vmatpush1.msra.mxu0 0.0
  %6252 = vmatprep.subr.mxu0 0.0
  %6253 = vmatpush1.msra.mxu0 0.0
  %6254 = vmatprep.subr.mxu0 0.0
  %6255 = vmatpush1.msra.mxu0 0.0
  %6256 = vmatprep.subr.mxu0 0.0
  %6257 = vmatpush1.msra.mxu0 0.0
  %6258 = vmatprep.subr.mxu0 0.0
  %6259 = vmatpush1.msra.mxu0 0.0
  %6260 = vmatprep.subr.mxu0 0.0
  %6261 = vmatpush1.msra.mxu0 0.0
  %6262 = vmatprep.subr.mxu0 0.0
  %6263 = vmatpush1.msra.mxu0 0.0
  %6264 = vmatprep.subr.mxu0 0.0
  %6265 = vmatpush1.msra.mxu0 0.0
  %6266 = vmatprep.subr.mxu0 0.0
  %6267 = vmatpush1.msra.mxu0 0.0
  %6268 = vmatprep.subr.mxu0 0.0
  %6269 = vmatpush1.msra.mxu0 0.0
  %6270 = vmatprep.subr.mxu0 0.0
  %6271 = vmatpush1.msra.mxu0 0.0
  %6272 = vmatprep.subr.mxu0 0.0
  %6273 = vmatpush1.msra.mxu0 0.0
  %6274 = vmatprep.subr.mxu0 0.0
  %6275 = vmatpush1.msra.mxu0 0.0
  %6276 = vmatprep.subr.mxu0 0.0
  %6277 = vmatpush1.msra.mxu0 0.0
  %6278 = vmatprep.subr.mxu0 0.0
  %6279 = vmatpush1.msra.mxu0 0.0
  %6280 = vmatprep.subr.mxu0 0.0
  %6281 = vmatpush1.msra.mxu0 0.0
  %6282 = vmatprep.subr.mxu0 0.0
  %6283 = vmatpush1.msra.mxu0 0.0
  %6284 = vmatprep.subr.mxu0 0.0
  %6285 = vmatpush1.msra.mxu0 0.0
  %6286 = vmatprep.subr.mxu0 0.0
  %6287 = vmatpush1.msra.mxu0 0.0
  %6288 = vmatprep.subr.mxu0 0.0
  %6289 = vmatpush1.msra.mxu0 0.0
  %6290 = vmatprep.subr.mxu0 0.0
  %6291 = vmatpush1.msra.mxu0 0.0
  %6292 = vmatprep.subr.mxu0 0.0
  %6293 = vmatpush1.msra.mxu0 0.0
  %6294 = vmatprep.subr.mxu0 0.0
  %6295 = vmatpush1.msra.mxu0 0.0
  %6296 = vmatprep.subr.mxu0 0.0
  %6297 = vmatpush1.msra.mxu0 0.0
  %6298 = vmatprep.subr.mxu0 0.0
  %6299 = vmatpush1.msra.mxu0 0.0
  %6300 = vmatprep.mubr.f32.mxu0 0.0
  %v6301 = vand.u32 %v5948, 4294901760
  %v6302 = vsub.f32 %v5948, %v6301
  %v6303 = vand.u32 %v6302, 4294901760
  %6304 = vmatmul.mubr.f32.gmra.mrb[0].mxu0 %v6303
  %v6305 = vpop.f32.mrb[0].mxu0
  %v6306 = vadd.f32 %v6220, %v6305
  %v6307 = vpop.f32.mrb[0].mxu0
  %v6308 = vadd.f32 %v6222, %v6307
  %6309 = vmatprep.mubr.f32.mxu0 0.0
  %v6310 = vand.u32 %v5951, 4294901760
  %v6311 = vsub.f32 %v5951, %v6310
  %v6312 = vand.u32 %v6311, 4294901760
  %6313 = vmatmul.mubr.f32.gmra.mrb[0].mxu0 %v6312
  %v6314 = vpop.f32.mrb[0].mxu0
  %v6315 = vadd.f32 %v6228, %v6314
  %v6316 = vpop.f32.mrb[0].mxu0
  %v6317 = vadd.f32 %v6230, %v6316
  %6318 = vdwg.mxu0
  %v6319 = vand.u32 %v5932, 4294901760
  %v6320 = vsub.f32 %v5932, %v6319
  %v6321 = vand.u32 %v6320, 4294901760
  %6322 = vmatprep.subr.mxu0 %v6321
  %v6323 = vand.u32 %v5931, 4294901760
  %v6324 = vsub.f32 %v5931, %v6323
  %v6325 = vand.u32 %v6324, 4294901760
  %6326 = vmatpush1.msra.mxu0 %v6325
  %v6327 = vand.u32 %v5936, 4294901760
  %v6328 = vsub.f32 %v5936, %v6327
  %v6329 = vand.u32 %v6328, 4294901760
  %6330 = vmatprep.subr.mxu0 %v6329
  %v6331 = vand.u32 %v5935, 4294901760
  %v6332 = vsub.f32 %v5935, %v6331
  %v6333 = vand.u32 %v6332, 4294901760
  %6334 = vmatpush1.msra.mxu0 %v6333
  %6335 = vmatprep.subr.mxu0 0.0
  %6336 = vmatpush1.msra.mxu0 0.0
  %6337 = vmatprep.subr.mxu0 0.0
  %6338 = vmatpush1.msra.mxu0 0.0
  %6339 = vmatprep.subr.mxu0 0.0
  %6340 = vmatpush1.msra.mxu0 0.0
  %6341 = vmatprep.subr.mxu0 0.0
  %6342 = vmatpush1.msra.mxu0 0.0
  %6343 = vmatprep.subr.mxu0 0.0
  %6344 = vmatpush1.msra.mxu0 0.0
  %6345 = vmatprep.subr.mxu0 0.0
  %6346 = vmatpush1.msra.mxu0 0.0
  %6347 = vmatprep.subr.mxu0 0.0
  %6348 = vmatpush1.msra.mxu0 0.0
  %6349 = vmatprep.subr.mxu0 0.0
  %6350 = vmatpush1.msra.mxu0 0.0
  %6351 = vmatprep.subr.mxu0 0.0
  %6352 = vmatpush1.msra.mxu0 0.0
  %6353 = vmatprep.subr.mxu0 0.0
  %6354 = vmatpush1.msra.mxu0 0.0
  %6355 = vmatprep.subr.mxu0 0.0
  %6356 = vmatpush1.msra.mxu0 0.0
  %6357 = vmatprep.subr.mxu0 0.0
  %6358 = vmatpush1.msra.mxu0 0.0
  %6359 = vmatprep.subr.mxu0 0.0
  %6360 = vmatpush1.msra.mxu0 0.0
  %6361 = vmatprep.subr.mxu0 0.0
  %6362 = vmatpush1.msra.mxu0 0.0
  %6363 = vmatprep.subr.mxu0 0.0
  %6364 = vmatpush1.msra.mxu0 0.0
  %6365 = vmatprep.subr.mxu0 0.0
  %6366 = vmatpush1.msra.mxu0 0.0
  %6367 = vmatprep.subr.mxu0 0.0
  %6368 = vmatpush1.msra.mxu0 0.0
  %6369 = vmatprep.subr.mxu0 0.0
  %6370 = vmatpush1.msra.mxu0 0.0
  %6371 = vmatprep.subr.mxu0 0.0
  %6372 = vmatpush1.msra.mxu0 0.0
  %6373 = vmatprep.subr.mxu0 0.0
  %6374 = vmatpush1.msra.mxu0 0.0
  %6375 = vmatprep.subr.mxu0 0.0
  %6376 = vmatpush1.msra.mxu0 0.0
  %6377 = vmatprep.subr.mxu0 0.0
  %6378 = vmatpush1.msra.mxu0 0.0
  %6379 = vmatprep.subr.mxu0 0.0
  %6380 = vmatpush1.msra.mxu0 0.0
  %6381 = vmatprep.subr.mxu0 0.0
  %6382 = vmatpush1.msra.mxu0 0.0
  %6383 = vmatprep.subr.mxu0 0.0
  %6384 = vmatpush1.msra.mxu0 0.0
  %6385 = vmatprep.subr.mxu0 0.0
  %6386 = vmatpush1.msra.mxu0 0.0
  %6387 = vmatprep.subr.mxu0 0.0
  %6388 = vmatpush1.msra.mxu0 0.0
  %6389 = vmatprep.subr.mxu0 0.0
  %6390 = vmatpush1.msra.mxu0 0.0
  %6391 = vmatprep.subr.mxu0 0.0
  %6392 = vmatpush1.msra.mxu0 0.0
  %6393 = vmatprep.subr.mxu0 0.0
  %6394 = vmatpush1.msra.mxu0 0.0
  %6395 = vmatprep.mubr.f32.mxu0 0.0
  %v6396 = vand.u32 %v5948, 4294901760
  %6397 = vmatmul.mubr.f32.gmra.mrb[0].mxu0 %v6396
  %v6398 = vpop.f32.mrb[0].mxu0
  %v6399 = vadd.f32 %v6306, %v6398
  %v6400 = vpop.f32.mrb[0].mxu0
  %v6401 = vadd.f32 %v6308, %v6400
  %6402 = vmatprep.mubr.f32.mxu0 0.0
  %v6403 = vand.u32 %v5951, 4294901760
  %6404 = vmatmul.mubr.f32.gmra.mrb[0].mxu0 %v6403
  %v6405 = vpop.f32.mrb[0].mxu0
  %v6406 = vadd.f32 %v6315, %v6405
  %v6407 = vpop.f32.mrb[0].mxu0
  %v6408 = vadd.f32 %v6317, %v6407
  %6409 = vdwg.mxu0
  %v6410 = vand.u32 %v5932, 4294901760
  %6411 = vmatprep.subr.mxu0 %v6410
  %v6412 = vand.u32 %v5931, 4294901760
  %6413 = vmatpush1.msra.mxu0 %v6412
  %v6414 = vand.u32 %v5936, 4294901760
  %6415 = vmatprep.subr.mxu0 %v6414
  %v6416 = vand.u32 %v5935, 4294901760
  %6417 = vmatpush1.msra.mxu0 %v6416
  %6418 = vmatprep.subr.mxu0 0.0
  %6419 = vmatpush1.msra.mxu0 0.0
  %6420 = vmatprep.subr.mxu0 0.0
  %6421 = vmatpush1.msra.mxu0 0.0
  %6422 = vmatprep.subr.mxu0 0.0
  %6423 = vmatpush1.msra.mxu0 0.0
  %6424 = vmatprep.subr.mxu0 0.0
  %6425 = vmatpush1.msra.mxu0 0.0
  %6426 = vmatprep.subr.mxu0 0.0
  %6427 = vmatpush1.msra.mxu0 0.0
  %6428 = vmatprep.subr.mxu0 0.0
  %6429 = vmatpush1.msra.mxu0 0.0
  %6430 = vmatprep.subr.mxu0 0.0
  %6431 = vmatpush1.msra.mxu0 0.0
  %6432 = vmatprep.subr.mxu0 0.0
  %6433 = vmatpush1.msra.mxu0 0.0
  %6434 = vmatprep.subr.mxu0 0.0
  %6435 = vmatpush1.msra.mxu0 0.0
  %6436 = vmatprep.subr.mxu0 0.0
  %6437 = vmatpush1.msra.mxu0 0.0
  %6438 = vmatprep.subr.mxu0 0.0
  %6439 = vmatpush1.msra.mxu0 0.0
  %6440 = vmatprep.subr.mxu0 0.0
  %6441 = vmatpush1.msra.mxu0 0.0
  %6442 = vmatprep.subr.mxu0 0.0
  %6443 = vmatpush1.msra.mxu0 0.0
  %6444 = vmatprep.subr.mxu0 0.0
  %6445 = vmatpush1.msra.mxu0 0.0
  %6446 = vmatprep.subr.mxu0 0.0
  %6447 = vmatpush1.msra.mxu0 0.0
  %6448 = vmatprep.subr.mxu0 0.0
  %6449 = vmatpush1.msra.mxu0 0.0
  %6450 = vmatprep.subr.mxu0 0.0
  %6451 = vmatpush1.msra.mxu0 0.0
  %6452 = vmatprep.subr.mxu0 0.0
  %6453 = vmatpush1.msra.mxu0 0.0
  %6454 = vmatprep.subr.mxu0 0.0
  %6455 = vmatpush1.msra.mxu0 0.0
  %6456 = vmatprep.subr.mxu0 0.0
  %6457 = vmatpush1.msra.mxu0 0.0
  %6458 = vmatprep.subr.mxu0 0.0
  %6459 = vmatpush1.msra.mxu0 0.0
  %6460 = vmatprep.subr.mxu0 0.0
  %6461 = vmatpush1.msra.mxu0 0.0
  %6462 = vmatprep.subr.mxu0 0.0
  %6463 = vmatpush1.msra.mxu0 0.0
  %6464 = vmatprep.subr.mxu0 0.0
  %6465 = vmatpush1.msra.mxu0 0.0
  %6466 = vmatprep.subr.mxu0 0.0
  %6467 = vmatpush1.msra.mxu0 0.0
  %6468 = vmatprep.subr.mxu0 0.0
  %6469 = vmatpush1.msra.mxu0 0.0
  %6470 = vmatprep.subr.mxu0 0.0
  %6471 = vmatpush1.msra.mxu0 0.0
  %6472 = vmatprep.subr.mxu0 0.0
  %6473 = vmatpush1.msra.mxu0 0.0
  %6474 = vmatprep.subr.mxu0 0.0
  %6475 = vmatpush1.msra.mxu0 0.0
  %6476 = vmatprep.subr.mxu0 0.0
  %6477 = vmatpush1.msra.mxu0 0.0
  %6478 = vmatprep.mubr.f32.mxu0 0.0
  %v6479 = vand.u32 %v5948, 4294901760
  %6480 = vmatmul.mubr.f32.gmra.mrb[0].mxu0 %v6479
  %v6481 = vpop.f32.mrb[0].mxu0
  %v6482 = vadd.f32 %v6399, %v6481
  %v6483 = vpop.f32.mrb[0].mxu0
  %v6484 = vadd.f32 %v6401, %v6483
  %6485 = vmatprep.mubr.f32.mxu0 0.0
  %v6486 = vand.u32 %v5951, 4294901760
  %6487 = vmatmul.mubr.f32.gmra.mrb[0].mxu0 %v6486
  %v6488 = vpop.f32.mrb[0].mxu0
  %v6489 = vadd.f32 %v6406, %v6488
  %v6490 = vpop.f32.mrb[0].mxu0
  %v6491 = vadd.f32 %v6408, %v6490
  %6492 = vdwg.mxu0
  %v6493 = vand.u32 %v5934, 4294901760
  %6494 = vmatprep.subr.mxu0 %v6493
  %v6495 = vand.u32 %v5933, 4294901760
  %6496 = vmatpush1.msra.mxu0 %v6495
  %v6497 = vand.u32 %v5938, 4294901760
  %6498 = vmatprep.subr.mxu0 %v6497
  %v6499 = vand.u32 %v5937, 4294901760
  %6500 = vmatpush1.msra.mxu0 %v6499
  %6501 = vmatprep.subr.mxu0 0.0
  %6502 = vmatpush1.msra.mxu0 0.0
  %6503 = vmatprep.subr.mxu0 0.0
  %6504 = vmatpush1.msra.mxu0 0.0
  %6505 = vmatprep.subr.mxu0 0.0
  %6506 = vmatpush1.msra.mxu0 0.0
  %6507 = vmatprep.subr.mxu0 0.0
  %6508 = vmatpush1.msra.mxu0 0.0
  %6509 = vmatprep.subr.mxu0 0.0
  %6510 = vmatpush1.msra.mxu0 0.0
  %6511 = vmatprep.subr.mxu0 0.0
  %6512 = vmatpush1.msra.mxu0 0.0
  %6513 = vmatprep.subr.mxu0 0.0
  %6514 = vmatpush1.msra.mxu0 0.0
  %6515 = vmatprep.subr.mxu0 0.0
  %6516 = vmatpush1.msra.mxu0 0.0
  %6517 = vmatprep.subr.mxu0 0.0
  %6518 = vmatpush1.msra.mxu0 0.0
  %6519 = vmatprep.subr.mxu0 0.0
  %6520 = vmatpush1.msra.mxu0 0.0
  %6521 = vmatprep.subr.mxu0 0.0
  %6522 = vmatpush1.msra.mxu0 0.0
  %6523 = vmatprep.subr.mxu0 0.0
  %6524 = vmatpush1.msra.mxu0 0.0
  %6525 = vmatprep.subr.mxu0 0.0
  %6526 = vmatpush1.msra.mxu0 0.0
  %6527 = vmatprep.subr.mxu0 0.0
  %6528 = vmatpush1.msra.mxu0 0.0
  %6529 = vmatprep.subr.mxu0 0.0
  %6530 = vmatpush1.msra.mxu0 0.0
  %6531 = vmatprep.subr.mxu0 0.0
  %6532 = vmatpush1.msra.mxu0 0.0
  %6533 = vmatprep.subr.mxu0 0.0
  %6534 = vmatpush1.msra.mxu0 0.0
  %6535 = vmatprep.subr.mxu0 0.0
  %6536 = vmatpush1.msra.mxu0 0.0
  %6537 = vmatprep.subr.mxu0 0.0
  %6538 = vmatpush1.msra.mxu0 0.0
  %6539 = vmatprep.subr.mxu0 0.0
  %6540 = vmatpush1.msra.mxu0 0.0
  %6541 = vmatprep.subr.mxu0 0.0
  %6542 = vmatpush1.msra.mxu0 0.0
  %6543 = vmatprep.subr.mxu0 0.0
  %6544 = vmatpush1.msra.mxu0 0.0
  %6545 = vmatprep.subr.mxu0 0.0
  %6546 = vmatpush1.msra.mxu0 0.0
  %6547 = vmatprep.subr.mxu0 0.0
  %6548 = vmatpush1.msra.mxu0 0.0
  %6549 = vmatprep.subr.mxu0 0.0
  %6550 = vmatpush1.msra.mxu0 0.0
  %6551 = vmatprep.subr.mxu0 0.0
  %6552 = vmatpush1.msra.mxu0 0.0
  %6553 = vmatprep.subr.mxu0 0.0
  %6554 = vmatpush1.msra.mxu0 0.0
  %6555 = vmatprep.subr.mxu0 0.0
  %6556 = vmatpush1.msra.mxu0 0.0
  %6557 = vmatprep.subr.mxu0 0.0
  %6558 = vmatpush1.msra.mxu0 0.0
  %6559 = vmatprep.subr.mxu0 0.0
  %6560 = vmatpush1.msra.mxu0 0.0
  %6561 = vmatprep.mubr.f32.mxu0 0.0
  %v6562 = vand.u32 %v5948, 4294901760
  %v6563 = vsub.f32 %v5948, %v6562
  %v6564 = vand.u32 %v6563, 4294901760
  %v6565 = vsub.f32 %v6563, %v6564
  %v6566 = vand.u32 %v6565, 4294901760
  %6567 = vmatmul.mubr.f32.gmra.mrb[0].mxu0 %v6566
  %v6568 = vpop.f32.mrb[0].mxu0
  %v6569 = vadd.f32 0.0, %v6568
  %v6570 = vpop.f32.mrb[0].mxu0
  %v6571 = vadd.f32 0.0, %v6570
  %6572 = vmatprep.mubr.f32.mxu0 0.0
  %v6573 = vand.u32 %v5951, 4294901760
  %v6574 = vsub.f32 %v5951, %v6573
  %v6575 = vand.u32 %v6574, 4294901760
  %v6576 = vsub.f32 %v6574, %v6575
  %v6577 = vand.u32 %v6576, 4294901760
  %6578 = vmatmul.mubr.f32.gmra.mrb[0].mxu0 %v6577
  %v6579 = vpop.f32.mrb[0].mxu0
  %v6580 = vadd.f32 0.0, %v6579
  %v6581 = vpop.f32.mrb[0].mxu0
  %v6582 = vadd.f32 0.0, %v6581
  %6583 = vdwg.mxu0
  %v6584 = vand.u32 %v5934, 4294901760
  %v6585 = vsub.f32 %v5934, %v6584
  %v6586 = vand.u32 %v6585, 4294901760
  %v6587 = vsub.f32 %v6585, %v6586
  %v6588 = vand.u32 %v6587, 4294901760
  %6589 = vmatprep.subr.mxu0 %v6588
  %v6590 = vand.u32 %v5933, 4294901760
  %v6591 = vsub.f32 %v5933, %v6590
  %v6592 = vand.u32 %v6591, 4294901760
  %v6593 = vsub.f32 %v6591, %v6592
  %v6594 = vand.u32 %v6593, 4294901760
  %6595 = vmatpush1.msra.mxu0 %v6594
  %v6596 = vand.u32 %v5938, 4294901760
  %v6597 = vsub.f32 %v5938, %v6596
  %v6598 = vand.u32 %v6597, 4294901760
  %v6599 = vsub.f32 %v6597, %v6598
  %v6600 = vand.u32 %v6599, 4294901760
  %6601 = vmatprep.subr.mxu0 %v6600
  %v6602 = vand.u32 %v5937, 4294901760
  %v6603 = vsub.f32 %v5937, %v6602
  %v6604 = vand.u32 %v6603, 4294901760
  %v6605 = vsub.f32 %v6603, %v6604
  %v6606 = vand.u32 %v6605, 4294901760
  %6607 = vmatpush1.msra.mxu0 %v6606
  %6608 = vmatprep.subr.mxu0 0.0
  %6609 = vmatpush1.msra.mxu0 0.0
  %6610 = vmatprep.subr.mxu0 0.0
  %6611 = vmatpush1.msra.mxu0 0.0
  %6612 = vmatprep.subr.mxu0 0.0
  %6613 = vmatpush1.msra.mxu0 0.0
  %6614 = vmatprep.subr.mxu0 0.0
  %6615 = vmatpush1.msra.mxu0 0.0
  %6616 = vmatprep.subr.mxu0 0.0
  %6617 = vmatpush1.msra.mxu0 0.0
  %6618 = vmatprep.subr.mxu0 0.0
  %6619 = vmatpush1.msra.mxu0 0.0
  %6620 = vmatprep.subr.mxu0 0.0
  %6621 = vmatpush1.msra.mxu0 0.0
  %6622 = vmatprep.subr.mxu0 0.0
  %6623 = vmatpush1.msra.mxu0 0.0
  %6624 = vmatprep.subr.mxu0 0.0
  %6625 = vmatpush1.msra.mxu0 0.0
  %6626 = vmatprep.subr.mxu0 0.0
  %6627 = vmatpush1.msra.mxu0 0.0
  %6628 = vmatprep.subr.mxu0 0.0
  %6629 = vmatpush1.msra.mxu0 0.0
  %6630 = vmatprep.subr.mxu0 0.0
  %6631 = vmatpush1.msra.mxu0 0.0
  %6632 = vmatprep.subr.mxu0 0.0
  %6633 = vmatpush1.msra.mxu0 0.0
  %6634 = vmatprep.subr.mxu0 0.0
  %6635 = vmatpush1.msra.mxu0 0.0
  %6636 = vmatprep.subr.mxu0 0.0
  %6637 = vmatpush1.msra.mxu0 0.0
  %6638 = vmatprep.subr.mxu0 0.0
  %6639 = vmatpush1.msra.mxu0 0.0
  %6640 = vmatprep.subr.mxu0 0.0
  %6641 = vmatpush1.msra.mxu0 0.0
  %6642 = vmatprep.subr.mxu0 0.0
  %6643 = vmatpush1.msra.mxu0 0.0
  %6644 = vmatprep.subr.mxu0 0.0
  %6645 = vmatpush1.msra.mxu0 0.0
  %6646 = vmatprep.subr.mxu0 0.0
  %6647 = vmatpush1.msra.mxu0 0.0
  %6648 = vmatprep.subr.mxu0 0.0
  %6649 = vmatpush1.msra.mxu0 0.0
  %6650 = vmatprep.subr.mxu0 0.0
  %6651 = vmatpush1.msra.mxu0 0.0
  %6652 = vmatprep.subr.mxu0 0.0
  %6653 = vmatpush1.msra.mxu0 0.0
  %6654 = vmatprep.subr.mxu0 0.0
  %6655 = vmatpush1.msra.mxu0 0.0
  %6656 = vmatprep.subr.mxu0 0.0
  %6657 = vmatpush1.msra.mxu0 0.0
  %6658 = vmatprep.subr.mxu0 0.0
  %6659 = vmatpush1.msra.mxu0 0.0
  %6660 = vmatprep.subr.mxu0 0.0
  %6661 = vmatpush1.msra.mxu0 0.0
  %6662 = vmatprep.subr.mxu0 0.0
  %6663 = vmatpush1.msra.mxu0 0.0
  %6664 = vmatprep.subr.mxu0 0.0
  %6665 = vmatpush1.msra.mxu0 0.0
  %6666 = vmatprep.subr.mxu0 0.0
  %6667 = vmatpush1.msra.mxu0 0.0
  %6668 = vmatprep.mubr.f32.mxu0 0.0
  %v6669 = vand.u32 %v5948, 4294901760
  %6670 = vmatmul.mubr.f32.gmra.mrb[0].mxu0 %v6669
  %v6671 = vpop.f32.mrb[0].mxu0
  %v6672 = vadd.f32 %v6569, %v6671
  %v6673 = vpop.f32.mrb[0].mxu0
  %v6674 = vadd.f32 %v6571, %v6673
  %6675 = vmatprep.mubr.f32.mxu0 0.0
  %v6676 = vand.u32 %v5951, 4294901760
  %6677 = vmatmul.mubr.f32.gmra.mrb[0].mxu0 %v6676
  %v6678 = vpop.f32.mrb[0].mxu0
  %v6679 = vadd.f32 %v6580, %v6678
  %v6680 = vpop.f32.mrb[0].mxu0
  %v6681 = vadd.f32 %v6582, %v6680
  %6682 = vdwg.mxu0
  %v6683 = vand.u32 %v5934, 4294901760
  %v6684 = vsub.f32 %v5934, %v6683
  %6685 = vmatprep.subr.mxu0 %v6684
  %v6686 = vand.u32 %v5933, 4294901760
  %v6687 = vsub.f32 %v5933, %v6686
  %6688 = vmatpush1.msra.mxu0 %v6687
  %v6689 = vand.u32 %v5938, 4294901760
  %v6690 = vsub.f32 %v5938, %v6689
  %6691 = vmatprep.subr.mxu0 %v6690
  %v6692 = vand.u32 %v5937, 4294901760
  %v6693 = vsub.f32 %v5937, %v6692
  %6694 = vmatpush1.msra.mxu0 %v6693
  %6695 = vmatprep.subr.mxu0 0.0
  %6696 = vmatpush1.msra.mxu0 0.0
  %6697 = vmatprep.subr.mxu0 0.0
  %6698 = vmatpush1.msra.mxu0 0.0
  %6699 = vmatprep.subr.mxu0 0.0
  %6700 = vmatpush1.msra.mxu0 0.0
  %6701 = vmatprep.subr.mxu0 0.0
  %6702 = vmatpush1.msra.mxu0 0.0
  %6703 = vmatprep.subr.mxu0 0.0
  %6704 = vmatpush1.msra.mxu0 0.0
  %6705 = vmatprep.subr.mxu0 0.0
  %6706 = vmatpush1.msra.mxu0 0.0
  %6707 = vmatprep.subr.mxu0 0.0
  %6708 = vmatpush1.msra.mxu0 0.0
  %6709 = vmatprep.subr.mxu0 0.0
  %6710 = vmatpush1.msra.mxu0 0.0
  %6711 = vmatprep.subr.mxu0 0.0
  %6712 = vmatpush1.msra.mxu0 0.0
  %6713 = vmatprep.subr.mxu0 0.0
  %6714 = vmatpush1.msra.mxu0 0.0
  %6715 = vmatprep.subr.mxu0 0.0
  %6716 = vmatpush1.msra.mxu0 0.0
  %6717 = vmatprep.subr.mxu0 0.0
  %6718 = vmatpush1.msra.mxu0 0.0
  %6719 = vmatprep.subr.mxu0 0.0
  %6720 = vmatpush1.msra.mxu0 0.0
  %6721 = vmatprep.subr.mxu0 0.0
  %6722 = vmatpush1.msra.mxu0 0.0
  %6723 = vmatprep.subr.mxu0 0.0
  %6724 = vmatpush1.msra.mxu0 0.0
  %6725 = vmatprep.subr.mxu0 0.0
  %6726 = vmatpush1.msra.mxu0 0.0
  %6727 = vmatprep.subr.mxu0 0.0
  %6728 = vmatpush1.msra.mxu0 0.0
  %6729 = vmatprep.subr.mxu0 0.0
  %6730 = vmatpush1.msra.mxu0 0.0
  %6731 = vmatprep.subr.mxu0 0.0
  %6732 = vmatpush1.msra.mxu0 0.0
  %6733 = vmatprep.subr.mxu0 0.0
  %6734 = vmatpush1.msra.mxu0 0.0
  %6735 = vmatprep.subr.mxu0 0.0
  %6736 = vmatpush1.msra.mxu0 0.0
  %6737 = vmatprep.subr.mxu0 0.0
  %6738 = vmatpush1.msra.mxu0 0.0
  %6739 = vmatprep.subr.mxu0 0.0
  %6740 = vmatpush1.msra.mxu0 0.0
  %6741 = vmatprep.subr.mxu0 0.0
  %6742 = vmatpush1.msra.mxu0 0.0
  %6743 = vmatprep.subr.mxu0 0.0
  %6744 = vmatpush1.msra.mxu0 0.0
  %6745 = vmatprep.subr.mxu0 0.0
  %6746 = vmatpush1.msra.mxu0 0.0
  %6747 = vmatprep.subr.mxu0 0.0
  %6748 = vmatpush1.msra.mxu0 0.0
  %6749 = vmatprep.subr.mxu0 0.0
  %6750 = vmatpush1.msra.mxu0 0.0
  %6751 = vmatprep.subr.mxu0 0.0
  %6752 = vmatpush1.msra.mxu0 0.0
  %6753 = vmatprep.subr.mxu0 0.0
  %6754 = vmatpush1.msra.mxu0 0.0
  %6755 = vmatprep.mubr.f32.mxu0 0.0
  %v6756 = vand.u32 %v5948, 4294901760
  %v6757 = vsub.f32 %v5948, %v6756
  %6758 = vmatmul.mubr.f32.gmra.mrb[0].mxu0 %v6757
  %v6759 = vpop.f32.mrb[0].mxu0
  %v6760 = vadd.f32 %v6672, %v6759
  %v6761 = vpop.f32.mrb[0].mxu0
  %v6762 = vadd.f32 %v6674, %v6761
  %6763 = vmatprep.mubr.f32.mxu0 0.0
  %v6764 = vand.u32 %v5951, 4294901760
  %v6765 = vsub.f32 %v5951, %v6764
  %6766 = vmatmul.mubr.f32.gmra.mrb[0].mxu0 %v6765
  %v6767 = vpop.f32.mrb[0].mxu0
  %v6768 = vadd.f32 %v6679, %v6767
  %v6769 = vpop.f32.mrb[0].mxu0
  %v6770 = vadd.f32 %v6681, %v6769
  %6771 = vdwg.mxu0
  %v6772 = vand.u32 %v5934, 4294901760
  %6773 = vmatprep.subr.mxu0 %v6772
  %v6774 = vand.u32 %v5933, 4294901760
  %6775 = vmatpush1.msra.mxu0 %v6774
  %v6776 = vand.u32 %v5938, 4294901760
  %6777 = vmatprep.subr.mxu0 %v6776
  %v6778 = vand.u32 %v5937, 4294901760
  %6779 = vmatpush1.msra.mxu0 %v6778
  %6780 = vmatprep.subr.mxu0 0.0
  %6781 = vmatpush1.msra.mxu0 0.0
  %6782 = vmatprep.subr.mxu0 0.0
  %6783 = vmatpush1.msra.mxu0 0.0
  %6784 = vmatprep.subr.mxu0 0.0
  %6785 = vmatpush1.msra.mxu0 0.0
  %6786 = vmatprep.subr.mxu0 0.0
  %6787 = vmatpush1.msra.mxu0 0.0
  %6788 = vmatprep.subr.mxu0 0.0
  %6789 = vmatpush1.msra.mxu0 0.0
  %6790 = vmatprep.subr.mxu0 0.0
  %6791 = vmatpush1.msra.mxu0 0.0
  %6792 = vmatprep.subr.mxu0 0.0
  %6793 = vmatpush1.msra.mxu0 0.0
  %6794 = vmatprep.subr.mxu0 0.0
  %6795 = vmatpush1.msra.mxu0 0.0
  %6796 = vmatprep.subr.mxu0 0.0
  %6797 = vmatpush1.msra.mxu0 0.0
  %6798 = vmatprep.subr.mxu0 0.0
  %6799 = vmatpush1.msra.mxu0 0.0
  %6800 = vmatprep.subr.mxu0 0.0
  %6801 = vmatpush1.msra.mxu0 0.0
  %6802 = vmatprep.subr.mxu0 0.0
  %6803 = vmatpush1.msra.mxu0 0.0
  %6804 = vmatprep.subr.mxu0 0.0
  %6805 = vmatpush1.msra.mxu0 0.0
  %6806 = vmatprep.subr.mxu0 0.0
  %6807 = vmatpush1.msra.mxu0 0.0
  %6808 = vmatprep.subr.mxu0 0.0
  %6809 = vmatpush1.msra.mxu0 0.0
  %6810 = vmatprep.subr.mxu0 0.0
  %6811 = vmatpush1.msra.mxu0 0.0
  %6812 = vmatprep.subr.mxu0 0.0
  %6813 = vmatpush1.msra.mxu0 0.0
  %6814 = vmatprep.subr.mxu0 0.0
  %6815 = vmatpush1.msra.mxu0 0.0
  %6816 = vmatprep.subr.mxu0 0.0
  %6817 = vmatpush1.msra.mxu0 0.0
  %6818 = vmatprep.subr.mxu0 0.0
  %6819 = vmatpush1.msra.mxu0 0.0
  %6820 = vmatprep.subr.mxu0 0.0
  %6821 = vmatpush1.msra.mxu0 0.0
  %6822 = vmatprep.subr.mxu0 0.0
  %6823 = vmatpush1.msra.mxu0 0.0
  %6824 = vmatprep.subr.mxu0 0.0
  %6825 = vmatpush1.msra.mxu0 0.0
  %6826 = vmatprep.subr.mxu0 0.0
  %6827 = vmatpush1.msra.mxu0 0.0
  %6828 = vmatprep.subr.mxu0 0.0
  %6829 = vmatpush1.msra.mxu0 0.0
  %6830 = vmatprep.subr.mxu0 0.0
  %6831 = vmatpush1.msra.mxu0 0.0
  %6832 = vmatprep.subr.mxu0 0.0
  %6833 = vmatpush1.msra.mxu0 0.0
  %6834 = vmatprep.subr.mxu0 0.0
  %6835 = vmatpush1.msra.mxu0 0.0
  %6836 = vmatprep.subr.mxu0 0.0
  %6837 = vmatpush1.msra.mxu0 0.0
  %6838 = vmatprep.subr.mxu0 0.0
  %6839 = vmatpush1.msra.mxu0 0.0
  %6840 = vmatprep.mubr.f32.mxu0 0.0
  %v6841 = vand.u32 %v5948, 4294901760
  %v6842 = vsub.f32 %v5948, %v6841
  %v6843 = vand.u32 %v6842, 4294901760
  %6844 = vmatmul.mubr.f32.gmra.mrb[0].mxu0 %v6843
  %v6845 = vpop.f32.mrb[0].mxu0
  %v6846 = vadd.f32 %v6760, %v6845
  %v6847 = vpop.f32.mrb[0].mxu0
  %v6848 = vadd.f32 %v6762, %v6847
  %6849 = vmatprep.mubr.f32.mxu0 0.0
  %v6850 = vand.u32 %v5951, 4294901760
  %v6851 = vsub.f32 %v5951, %v6850
  %v6852 = vand.u32 %v6851, 4294901760
  %6853 = vmatmul.mubr.f32.gmra.mrb[0].mxu0 %v6852
  %v6854 = vpop.f32.mrb[0].mxu0
  %v6855 = vadd.f32 %v6768, %v6854
  %v6856 = vpop.f32.mrb[0].mxu0
  %v6857 = vadd.f32 %v6770, %v6856
  %6858 = vdwg.mxu0
  %v6859 = vand.u32 %v5934, 4294901760
  %v6860 = vsub.f32 %v5934, %v6859
  %v6861 = vand.u32 %v6860, 4294901760
  %6862 = vmatprep.subr.mxu0 %v6861
  %v6863 = vand.u32 %v5933, 4294901760
  %v6864 = vsub.f32 %v5933, %v6863
  %v6865 = vand.u32 %v6864, 4294901760
  %6866 = vmatpush1.msra.mxu0 %v6865
  %v6867 = vand.u32 %v5938, 4294901760
  %v6868 = vsub.f32 %v5938, %v6867
  %v6869 = vand.u32 %v6868, 4294901760
  %6870 = vmatprep.subr.mxu0 %v6869
  %v6871 = vand.u32 %v5937, 4294901760
  %v6872 = vsub.f32 %v5937, %v6871
  %v6873 = vand.u32 %v6872, 4294901760
  %6874 = vmatpush1.msra.mxu0 %v6873
  %6875 = vmatprep.subr.mxu0 0.0
  %6876 = vmatpush1.msra.mxu0 0.0
  %6877 = vmatprep.subr.mxu0 0.0
  %6878 = vmatpush1.msra.mxu0 0.0
  %6879 = vmatprep.subr.mxu0 0.0
  %6880 = vmatpush1.msra.mxu0 0.0
  %6881 = vmatprep.subr.mxu0 0.0
  %6882 = vmatpush1.msra.mxu0 0.0
  %6883 = vmatprep.subr.mxu0 0.0
  %6884 = vmatpush1.msra.mxu0 0.0
  %6885 = vmatprep.subr.mxu0 0.0
  %6886 = vmatpush1.msra.mxu0 0.0
  %6887 = vmatprep.subr.mxu0 0.0
  %6888 = vmatpush1.msra.mxu0 0.0
  %6889 = vmatprep.subr.mxu0 0.0
  %6890 = vmatpush1.msra.mxu0 0.0
  %6891 = vmatprep.subr.mxu0 0.0
  %6892 = vmatpush1.msra.mxu0 0.0
  %6893 = vmatprep.subr.mxu0 0.0
  %6894 = vmatpush1.msra.mxu0 0.0
  %6895 = vmatprep.subr.mxu0 0.0
  %6896 = vmatpush1.msra.mxu0 0.0
  %6897 = vmatprep.subr.mxu0 0.0
  %6898 = vmatpush1.msra.mxu0 0.0
  %6899 = vmatprep.subr.mxu0 0.0
  %6900 = vmatpush1.msra.mxu0 0.0
  %6901 = vmatprep.subr.mxu0 0.0
  %6902 = vmatpush1.msra.mxu0 0.0
  %6903 = vmatprep.subr.mxu0 0.0
  %6904 = vmatpush1.msra.mxu0 0.0
  %6905 = vmatprep.subr.mxu0 0.0
  %6906 = vmatpush1.msra.mxu0 0.0
  %6907 = vmatprep.subr.mxu0 0.0
  %6908 = vmatpush1.msra.mxu0 0.0
  %6909 = vmatprep.subr.mxu0 0.0
  %6910 = vmatpush1.msra.mxu0 0.0
  %6911 = vmatprep.subr.mxu0 0.0
  %6912 = vmatpush1.msra.mxu0 0.0
  %6913 = vmatprep.subr.mxu0 0.0
  %6914 = vmatpush1.msra.mxu0 0.0
  %6915 = vmatprep.subr.mxu0 0.0
  %6916 = vmatpush1.msra.mxu0 0.0
  %6917 = vmatprep.subr.mxu0 0.0
  %6918 = vmatpush1.msra.mxu0 0.0
  %6919 = vmatprep.subr.mxu0 0.0
  %6920 = vmatpush1.msra.mxu0 0.0
  %6921 = vmatprep.subr.mxu0 0.0
  %6922 = vmatpush1.msra.mxu0 0.0
  %6923 = vmatprep.subr.mxu0 0.0
  %6924 = vmatpush1.msra.mxu0 0.0
  %6925 = vmatprep.subr.mxu0 0.0
  %6926 = vmatpush1.msra.mxu0 0.0
  %6927 = vmatprep.subr.mxu0 0.0
  %6928 = vmatpush1.msra.mxu0 0.0
  %6929 = vmatprep.subr.mxu0 0.0
  %6930 = vmatpush1.msra.mxu0 0.0
  %6931 = vmatprep.subr.mxu0 0.0
  %6932 = vmatpush1.msra.mxu0 0.0
  %6933 = vmatprep.subr.mxu0 0.0
  %6934 = vmatpush1.msra.mxu0 0.0
  %6935 = vmatprep.mubr.f32.mxu0 0.0
  %v6936 = vand.u32 %v5948, 4294901760
  %6937 = vmatmul.mubr.f32.gmra.mrb[0].mxu0 %v6936
  %v6938 = vpop.f32.mrb[0].mxu0
  %v6939 = vadd.f32 %v6846, %v6938
  %v6940 = vpop.f32.mrb[0].mxu0
  %v6941 = vadd.f32 %v6848, %v6940
  %6942 = vmatprep.mubr.f32.mxu0 0.0
  %v6943 = vand.u32 %v5951, 4294901760
  %6944 = vmatmul.mubr.f32.gmra.mrb[0].mxu0 %v6943
  %v6945 = vpop.f32.mrb[0].mxu0
  %v6946 = vadd.f32 %v6855, %v6945
  %v6947 = vpop.f32.mrb[0].mxu0
  %v6948 = vadd.f32 %v6857, %v6947
  %6949 = vdwg.mxu0
  %v6950 = vand.u32 %v5934, 4294901760
  %6951 = vmatprep.subr.mxu0 %v6950
  %v6952 = vand.u32 %v5933, 4294901760
  %6953 = vmatpush1.msra.mxu0 %v6952
  %v6954 = vand.u32 %v5938, 4294901760
  %6955 = vmatprep.subr.mxu0 %v6954
  %v6956 = vand.u32 %v5937, 4294901760
  %6957 = vmatpush1.msra.mxu0 %v6956
  %6958 = vmatprep.subr.mxu0 0.0
  %6959 = vmatpush1.msra.mxu0 0.0
  %6960 = vmatprep.subr.mxu0 0.0
  %6961 = vmatpush1.msra.mxu0 0.0
  %6962 = vmatprep.subr.mxu0 0.0
  %6963 = vmatpush1.msra.mxu0 0.0
  %6964 = vmatprep.subr.mxu0 0.0
  %6965 = vmatpush1.msra.mxu0 0.0
  %6966 = vmatprep.subr.mxu0 0.0
  %6967 = vmatpush1.msra.mxu0 0.0
  %6968 = vmatprep.subr.mxu0 0.0
  %6969 = vmatpush1.msra.mxu0 0.0
  %6970 = vmatprep.subr.mxu0 0.0
  %6971 = vmatpush1.msra.mxu0 0.0
  %6972 = vmatprep.subr.mxu0 0.0
  %6973 = vmatpush1.msra.mxu0 0.0
  %6974 = vmatprep.subr.mxu0 0.0
  %6975 = vmatpush1.msra.mxu0 0.0
  %6976 = vmatprep.subr.mxu0 0.0
  %6977 = vmatpush1.msra.mxu0 0.0
  %6978 = vmatprep.subr.mxu0 0.0
  %6979 = vmatpush1.msra.mxu0 0.0
  %6980 = vmatprep.subr.mxu0 0.0
  %6981 = vmatpush1.msra.mxu0 0.0
  %6982 = vmatprep.subr.mxu0 0.0
  %6983 = vmatpush1.msra.mxu0 0.0
  %6984 = vmatprep.subr.mxu0 0.0
  %6985 = vmatpush1.msra.mxu0 0.0
  %6986 = vmatprep.subr.mxu0 0.0
  %6987 = vmatpush1.msra.mxu0 0.0
  %6988 = vmatprep.subr.mxu0 0.0
  %6989 = vmatpush1.msra.mxu0 0.0
  %6990 = vmatprep.subr.mxu0 0.0
  %6991 = vmatpush1.msra.mxu0 0.0
  %6992 = vmatprep.subr.mxu0 0.0
  %6993 = vmatpush1.msra.mxu0 0.0
  %6994 = vmatprep.subr.mxu0 0.0
  %6995 = vmatpush1.msra.mxu0 0.0
  %6996 = vmatprep.subr.mxu0 0.0
  %6997 = vmatpush1.msra.mxu0 0.0
  %6998 = vmatprep.subr.mxu0 0.0
  %6999 = vmatpush1.msra.mxu0 0.0
  %7000 = vmatprep.subr.mxu0 0.0
  %7001 = vmatpush1.msra.mxu0 0.0
  %7002 = vmatprep.subr.mxu0 0.0
  %7003 = vmatpush1.msra.mxu0 0.0
  %7004 = vmatprep.subr.mxu0 0.0
  %7005 = vmatpush1.msra.mxu0 0.0
  %7006 = vmatprep.subr.mxu0 0.0
  %7007 = vmatpush1.msra.mxu0 0.0
  %7008 = vmatprep.subr.mxu0 0.0
  %7009 = vmatpush1.msra.mxu0 0.0
  %7010 = vmatprep.subr.mxu0 0.0
  %7011 = vmatpush1.msra.mxu0 0.0
  %7012 = vmatprep.subr.mxu0 0.0
  %7013 = vmatpush1.msra.mxu0 0.0
  %7014 = vmatprep.subr.mxu0 0.0
  %7015 = vmatpush1.msra.mxu0 0.0
  %7016 = vmatprep.subr.mxu0 0.0
  %7017 = vmatpush1.msra.mxu0 0.0
  %7018 = vmatprep.mubr.f32.mxu0 0.0
  %v7019 = vand.u32 %v5948, 4294901760
  %7020 = vmatmul.mubr.f32.gmra.mrb[0].mxu0 %v7019
  %v7021 = vpop.f32.mrb[0].mxu0
  %v7022 = vadd.f32 %v6939, %v7021
  %v7023 = vpop.f32.mrb[0].mxu0
  %v7024 = vadd.f32 %v6941, %v7023
  %7025 = vmatprep.mubr.f32.mxu0 0.0
  %v7026 = vand.u32 %v5951, 4294901760
  %7027 = vmatmul.mubr.f32.gmra.mrb[0].mxu0 %v7026
  %v7028 = vpop.f32.mrb[0].mxu0
  %v7029 = vadd.f32 %v6946, %v7028
  %v7030 = vpop.f32.mrb[0].mxu0
  %v7031 = vadd.f32 %v6948, %v7030
  %7032 = vdwg.mxu0
  %v7033 = vadd.f32 %v5843, %v6482
  %v7034 = vadd.f32 %v5844, %v6484
  %v7035 = vadd.f32 %v5845, %v7022
  %v7036 = vadd.f32 %v5846, %v7024
  %v7037 = vadd.f32 %v5847, %v6489
  %v7038 = vadd.f32 %v5848, %v6491
  %v7039 = vadd.f32 %v5849, %v7029
  %v7040 = vadd.f32 %v5850, %v7031
  %s7041 = scalar_lea.vmem %s3, 6
  %v7042 = vld [vmem:[%s7041] ss:$8 sm:$0xf]
  %v7044 = vlaneseq
  %v7045 = vshrl.u32 %v7044, 7
  %v7046 = vsub.s32 0, %v7045
  %v7047 = vrot.slane %v7042, %v7046
  %v7048 = vlaneseq
  %v7049 = vshrl.u32 %v7048, 7
  %v7050 = vsub.s32 1, %v7049
  %v7051 = vrot.slane %v7042, %v7050
  %v7052 = vlaneseq
  %v7053 = vshrl.u32 %v7052, 7
  %v7054 = vsub.s32 2, %v7053
  %v7055 = vrot.slane %v7042, %v7054
  %v7056 = vlaneseq
  %v7057 = vshrl.u32 %v7056, 7
  %v7058 = vsub.s32 3, %v7057
  %v7059 = vrot.slane %v7042, %v7058
  %7060 = vrot.lane.b32.xlu0 %v7047, 32
  %v7061 = vpop.permute.xlu0 %7060
  %7062 = vrot.lane.b32.xlu0 %v7051, 32
  %v7063 = vpop.permute.xlu0 %7062
  %7064 = vrot.lane.b32.xlu0 %v7055, 32
  %v7065 = vpop.permute.xlu0 %7064
  %7066 = vrot.lane.b32.xlu0 %v7059, 32
  %v7067 = vpop.permute.xlu0 %7066
  %vm7068 = vcmask 261120
  %v7069 = vsel %vm7068, %v7061, %v7063
  %v7070 = vsel %vm7068, %v7063, %v7065
  %v7071 = vsel %vm7068, %v7065, %v7067
  %v7077 = vmul.f32 %v17, %v7061
  %v7078 = vmul.f32 %v18, %v7069
  %v7079 = vmul.f32 %v19, %v7070
  %v7080 = vmul.f32 %v20, %v7071
  %v7081 = vmul.f32 %v57, %v7067
  %v7082 = vmul.f32 %v21, %v7061
  %v7083 = vmul.f32 %v22, %v7069
  %v7084 = vmul.f32 %v23, %v7070
  %v7085 = vmul.f32 %v24, %v7071
  %v7086 = vmul.f32 %v58, %v7067
  %s7087 = scalar_lea.vmem %s1, 96
  %v7088 = vld [vmem:[%s7087] sm:$0xff]
  %v7089 = vld [vmem:[%s7087 + $0x8] sm:$0xff]
  %7100 = vrot.lane.b32.xlu0 %v7077, 96
  %v7101 = vpop.permute.xlu0 %7100
  %7102 = vrot.lane.b32.xlu0 %v7078, 96
  %v7103 = vpop.permute.xlu0 %7102
  %7104 = vrot.lane.b32.xlu0 %v7079, 96
  %v7105 = vpop.permute.xlu0 %7104
  %7106 = vrot.lane.b32.xlu0 %v7080, 96
  %v7107 = vpop.permute.xlu0 %7106
  %7108 = vrot.lane.b32.xlu0 %v7081, 96
  %v7109 = vpop.permute.xlu0 %7108
  %7110 = vrot.lane.b32.xlu0 %v7082, 96
  %v7111 = vpop.permute.xlu0 %7110
  %7112 = vrot.lane.b32.xlu0 %v7083, 96
  %v7113 = vpop.permute.xlu0 %7112
  %7114 = vrot.lane.b32.xlu0 %v7084, 96
  %v7115 = vpop.permute.xlu0 %7114
  %7116 = vrot.lane.b32.xlu0 %v7085, 96
  %v7117 = vpop.permute.xlu0 %7116
  %7118 = vrot.lane.b32.xlu0 %v7086, 96
  %v7119 = vpop.permute.xlu0 %7118
  %vm7120 = vcmask 785408
  %v7121 = vsel %vm7120, %v7101, %v7103
  %v7122 = vsel %vm7120, %v7103, %v7105
  %v7123 = vsel %vm7120, %v7105, %v7107
  %v7124 = vsel %vm7120, %v7107, %v7109
  %v7125 = vsel %vm7120, %v7111, %v7113
  %v7126 = vsel %vm7120, %v7113, %v7115
  %v7127 = vsel %vm7120, %v7115, %v7117
  %v7128 = vsel %vm7120, %v7117, %v7119
  %v7138 = vsel %vm155, %v7088, 0
  %v7141 = vsel %vm155, %v7089, 0
  %v7143 = vand.u32 %v7122, 4294901760
  %7144 = vmatprep.subr.mxu0 %v7143
  %v7145 = vand.u32 %v7121, 4294901760
  %7146 = vmatpush1.msra.mxu0 %v7145
  %v7147 = vand.u32 %v7126, 4294901760
  %7148 = vmatprep.subr.mxu0 %v7147
  %v7149 = vand.u32 %v7125, 4294901760
  %7150 = vmatpush1.msra.mxu0 %v7149
  %7151 = vmatprep.subr.mxu0 0.0
  %7152 = vmatpush1.msra.mxu0 0.0
  %7153 = vmatprep.subr.mxu0 0.0
  %7154 = vmatpush1.msra.mxu0 0.0
  %7155 = vmatprep.subr.mxu0 0.0
  %7156 = vmatpush1.msra.mxu0 0.0
  %7157 = vmatprep.subr.mxu0 0.0
  %7158 = vmatpush1.msra.mxu0 0.0
  %7159 = vmatprep.subr.mxu0 0.0
  %7160 = vmatpush1.msra.mxu0 0.0
  %7161 = vmatprep.subr.mxu0 0.0
  %7162 = vmatpush1.msra.mxu0 0.0
  %7163 = vmatprep.subr.mxu0 0.0
  %7164 = vmatpush1.msra.mxu0 0.0
  %7165 = vmatprep.subr.mxu0 0.0
  %7166 = vmatpush1.msra.mxu0 0.0
  %7167 = vmatprep.subr.mxu0 0.0
  %7168 = vmatpush1.msra.mxu0 0.0
  %7169 = vmatprep.subr.mxu0 0.0
  %7170 = vmatpush1.msra.mxu0 0.0
  %7171 = vmatprep.subr.mxu0 0.0
  %7172 = vmatpush1.msra.mxu0 0.0
  %7173 = vmatprep.subr.mxu0 0.0
  %7174 = vmatpush1.msra.mxu0 0.0
  %7175 = vmatprep.subr.mxu0 0.0
  %7176 = vmatpush1.msra.mxu0 0.0
  %7177 = vmatprep.subr.mxu0 0.0
  %7178 = vmatpush1.msra.mxu0 0.0
  %7179 = vmatprep.subr.mxu0 0.0
  %7180 = vmatpush1.msra.mxu0 0.0
  %7181 = vmatprep.subr.mxu0 0.0
  %7182 = vmatpush1.msra.mxu0 0.0
  %7183 = vmatprep.subr.mxu0 0.0
  %7184 = vmatpush1.msra.mxu0 0.0
  %7185 = vmatprep.subr.mxu0 0.0
  %7186 = vmatpush1.msra.mxu0 0.0
  %7187 = vmatprep.subr.mxu0 0.0
  %7188 = vmatpush1.msra.mxu0 0.0
  %7189 = vmatprep.subr.mxu0 0.0
  %7190 = vmatpush1.msra.mxu0 0.0
  %7191 = vmatprep.subr.mxu0 0.0
  %7192 = vmatpush1.msra.mxu0 0.0
  %7193 = vmatprep.subr.mxu0 0.0
  %7194 = vmatpush1.msra.mxu0 0.0
  %7195 = vmatprep.subr.mxu0 0.0
  %7196 = vmatpush1.msra.mxu0 0.0
  %7197 = vmatprep.subr.mxu0 0.0
  %7198 = vmatpush1.msra.mxu0 0.0
  %7199 = vmatprep.subr.mxu0 0.0
  %7200 = vmatpush1.msra.mxu0 0.0
  %7201 = vmatprep.subr.mxu0 0.0
  %7202 = vmatpush1.msra.mxu0 0.0
  %7203 = vmatprep.subr.mxu0 0.0
  %7204 = vmatpush1.msra.mxu0 0.0
  %7205 = vmatprep.subr.mxu0 0.0
  %7206 = vmatpush1.msra.mxu0 0.0
  %7207 = vmatprep.subr.mxu0 0.0
  %7208 = vmatpush1.msra.mxu0 0.0
  %7209 = vmatprep.subr.mxu0 0.0
  %7210 = vmatpush1.msra.mxu0 0.0
  %7211 = vmatprep.mubr.f32.mxu0 0.0
  %v7212 = vand.u32 %v7138, 4294901760
  %v7213 = vsub.f32 %v7138, %v7212
  %v7214 = vand.u32 %v7213, 4294901760
  %v7215 = vsub.f32 %v7213, %v7214
  %v7216 = vand.u32 %v7215, 4294901760
  %7217 = vmatmul.mubr.f32.gmra.mrb[0].mxu0 %v7216
  %v7218 = vpop.f32.mrb[0].mxu0
  %v7219 = vadd.f32 0.0, %v7218
  %v7220 = vpop.f32.mrb[0].mxu0
  %v7221 = vadd.f32 0.0, %v7220
  %7222 = vmatprep.mubr.f32.mxu0 0.0
  %v7223 = vand.u32 %v7141, 4294901760
  %v7224 = vsub.f32 %v7141, %v7223
  %v7225 = vand.u32 %v7224, 4294901760
  %v7226 = vsub.f32 %v7224, %v7225
  %v7227 = vand.u32 %v7226, 4294901760
  %7228 = vmatmul.mubr.f32.gmra.mrb[0].mxu0 %v7227
  %v7229 = vpop.f32.mrb[0].mxu0
  %v7230 = vadd.f32 0.0, %v7229
  %v7231 = vpop.f32.mrb[0].mxu0
  %v7232 = vadd.f32 0.0, %v7231
  %7233 = vdwg.mxu0
  %v7234 = vand.u32 %v7122, 4294901760
  %v7235 = vsub.f32 %v7122, %v7234
  %v7236 = vand.u32 %v7235, 4294901760
  %v7237 = vsub.f32 %v7235, %v7236
  %v7238 = vand.u32 %v7237, 4294901760
  %7239 = vmatprep.subr.mxu0 %v7238
  %v7240 = vand.u32 %v7121, 4294901760
  %v7241 = vsub.f32 %v7121, %v7240
  %v7242 = vand.u32 %v7241, 4294901760
  %v7243 = vsub.f32 %v7241, %v7242
  %v7244 = vand.u32 %v7243, 4294901760
  %7245 = vmatpush1.msra.mxu0 %v7244
  %v7246 = vand.u32 %v7126, 4294901760
  %v7247 = vsub.f32 %v7126, %v7246
  %v7248 = vand.u32 %v7247, 4294901760
  %v7249 = vsub.f32 %v7247, %v7248
  %v7250 = vand.u32 %v7249, 4294901760
  %7251 = vmatprep.subr.mxu0 %v7250
  %v7252 = vand.u32 %v7125, 4294901760
  %v7253 = vsub.f32 %v7125, %v7252
  %v7254 = vand.u32 %v7253, 4294901760
  %v7255 = vsub.f32 %v7253, %v7254
  %v7256 = vand.u32 %v7255, 4294901760
  %7257 = vmatpush1.msra.mxu0 %v7256
  %7258 = vmatprep.subr.mxu0 0.0
  %7259 = vmatpush1.msra.mxu0 0.0
  %7260 = vmatprep.subr.mxu0 0.0
  %7261 = vmatpush1.msra.mxu0 0.0
  %7262 = vmatprep.subr.mxu0 0.0
  %7263 = vmatpush1.msra.mxu0 0.0
  %7264 = vmatprep.subr.mxu0 0.0
  %7265 = vmatpush1.msra.mxu0 0.0
  %7266 = vmatprep.subr.mxu0 0.0
  %7267 = vmatpush1.msra.mxu0 0.0
  %7268 = vmatprep.subr.mxu0 0.0
  %7269 = vmatpush1.msra.mxu0 0.0
  %7270 = vmatprep.subr.mxu0 0.0
  %7271 = vmatpush1.msra.mxu0 0.0
  %7272 = vmatprep.subr.mxu0 0.0
  %7273 = vmatpush1.msra.mxu0 0.0
  %7274 = vmatprep.subr.mxu0 0.0
  %7275 = vmatpush1.msra.mxu0 0.0
  %7276 = vmatprep.subr.mxu0 0.0
  %7277 = vmatpush1.msra.mxu0 0.0
  %7278 = vmatprep.subr.mxu0 0.0
  %7279 = vmatpush1.msra.mxu0 0.0
  %7280 = vmatprep.subr.mxu0 0.0
  %7281 = vmatpush1.msra.mxu0 0.0
  %7282 = vmatprep.subr.mxu0 0.0
  %7283 = vmatpush1.msra.mxu0 0.0
  %7284 = vmatprep.subr.mxu0 0.0
  %7285 = vmatpush1.msra.mxu0 0.0
  %7286 = vmatprep.subr.mxu0 0.0
  %7287 = vmatpush1.msra.mxu0 0.0
  %7288 = vmatprep.subr.mxu0 0.0
  %7289 = vmatpush1.msra.mxu0 0.0
  %7290 = vmatprep.subr.mxu0 0.0
  %7291 = vmatpush1.msra.mxu0 0.0
  %7292 = vmatprep.subr.mxu0 0.0
  %7293 = vmatpush1.msra.mxu0 0.0
  %7294 = vmatprep.subr.mxu0 0.0
  %7295 = vmatpush1.msra.mxu0 0.0
  %7296 = vmatprep.subr.mxu0 0.0
  %7297 = vmatpush1.msra.mxu0 0.0
  %7298 = vmatprep.subr.mxu0 0.0
  %7299 = vmatpush1.msra.mxu0 0.0
  %7300 = vmatprep.subr.mxu0 0.0
  %7301 = vmatpush1.msra.mxu0 0.0
  %7302 = vmatprep.subr.mxu0 0.0
  %7303 = vmatpush1.msra.mxu0 0.0
  %7304 = vmatprep.subr.mxu0 0.0
  %7305 = vmatpush1.msra.mxu0 0.0
  %7306 = vmatprep.subr.mxu0 0.0
  %7307 = vmatpush1.msra.mxu0 0.0
  %7308 = vmatprep.subr.mxu0 0.0
  %7309 = vmatpush1.msra.mxu0 0.0
  %7310 = vmatprep.subr.mxu0 0.0
  %7311 = vmatpush1.msra.mxu0 0.0
  %7312 = vmatprep.subr.mxu0 0.0
  %7313 = vmatpush1.msra.mxu0 0.0
  %7314 = vmatprep.subr.mxu0 0.0
  %7315 = vmatpush1.msra.mxu0 0.0
  %7316 = vmatprep.subr.mxu0 0.0
  %7317 = vmatpush1.msra.mxu0 0.0
  %7318 = vmatprep.mubr.f32.mxu0 0.0
  %v7319 = vand.u32 %v7138, 4294901760
  %7320 = vmatmul.mubr.f32.gmra.mrb[0].mxu0 %v7319
  %v7321 = vpop.f32.mrb[0].mxu0
  %v7322 = vadd.f32 %v7219, %v7321
  %v7323 = vpop.f32.mrb[0].mxu0
  %v7324 = vadd.f32 %v7221, %v7323
  %7325 = vmatprep.mubr.f32.mxu0 0.0
  %v7326 = vand.u32 %v7141, 4294901760
  %7327 = vmatmul.mubr.f32.gmra.mrb[0].mxu0 %v7326
  %v7328 = vpop.f32.mrb[0].mxu0
  %v7329 = vadd.f32 %v7230, %v7328
  %v7330 = vpop.f32.mrb[0].mxu0
  %v7331 = vadd.f32 %v7232, %v7330
  %7332 = vdwg.mxu0
  %v7333 = vand.u32 %v7122, 4294901760
  %v7334 = vsub.f32 %v7122, %v7333
  %7335 = vmatprep.subr.mxu0 %v7334
  %v7336 = vand.u32 %v7121, 4294901760
  %v7337 = vsub.f32 %v7121, %v7336
  %7338 = vmatpush1.msra.mxu0 %v7337
  %v7339 = vand.u32 %v7126, 4294901760
  %v7340 = vsub.f32 %v7126, %v7339
  %7341 = vmatprep.subr.mxu0 %v7340
  %v7342 = vand.u32 %v7125, 4294901760
  %v7343 = vsub.f32 %v7125, %v7342
  %7344 = vmatpush1.msra.mxu0 %v7343
  %7345 = vmatprep.subr.mxu0 0.0
  %7346 = vmatpush1.msra.mxu0 0.0
  %7347 = vmatprep.subr.mxu0 0.0
  %7348 = vmatpush1.msra.mxu0 0.0
  %7349 = vmatprep.subr.mxu0 0.0
  %7350 = vmatpush1.msra.mxu0 0.0
  %7351 = vmatprep.subr.mxu0 0.0
  %7352 = vmatpush1.msra.mxu0 0.0
  %7353 = vmatprep.subr.mxu0 0.0
  %7354 = vmatpush1.msra.mxu0 0.0
  %7355 = vmatprep.subr.mxu0 0.0
  %7356 = vmatpush1.msra.mxu0 0.0
  %7357 = vmatprep.subr.mxu0 0.0
  %7358 = vmatpush1.msra.mxu0 0.0
  %7359 = vmatprep.subr.mxu0 0.0
  %7360 = vmatpush1.msra.mxu0 0.0
  %7361 = vmatprep.subr.mxu0 0.0
  %7362 = vmatpush1.msra.mxu0 0.0
  %7363 = vmatprep.subr.mxu0 0.0
  %7364 = vmatpush1.msra.mxu0 0.0
  %7365 = vmatprep.subr.mxu0 0.0
  %7366 = vmatpush1.msra.mxu0 0.0
  %7367 = vmatprep.subr.mxu0 0.0
  %7368 = vmatpush1.msra.mxu0 0.0
  %7369 = vmatprep.subr.mxu0 0.0
  %7370 = vmatpush1.msra.mxu0 0.0
  %7371 = vmatprep.subr.mxu0 0.0
  %7372 = vmatpush1.msra.mxu0 0.0
  %7373 = vmatprep.subr.mxu0 0.0
  %7374 = vmatpush1.msra.mxu0 0.0
  %7375 = vmatprep.subr.mxu0 0.0
  %7376 = vmatpush1.msra.mxu0 0.0
  %7377 = vmatprep.subr.mxu0 0.0
  %7378 = vmatpush1.msra.mxu0 0.0
  %7379 = vmatprep.subr.mxu0 0.0
  %7380 = vmatpush1.msra.mxu0 0.0
  %7381 = vmatprep.subr.mxu0 0.0
  %7382 = vmatpush1.msra.mxu0 0.0
  %7383 = vmatprep.subr.mxu0 0.0
  %7384 = vmatpush1.msra.mxu0 0.0
  %7385 = vmatprep.subr.mxu0 0.0
  %7386 = vmatpush1.msra.mxu0 0.0
  %7387 = vmatprep.subr.mxu0 0.0
  %7388 = vmatpush1.msra.mxu0 0.0
  %7389 = vmatprep.subr.mxu0 0.0
  %7390 = vmatpush1.msra.mxu0 0.0
  %7391 = vmatprep.subr.mxu0 0.0
  %7392 = vmatpush1.msra.mxu0 0.0
  %7393 = vmatprep.subr.mxu0 0.0
  %7394 = vmatpush1.msra.mxu0 0.0
  %7395 = vmatprep.subr.mxu0 0.0
  %7396 = vmatpush1.msra.mxu0 0.0
  %7397 = vmatprep.subr.mxu0 0.0
  %7398 = vmatpush1.msra.mxu0 0.0
  %7399 = vmatprep.subr.mxu0 0.0
  %7400 = vmatpush1.msra.mxu0 0.0
  %7401 = vmatprep.subr.mxu0 0.0
  %7402 = vmatpush1.msra.mxu0 0.0
  %7403 = vmatprep.subr.mxu0 0.0
  %7404 = vmatpush1.msra.mxu0 0.0
  %7405 = vmatprep.mubr.f32.mxu0 0.0
  %v7406 = vand.u32 %v7138, 4294901760
  %v7407 = vsub.f32 %v7138, %v7406
  %7408 = vmatmul.mubr.f32.gmra.mrb[0].mxu0 %v7407
  %v7409 = vpop.f32.mrb[0].mxu0
  %v7410 = vadd.f32 %v7322, %v7409
  %v7411 = vpop.f32.mrb[0].mxu0
  %v7412 = vadd.f32 %v7324, %v7411
  %7413 = vmatprep.mubr.f32.mxu0 0.0
  %v7414 = vand.u32 %v7141, 4294901760
  %v7415 = vsub.f32 %v7141, %v7414
  %7416 = vmatmul.mubr.f32.gmra.mrb[0].mxu0 %v7415
  %v7417 = vpop.f32.mrb[0].mxu0
  %v7418 = vadd.f32 %v7329, %v7417
  %v7419 = vpop.f32.mrb[0].mxu0
  %v7420 = vadd.f32 %v7331, %v7419
  %7421 = vdwg.mxu0
  %v7422 = vand.u32 %v7122, 4294901760
  %7423 = vmatprep.subr.mxu0 %v7422
  %v7424 = vand.u32 %v7121, 4294901760
  %7425 = vmatpush1.msra.mxu0 %v7424
  %v7426 = vand.u32 %v7126, 4294901760
  %7427 = vmatprep.subr.mxu0 %v7426
  %v7428 = vand.u32 %v7125, 4294901760
  %7429 = vmatpush1.msra.mxu0 %v7428
  %7430 = vmatprep.subr.mxu0 0.0
  %7431 = vmatpush1.msra.mxu0 0.0
  %7432 = vmatprep.subr.mxu0 0.0
  %7433 = vmatpush1.msra.mxu0 0.0
  %7434 = vmatprep.subr.mxu0 0.0
  %7435 = vmatpush1.msra.mxu0 0.0
  %7436 = vmatprep.subr.mxu0 0.0
  %7437 = vmatpush1.msra.mxu0 0.0
  %7438 = vmatprep.subr.mxu0 0.0
  %7439 = vmatpush1.msra.mxu0 0.0
  %7440 = vmatprep.subr.mxu0 0.0
  %7441 = vmatpush1.msra.mxu0 0.0
  %7442 = vmatprep.subr.mxu0 0.0
  %7443 = vmatpush1.msra.mxu0 0.0
  %7444 = vmatprep.subr.mxu0 0.0
  %7445 = vmatpush1.msra.mxu0 0.0
  %7446 = vmatprep.subr.mxu0 0.0
  %7447 = vmatpush1.msra.mxu0 0.0
  %7448 = vmatprep.subr.mxu0 0.0
  %7449 = vmatpush1.msra.mxu0 0.0
  %7450 = vmatprep.subr.mxu0 0.0
  %7451 = vmatpush1.msra.mxu0 0.0
  %7452 = vmatprep.subr.mxu0 0.0
  %7453 = vmatpush1.msra.mxu0 0.0
  %7454 = vmatprep.subr.mxu0 0.0
  %7455 = vmatpush1.msra.mxu0 0.0
  %7456 = vmatprep.subr.mxu0 0.0
  %7457 = vmatpush1.msra.mxu0 0.0
  %7458 = vmatprep.subr.mxu0 0.0
  %7459 = vmatpush1.msra.mxu0 0.0
  %7460 = vmatprep.subr.mxu0 0.0
  %7461 = vmatpush1.msra.mxu0 0.0
  %7462 = vmatprep.subr.mxu0 0.0
  %7463 = vmatpush1.msra.mxu0 0.0
  %7464 = vmatprep.subr.mxu0 0.0
  %7465 = vmatpush1.msra.mxu0 0.0
  %7466 = vmatprep.subr.mxu0 0.0
  %7467 = vmatpush1.msra.mxu0 0.0
  %7468 = vmatprep.subr.mxu0 0.0
  %7469 = vmatpush1.msra.mxu0 0.0
  %7470 = vmatprep.subr.mxu0 0.0
  %7471 = vmatpush1.msra.mxu0 0.0
  %7472 = vmatprep.subr.mxu0 0.0
  %7473 = vmatpush1.msra.mxu0 0.0
  %7474 = vmatprep.subr.mxu0 0.0
  %7475 = vmatpush1.msra.mxu0 0.0
  %7476 = vmatprep.subr.mxu0 0.0
  %7477 = vmatpush1.msra.mxu0 0.0
  %7478 = vmatprep.subr.mxu0 0.0
  %7479 = vmatpush1.msra.mxu0 0.0
  %7480 = vmatprep.subr.mxu0 0.0
  %7481 = vmatpush1.msra.mxu0 0.0
  %7482 = vmatprep.subr.mxu0 0.0
  %7483 = vmatpush1.msra.mxu0 0.0
  %7484 = vmatprep.subr.mxu0 0.0
  %7485 = vmatpush1.msra.mxu0 0.0
  %7486 = vmatprep.subr.mxu0 0.0
  %7487 = vmatpush1.msra.mxu0 0.0
  %7488 = vmatprep.subr.mxu0 0.0
  %7489 = vmatpush1.msra.mxu0 0.0
  %7490 = vmatprep.mubr.f32.mxu0 0.0
  %v7491 = vand.u32 %v7138, 4294901760
  %v7492 = vsub.f32 %v7138, %v7491
  %v7493 = vand.u32 %v7492, 4294901760
  %7494 = vmatmul.mubr.f32.gmra.mrb[0].mxu0 %v7493
  %v7495 = vpop.f32.mrb[0].mxu0
  %v7496 = vadd.f32 %v7410, %v7495
  %v7497 = vpop.f32.mrb[0].mxu0
  %v7498 = vadd.f32 %v7412, %v7497
  %7499 = vmatprep.mubr.f32.mxu0 0.0
  %v7500 = vand.u32 %v7141, 4294901760
  %v7501 = vsub.f32 %v7141, %v7500
  %v7502 = vand.u32 %v7501, 4294901760
  %7503 = vmatmul.mubr.f32.gmra.mrb[0].mxu0 %v7502
  %v7504 = vpop.f32.mrb[0].mxu0
  %v7505 = vadd.f32 %v7418, %v7504
  %v7506 = vpop.f32.mrb[0].mxu0
  %v7507 = vadd.f32 %v7420, %v7506
  %7508 = vdwg.mxu0
  %v7509 = vand.u32 %v7122, 4294901760
  %v7510 = vsub.f32 %v7122, %v7509
  %v7511 = vand.u32 %v7510, 4294901760
  %7512 = vmatprep.subr.mxu0 %v7511
  %v7513 = vand.u32 %v7121, 4294901760
  %v7514 = vsub.f32 %v7121, %v7513
  %v7515 = vand.u32 %v7514, 4294901760
  %7516 = vmatpush1.msra.mxu0 %v7515
  %v7517 = vand.u32 %v7126, 4294901760
  %v7518 = vsub.f32 %v7126, %v7517
  %v7519 = vand.u32 %v7518, 4294901760
  %7520 = vmatprep.subr.mxu0 %v7519
  %v7521 = vand.u32 %v7125, 4294901760
  %v7522 = vsub.f32 %v7125, %v7521
  %v7523 = vand.u32 %v7522, 4294901760
  %7524 = vmatpush1.msra.mxu0 %v7523
  %7525 = vmatprep.subr.mxu0 0.0
  %7526 = vmatpush1.msra.mxu0 0.0
  %7527 = vmatprep.subr.mxu0 0.0
  %7528 = vmatpush1.msra.mxu0 0.0
  %7529 = vmatprep.subr.mxu0 0.0
  %7530 = vmatpush1.msra.mxu0 0.0
  %7531 = vmatprep.subr.mxu0 0.0
  %7532 = vmatpush1.msra.mxu0 0.0
  %7533 = vmatprep.subr.mxu0 0.0
  %7534 = vmatpush1.msra.mxu0 0.0
  %7535 = vmatprep.subr.mxu0 0.0
  %7536 = vmatpush1.msra.mxu0 0.0
  %7537 = vmatprep.subr.mxu0 0.0
  %7538 = vmatpush1.msra.mxu0 0.0
  %7539 = vmatprep.subr.mxu0 0.0
  %7540 = vmatpush1.msra.mxu0 0.0
  %7541 = vmatprep.subr.mxu0 0.0
  %7542 = vmatpush1.msra.mxu0 0.0
  %7543 = vmatprep.subr.mxu0 0.0
  %7544 = vmatpush1.msra.mxu0 0.0
  %7545 = vmatprep.subr.mxu0 0.0
  %7546 = vmatpush1.msra.mxu0 0.0
  %7547 = vmatprep.subr.mxu0 0.0
  %7548 = vmatpush1.msra.mxu0 0.0
  %7549 = vmatprep.subr.mxu0 0.0
  %7550 = vmatpush1.msra.mxu0 0.0
  %7551 = vmatprep.subr.mxu0 0.0
  %7552 = vmatpush1.msra.mxu0 0.0
  %7553 = vmatprep.subr.mxu0 0.0
  %7554 = vmatpush1.msra.mxu0 0.0
  %7555 = vmatprep.subr.mxu0 0.0
  %7556 = vmatpush1.msra.mxu0 0.0
  %7557 = vmatprep.subr.mxu0 0.0
  %7558 = vmatpush1.msra.mxu0 0.0
  %7559 = vmatprep.subr.mxu0 0.0
  %7560 = vmatpush1.msra.mxu0 0.0
  %7561 = vmatprep.subr.mxu0 0.0
  %7562 = vmatpush1.msra.mxu0 0.0
  %7563 = vmatprep.subr.mxu0 0.0
  %7564 = vmatpush1.msra.mxu0 0.0
  %7565 = vmatprep.subr.mxu0 0.0
  %7566 = vmatpush1.msra.mxu0 0.0
  %7567 = vmatprep.subr.mxu0 0.0
  %7568 = vmatpush1.msra.mxu0 0.0
  %7569 = vmatprep.subr.mxu0 0.0
  %7570 = vmatpush1.msra.mxu0 0.0
  %7571 = vmatprep.subr.mxu0 0.0
  %7572 = vmatpush1.msra.mxu0 0.0
  %7573 = vmatprep.subr.mxu0 0.0
  %7574 = vmatpush1.msra.mxu0 0.0
  %7575 = vmatprep.subr.mxu0 0.0
  %7576 = vmatpush1.msra.mxu0 0.0
  %7577 = vmatprep.subr.mxu0 0.0
  %7578 = vmatpush1.msra.mxu0 0.0
  %7579 = vmatprep.subr.mxu0 0.0
  %7580 = vmatpush1.msra.mxu0 0.0
  %7581 = vmatprep.subr.mxu0 0.0
  %7582 = vmatpush1.msra.mxu0 0.0
  %7583 = vmatprep.subr.mxu0 0.0
  %7584 = vmatpush1.msra.mxu0 0.0
  %7585 = vmatprep.mubr.f32.mxu0 0.0
  %v7586 = vand.u32 %v7138, 4294901760
  %7587 = vmatmul.mubr.f32.gmra.mrb[0].mxu0 %v7586
  %v7588 = vpop.f32.mrb[0].mxu0
  %v7589 = vadd.f32 %v7496, %v7588
  %v7590 = vpop.f32.mrb[0].mxu0
  %v7591 = vadd.f32 %v7498, %v7590
  %7592 = vmatprep.mubr.f32.mxu0 0.0
  %v7593 = vand.u32 %v7141, 4294901760
  %7594 = vmatmul.mubr.f32.gmra.mrb[0].mxu0 %v7593
  %v7595 = vpop.f32.mrb[0].mxu0
  %v7596 = vadd.f32 %v7505, %v7595
  %v7597 = vpop.f32.mrb[0].mxu0
  %v7598 = vadd.f32 %v7507, %v7597
  %7599 = vdwg.mxu0
  %v7600 = vand.u32 %v7122, 4294901760
  %7601 = vmatprep.subr.mxu0 %v7600
  %v7602 = vand.u32 %v7121, 4294901760
  %7603 = vmatpush1.msra.mxu0 %v7602
  %v7604 = vand.u32 %v7126, 4294901760
  %7605 = vmatprep.subr.mxu0 %v7604
  %v7606 = vand.u32 %v7125, 4294901760
  %7607 = vmatpush1.msra.mxu0 %v7606
  %7608 = vmatprep.subr.mxu0 0.0
  %7609 = vmatpush1.msra.mxu0 0.0
  %7610 = vmatprep.subr.mxu0 0.0
  %7611 = vmatpush1.msra.mxu0 0.0
  %7612 = vmatprep.subr.mxu0 0.0
  %7613 = vmatpush1.msra.mxu0 0.0
  %7614 = vmatprep.subr.mxu0 0.0
  %7615 = vmatpush1.msra.mxu0 0.0
  %7616 = vmatprep.subr.mxu0 0.0
  %7617 = vmatpush1.msra.mxu0 0.0
  %7618 = vmatprep.subr.mxu0 0.0
  %7619 = vmatpush1.msra.mxu0 0.0
  %7620 = vmatprep.subr.mxu0 0.0
  %7621 = vmatpush1.msra.mxu0 0.0
  %7622 = vmatprep.subr.mxu0 0.0
  %7623 = vmatpush1.msra.mxu0 0.0
  %7624 = vmatprep.subr.mxu0 0.0
  %7625 = vmatpush1.msra.mxu0 0.0
  %7626 = vmatprep.subr.mxu0 0.0
  %7627 = vmatpush1.msra.mxu0 0.0
  %7628 = vmatprep.subr.mxu0 0.0
  %7629 = vmatpush1.msra.mxu0 0.0
  %7630 = vmatprep.subr.mxu0 0.0
  %7631 = vmatpush1.msra.mxu0 0.0
  %7632 = vmatprep.subr.mxu0 0.0
  %7633 = vmatpush1.msra.mxu0 0.0
  %7634 = vmatprep.subr.mxu0 0.0
  %7635 = vmatpush1.msra.mxu0 0.0
  %7636 = vmatprep.subr.mxu0 0.0
  %7637 = vmatpush1.msra.mxu0 0.0
  %7638 = vmatprep.subr.mxu0 0.0
  %7639 = vmatpush1.msra.mxu0 0.0
  %7640 = vmatprep.subr.mxu0 0.0
  %7641 = vmatpush1.msra.mxu0 0.0
  %7642 = vmatprep.subr.mxu0 0.0
  %7643 = vmatpush1.msra.mxu0 0.0
  %7644 = vmatprep.subr.mxu0 0.0
  %7645 = vmatpush1.msra.mxu0 0.0
  %7646 = vmatprep.subr.mxu0 0.0
  %7647 = vmatpush1.msra.mxu0 0.0
  %7648 = vmatprep.subr.mxu0 0.0
  %7649 = vmatpush1.msra.mxu0 0.0
  %7650 = vmatprep.subr.mxu0 0.0
  %7651 = vmatpush1.msra.mxu0 0.0
  %7652 = vmatprep.subr.mxu0 0.0
  %7653 = vmatpush1.msra.mxu0 0.0
  %7654 = vmatprep.subr.mxu0 0.0
  %7655 = vmatpush1.msra.mxu0 0.0
  %7656 = vmatprep.subr.mxu0 0.0
  %7657 = vmatpush1.msra.mxu0 0.0
  %7658 = vmatprep.subr.mxu0 0.0
  %7659 = vmatpush1.msra.mxu0 0.0
  %7660 = vmatprep.subr.mxu0 0.0
  %7661 = vmatpush1.msra.mxu0 0.0
  %7662 = vmatprep.subr.mxu0 0.0
  %7663 = vmatpush1.msra.mxu0 0.0
  %7664 = vmatprep.subr.mxu0 0.0
  %7665 = vmatpush1.msra.mxu0 0.0
  %7666 = vmatprep.subr.mxu0 0.0
  %7667 = vmatpush1.msra.mxu0 0.0
  %7668 = vmatprep.mubr.f32.mxu0 0.0
  %v7669 = vand.u32 %v7138, 4294901760
  %7670 = vmatmul.mubr.f32.gmra.mrb[0].mxu0 %v7669
  %v7671 = vpop.f32.mrb[0].mxu0
  %v7672 = vadd.f32 %v7589, %v7671
  %v7673 = vpop.f32.mrb[0].mxu0
  %v7674 = vadd.f32 %v7591, %v7673
  %7675 = vmatprep.mubr.f32.mxu0 0.0
  %v7676 = vand.u32 %v7141, 4294901760
  %7677 = vmatmul.mubr.f32.gmra.mrb[0].mxu0 %v7676
  %v7678 = vpop.f32.mrb[0].mxu0
  %v7679 = vadd.f32 %v7596, %v7678
  %v7680 = vpop.f32.mrb[0].mxu0
  %v7681 = vadd.f32 %v7598, %v7680
  %7682 = vdwg.mxu0
  %v7683 = vand.u32 %v7124, 4294901760
  %7684 = vmatprep.subr.mxu0 %v7683
  %v7685 = vand.u32 %v7123, 4294901760
  %7686 = vmatpush1.msra.mxu0 %v7685
  %v7687 = vand.u32 %v7128, 4294901760
  %7688 = vmatprep.subr.mxu0 %v7687
  %v7689 = vand.u32 %v7127, 4294901760
  %7690 = vmatpush1.msra.mxu0 %v7689
  %7691 = vmatprep.subr.mxu0 0.0
  %7692 = vmatpush1.msra.mxu0 0.0
  %7693 = vmatprep.subr.mxu0 0.0
  %7694 = vmatpush1.msra.mxu0 0.0
  %7695 = vmatprep.subr.mxu0 0.0
  %7696 = vmatpush1.msra.mxu0 0.0
  %7697 = vmatprep.subr.mxu0 0.0
  %7698 = vmatpush1.msra.mxu0 0.0
  %7699 = vmatprep.subr.mxu0 0.0
  %7700 = vmatpush1.msra.mxu0 0.0
  %7701 = vmatprep.subr.mxu0 0.0
  %7702 = vmatpush1.msra.mxu0 0.0
  %7703 = vmatprep.subr.mxu0 0.0
  %7704 = vmatpush1.msra.mxu0 0.0
  %7705 = vmatprep.subr.mxu0 0.0
  %7706 = vmatpush1.msra.mxu0 0.0
  %7707 = vmatprep.subr.mxu0 0.0
  %7708 = vmatpush1.msra.mxu0 0.0
  %7709 = vmatprep.subr.mxu0 0.0
  %7710 = vmatpush1.msra.mxu0 0.0
  %7711 = vmatprep.subr.mxu0 0.0
  %7712 = vmatpush1.msra.mxu0 0.0
  %7713 = vmatprep.subr.mxu0 0.0
  %7714 = vmatpush1.msra.mxu0 0.0
  %7715 = vmatprep.subr.mxu0 0.0
  %7716 = vmatpush1.msra.mxu0 0.0
  %7717 = vmatprep.subr.mxu0 0.0
  %7718 = vmatpush1.msra.mxu0 0.0
  %7719 = vmatprep.subr.mxu0 0.0
  %7720 = vmatpush1.msra.mxu0 0.0
  %7721 = vmatprep.subr.mxu0 0.0
  %7722 = vmatpush1.msra.mxu0 0.0
  %7723 = vmatprep.subr.mxu0 0.0
  %7724 = vmatpush1.msra.mxu0 0.0
  %7725 = vmatprep.subr.mxu0 0.0
  %7726 = vmatpush1.msra.mxu0 0.0
  %7727 = vmatprep.subr.mxu0 0.0
  %7728 = vmatpush1.msra.mxu0 0.0
  %7729 = vmatprep.subr.mxu0 0.0
  %7730 = vmatpush1.msra.mxu0 0.0
  %7731 = vmatprep.subr.mxu0 0.0
  %7732 = vmatpush1.msra.mxu0 0.0
  %7733 = vmatprep.subr.mxu0 0.0
  %7734 = vmatpush1.msra.mxu0 0.0
  %7735 = vmatprep.subr.mxu0 0.0
  %7736 = vmatpush1.msra.mxu0 0.0
  %7737 = vmatprep.subr.mxu0 0.0
  %7738 = vmatpush1.msra.mxu0 0.0
  %7739 = vmatprep.subr.mxu0 0.0
  %7740 = vmatpush1.msra.mxu0 0.0
  %7741 = vmatprep.subr.mxu0 0.0
  %7742 = vmatpush1.msra.mxu0 0.0
  %7743 = vmatprep.subr.mxu0 0.0
  %7744 = vmatpush1.msra.mxu0 0.0
  %7745 = vmatprep.subr.mxu0 0.0
  %7746 = vmatpush1.msra.mxu0 0.0
  %7747 = vmatprep.subr.mxu0 0.0
  %7748 = vmatpush1.msra.mxu0 0.0
  %7749 = vmatprep.subr.mxu0 0.0
  %7750 = vmatpush1.msra.mxu0 0.0
  %7751 = vmatprep.mubr.f32.mxu0 0.0
  %v7752 = vand.u32 %v7138, 4294901760
  %v7753 = vsub.f32 %v7138, %v7752
  %v7754 = vand.u32 %v7753, 4294901760
  %v7755 = vsub.f32 %v7753, %v7754
  %v7756 = vand.u32 %v7755, 4294901760
  %7757 = vmatmul.mubr.f32.gmra.mrb[0].mxu0 %v7756
  %v7758 = vpop.f32.mrb[0].mxu0
  %v7759 = vadd.f32 0.0, %v7758
  %v7760 = vpop.f32.mrb[0].mxu0
  %v7761 = vadd.f32 0.0, %v7760
  %7762 = vmatprep.mubr.f32.mxu0 0.0
  %v7763 = vand.u32 %v7141, 4294901760
  %v7764 = vsub.f32 %v7141, %v7763
  %v7765 = vand.u32 %v7764, 4294901760
  %v7766 = vsub.f32 %v7764, %v7765
  %v7767 = vand.u32 %v7766, 4294901760
  %7768 = vmatmul.mubr.f32.gmra.mrb[0].mxu0 %v7767
  %v7769 = vpop.f32.mrb[0].mxu0
  %v7770 = vadd.f32 0.0, %v7769
  %v7771 = vpop.f32.mrb[0].mxu0
  %v7772 = vadd.f32 0.0, %v7771
  %7773 = vdwg.mxu0
  %v7774 = vand.u32 %v7124, 4294901760
  %v7775 = vsub.f32 %v7124, %v7774
  %v7776 = vand.u32 %v7775, 4294901760
  %v7777 = vsub.f32 %v7775, %v7776
  %v7778 = vand.u32 %v7777, 4294901760
  %7779 = vmatprep.subr.mxu0 %v7778
  %v7780 = vand.u32 %v7123, 4294901760
  %v7781 = vsub.f32 %v7123, %v7780
  %v7782 = vand.u32 %v7781, 4294901760
  %v7783 = vsub.f32 %v7781, %v7782
  %v7784 = vand.u32 %v7783, 4294901760
  %7785 = vmatpush1.msra.mxu0 %v7784
  %v7786 = vand.u32 %v7128, 4294901760
  %v7787 = vsub.f32 %v7128, %v7786
  %v7788 = vand.u32 %v7787, 4294901760
  %v7789 = vsub.f32 %v7787, %v7788
  %v7790 = vand.u32 %v7789, 4294901760
  %7791 = vmatprep.subr.mxu0 %v7790
  %v7792 = vand.u32 %v7127, 4294901760
  %v7793 = vsub.f32 %v7127, %v7792
  %v7794 = vand.u32 %v7793, 4294901760
  %v7795 = vsub.f32 %v7793, %v7794
  %v7796 = vand.u32 %v7795, 4294901760
  %7797 = vmatpush1.msra.mxu0 %v7796
  %7798 = vmatprep.subr.mxu0 0.0
  %7799 = vmatpush1.msra.mxu0 0.0
  %7800 = vmatprep.subr.mxu0 0.0
  %7801 = vmatpush1.msra.mxu0 0.0
  %7802 = vmatprep.subr.mxu0 0.0
  %7803 = vmatpush1.msra.mxu0 0.0
  %7804 = vmatprep.subr.mxu0 0.0
  %7805 = vmatpush1.msra.mxu0 0.0
  %7806 = vmatprep.subr.mxu0 0.0
  %7807 = vmatpush1.msra.mxu0 0.0
  %7808 = vmatprep.subr.mxu0 0.0
  %7809 = vmatpush1.msra.mxu0 0.0
  %7810 = vmatprep.subr.mxu0 0.0
  %7811 = vmatpush1.msra.mxu0 0.0
  %7812 = vmatprep.subr.mxu0 0.0
  %7813 = vmatpush1.msra.mxu0 0.0
  %7814 = vmatprep.subr.mxu0 0.0
  %7815 = vmatpush1.msra.mxu0 0.0
  %7816 = vmatprep.subr.mxu0 0.0
  %7817 = vmatpush1.msra.mxu0 0.0
  %7818 = vmatprep.subr.mxu0 0.0
  %7819 = vmatpush1.msra.mxu0 0.0
  %7820 = vmatprep.subr.mxu0 0.0
  %7821 = vmatpush1.msra.mxu0 0.0
  %7822 = vmatprep.subr.mxu0 0.0
  %7823 = vmatpush1.msra.mxu0 0.0
  %7824 = vmatprep.subr.mxu0 0.0
  %7825 = vmatpush1.msra.mxu0 0.0
  %7826 = vmatprep.subr.mxu0 0.0
  %7827 = vmatpush1.msra.mxu0 0.0
  %7828 = vmatprep.subr.mxu0 0.0
  %7829 = vmatpush1.msra.mxu0 0.0
  %7830 = vmatprep.subr.mxu0 0.0
  %7831 = vmatpush1.msra.mxu0 0.0
  %7832 = vmatprep.subr.mxu0 0.0
  %7833 = vmatpush1.msra.mxu0 0.0
  %7834 = vmatprep.subr.mxu0 0.0
  %7835 = vmatpush1.msra.mxu0 0.0
  %7836 = vmatprep.subr.mxu0 0.0
  %7837 = vmatpush1.msra.mxu0 0.0
  %7838 = vmatprep.subr.mxu0 0.0
  %7839 = vmatpush1.msra.mxu0 0.0
  %7840 = vmatprep.subr.mxu0 0.0
  %7841 = vmatpush1.msra.mxu0 0.0
  %7842 = vmatprep.subr.mxu0 0.0
  %7843 = vmatpush1.msra.mxu0 0.0
  %7844 = vmatprep.subr.mxu0 0.0
  %7845 = vmatpush1.msra.mxu0 0.0
  %7846 = vmatprep.subr.mxu0 0.0
  %7847 = vmatpush1.msra.mxu0 0.0
  %7848 = vmatprep.subr.mxu0 0.0
  %7849 = vmatpush1.msra.mxu0 0.0
  %7850 = vmatprep.subr.mxu0 0.0
  %7851 = vmatpush1.msra.mxu0 0.0
  %7852 = vmatprep.subr.mxu0 0.0
  %7853 = vmatpush1.msra.mxu0 0.0
  %7854 = vmatprep.subr.mxu0 0.0
  %7855 = vmatpush1.msra.mxu0 0.0
  %7856 = vmatprep.subr.mxu0 0.0
  %7857 = vmatpush1.msra.mxu0 0.0
  %7858 = vmatprep.mubr.f32.mxu0 0.0
  %v7859 = vand.u32 %v7138, 4294901760
  %7860 = vmatmul.mubr.f32.gmra.mrb[0].mxu0 %v7859
  %v7861 = vpop.f32.mrb[0].mxu0
  %v7862 = vadd.f32 %v7759, %v7861
  %v7863 = vpop.f32.mrb[0].mxu0
  %v7864 = vadd.f32 %v7761, %v7863
  %7865 = vmatprep.mubr.f32.mxu0 0.0
  %v7866 = vand.u32 %v7141, 4294901760
  %7867 = vmatmul.mubr.f32.gmra.mrb[0].mxu0 %v7866
  %v7868 = vpop.f32.mrb[0].mxu0
  %v7869 = vadd.f32 %v7770, %v7868
  %v7870 = vpop.f32.mrb[0].mxu0
  %v7871 = vadd.f32 %v7772, %v7870
  %7872 = vdwg.mxu0
  %v7873 = vand.u32 %v7124, 4294901760
  %v7874 = vsub.f32 %v7124, %v7873
  %7875 = vmatprep.subr.mxu0 %v7874
  %v7876 = vand.u32 %v7123, 4294901760
  %v7877 = vsub.f32 %v7123, %v7876
  %7878 = vmatpush1.msra.mxu0 %v7877
  %v7879 = vand.u32 %v7128, 4294901760
  %v7880 = vsub.f32 %v7128, %v7879
  %7881 = vmatprep.subr.mxu0 %v7880
  %v7882 = vand.u32 %v7127, 4294901760
  %v7883 = vsub.f32 %v7127, %v7882
  %7884 = vmatpush1.msra.mxu0 %v7883
  %7885 = vmatprep.subr.mxu0 0.0
  %7886 = vmatpush1.msra.mxu0 0.0
  %7887 = vmatprep.subr.mxu0 0.0
  %7888 = vmatpush1.msra.mxu0 0.0
  %7889 = vmatprep.subr.mxu0 0.0
  %7890 = vmatpush1.msra.mxu0 0.0
  %7891 = vmatprep.subr.mxu0 0.0
  %7892 = vmatpush1.msra.mxu0 0.0
  %7893 = vmatprep.subr.mxu0 0.0
  %7894 = vmatpush1.msra.mxu0 0.0
  %7895 = vmatprep.subr.mxu0 0.0
  %7896 = vmatpush1.msra.mxu0 0.0
  %7897 = vmatprep.subr.mxu0 0.0
  %7898 = vmatpush1.msra.mxu0 0.0
  %7899 = vmatprep.subr.mxu0 0.0
  %7900 = vmatpush1.msra.mxu0 0.0
  %7901 = vmatprep.subr.mxu0 0.0
  %7902 = vmatpush1.msra.mxu0 0.0
  %7903 = vmatprep.subr.mxu0 0.0
  %7904 = vmatpush1.msra.mxu0 0.0
  %7905 = vmatprep.subr.mxu0 0.0
  %7906 = vmatpush1.msra.mxu0 0.0
  %7907 = vmatprep.subr.mxu0 0.0
  %7908 = vmatpush1.msra.mxu0 0.0
  %7909 = vmatprep.subr.mxu0 0.0
  %7910 = vmatpush1.msra.mxu0 0.0
  %7911 = vmatprep.subr.mxu0 0.0
  %7912 = vmatpush1.msra.mxu0 0.0
  %7913 = vmatprep.subr.mxu0 0.0
  %7914 = vmatpush1.msra.mxu0 0.0
  %7915 = vmatprep.subr.mxu0 0.0
  %7916 = vmatpush1.msra.mxu0 0.0
  %7917 = vmatprep.subr.mxu0 0.0
  %7918 = vmatpush1.msra.mxu0 0.0
  %7919 = vmatprep.subr.mxu0 0.0
  %7920 = vmatpush1.msra.mxu0 0.0
  %7921 = vmatprep.subr.mxu0 0.0
  %7922 = vmatpush1.msra.mxu0 0.0
  %7923 = vmatprep.subr.mxu0 0.0
  %7924 = vmatpush1.msra.mxu0 0.0
  %7925 = vmatprep.subr.mxu0 0.0
  %7926 = vmatpush1.msra.mxu0 0.0
  %7927 = vmatprep.subr.mxu0 0.0
  %7928 = vmatpush1.msra.mxu0 0.0
  %7929 = vmatprep.subr.mxu0 0.0
  %7930 = vmatpush1.msra.mxu0 0.0
  %7931 = vmatprep.subr.mxu0 0.0
  %7932 = vmatpush1.msra.mxu0 0.0
  %7933 = vmatprep.subr.mxu0 0.0
  %7934 = vmatpush1.msra.mxu0 0.0
  %7935 = vmatprep.subr.mxu0 0.0
  %7936 = vmatpush1.msra.mxu0 0.0
  %7937 = vmatprep.subr.mxu0 0.0
  %7938 = vmatpush1.msra.mxu0 0.0
  %7939 = vmatprep.subr.mxu0 0.0
  %7940 = vmatpush1.msra.mxu0 0.0
  %7941 = vmatprep.subr.mxu0 0.0
  %7942 = vmatpush1.msra.mxu0 0.0
  %7943 = vmatprep.subr.mxu0 0.0
  %7944 = vmatpush1.msra.mxu0 0.0
  %7945 = vmatprep.mubr.f32.mxu0 0.0
  %v7946 = vand.u32 %v7138, 4294901760
  %v7947 = vsub.f32 %v7138, %v7946
  %7948 = vmatmul.mubr.f32.gmra.mrb[0].mxu0 %v7947
  %v7949 = vpop.f32.mrb[0].mxu0
  %v7950 = vadd.f32 %v7862, %v7949
  %v7951 = vpop.f32.mrb[0].mxu0
  %v7952 = vadd.f32 %v7864, %v7951
  %7953 = vmatprep.mubr.f32.mxu0 0.0
  %v7954 = vand.u32 %v7141, 4294901760
  %v7955 = vsub.f32 %v7141, %v7954
  %7956 = vmatmul.mubr.f32.gmra.mrb[0].mxu0 %v7955
  %v7957 = vpop.f32.mrb[0].mxu0
  %v7958 = vadd.f32 %v7869, %v7957
  %v7959 = vpop.f32.mrb[0].mxu0
  %v7960 = vadd.f32 %v7871, %v7959
  %7961 = vdwg.mxu0
  %v7962 = vand.u32 %v7124, 4294901760
  %7963 = vmatprep.subr.mxu0 %v7962
  %v7964 = vand.u32 %v7123, 4294901760
  %7965 = vmatpush1.msra.mxu0 %v7964
  %v7966 = vand.u32 %v7128, 4294901760
  %7967 = vmatprep.subr.mxu0 %v7966
  %v7968 = vand.u32 %v7127, 4294901760
  %7969 = vmatpush1.msra.mxu0 %v7968
  %7970 = vmatprep.subr.mxu0 0.0
  %7971 = vmatpush1.msra.mxu0 0.0
  %7972 = vmatprep.subr.mxu0 0.0
  %7973 = vmatpush1.msra.mxu0 0.0
  %7974 = vmatprep.subr.mxu0 0.0
  %7975 = vmatpush1.msra.mxu0 0.0
  %7976 = vmatprep.subr.mxu0 0.0
  %7977 = vmatpush1.msra.mxu0 0.0
  %7978 = vmatprep.subr.mxu0 0.0
  %7979 = vmatpush1.msra.mxu0 0.0
  %7980 = vmatprep.subr.mxu0 0.0
  %7981 = vmatpush1.msra.mxu0 0.0
  %7982 = vmatprep.subr.mxu0 0.0
  %7983 = vmatpush1.msra.mxu0 0.0
  %7984 = vmatprep.subr.mxu0 0.0
  %7985 = vmatpush1.msra.mxu0 0.0
  %7986 = vmatprep.subr.mxu0 0.0
  %7987 = vmatpush1.msra.mxu0 0.0
  %7988 = vmatprep.subr.mxu0 0.0
  %7989 = vmatpush1.msra.mxu0 0.0
  %7990 = vmatprep.subr.mxu0 0.0
  %7991 = vmatpush1.msra.mxu0 0.0
  %7992 = vmatprep.subr.mxu0 0.0
  %7993 = vmatpush1.msra.mxu0 0.0
  %7994 = vmatprep.subr.mxu0 0.0
  %7995 = vmatpush1.msra.mxu0 0.0
  %7996 = vmatprep.subr.mxu0 0.0
  %7997 = vmatpush1.msra.mxu0 0.0
  %7998 = vmatprep.subr.mxu0 0.0
  %7999 = vmatpush1.msra.mxu0 0.0
  %8000 = vmatprep.subr.mxu0 0.0
  %8001 = vmatpush1.msra.mxu0 0.0
  %8002 = vmatprep.subr.mxu0 0.0
  %8003 = vmatpush1.msra.mxu0 0.0
  %8004 = vmatprep.subr.mxu0 0.0
  %8005 = vmatpush1.msra.mxu0 0.0
  %8006 = vmatprep.subr.mxu0 0.0
  %8007 = vmatpush1.msra.mxu0 0.0
  %8008 = vmatprep.subr.mxu0 0.0
  %8009 = vmatpush1.msra.mxu0 0.0
  %8010 = vmatprep.subr.mxu0 0.0
  %8011 = vmatpush1.msra.mxu0 0.0
  %8012 = vmatprep.subr.mxu0 0.0
  %8013 = vmatpush1.msra.mxu0 0.0
  %8014 = vmatprep.subr.mxu0 0.0
  %8015 = vmatpush1.msra.mxu0 0.0
  %8016 = vmatprep.subr.mxu0 0.0
  %8017 = vmatpush1.msra.mxu0 0.0
  %8018 = vmatprep.subr.mxu0 0.0
  %8019 = vmatpush1.msra.mxu0 0.0
  %8020 = vmatprep.subr.mxu0 0.0
  %8021 = vmatpush1.msra.mxu0 0.0
  %8022 = vmatprep.subr.mxu0 0.0
  %8023 = vmatpush1.msra.mxu0 0.0
  %8024 = vmatprep.subr.mxu0 0.0
  %8025 = vmatpush1.msra.mxu0 0.0
  %8026 = vmatprep.subr.mxu0 0.0
  %8027 = vmatpush1.msra.mxu0 0.0
  %8028 = vmatprep.subr.mxu0 0.0
  %8029 = vmatpush1.msra.mxu0 0.0
  %8030 = vmatprep.mubr.f32.mxu0 0.0
  %v8031 = vand.u32 %v7138, 4294901760
  %v8032 = vsub.f32 %v7138, %v8031
  %v8033 = vand.u32 %v8032, 4294901760
  %8034 = vmatmul.mubr.f32.gmra.mrb[0].mxu0 %v8033
  %v8035 = vpop.f32.mrb[0].mxu0
  %v8036 = vadd.f32 %v7950, %v8035
  %v8037 = vpop.f32.mrb[0].mxu0
  %v8038 = vadd.f32 %v7952, %v8037
  %8039 = vmatprep.mubr.f32.mxu0 0.0
  %v8040 = vand.u32 %v7141, 4294901760
  %v8041 = vsub.f32 %v7141, %v8040
  %v8042 = vand.u32 %v8041, 4294901760
  %8043 = vmatmul.mubr.f32.gmra.mrb[0].mxu0 %v8042
  %v8044 = vpop.f32.mrb[0].mxu0
  %v8045 = vadd.f32 %v7958, %v8044
  %v8046 = vpop.f32.mrb[0].mxu0
  %v8047 = vadd.f32 %v7960, %v8046
  %8048 = vdwg.mxu0
  %v8049 = vand.u32 %v7124, 4294901760
  %v8050 = vsub.f32 %v7124, %v8049
  %v8051 = vand.u32 %v8050, 4294901760
  %8052 = vmatprep.subr.mxu0 %v8051
  %v8053 = vand.u32 %v7123, 4294901760
  %v8054 = vsub.f32 %v7123, %v8053
  %v8055 = vand.u32 %v8054, 4294901760
  %8056 = vmatpush1.msra.mxu0 %v8055
  %v8057 = vand.u32 %v7128, 4294901760
  %v8058 = vsub.f32 %v7128, %v8057
  %v8059 = vand.u32 %v8058, 4294901760
  %8060 = vmatprep.subr.mxu0 %v8059
  %v8061 = vand.u32 %v7127, 4294901760
  %v8062 = vsub.f32 %v7127, %v8061
  %v8063 = vand.u32 %v8062, 4294901760
  %8064 = vmatpush1.msra.mxu0 %v8063
  %8065 = vmatprep.subr.mxu0 0.0
  %8066 = vmatpush1.msra.mxu0 0.0
  %8067 = vmatprep.subr.mxu0 0.0
  %8068 = vmatpush1.msra.mxu0 0.0
  %8069 = vmatprep.subr.mxu0 0.0
  %8070 = vmatpush1.msra.mxu0 0.0
  %8071 = vmatprep.subr.mxu0 0.0
  %8072 = vmatpush1.msra.mxu0 0.0
  %8073 = vmatprep.subr.mxu0 0.0
  %8074 = vmatpush1.msra.mxu0 0.0
  %8075 = vmatprep.subr.mxu0 0.0
  %8076 = vmatpush1.msra.mxu0 0.0
  %8077 = vmatprep.subr.mxu0 0.0
  %8078 = vmatpush1.msra.mxu0 0.0
  %8079 = vmatprep.subr.mxu0 0.0
  %8080 = vmatpush1.msra.mxu0 0.0
  %8081 = vmatprep.subr.mxu0 0.0
  %8082 = vmatpush1.msra.mxu0 0.0
  %8083 = vmatprep.subr.mxu0 0.0
  %8084 = vmatpush1.msra.mxu0 0.0
  %8085 = vmatprep.subr.mxu0 0.0
  %8086 = vmatpush1.msra.mxu0 0.0
  %8087 = vmatprep.subr.mxu0 0.0
  %8088 = vmatpush1.msra.mxu0 0.0
  %8089 = vmatprep.subr.mxu0 0.0
  %8090 = vmatpush1.msra.mxu0 0.0
  %8091 = vmatprep.subr.mxu0 0.0
  %8092 = vmatpush1.msra.mxu0 0.0
  %8093 = vmatprep.subr.mxu0 0.0
  %8094 = vmatpush1.msra.mxu0 0.0
  %8095 = vmatprep.subr.mxu0 0.0
  %8096 = vmatpush1.msra.mxu0 0.0
  %8097 = vmatprep.subr.mxu0 0.0
  %8098 = vmatpush1.msra.mxu0 0.0
  %8099 = vmatprep.subr.mxu0 0.0
  %8100 = vmatpush1.msra.mxu0 0.0
  %8101 = vmatprep.subr.mxu0 0.0
  %8102 = vmatpush1.msra.mxu0 0.0
  %8103 = vmatprep.subr.mxu0 0.0
  %8104 = vmatpush1.msra.mxu0 0.0
  %8105 = vmatprep.subr.mxu0 0.0
  %8106 = vmatpush1.msra.mxu0 0.0
  %8107 = vmatprep.subr.mxu0 0.0
  %8108 = vmatpush1.msra.mxu0 0.0
  %8109 = vmatprep.subr.mxu0 0.0
  %8110 = vmatpush1.msra.mxu0 0.0
  %8111 = vmatprep.subr.mxu0 0.0
  %8112 = vmatpush1.msra.mxu0 0.0
  %8113 = vmatprep.subr.mxu0 0.0
  %8114 = vmatpush1.msra.mxu0 0.0
  %8115 = vmatprep.subr.mxu0 0.0
  %8116 = vmatpush1.msra.mxu0 0.0
  %8117 = vmatprep.subr.mxu0 0.0
  %8118 = vmatpush1.msra.mxu0 0.0
  %8119 = vmatprep.subr.mxu0 0.0
  %8120 = vmatpush1.msra.mxu0 0.0
  %8121 = vmatprep.subr.mxu0 0.0
  %8122 = vmatpush1.msra.mxu0 0.0
  %8123 = vmatprep.subr.mxu0 0.0
  %8124 = vmatpush1.msra.mxu0 0.0
  %8125 = vmatprep.mubr.f32.mxu0 0.0
  %v8126 = vand.u32 %v7138, 4294901760
  %8127 = vmatmul.mubr.f32.gmra.mrb[0].mxu0 %v8126
  %v8128 = vpop.f32.mrb[0].mxu0
  %v8129 = vadd.f32 %v8036, %v8128
  %v8130 = vpop.f32.mrb[0].mxu0
  %v8131 = vadd.f32 %v8038, %v8130
  %8132 = vmatprep.mubr.f32.mxu0 0.0
  %v8133 = vand.u32 %v7141, 4294901760
  %8134 = vmatmul.mubr.f32.gmra.mrb[0].mxu0 %v8133
  %v8135 = vpop.f32.mrb[0].mxu0
  %v8136 = vadd.f32 %v8045, %v8135
  %v8137 = vpop.f32.mrb[0].mxu0
  %v8138 = vadd.f32 %v8047, %v8137
  %8139 = vdwg.mxu0
  %v8140 = vand.u32 %v7124, 4294901760
  %8141 = vmatprep.subr.mxu0 %v8140
  %v8142 = vand.u32 %v7123, 4294901760
  %8143 = vmatpush1.msra.mxu0 %v8142
  %v8144 = vand.u32 %v7128, 4294901760
  %8145 = vmatprep.subr.mxu0 %v8144
  %v8146 = vand.u32 %v7127, 4294901760
  %8147 = vmatpush1.msra.mxu0 %v8146
  %8148 = vmatprep.subr.mxu0 0.0
  %8149 = vmatpush1.msra.mxu0 0.0
  %8150 = vmatprep.subr.mxu0 0.0
  %8151 = vmatpush1.msra.mxu0 0.0
  %8152 = vmatprep.subr.mxu0 0.0
  %8153 = vmatpush1.msra.mxu0 0.0
  %8154 = vmatprep.subr.mxu0 0.0
  %8155 = vmatpush1.msra.mxu0 0.0
  %8156 = vmatprep.subr.mxu0 0.0
  %8157 = vmatpush1.msra.mxu0 0.0
  %8158 = vmatprep.subr.mxu0 0.0
  %8159 = vmatpush1.msra.mxu0 0.0
  %8160 = vmatprep.subr.mxu0 0.0
  %8161 = vmatpush1.msra.mxu0 0.0
  %8162 = vmatprep.subr.mxu0 0.0
  %8163 = vmatpush1.msra.mxu0 0.0
  %8164 = vmatprep.subr.mxu0 0.0
  %8165 = vmatpush1.msra.mxu0 0.0
  %8166 = vmatprep.subr.mxu0 0.0
  %8167 = vmatpush1.msra.mxu0 0.0
  %8168 = vmatprep.subr.mxu0 0.0
  %8169 = vmatpush1.msra.mxu0 0.0
  %8170 = vmatprep.subr.mxu0 0.0
  %8171 = vmatpush1.msra.mxu0 0.0
  %8172 = vmatprep.subr.mxu0 0.0
  %8173 = vmatpush1.msra.mxu0 0.0
  %8174 = vmatprep.subr.mxu0 0.0
  %8175 = vmatpush1.msra.mxu0 0.0
  %8176 = vmatprep.subr.mxu0 0.0
  %8177 = vmatpush1.msra.mxu0 0.0
  %8178 = vmatprep.subr.mxu0 0.0
  %8179 = vmatpush1.msra.mxu0 0.0
  %8180 = vmatprep.subr.mxu0 0.0
  %8181 = vmatpush1.msra.mxu0 0.0
  %8182 = vmatprep.subr.mxu0 0.0
  %8183 = vmatpush1.msra.mxu0 0.0
  %8184 = vmatprep.subr.mxu0 0.0
  %8185 = vmatpush1.msra.mxu0 0.0
  %8186 = vmatprep.subr.mxu0 0.0
  %8187 = vmatpush1.msra.mxu0 0.0
  %8188 = vmatprep.subr.mxu0 0.0
  %8189 = vmatpush1.msra.mxu0 0.0
  %8190 = vmatprep.subr.mxu0 0.0
  %8191 = vmatpush1.msra.mxu0 0.0
  %8192 = vmatprep.subr.mxu0 0.0
  %8193 = vmatpush1.msra.mxu0 0.0
  %8194 = vmatprep.subr.mxu0 0.0
  %8195 = vmatpush1.msra.mxu0 0.0
  %8196 = vmatprep.subr.mxu0 0.0
  %8197 = vmatpush1.msra.mxu0 0.0
  %8198 = vmatprep.subr.mxu0 0.0
  %8199 = vmatpush1.msra.mxu0 0.0
  %8200 = vmatprep.subr.mxu0 0.0
  %8201 = vmatpush1.msra.mxu0 0.0
  %8202 = vmatprep.subr.mxu0 0.0
  %8203 = vmatpush1.msra.mxu0 0.0
  %8204 = vmatprep.subr.mxu0 0.0
  %8205 = vmatpush1.msra.mxu0 0.0
  %8206 = vmatprep.subr.mxu0 0.0
  %8207 = vmatpush1.msra.mxu0 0.0
  %8208 = vmatprep.mubr.f32.mxu0 0.0
  %v8209 = vand.u32 %v7138, 4294901760
  %8210 = vmatmul.mubr.f32.gmra.mrb[0].mxu0 %v8209
  %v8211 = vpop.f32.mrb[0].mxu0
  %v8212 = vadd.f32 %v8129, %v8211
  %v8213 = vpop.f32.mrb[0].mxu0
  %v8214 = vadd.f32 %v8131, %v8213
  %8215 = vmatprep.mubr.f32.mxu0 0.0
  %v8216 = vand.u32 %v7141, 4294901760
  %8217 = vmatmul.mubr.f32.gmra.mrb[0].mxu0 %v8216
  %v8218 = vpop.f32.mrb[0].mxu0
  %v8219 = vadd.f32 %v8136, %v8218
  %v8220 = vpop.f32.mrb[0].mxu0
  %v8221 = vadd.f32 %v8138, %v8220
  %8222 = vdwg.mxu0
  %v8223 = vadd.f32 %v7033, %v7672
  %v8224 = vadd.f32 %v7034, %v7674
  %v8225 = vadd.f32 %v7035, %v8212
  %v8226 = vadd.f32 %v7036, %v8214
  %v8227 = vadd.f32 %v7037, %v7679
  %v8228 = vadd.f32 %v7038, %v7681
  %v8229 = vadd.f32 %v7039, %v8219
  %v8230 = vadd.f32 %v7040, %v8221
  %s8231 = scalar_lea.vmem %s3, 7
  %v8232 = vld [vmem:[%s8231] ss:$8 sm:$0xf]
  %v8234 = vlaneseq
  %v8235 = vshrl.u32 %v8234, 7
  %v8236 = vsub.s32 0, %v8235
  %v8237 = vrot.slane %v8232, %v8236
  %v8238 = vlaneseq
  %v8239 = vshrl.u32 %v8238, 7
  %v8240 = vsub.s32 1, %v8239
  %v8241 = vrot.slane %v8232, %v8240
  %v8242 = vlaneseq
  %v8243 = vshrl.u32 %v8242, 7
  %v8244 = vsub.s32 2, %v8243
  %v8245 = vrot.slane %v8232, %v8244
  %v8246 = vlaneseq
  %v8247 = vshrl.u32 %v8246, 7
  %v8248 = vsub.s32 3, %v8247
  %v8249 = vrot.slane %v8232, %v8248
  %8250 = vrot.lane.b32.xlu0 %v8237, 33
  %v8251 = vpop.permute.xlu0 %8250
  %8252 = vrot.lane.b32.xlu0 %v8241, 33
  %v8253 = vpop.permute.xlu0 %8252
  %8254 = vrot.lane.b32.xlu0 %v8245, 33
  %v8255 = vpop.permute.xlu0 %8254
  %8256 = vrot.lane.b32.xlu0 %v8249, 33
  %v8257 = vpop.permute.xlu0 %8256
  %vm8258 = vcmask 269312
  %v8259 = vsel %vm8258, %v8251, %v8253
  %v8260 = vsel %vm8258, %v8253, %v8255
  %v8261 = vsel %vm8258, %v8255, %v8257
  %v8267 = vmul.f32 %v17, %v8251
  %v8268 = vmul.f32 %v18, %v8259
  %v8269 = vmul.f32 %v19, %v8260
  %v8270 = vmul.f32 %v20, %v8261
  %v8271 = vmul.f32 %v57, %v8257
  %v8272 = vmul.f32 %v21, %v8251
  %v8273 = vmul.f32 %v22, %v8259
  %v8274 = vmul.f32 %v23, %v8260
  %v8275 = vmul.f32 %v24, %v8261
  %v8276 = vmul.f32 %v58, %v8257
  %s8277 = scalar_lea.vmem %s1, 112
  %v8278 = vld [vmem:[%s8277] sm:$0xff]
  %v8279 = vld [vmem:[%s8277 + $0x8] sm:$0xff]
  %8290 = vrot.lane.b32.xlu0 %v8267, 95
  %v8291 = vpop.permute.xlu0 %8290
  %8292 = vrot.lane.b32.xlu0 %v8268, 95
  %v8293 = vpop.permute.xlu0 %8292
  %8294 = vrot.lane.b32.xlu0 %v8269, 95
  %v8295 = vpop.permute.xlu0 %8294
  %8296 = vrot.lane.b32.xlu0 %v8270, 95
  %v8297 = vpop.permute.xlu0 %8296
  %8298 = vrot.lane.b32.xlu0 %v8271, 95
  %v8299 = vpop.permute.xlu0 %8298
  %8300 = vrot.lane.b32.xlu0 %v8272, 95
  %v8301 = vpop.permute.xlu0 %8300
  %8302 = vrot.lane.b32.xlu0 %v8273, 95
  %v8303 = vpop.permute.xlu0 %8302
  %8304 = vrot.lane.b32.xlu0 %v8274, 95
  %v8305 = vpop.permute.xlu0 %8304
  %8306 = vrot.lane.b32.xlu0 %v8275, 95
  %v8307 = vpop.permute.xlu0 %8306
  %8308 = vrot.lane.b32.xlu0 %v8276, 95
  %v8309 = vpop.permute.xlu0 %8308
  %vm8310 = vcmask 777216
  %v8311 = vsel %vm8310, %v8291, %v8293
  %v8312 = vsel %vm8310, %v8293, %v8295
  %v8313 = vsel %vm8310, %v8295, %v8297
  %v8314 = vsel %vm8310, %v8297, %v8299
  %v8315 = vsel %vm8310, %v8301, %v8303
  %v8316 = vsel %vm8310, %v8303, %v8305
  %v8317 = vsel %vm8310, %v8305, %v8307
  %v8318 = vsel %vm8310, %v8307, %v8309
  %v8328 = vsel %vm155, %v8278, 0
  %v8331 = vsel %vm155, %v8279, 0
  %v8333 = vand.u32 %v8312, 4294901760
  %8334 = vmatprep.subr.mxu0 %v8333
  %v8335 = vand.u32 %v8311, 4294901760
  %8336 = vmatpush1.msra.mxu0 %v8335
  %v8337 = vand.u32 %v8316, 4294901760
  %8338 = vmatprep.subr.mxu0 %v8337
  %v8339 = vand.u32 %v8315, 4294901760
  %8340 = vmatpush1.msra.mxu0 %v8339
  %8341 = vmatprep.subr.mxu0 0.0
  %8342 = vmatpush1.msra.mxu0 0.0
  %8343 = vmatprep.subr.mxu0 0.0
  %8344 = vmatpush1.msra.mxu0 0.0
  %8345 = vmatprep.subr.mxu0 0.0
  %8346 = vmatpush1.msra.mxu0 0.0
  %8347 = vmatprep.subr.mxu0 0.0
  %8348 = vmatpush1.msra.mxu0 0.0
  %8349 = vmatprep.subr.mxu0 0.0
  %8350 = vmatpush1.msra.mxu0 0.0
  %8351 = vmatprep.subr.mxu0 0.0
  %8352 = vmatpush1.msra.mxu0 0.0
  %8353 = vmatprep.subr.mxu0 0.0
  %8354 = vmatpush1.msra.mxu0 0.0
  %8355 = vmatprep.subr.mxu0 0.0
  %8356 = vmatpush1.msra.mxu0 0.0
  %8357 = vmatprep.subr.mxu0 0.0
  %8358 = vmatpush1.msra.mxu0 0.0
  %8359 = vmatprep.subr.mxu0 0.0
  %8360 = vmatpush1.msra.mxu0 0.0
  %8361 = vmatprep.subr.mxu0 0.0
  %8362 = vmatpush1.msra.mxu0 0.0
  %8363 = vmatprep.subr.mxu0 0.0
  %8364 = vmatpush1.msra.mxu0 0.0
  %8365 = vmatprep.subr.mxu0 0.0
  %8366 = vmatpush1.msra.mxu0 0.0
  %8367 = vmatprep.subr.mxu0 0.0
  %8368 = vmatpush1.msra.mxu0 0.0
  %8369 = vmatprep.subr.mxu0 0.0
  %8370 = vmatpush1.msra.mxu0 0.0
  %8371 = vmatprep.subr.mxu0 0.0
  %8372 = vmatpush1.msra.mxu0 0.0
  %8373 = vmatprep.subr.mxu0 0.0
  %8374 = vmatpush1.msra.mxu0 0.0
  %8375 = vmatprep.subr.mxu0 0.0
  %8376 = vmatpush1.msra.mxu0 0.0
  %8377 = vmatprep.subr.mxu0 0.0
  %8378 = vmatpush1.msra.mxu0 0.0
  %8379 = vmatprep.subr.mxu0 0.0
  %8380 = vmatpush1.msra.mxu0 0.0
  %8381 = vmatprep.subr.mxu0 0.0
  %8382 = vmatpush1.msra.mxu0 0.0
  %8383 = vmatprep.subr.mxu0 0.0
  %8384 = vmatpush1.msra.mxu0 0.0
  %8385 = vmatprep.subr.mxu0 0.0
  %8386 = vmatpush1.msra.mxu0 0.0
  %8387 = vmatprep.subr.mxu0 0.0
  %8388 = vmatpush1.msra.mxu0 0.0
  %8389 = vmatprep.subr.mxu0 0.0
  %8390 = vmatpush1.msra.mxu0 0.0
  %8391 = vmatprep.subr.mxu0 0.0
  %8392 = vmatpush1.msra.mxu0 0.0
  %8393 = vmatprep.subr.mxu0 0.0
  %8394 = vmatpush1.msra.mxu0 0.0
  %8395 = vmatprep.subr.mxu0 0.0
  %8396 = vmatpush1.msra.mxu0 0.0
  %8397 = vmatprep.subr.mxu0 0.0
  %8398 = vmatpush1.msra.mxu0 0.0
  %8399 = vmatprep.subr.mxu0 0.0
  %8400 = vmatpush1.msra.mxu0 0.0
  %8401 = vmatprep.mubr.f32.mxu0 0.0
  %v8402 = vand.u32 %v8328, 4294901760
  %v8403 = vsub.f32 %v8328, %v8402
  %v8404 = vand.u32 %v8403, 4294901760
  %v8405 = vsub.f32 %v8403, %v8404
  %v8406 = vand.u32 %v8405, 4294901760
  %8407 = vmatmul.mubr.f32.gmra.mrb[0].mxu0 %v8406
  %v8408 = vpop.f32.mrb[0].mxu0
  %v8409 = vadd.f32 0.0, %v8408
  %v8410 = vpop.f32.mrb[0].mxu0
  %v8411 = vadd.f32 0.0, %v8410
  %8412 = vmatprep.mubr.f32.mxu0 0.0
  %v8413 = vand.u32 %v8331, 4294901760
  %v8414 = vsub.f32 %v8331, %v8413
  %v8415 = vand.u32 %v8414, 4294901760
  %v8416 = vsub.f32 %v8414, %v8415
  %v8417 = vand.u32 %v8416, 4294901760
  %8418 = vmatmul.mubr.f32.gmra.mrb[0].mxu0 %v8417
  %v8419 = vpop.f32.mrb[0].mxu0
  %v8420 = vadd.f32 0.0, %v8419
  %v8421 = vpop.f32.mrb[0].mxu0
  %v8422 = vadd.f32 0.0, %v8421
  %8423 = vdwg.mxu0
  %v8424 = vand.u32 %v8312, 4294901760
  %v8425 = vsub.f32 %v8312, %v8424
  %v8426 = vand.u32 %v8425, 4294901760
  %v8427 = vsub.f32 %v8425, %v8426
  %v8428 = vand.u32 %v8427, 4294901760
  %8429 = vmatprep.subr.mxu0 %v8428
  %v8430 = vand.u32 %v8311, 4294901760
  %v8431 = vsub.f32 %v8311, %v8430
  %v8432 = vand.u32 %v8431, 4294901760
  %v8433 = vsub.f32 %v8431, %v8432
  %v8434 = vand.u32 %v8433, 4294901760
  %8435 = vmatpush1.msra.mxu0 %v8434
  %v8436 = vand.u32 %v8316, 4294901760
  %v8437 = vsub.f32 %v8316, %v8436
  %v8438 = vand.u32 %v8437, 4294901760
  %v8439 = vsub.f32 %v8437, %v8438
  %v8440 = vand.u32 %v8439, 4294901760
  %8441 = vmatprep.subr.mxu0 %v8440
  %v8442 = vand.u32 %v8315, 4294901760
  %v8443 = vsub.f32 %v8315, %v8442
  %v8444 = vand.u32 %v8443, 4294901760
  %v8445 = vsub.f32 %v8443, %v8444
  %v8446 = vand.u32 %v8445, 4294901760
  %8447 = vmatpush1.msra.mxu0 %v8446
  %8448 = vmatprep.subr.mxu0 0.0
  %8449 = vmatpush1.msra.mxu0 0.0
  %8450 = vmatprep.subr.mxu0 0.0
  %8451 = vmatpush1.msra.mxu0 0.0
  %8452 = vmatprep.subr.mxu0 0.0
  %8453 = vmatpush1.msra.mxu0 0.0
  %8454 = vmatprep.subr.mxu0 0.0
  %8455 = vmatpush1.msra.mxu0 0.0
  %8456 = vmatprep.subr.mxu0 0.0
  %8457 = vmatpush1.msra.mxu0 0.0
  %8458 = vmatprep.subr.mxu0 0.0
  %8459 = vmatpush1.msra.mxu0 0.0
  %8460 = vmatprep.subr.mxu0 0.0
  %8461 = vmatpush1.msra.mxu0 0.0
  %8462 = vmatprep.subr.mxu0 0.0
  %8463 = vmatpush1.msra.mxu0 0.0
  %8464 = vmatprep.subr.mxu0 0.0
  %8465 = vmatpush1.msra.mxu0 0.0
  %8466 = vmatprep.subr.mxu0 0.0
  %8467 = vmatpush1.msra.mxu0 0.0
  %8468 = vmatprep.subr.mxu0 0.0
  %8469 = vmatpush1.msra.mxu0 0.0
  %8470 = vmatprep.subr.mxu0 0.0
  %8471 = vmatpush1.msra.mxu0 0.0
  %8472 = vmatprep.subr.mxu0 0.0
  %8473 = vmatpush1.msra.mxu0 0.0
  %8474 = vmatprep.subr.mxu0 0.0
  %8475 = vmatpush1.msra.mxu0 0.0
  %8476 = vmatprep.subr.mxu0 0.0
  %8477 = vmatpush1.msra.mxu0 0.0
  %8478 = vmatprep.subr.mxu0 0.0
  %8479 = vmatpush1.msra.mxu0 0.0
  %8480 = vmatprep.subr.mxu0 0.0
  %8481 = vmatpush1.msra.mxu0 0.0
  %8482 = vmatprep.subr.mxu0 0.0
  %8483 = vmatpush1.msra.mxu0 0.0
  %8484 = vmatprep.subr.mxu0 0.0
  %8485 = vmatpush1.msra.mxu0 0.0
  %8486 = vmatprep.subr.mxu0 0.0
  %8487 = vmatpush1.msra.mxu0 0.0
  %8488 = vmatprep.subr.mxu0 0.0
  %8489 = vmatpush1.msra.mxu0 0.0
  %8490 = vmatprep.subr.mxu0 0.0
  %8491 = vmatpush1.msra.mxu0 0.0
  %8492 = vmatprep.subr.mxu0 0.0
  %8493 = vmatpush1.msra.mxu0 0.0
  %8494 = vmatprep.subr.mxu0 0.0
  %8495 = vmatpush1.msra.mxu0 0.0
  %8496 = vmatprep.subr.mxu0 0.0
  %8497 = vmatpush1.msra.mxu0 0.0
  %8498 = vmatprep.subr.mxu0 0.0
  %8499 = vmatpush1.msra.mxu0 0.0
  %8500 = vmatprep.subr.mxu0 0.0
  %8501 = vmatpush1.msra.mxu0 0.0
  %8502 = vmatprep.subr.mxu0 0.0
  %8503 = vmatpush1.msra.mxu0 0.0
  %8504 = vmatprep.subr.mxu0 0.0
  %8505 = vmatpush1.msra.mxu0 0.0
  %8506 = vmatprep.subr.mxu0 0.0
  %8507 = vmatpush1.msra.mxu0 0.0
  %8508 = vmatprep.mubr.f32.mxu0 0.0
  %v8509 = vand.u32 %v8328, 4294901760
  %8510 = vmatmul.mubr.f32.gmra.mrb[0].mxu0 %v8509
  %v8511 = vpop.f32.mrb[0].mxu0
  %v8512 = vadd.f32 %v8409, %v8511
  %v8513 = vpop.f32.mrb[0].mxu0
  %v8514 = vadd.f32 %v8411, %v8513
  %8515 = vmatprep.mubr.f32.mxu0 0.0
  %v8516 = vand.u32 %v8331, 4294901760
  %8517 = vmatmul.mubr.f32.gmra.mrb[0].mxu0 %v8516
  %v8518 = vpop.f32.mrb[0].mxu0
  %v8519 = vadd.f32 %v8420, %v8518
  %v8520 = vpop.f32.mrb[0].mxu0
  %v8521 = vadd.f32 %v8422, %v8520
  %8522 = vdwg.mxu0
  %v8523 = vand.u32 %v8312, 4294901760
  %v8524 = vsub.f32 %v8312, %v8523
  %8525 = vmatprep.subr.mxu0 %v8524
  %v8526 = vand.u32 %v8311, 4294901760
  %v8527 = vsub.f32 %v8311, %v8526
  %8528 = vmatpush1.msra.mxu0 %v8527
  %v8529 = vand.u32 %v8316, 4294901760
  %v8530 = vsub.f32 %v8316, %v8529
  %8531 = vmatprep.subr.mxu0 %v8530
  %v8532 = vand.u32 %v8315, 4294901760
  %v8533 = vsub.f32 %v8315, %v8532
  %8534 = vmatpush1.msra.mxu0 %v8533
  %8535 = vmatprep.subr.mxu0 0.0
  %8536 = vmatpush1.msra.mxu0 0.0
  %8537 = vmatprep.subr.mxu0 0.0
  %8538 = vmatpush1.msra.mxu0 0.0
  %8539 = vmatprep.subr.mxu0 0.0
  %8540 = vmatpush1.msra.mxu0 0.0
  %8541 = vmatprep.subr.mxu0 0.0
  %8542 = vmatpush1.msra.mxu0 0.0
  %8543 = vmatprep.subr.mxu0 0.0
  %8544 = vmatpush1.msra.mxu0 0.0
  %8545 = vmatprep.subr.mxu0 0.0
  %8546 = vmatpush1.msra.mxu0 0.0
  %8547 = vmatprep.subr.mxu0 0.0
  %8548 = vmatpush1.msra.mxu0 0.0
  %8549 = vmatprep.subr.mxu0 0.0
  %8550 = vmatpush1.msra.mxu0 0.0
  %8551 = vmatprep.subr.mxu0 0.0
  %8552 = vmatpush1.msra.mxu0 0.0
  %8553 = vmatprep.subr.mxu0 0.0
  %8554 = vmatpush1.msra.mxu0 0.0
  %8555 = vmatprep.subr.mxu0 0.0
  %8556 = vmatpush1.msra.mxu0 0.0
  %8557 = vmatprep.subr.mxu0 0.0
  %8558 = vmatpush1.msra.mxu0 0.0
  %8559 = vmatprep.subr.mxu0 0.0
  %8560 = vmatpush1.msra.mxu0 0.0
  %8561 = vmatprep.subr.mxu0 0.0
  %8562 = vmatpush1.msra.mxu0 0.0
  %8563 = vmatprep.subr.mxu0 0.0
  %8564 = vmatpush1.msra.mxu0 0.0
  %8565 = vmatprep.subr.mxu0 0.0
  %8566 = vmatpush1.msra.mxu0 0.0
  %8567 = vmatprep.subr.mxu0 0.0
  %8568 = vmatpush1.msra.mxu0 0.0
  %8569 = vmatprep.subr.mxu0 0.0
  %8570 = vmatpush1.msra.mxu0 0.0
  %8571 = vmatprep.subr.mxu0 0.0
  %8572 = vmatpush1.msra.mxu0 0.0
  %8573 = vmatprep.subr.mxu0 0.0
  %8574 = vmatpush1.msra.mxu0 0.0
  %8575 = vmatprep.subr.mxu0 0.0
  %8576 = vmatpush1.msra.mxu0 0.0
  %8577 = vmatprep.subr.mxu0 0.0
  %8578 = vmatpush1.msra.mxu0 0.0
  %8579 = vmatprep.subr.mxu0 0.0
  %8580 = vmatpush1.msra.mxu0 0.0
  %8581 = vmatprep.subr.mxu0 0.0
  %8582 = vmatpush1.msra.mxu0 0.0
  %8583 = vmatprep.subr.mxu0 0.0
  %8584 = vmatpush1.msra.mxu0 0.0
  %8585 = vmatprep.subr.mxu0 0.0
  %8586 = vmatpush1.msra.mxu0 0.0
  %8587 = vmatprep.subr.mxu0 0.0
  %8588 = vmatpush1.msra.mxu0 0.0
  %8589 = vmatprep.subr.mxu0 0.0
  %8590 = vmatpush1.msra.mxu0 0.0
  %8591 = vmatprep.subr.mxu0 0.0
  %8592 = vmatpush1.msra.mxu0 0.0
  %8593 = vmatprep.subr.mxu0 0.0
  %8594 = vmatpush1.msra.mxu0 0.0
  %8595 = vmatprep.mubr.f32.mxu0 0.0
  %v8596 = vand.u32 %v8328, 4294901760
  %v8597 = vsub.f32 %v8328, %v8596
  %8598 = vmatmul.mubr.f32.gmra.mrb[0].mxu0 %v8597
  %v8599 = vpop.f32.mrb[0].mxu0
  %v8600 = vadd.f32 %v8512, %v8599
  %v8601 = vpop.f32.mrb[0].mxu0
  %v8602 = vadd.f32 %v8514, %v8601
  %8603 = vmatprep.mubr.f32.mxu0 0.0
  %v8604 = vand.u32 %v8331, 4294901760
  %v8605 = vsub.f32 %v8331, %v8604
  %8606 = vmatmul.mubr.f32.gmra.mrb[0].mxu0 %v8605
  %v8607 = vpop.f32.mrb[0].mxu0
  %v8608 = vadd.f32 %v8519, %v8607
  %v8609 = vpop.f32.mrb[0].mxu0
  %v8610 = vadd.f32 %v8521, %v8609
  %8611 = vdwg.mxu0
  %v8612 = vand.u32 %v8312, 4294901760
  %8613 = vmatprep.subr.mxu0 %v8612
  %v8614 = vand.u32 %v8311, 4294901760
  %8615 = vmatpush1.msra.mxu0 %v8614
  %v8616 = vand.u32 %v8316, 4294901760
  %8617 = vmatprep.subr.mxu0 %v8616
  %v8618 = vand.u32 %v8315, 4294901760
  %8619 = vmatpush1.msra.mxu0 %v8618
  %8620 = vmatprep.subr.mxu0 0.0
  %8621 = vmatpush1.msra.mxu0 0.0
  %8622 = vmatprep.subr.mxu0 0.0
  %8623 = vmatpush1.msra.mxu0 0.0
  %8624 = vmatprep.subr.mxu0 0.0
  %8625 = vmatpush1.msra.mxu0 0.0
  %8626 = vmatprep.subr.mxu0 0.0
  %8627 = vmatpush1.msra.mxu0 0.0
  %8628 = vmatprep.subr.mxu0 0.0
  %8629 = vmatpush1.msra.mxu0 0.0
  %8630 = vmatprep.subr.mxu0 0.0
  %8631 = vmatpush1.msra.mxu0 0.0
  %8632 = vmatprep.subr.mxu0 0.0
  %8633 = vmatpush1.msra.mxu0 0.0
  %8634 = vmatprep.subr.mxu0 0.0
  %8635 = vmatpush1.msra.mxu0 0.0
  %8636 = vmatprep.subr.mxu0 0.0
  %8637 = vmatpush1.msra.mxu0 0.0
  %8638 = vmatprep.subr.mxu0 0.0
  %8639 = vmatpush1.msra.mxu0 0.0
  %8640 = vmatprep.subr.mxu0 0.0
  %8641 = vmatpush1.msra.mxu0 0.0
  %8642 = vmatprep.subr.mxu0 0.0
  %8643 = vmatpush1.msra.mxu0 0.0
  %8644 = vmatprep.subr.mxu0 0.0
  %8645 = vmatpush1.msra.mxu0 0.0
  %8646 = vmatprep.subr.mxu0 0.0
  %8647 = vmatpush1.msra.mxu0 0.0
  %8648 = vmatprep.subr.mxu0 0.0
  %8649 = vmatpush1.msra.mxu0 0.0
  %8650 = vmatprep.subr.mxu0 0.0
  %8651 = vmatpush1.msra.mxu0 0.0
  %8652 = vmatprep.subr.mxu0 0.0
  %8653 = vmatpush1.msra.mxu0 0.0
  %8654 = vmatprep.subr.mxu0 0.0
  %8655 = vmatpush1.msra.mxu0 0.0
  %8656 = vmatprep.subr.mxu0 0.0
  %8657 = vmatpush1.msra.mxu0 0.0
  %8658 = vmatprep.subr.mxu0 0.0
  %8659 = vmatpush1.msra.mxu0 0.0
  %8660 = vmatprep.subr.mxu0 0.0
  %8661 = vmatpush1.msra.mxu0 0.0
  %8662 = vmatprep.subr.mxu0 0.0
  %8663 = vmatpush1.msra.mxu0 0.0
  %8664 = vmatprep.subr.mxu0 0.0
  %8665 = vmatpush1.msra.mxu0 0.0
  %8666 = vmatprep.subr.mxu0 0.0
  %8667 = vmatpush1.msra.mxu0 0.0
  %8668 = vmatprep.subr.mxu0 0.0
  %8669 = vmatpush1.msra.mxu0 0.0
  %8670 = vmatprep.subr.mxu0 0.0
  %8671 = vmatpush1.msra.mxu0 0.0
  %8672 = vmatprep.subr.mxu0 0.0
  %8673 = vmatpush1.msra.mxu0 0.0
  %8674 = vmatprep.subr.mxu0 0.0
  %8675 = vmatpush1.msra.mxu0 0.0
  %8676 = vmatprep.subr.mxu0 0.0
  %8677 = vmatpush1.msra.mxu0 0.0
  %8678 = vmatprep.subr.mxu0 0.0
  %8679 = vmatpush1.msra.mxu0 0.0
  %8680 = vmatprep.mubr.f32.mxu0 0.0
  %v8681 = vand.u32 %v8328, 4294901760
  %v8682 = vsub.f32 %v8328, %v8681
  %v8683 = vand.u32 %v8682, 4294901760
  %8684 = vmatmul.mubr.f32.gmra.mrb[0].mxu0 %v8683
  %v8685 = vpop.f32.mrb[0].mxu0
  %v8686 = vadd.f32 %v8600, %v8685
  %v8687 = vpop.f32.mrb[0].mxu0
  %v8688 = vadd.f32 %v8602, %v8687
  %8689 = vmatprep.mubr.f32.mxu0 0.0
  %v8690 = vand.u32 %v8331, 4294901760
  %v8691 = vsub.f32 %v8331, %v8690
  %v8692 = vand.u32 %v8691, 4294901760
  %8693 = vmatmul.mubr.f32.gmra.mrb[0].mxu0 %v8692
  %v8694 = vpop.f32.mrb[0].mxu0
  %v8695 = vadd.f32 %v8608, %v8694
  %v8696 = vpop.f32.mrb[0].mxu0
  %v8697 = vadd.f32 %v8610, %v8696
  %8698 = vdwg.mxu0
  %v8699 = vand.u32 %v8312, 4294901760
  %v8700 = vsub.f32 %v8312, %v8699
  %v8701 = vand.u32 %v8700, 4294901760
  %8702 = vmatprep.subr.mxu0 %v8701
  %v8703 = vand.u32 %v8311, 4294901760
  %v8704 = vsub.f32 %v8311, %v8703
  %v8705 = vand.u32 %v8704, 4294901760
  %8706 = vmatpush1.msra.mxu0 %v8705
  %v8707 = vand.u32 %v8316, 4294901760
  %v8708 = vsub.f32 %v8316, %v8707
  %v8709 = vand.u32 %v8708, 4294901760
  %8710 = vmatprep.subr.mxu0 %v8709
  %v8711 = vand.u32 %v8315, 4294901760
  %v8712 = vsub.f32 %v8315, %v8711
  %v8713 = vand.u32 %v8712, 4294901760
  %8714 = vmatpush1.msra.mxu0 %v8713
  %8715 = vmatprep.subr.mxu0 0.0
  %8716 = vmatpush1.msra.mxu0 0.0
  %8717 = vmatprep.subr.mxu0 0.0
  %8718 = vmatpush1.msra.mxu0 0.0
  %8719 = vmatprep.subr.mxu0 0.0
  %8720 = vmatpush1.msra.mxu0 0.0
  %8721 = vmatprep.subr.mxu0 0.0
  %8722 = vmatpush1.msra.mxu0 0.0
  %8723 = vmatprep.subr.mxu0 0.0
  %8724 = vmatpush1.msra.mxu0 0.0
  %8725 = vmatprep.subr.mxu0 0.0
  %8726 = vmatpush1.msra.mxu0 0.0
  %8727 = vmatprep.subr.mxu0 0.0
  %8728 = vmatpush1.msra.mxu0 0.0
  %8729 = vmatprep.subr.mxu0 0.0
  %8730 = vmatpush1.msra.mxu0 0.0
  %8731 = vmatprep.subr.mxu0 0.0
  %8732 = vmatpush1.msra.mxu0 0.0
  %8733 = vmatprep.subr.mxu0 0.0
  %8734 = vmatpush1.msra.mxu0 0.0
  %8735 = vmatprep.subr.mxu0 0.0
  %8736 = vmatpush1.msra.mxu0 0.0
  %8737 = vmatprep.subr.mxu0 0.0
  %8738 = vmatpush1.msra.mxu0 0.0
  %8739 = vmatprep.subr.mxu0 0.0
  %8740 = vmatpush1.msra.mxu0 0.0
  %8741 = vmatprep.subr.mxu0 0.0
  %8742 = vmatpush1.msra.mxu0 0.0
  %8743 = vmatprep.subr.mxu0 0.0
  %8744 = vmatpush1.msra.mxu0 0.0
  %8745 = vmatprep.subr.mxu0 0.0
  %8746 = vmatpush1.msra.mxu0 0.0
  %8747 = vmatprep.subr.mxu0 0.0
  %8748 = vmatpush1.msra.mxu0 0.0
  %8749 = vmatprep.subr.mxu0 0.0
  %8750 = vmatpush1.msra.mxu0 0.0
  %8751 = vmatprep.subr.mxu0 0.0
  %8752 = vmatpush1.msra.mxu0 0.0
  %8753 = vmatprep.subr.mxu0 0.0
  %8754 = vmatpush1.msra.mxu0 0.0
  %8755 = vmatprep.subr.mxu0 0.0
  %8756 = vmatpush1.msra.mxu0 0.0
  %8757 = vmatprep.subr.mxu0 0.0
  %8758 = vmatpush1.msra.mxu0 0.0
  %8759 = vmatprep.subr.mxu0 0.0
  %8760 = vmatpush1.msra.mxu0 0.0
  %8761 = vmatprep.subr.mxu0 0.0
  %8762 = vmatpush1.msra.mxu0 0.0
  %8763 = vmatprep.subr.mxu0 0.0
  %8764 = vmatpush1.msra.mxu0 0.0
  %8765 = vmatprep.subr.mxu0 0.0
  %8766 = vmatpush1.msra.mxu0 0.0
  %8767 = vmatprep.subr.mxu0 0.0
  %8768 = vmatpush1.msra.mxu0 0.0
  %8769 = vmatprep.subr.mxu0 0.0
  %8770 = vmatpush1.msra.mxu0 0.0
  %8771 = vmatprep.subr.mxu0 0.0
  %8772 = vmatpush1.msra.mxu0 0.0
  %8773 = vmatprep.subr.mxu0 0.0
  %8774 = vmatpush1.msra.mxu0 0.0
  %8775 = vmatprep.mubr.f32.mxu0 0.0
  %v8776 = vand.u32 %v8328, 4294901760
  %8777 = vmatmul.mubr.f32.gmra.mrb[0].mxu0 %v8776
  %v8778 = vpop.f32.mrb[0].mxu0
  %v8779 = vadd.f32 %v8686, %v8778
  %v8780 = vpop.f32.mrb[0].mxu0
  %v8781 = vadd.f32 %v8688, %v8780
  %8782 = vmatprep.mubr.f32.mxu0 0.0
  %v8783 = vand.u32 %v8331, 4294901760
  %8784 = vmatmul.mubr.f32.gmra.mrb[0].mxu0 %v8783
  %v8785 = vpop.f32.mrb[0].mxu0
  %v8786 = vadd.f32 %v8695, %v8785
  %v8787 = vpop.f32.mrb[0].mxu0
  %v8788 = vadd.f32 %v8697, %v8787
  %8789 = vdwg.mxu0
  %v8790 = vand.u32 %v8312, 4294901760
  %8791 = vmatprep.subr.mxu0 %v8790
  %v8792 = vand.u32 %v8311, 4294901760
  %8793 = vmatpush1.msra.mxu0 %v8792
  %v8794 = vand.u32 %v8316, 4294901760
  %8795 = vmatprep.subr.mxu0 %v8794
  %v8796 = vand.u32 %v8315, 4294901760
  %8797 = vmatpush1.msra.mxu0 %v8796
  %8798 = vmatprep.subr.mxu0 0.0
  %8799 = vmatpush1.msra.mxu0 0.0
  %8800 = vmatprep.subr.mxu0 0.0
  %8801 = vmatpush1.msra.mxu0 0.0
  %8802 = vmatprep.subr.mxu0 0.0
  %8803 = vmatpush1.msra.mxu0 0.0
  %8804 = vmatprep.subr.mxu0 0.0
  %8805 = vmatpush1.msra.mxu0 0.0
  %8806 = vmatprep.subr.mxu0 0.0
  %8807 = vmatpush1.msra.mxu0 0.0
  %8808 = vmatprep.subr.mxu0 0.0
  %8809 = vmatpush1.msra.mxu0 0.0
  %8810 = vmatprep.subr.mxu0 0.0
  %8811 = vmatpush1.msra.mxu0 0.0
  %8812 = vmatprep.subr.mxu0 0.0
  %8813 = vmatpush1.msra.mxu0 0.0
  %8814 = vmatprep.subr.mxu0 0.0
  %8815 = vmatpush1.msra.mxu0 0.0
  %8816 = vmatprep.subr.mxu0 0.0
  %8817 = vmatpush1.msra.mxu0 0.0
  %8818 = vmatprep.subr.mxu0 0.0
  %8819 = vmatpush1.msra.mxu0 0.0
  %8820 = vmatprep.subr.mxu0 0.0
  %8821 = vmatpush1.msra.mxu0 0.0
  %8822 = vmatprep.subr.mxu0 0.0
  %8823 = vmatpush1.msra.mxu0 0.0
  %8824 = vmatprep.subr.mxu0 0.0
  %8825 = vmatpush1.msra.mxu0 0.0
  %8826 = vmatprep.subr.mxu0 0.0
  %8827 = vmatpush1.msra.mxu0 0.0
  %8828 = vmatprep.subr.mxu0 0.0
  %8829 = vmatpush1.msra.mxu0 0.0
  %8830 = vmatprep.subr.mxu0 0.0
  %8831 = vmatpush1.msra.mxu0 0.0
  %8832 = vmatprep.subr.mxu0 0.0
  %8833 = vmatpush1.msra.mxu0 0.0
  %8834 = vmatprep.subr.mxu0 0.0
  %8835 = vmatpush1.msra.mxu0 0.0
  %8836 = vmatprep.subr.mxu0 0.0
  %8837 = vmatpush1.msra.mxu0 0.0
  %8838 = vmatprep.subr.mxu0 0.0
  %8839 = vmatpush1.msra.mxu0 0.0
  %8840 = vmatprep.subr.mxu0 0.0
  %8841 = vmatpush1.msra.mxu0 0.0
  %8842 = vmatprep.subr.mxu0 0.0
  %8843 = vmatpush1.msra.mxu0 0.0
  %8844 = vmatprep.subr.mxu0 0.0
  %8845 = vmatpush1.msra.mxu0 0.0
  %8846 = vmatprep.subr.mxu0 0.0
  %8847 = vmatpush1.msra.mxu0 0.0
  %8848 = vmatprep.subr.mxu0 0.0
  %8849 = vmatpush1.msra.mxu0 0.0
  %8850 = vmatprep.subr.mxu0 0.0
  %8851 = vmatpush1.msra.mxu0 0.0
  %8852 = vmatprep.subr.mxu0 0.0
  %8853 = vmatpush1.msra.mxu0 0.0
  %8854 = vmatprep.subr.mxu0 0.0
  %8855 = vmatpush1.msra.mxu0 0.0
  %8856 = vmatprep.subr.mxu0 0.0
  %8857 = vmatpush1.msra.mxu0 0.0
  %8858 = vmatprep.mubr.f32.mxu0 0.0
  %v8859 = vand.u32 %v8328, 4294901760
  %8860 = vmatmul.mubr.f32.gmra.mrb[0].mxu0 %v8859
  %v8861 = vpop.f32.mrb[0].mxu0
  %v8862 = vadd.f32 %v8779, %v8861
  %v8863 = vpop.f32.mrb[0].mxu0
  %v8864 = vadd.f32 %v8781, %v8863
  %8865 = vmatprep.mubr.f32.mxu0 0.0
  %v8866 = vand.u32 %v8331, 4294901760
  %8867 = vmatmul.mubr.f32.gmra.mrb[0].mxu0 %v8866
  %v8868 = vpop.f32.mrb[0].mxu0
  %v8869 = vadd.f32 %v8786, %v8868
  %v8870 = vpop.f32.mrb[0].mxu0
  %v8871 = vadd.f32 %v8788, %v8870
  %8872 = vdwg.mxu0
  %v8873 = vand.u32 %v8314, 4294901760
  %8874 = vmatprep.subr.mxu0 %v8873
  %v8875 = vand.u32 %v8313, 4294901760
  %8876 = vmatpush1.msra.mxu0 %v8875
  %v8877 = vand.u32 %v8318, 4294901760
  %8878 = vmatprep.subr.mxu0 %v8877
  %v8879 = vand.u32 %v8317, 4294901760
  %8880 = vmatpush1.msra.mxu0 %v8879
  %8881 = vmatprep.subr.mxu0 0.0
  %8882 = vmatpush1.msra.mxu0 0.0
  %8883 = vmatprep.subr.mxu0 0.0
  %8884 = vmatpush1.msra.mxu0 0.0
  %8885 = vmatprep.subr.mxu0 0.0
  %8886 = vmatpush1.msra.mxu0 0.0
  %8887 = vmatprep.subr.mxu0 0.0
  %8888 = vmatpush1.msra.mxu0 0.0
  %8889 = vmatprep.subr.mxu0 0.0
  %8890 = vmatpush1.msra.mxu0 0.0
  %8891 = vmatprep.subr.mxu0 0.0
  %8892 = vmatpush1.msra.mxu0 0.0
  %8893 = vmatprep.subr.mxu0 0.0
  %8894 = vmatpush1.msra.mxu0 0.0
  %8895 = vmatprep.subr.mxu0 0.0
  %8896 = vmatpush1.msra.mxu0 0.0
  %8897 = vmatprep.subr.mxu0 0.0
  %8898 = vmatpush1.msra.mxu0 0.0
  %8899 = vmatprep.subr.mxu0 0.0
  %8900 = vmatpush1.msra.mxu0 0.0
  %8901 = vmatprep.subr.mxu0 0.0
  %8902 = vmatpush1.msra.mxu0 0.0
  %8903 = vmatprep.subr.mxu0 0.0
  %8904 = vmatpush1.msra.mxu0 0.0
  %8905 = vmatprep.subr.mxu0 0.0
  %8906 = vmatpush1.msra.mxu0 0.0
  %8907 = vmatprep.subr.mxu0 0.0
  %8908 = vmatpush1.msra.mxu0 0.0
  %8909 = vmatprep.subr.mxu0 0.0
  %8910 = vmatpush1.msra.mxu0 0.0
  %8911 = vmatprep.subr.mxu0 0.0
  %8912 = vmatpush1.msra.mxu0 0.0
  %8913 = vmatprep.subr.mxu0 0.0
  %8914 = vmatpush1.msra.mxu0 0.0
  %8915 = vmatprep.subr.mxu0 0.0
  %8916 = vmatpush1.msra.mxu0 0.0
  %8917 = vmatprep.subr.mxu0 0.0
  %8918 = vmatpush1.msra.mxu0 0.0
  %8919 = vmatprep.subr.mxu0 0.0
  %8920 = vmatpush1.msra.mxu0 0.0
  %8921 = vmatprep.subr.mxu0 0.0
  %8922 = vmatpush1.msra.mxu0 0.0
  %8923 = vmatprep.subr.mxu0 0.0
  %8924 = vmatpush1.msra.mxu0 0.0
  %8925 = vmatprep.subr.mxu0 0.0
  %8926 = vmatpush1.msra.mxu0 0.0
  %8927 = vmatprep.subr.mxu0 0.0
  %8928 = vmatpush1.msra.mxu0 0.0
  %8929 = vmatprep.subr.mxu0 0.0
  %8930 = vmatpush1.msra.mxu0 0.0
  %8931 = vmatprep.subr.mxu0 0.0
  %8932 = vmatpush1.msra.mxu0 0.0
  %8933 = vmatprep.subr.mxu0 0.0
  %8934 = vmatpush1.msra.mxu0 0.0
  %8935 = vmatprep.subr.mxu0 0.0
  %8936 = vmatpush1.msra.mxu0 0.0
  %8937 = vmatprep.subr.mxu0 0.0
  %8938 = vmatpush1.msra.mxu0 0.0
  %8939 = vmatprep.subr.mxu0 0.0
  %8940 = vmatpush1.msra.mxu0 0.0
  %8941 = vmatprep.mubr.f32.mxu0 0.0
  %v8942 = vand.u32 %v8328, 4294901760
  %v8943 = vsub.f32 %v8328, %v8942
  %v8944 = vand.u32 %v8943, 4294901760
  %v8945 = vsub.f32 %v8943, %v8944
  %v8946 = vand.u32 %v8945, 4294901760
  %8947 = vmatmul.mubr.f32.gmra.mrb[0].mxu0 %v8946
  %v8948 = vpop.f32.mrb[0].mxu0
  %v8949 = vadd.f32 0.0, %v8948
  %v8950 = vpop.f32.mrb[0].mxu0
  %v8951 = vadd.f32 0.0, %v8950
  %8952 = vmatprep.mubr.f32.mxu0 0.0
  %v8953 = vand.u32 %v8331, 4294901760
  %v8954 = vsub.f32 %v8331, %v8953
  %v8955 = vand.u32 %v8954, 4294901760
  %v8956 = vsub.f32 %v8954, %v8955
  %v8957 = vand.u32 %v8956, 4294901760
  %8958 = vmatmul.mubr.f32.gmra.mrb[0].mxu0 %v8957
  %v8959 = vpop.f32.mrb[0].mxu0
  %v8960 = vadd.f32 0.0, %v8959
  %v8961 = vpop.f32.mrb[0].mxu0
  %v8962 = vadd.f32 0.0, %v8961
  %8963 = vdwg.mxu0
  %v8964 = vand.u32 %v8314, 4294901760
  %v8965 = vsub.f32 %v8314, %v8964
  %v8966 = vand.u32 %v8965, 4294901760
  %v8967 = vsub.f32 %v8965, %v8966
  %v8968 = vand.u32 %v8967, 4294901760
  %8969 = vmatprep.subr.mxu0 %v8968
  %v8970 = vand.u32 %v8313, 4294901760
  %v8971 = vsub.f32 %v8313, %v8970
  %v8972 = vand.u32 %v8971, 4294901760
  %v8973 = vsub.f32 %v8971, %v8972
  %v8974 = vand.u32 %v8973, 4294901760
  %8975 = vmatpush1.msra.mxu0 %v8974
  %v8976 = vand.u32 %v8318, 4294901760
  %v8977 = vsub.f32 %v8318, %v8976
  %v8978 = vand.u32 %v8977, 4294901760
  %v8979 = vsub.f32 %v8977, %v8978
  %v8980 = vand.u32 %v8979, 4294901760
  %8981 = vmatprep.subr.mxu0 %v8980
  %v8982 = vand.u32 %v8317, 4294901760
  %v8983 = vsub.f32 %v8317, %v8982
  %v8984 = vand.u32 %v8983, 4294901760
  %v8985 = vsub.f32 %v8983, %v8984
  %v8986 = vand.u32 %v8985, 4294901760
  %8987 = vmatpush1.msra.mxu0 %v8986
  %8988 = vmatprep.subr.mxu0 0.0
  %8989 = vmatpush1.msra.mxu0 0.0
  %8990 = vmatprep.subr.mxu0 0.0
  %8991 = vmatpush1.msra.mxu0 0.0
  %8992 = vmatprep.subr.mxu0 0.0
  %8993 = vmatpush1.msra.mxu0 0.0
  %8994 = vmatprep.subr.mxu0 0.0
  %8995 = vmatpush1.msra.mxu0 0.0
  %8996 = vmatprep.subr.mxu0 0.0
  %8997 = vmatpush1.msra.mxu0 0.0
  %8998 = vmatprep.subr.mxu0 0.0
  %8999 = vmatpush1.msra.mxu0 0.0
  %9000 = vmatprep.subr.mxu0 0.0
  %9001 = vmatpush1.msra.mxu0 0.0
  %9002 = vmatprep.subr.mxu0 0.0
  %9003 = vmatpush1.msra.mxu0 0.0
  %9004 = vmatprep.subr.mxu0 0.0
  %9005 = vmatpush1.msra.mxu0 0.0
  %9006 = vmatprep.subr.mxu0 0.0
  %9007 = vmatpush1.msra.mxu0 0.0
  %9008 = vmatprep.subr.mxu0 0.0
  %9009 = vmatpush1.msra.mxu0 0.0
  %9010 = vmatprep.subr.mxu0 0.0
  %9011 = vmatpush1.msra.mxu0 0.0
  %9012 = vmatprep.subr.mxu0 0.0
  %9013 = vmatpush1.msra.mxu0 0.0
  %9014 = vmatprep.subr.mxu0 0.0
  %9015 = vmatpush1.msra.mxu0 0.0
  %9016 = vmatprep.subr.mxu0 0.0
  %9017 = vmatpush1.msra.mxu0 0.0
  %9018 = vmatprep.subr.mxu0 0.0
  %9019 = vmatpush1.msra.mxu0 0.0
  %9020 = vmatprep.subr.mxu0 0.0
  %9021 = vmatpush1.msra.mxu0 0.0
  %9022 = vmatprep.subr.mxu0 0.0
  %9023 = vmatpush1.msra.mxu0 0.0
  %9024 = vmatprep.subr.mxu0 0.0
  %9025 = vmatpush1.msra.mxu0 0.0
  %9026 = vmatprep.subr.mxu0 0.0
  %9027 = vmatpush1.msra.mxu0 0.0
  %9028 = vmatprep.subr.mxu0 0.0
  %9029 = vmatpush1.msra.mxu0 0.0
  %9030 = vmatprep.subr.mxu0 0.0
  %9031 = vmatpush1.msra.mxu0 0.0
  %9032 = vmatprep.subr.mxu0 0.0
  %9033 = vmatpush1.msra.mxu0 0.0
  %9034 = vmatprep.subr.mxu0 0.0
  %9035 = vmatpush1.msra.mxu0 0.0
  %9036 = vmatprep.subr.mxu0 0.0
  %9037 = vmatpush1.msra.mxu0 0.0
  %9038 = vmatprep.subr.mxu0 0.0
  %9039 = vmatpush1.msra.mxu0 0.0
  %9040 = vmatprep.subr.mxu0 0.0
  %9041 = vmatpush1.msra.mxu0 0.0
  %9042 = vmatprep.subr.mxu0 0.0
  %9043 = vmatpush1.msra.mxu0 0.0
  %9044 = vmatprep.subr.mxu0 0.0
  %9045 = vmatpush1.msra.mxu0 0.0
  %9046 = vmatprep.subr.mxu0 0.0
  %9047 = vmatpush1.msra.mxu0 0.0
  %9048 = vmatprep.mubr.f32.mxu0 0.0
  %v9049 = vand.u32 %v8328, 4294901760
  %9050 = vmatmul.mubr.f32.gmra.mrb[0].mxu0 %v9049
  %v9051 = vpop.f32.mrb[0].mxu0
  %v9052 = vadd.f32 %v8949, %v9051
  %v9053 = vpop.f32.mrb[0].mxu0
  %v9054 = vadd.f32 %v8951, %v9053
  %9055 = vmatprep.mubr.f32.mxu0 0.0
  %v9056 = vand.u32 %v8331, 4294901760
  %9057 = vmatmul.mubr.f32.gmra.mrb[0].mxu0 %v9056
  %v9058 = vpop.f32.mrb[0].mxu0
  %v9059 = vadd.f32 %v8960, %v9058
  %v9060 = vpop.f32.mrb[0].mxu0
  %v9061 = vadd.f32 %v8962, %v9060
  %9062 = vdwg.mxu0
  %v9063 = vand.u32 %v8314, 4294901760
  %v9064 = vsub.f32 %v8314, %v9063
  %9065 = vmatprep.subr.mxu0 %v9064
  %v9066 = vand.u32 %v8313, 4294901760
  %v9067 = vsub.f32 %v8313, %v9066
  %9068 = vmatpush1.msra.mxu0 %v9067
  %v9069 = vand.u32 %v8318, 4294901760
  %v9070 = vsub.f32 %v8318, %v9069
  %9071 = vmatprep.subr.mxu0 %v9070
  %v9072 = vand.u32 %v8317, 4294901760
  %v9073 = vsub.f32 %v8317, %v9072
  %9074 = vmatpush1.msra.mxu0 %v9073
  %9075 = vmatprep.subr.mxu0 0.0
  %9076 = vmatpush1.msra.mxu0 0.0
  %9077 = vmatprep.subr.mxu0 0.0
  %9078 = vmatpush1.msra.mxu0 0.0
  %9079 = vmatprep.subr.mxu0 0.0
  %9080 = vmatpush1.msra.mxu0 0.0
  %9081 = vmatprep.subr.mxu0 0.0
  %9082 = vmatpush1.msra.mxu0 0.0
  %9083 = vmatprep.subr.mxu0 0.0
  %9084 = vmatpush1.msra.mxu0 0.0
  %9085 = vmatprep.subr.mxu0 0.0
  %9086 = vmatpush1.msra.mxu0 0.0
  %9087 = vmatprep.subr.mxu0 0.0
  %9088 = vmatpush1.msra.mxu0 0.0
  %9089 = vmatprep.subr.mxu0 0.0
  %9090 = vmatpush1.msra.mxu0 0.0
  %9091 = vmatprep.subr.mxu0 0.0
  %9092 = vmatpush1.msra.mxu0 0.0
  %9093 = vmatprep.subr.mxu0 0.0
  %9094 = vmatpush1.msra.mxu0 0.0
  %9095 = vmatprep.subr.mxu0 0.0
  %9096 = vmatpush1.msra.mxu0 0.0
  %9097 = vmatprep.subr.mxu0 0.0
  %9098 = vmatpush1.msra.mxu0 0.0
  %9099 = vmatprep.subr.mxu0 0.0
  %9100 = vmatpush1.msra.mxu0 0.0
  %9101 = vmatprep.subr.mxu0 0.0
  %9102 = vmatpush1.msra.mxu0 0.0
  %9103 = vmatprep.subr.mxu0 0.0
  %9104 = vmatpush1.msra.mxu0 0.0
  %9105 = vmatprep.subr.mxu0 0.0
  %9106 = vmatpush1.msra.mxu0 0.0
  %9107 = vmatprep.subr.mxu0 0.0
  %9108 = vmatpush1.msra.mxu0 0.0
  %9109 = vmatprep.subr.mxu0 0.0
  %9110 = vmatpush1.msra.mxu0 0.0
  %9111 = vmatprep.subr.mxu0 0.0
  %9112 = vmatpush1.msra.mxu0 0.0
  %9113 = vmatprep.subr.mxu0 0.0
  %9114 = vmatpush1.msra.mxu0 0.0
  %9115 = vmatprep.subr.mxu0 0.0
  %9116 = vmatpush1.msra.mxu0 0.0
  %9117 = vmatprep.subr.mxu0 0.0
  %9118 = vmatpush1.msra.mxu0 0.0
  %9119 = vmatprep.subr.mxu0 0.0
  %9120 = vmatpush1.msra.mxu0 0.0
  %9121 = vmatprep.subr.mxu0 0.0
  %9122 = vmatpush1.msra.mxu0 0.0
  %9123 = vmatprep.subr.mxu0 0.0
  %9124 = vmatpush1.msra.mxu0 0.0
  %9125 = vmatprep.subr.mxu0 0.0
  %9126 = vmatpush1.msra.mxu0 0.0
  %9127 = vmatprep.subr.mxu0 0.0
  %9128 = vmatpush1.msra.mxu0 0.0
  %9129 = vmatprep.subr.mxu0 0.0
  %9130 = vmatpush1.msra.mxu0 0.0
  %9131 = vmatprep.subr.mxu0 0.0
  %9132 = vmatpush1.msra.mxu0 0.0
  %9133 = vmatprep.subr.mxu0 0.0
  %9134 = vmatpush1.msra.mxu0 0.0
  %9135 = vmatprep.mubr.f32.mxu0 0.0
  %v9136 = vand.u32 %v8328, 4294901760
  %v9137 = vsub.f32 %v8328, %v9136
  %9138 = vmatmul.mubr.f32.gmra.mrb[0].mxu0 %v9137
  %v9139 = vpop.f32.mrb[0].mxu0
  %v9140 = vadd.f32 %v9052, %v9139
  %v9141 = vpop.f32.mrb[0].mxu0
  %v9142 = vadd.f32 %v9054, %v9141
  %9143 = vmatprep.mubr.f32.mxu0 0.0
  %v9144 = vand.u32 %v8331, 4294901760
  %v9145 = vsub.f32 %v8331, %v9144
  %9146 = vmatmul.mubr.f32.gmra.mrb[0].mxu0 %v9145
  %v9147 = vpop.f32.mrb[0].mxu0
  %v9148 = vadd.f32 %v9059, %v9147
  %v9149 = vpop.f32.mrb[0].mxu0
  %v9150 = vadd.f32 %v9061, %v9149
  %9151 = vdwg.mxu0
  %v9152 = vand.u32 %v8314, 4294901760
  %9153 = vmatprep.subr.mxu0 %v9152
  %v9154 = vand.u32 %v8313, 4294901760
  %9155 = vmatpush1.msra.mxu0 %v9154
  %v9156 = vand.u32 %v8318, 4294901760
  %9157 = vmatprep.subr.mxu0 %v9156
  %v9158 = vand.u32 %v8317, 4294901760
  %9159 = vmatpush1.msra.mxu0 %v9158
  %9160 = vmatprep.subr.mxu0 0.0
  %9161 = vmatpush1.msra.mxu0 0.0
  %9162 = vmatprep.subr.mxu0 0.0
  %9163 = vmatpush1.msra.mxu0 0.0
  %9164 = vmatprep.subr.mxu0 0.0
  %9165 = vmatpush1.msra.mxu0 0.0
  %9166 = vmatprep.subr.mxu0 0.0
  %9167 = vmatpush1.msra.mxu0 0.0
  %9168 = vmatprep.subr.mxu0 0.0
  %9169 = vmatpush1.msra.mxu0 0.0
  %9170 = vmatprep.subr.mxu0 0.0
  %9171 = vmatpush1.msra.mxu0 0.0
  %9172 = vmatprep.subr.mxu0 0.0
  %9173 = vmatpush1.msra.mxu0 0.0
  %9174 = vmatprep.subr.mxu0 0.0
  %9175 = vmatpush1.msra.mxu0 0.0
  %9176 = vmatprep.subr.mxu0 0.0
  %9177 = vmatpush1.msra.mxu0 0.0
  %9178 = vmatprep.subr.mxu0 0.0
  %9179 = vmatpush1.msra.mxu0 0.0
  %9180 = vmatprep.subr.mxu0 0.0
  %9181 = vmatpush1.msra.mxu0 0.0
  %9182 = vmatprep.subr.mxu0 0.0
  %9183 = vmatpush1.msra.mxu0 0.0
  %9184 = vmatprep.subr.mxu0 0.0
  %9185 = vmatpush1.msra.mxu0 0.0
  %9186 = vmatprep.subr.mxu0 0.0
  %9187 = vmatpush1.msra.mxu0 0.0
  %9188 = vmatprep.subr.mxu0 0.0
  %9189 = vmatpush1.msra.mxu0 0.0
  %9190 = vmatprep.subr.mxu0 0.0
  %9191 = vmatpush1.msra.mxu0 0.0
  %9192 = vmatprep.subr.mxu0 0.0
  %9193 = vmatpush1.msra.mxu0 0.0
  %9194 = vmatprep.subr.mxu0 0.0
  %9195 = vmatpush1.msra.mxu0 0.0
  %9196 = vmatprep.subr.mxu0 0.0
  %9197 = vmatpush1.msra.mxu0 0.0
  %9198 = vmatprep.subr.mxu0 0.0
  %9199 = vmatpush1.msra.mxu0 0.0
  %9200 = vmatprep.subr.mxu0 0.0
  %9201 = vmatpush1.msra.mxu0 0.0
  %9202 = vmatprep.subr.mxu0 0.0
  %9203 = vmatpush1.msra.mxu0 0.0
  %9204 = vmatprep.subr.mxu0 0.0
  %9205 = vmatpush1.msra.mxu0 0.0
  %9206 = vmatprep.subr.mxu0 0.0
  %9207 = vmatpush1.msra.mxu0 0.0
  %9208 = vmatprep.subr.mxu0 0.0
  %9209 = vmatpush1.msra.mxu0 0.0
  %9210 = vmatprep.subr.mxu0 0.0
  %9211 = vmatpush1.msra.mxu0 0.0
  %9212 = vmatprep.subr.mxu0 0.0
  %9213 = vmatpush1.msra.mxu0 0.0
  %9214 = vmatprep.subr.mxu0 0.0
  %9215 = vmatpush1.msra.mxu0 0.0
  %9216 = vmatprep.subr.mxu0 0.0
  %9217 = vmatpush1.msra.mxu0 0.0
  %9218 = vmatprep.subr.mxu0 0.0
  %9219 = vmatpush1.msra.mxu0 0.0
  %9220 = vmatprep.mubr.f32.mxu0 0.0
  %v9221 = vand.u32 %v8328, 4294901760
  %v9222 = vsub.f32 %v8328, %v9221
  %v9223 = vand.u32 %v9222, 4294901760
  %9224 = vmatmul.mubr.f32.gmra.mrb[0].mxu0 %v9223
  %v9225 = vpop.f32.mrb[0].mxu0
  %v9226 = vadd.f32 %v9140, %v9225
  %v9227 = vpop.f32.mrb[0].mxu0
  %v9228 = vadd.f32 %v9142, %v9227
  %9229 = vmatprep.mubr.f32.mxu0 0.0
  %v9230 = vand.u32 %v8331, 4294901760
  %v9231 = vsub.f32 %v8331, %v9230
  %v9232 = vand.u32 %v9231, 4294901760
  %9233 = vmatmul.mubr.f32.gmra.mrb[0].mxu0 %v9232
  %v9234 = vpop.f32.mrb[0].mxu0
  %v9235 = vadd.f32 %v9148, %v9234
  %v9236 = vpop.f32.mrb[0].mxu0
  %v9237 = vadd.f32 %v9150, %v9236
  %9238 = vdwg.mxu0
  %v9239 = vand.u32 %v8314, 4294901760
  %v9240 = vsub.f32 %v8314, %v9239
  %v9241 = vand.u32 %v9240, 4294901760
  %9242 = vmatprep.subr.mxu0 %v9241
  %v9243 = vand.u32 %v8313, 4294901760
  %v9244 = vsub.f32 %v8313, %v9243
  %v9245 = vand.u32 %v9244, 4294901760
  %9246 = vmatpush1.msra.mxu0 %v9245
  %v9247 = vand.u32 %v8318, 4294901760
  %v9248 = vsub.f32 %v8318, %v9247
  %v9249 = vand.u32 %v9248, 4294901760
  %9250 = vmatprep.subr.mxu0 %v9249
  %v9251 = vand.u32 %v8317, 4294901760
  %v9252 = vsub.f32 %v8317, %v9251
  %v9253 = vand.u32 %v9252, 4294901760
  %9254 = vmatpush1.msra.mxu0 %v9253
  %9255 = vmatprep.subr.mxu0 0.0
  %9256 = vmatpush1.msra.mxu0 0.0
  %9257 = vmatprep.subr.mxu0 0.0
  %9258 = vmatpush1.msra.mxu0 0.0
  %9259 = vmatprep.subr.mxu0 0.0
  %9260 = vmatpush1.msra.mxu0 0.0
  %9261 = vmatprep.subr.mxu0 0.0
  %9262 = vmatpush1.msra.mxu0 0.0
  %9263 = vmatprep.subr.mxu0 0.0
  %9264 = vmatpush1.msra.mxu0 0.0
  %9265 = vmatprep.subr.mxu0 0.0
  %9266 = vmatpush1.msra.mxu0 0.0
  %9267 = vmatprep.subr.mxu0 0.0
  %9268 = vmatpush1.msra.mxu0 0.0
  %9269 = vmatprep.subr.mxu0 0.0
  %9270 = vmatpush1.msra.mxu0 0.0
  %9271 = vmatprep.subr.mxu0 0.0
  %9272 = vmatpush1.msra.mxu0 0.0
  %9273 = vmatprep.subr.mxu0 0.0
  %9274 = vmatpush1.msra.mxu0 0.0
  %9275 = vmatprep.subr.mxu0 0.0
  %9276 = vmatpush1.msra.mxu0 0.0
  %9277 = vmatprep.subr.mxu0 0.0
  %9278 = vmatpush1.msra.mxu0 0.0
  %9279 = vmatprep.subr.mxu0 0.0
  %9280 = vmatpush1.msra.mxu0 0.0
  %9281 = vmatprep.subr.mxu0 0.0
  %9282 = vmatpush1.msra.mxu0 0.0
  %9283 = vmatprep.subr.mxu0 0.0
  %9284 = vmatpush1.msra.mxu0 0.0
  %9285 = vmatprep.subr.mxu0 0.0
  %9286 = vmatpush1.msra.mxu0 0.0
  %9287 = vmatprep.subr.mxu0 0.0
  %9288 = vmatpush1.msra.mxu0 0.0
  %9289 = vmatprep.subr.mxu0 0.0
  %9290 = vmatpush1.msra.mxu0 0.0
  %9291 = vmatprep.subr.mxu0 0.0
  %9292 = vmatpush1.msra.mxu0 0.0
  %9293 = vmatprep.subr.mxu0 0.0
  %9294 = vmatpush1.msra.mxu0 0.0
  %9295 = vmatprep.subr.mxu0 0.0
  %9296 = vmatpush1.msra.mxu0 0.0
  %9297 = vmatprep.subr.mxu0 0.0
  %9298 = vmatpush1.msra.mxu0 0.0
  %9299 = vmatprep.subr.mxu0 0.0
  %9300 = vmatpush1.msra.mxu0 0.0
  %9301 = vmatprep.subr.mxu0 0.0
  %9302 = vmatpush1.msra.mxu0 0.0
  %9303 = vmatprep.subr.mxu0 0.0
  %9304 = vmatpush1.msra.mxu0 0.0
  %9305 = vmatprep.subr.mxu0 0.0
  %9306 = vmatpush1.msra.mxu0 0.0
  %9307 = vmatprep.subr.mxu0 0.0
  %9308 = vmatpush1.msra.mxu0 0.0
  %9309 = vmatprep.subr.mxu0 0.0
  %9310 = vmatpush1.msra.mxu0 0.0
  %9311 = vmatprep.subr.mxu0 0.0
  %9312 = vmatpush1.msra.mxu0 0.0
  %9313 = vmatprep.subr.mxu0 0.0
  %9314 = vmatpush1.msra.mxu0 0.0
  %9315 = vmatprep.mubr.f32.mxu0 0.0
  %v9316 = vand.u32 %v8328, 4294901760
  %9317 = vmatmul.mubr.f32.gmra.mrb[0].mxu0 %v9316
  %v9318 = vpop.f32.mrb[0].mxu0
  %v9319 = vadd.f32 %v9226, %v9318
  %v9320 = vpop.f32.mrb[0].mxu0
  %v9321 = vadd.f32 %v9228, %v9320
  %9322 = vmatprep.mubr.f32.mxu0 0.0
  %v9323 = vand.u32 %v8331, 4294901760
  %9324 = vmatmul.mubr.f32.gmra.mrb[0].mxu0 %v9323
  %v9325 = vpop.f32.mrb[0].mxu0
  %v9326 = vadd.f32 %v9235, %v9325
  %v9327 = vpop.f32.mrb[0].mxu0
  %v9328 = vadd.f32 %v9237, %v9327
  %9329 = vdwg.mxu0
  %v9330 = vand.u32 %v8314, 4294901760
  %9331 = vmatprep.subr.mxu0 %v9330
  %v9332 = vand.u32 %v8313, 4294901760
  %9333 = vmatpush1.msra.mxu0 %v9332
  %v9334 = vand.u32 %v8318, 4294901760
  %9335 = vmatprep.subr.mxu0 %v9334
  %v9336 = vand.u32 %v8317, 4294901760
  %9337 = vmatpush1.msra.mxu0 %v9336
  %9338 = vmatprep.subr.mxu0 0.0
  %9339 = vmatpush1.msra.mxu0 0.0
  %9340 = vmatprep.subr.mxu0 0.0
  %9341 = vmatpush1.msra.mxu0 0.0
  %9342 = vmatprep.subr.mxu0 0.0
  %9343 = vmatpush1.msra.mxu0 0.0
  %9344 = vmatprep.subr.mxu0 0.0
  %9345 = vmatpush1.msra.mxu0 0.0
  %9346 = vmatprep.subr.mxu0 0.0
  %9347 = vmatpush1.msra.mxu0 0.0
  %9348 = vmatprep.subr.mxu0 0.0
  %9349 = vmatpush1.msra.mxu0 0.0
  %9350 = vmatprep.subr.mxu0 0.0
  %9351 = vmatpush1.msra.mxu0 0.0
  %9352 = vmatprep.subr.mxu0 0.0
  %9353 = vmatpush1.msra.mxu0 0.0
  %9354 = vmatprep.subr.mxu0 0.0
  %9355 = vmatpush1.msra.mxu0 0.0
  %9356 = vmatprep.subr.mxu0 0.0
  %9357 = vmatpush1.msra.mxu0 0.0
  %9358 = vmatprep.subr.mxu0 0.0
  %9359 = vmatpush1.msra.mxu0 0.0
  %9360 = vmatprep.subr.mxu0 0.0
  %9361 = vmatpush1.msra.mxu0 0.0
  %9362 = vmatprep.subr.mxu0 0.0
  %9363 = vmatpush1.msra.mxu0 0.0
  %9364 = vmatprep.subr.mxu0 0.0
  %9365 = vmatpush1.msra.mxu0 0.0
  %9366 = vmatprep.subr.mxu0 0.0
  %9367 = vmatpush1.msra.mxu0 0.0
  %9368 = vmatprep.subr.mxu0 0.0
  %9369 = vmatpush1.msra.mxu0 0.0
  %9370 = vmatprep.subr.mxu0 0.0
  %9371 = vmatpush1.msra.mxu0 0.0
  %9372 = vmatprep.subr.mxu0 0.0
  %9373 = vmatpush1.msra.mxu0 0.0
  %9374 = vmatprep.subr.mxu0 0.0
  %9375 = vmatpush1.msra.mxu0 0.0
  %9376 = vmatprep.subr.mxu0 0.0
  %9377 = vmatpush1.msra.mxu0 0.0
  %9378 = vmatprep.subr.mxu0 0.0
  %9379 = vmatpush1.msra.mxu0 0.0
  %9380 = vmatprep.subr.mxu0 0.0
  %9381 = vmatpush1.msra.mxu0 0.0
  %9382 = vmatprep.subr.mxu0 0.0
  %9383 = vmatpush1.msra.mxu0 0.0
  %9384 = vmatprep.subr.mxu0 0.0
  %9385 = vmatpush1.msra.mxu0 0.0
  %9386 = vmatprep.subr.mxu0 0.0
  %9387 = vmatpush1.msra.mxu0 0.0
  %9388 = vmatprep.subr.mxu0 0.0
  %9389 = vmatpush1.msra.mxu0 0.0
  %9390 = vmatprep.subr.mxu0 0.0
  %9391 = vmatpush1.msra.mxu0 0.0
  %9392 = vmatprep.subr.mxu0 0.0
  %9393 = vmatpush1.msra.mxu0 0.0
  %9394 = vmatprep.subr.mxu0 0.0
  %9395 = vmatpush1.msra.mxu0 0.0
  %9396 = vmatprep.subr.mxu0 0.0
  %9397 = vmatpush1.msra.mxu0 0.0
  %9398 = vmatprep.mubr.f32.mxu0 0.0
  %v9399 = vand.u32 %v8328, 4294901760
  %9400 = vmatmul.mubr.f32.gmra.mrb[0].mxu0 %v9399
  %v9401 = vpop.f32.mrb[0].mxu0
  %v9402 = vadd.f32 %v9319, %v9401
  %v9403 = vpop.f32.mrb[0].mxu0
  %v9404 = vadd.f32 %v9321, %v9403
  %9405 = vmatprep.mubr.f32.mxu0 0.0
  %v9406 = vand.u32 %v8331, 4294901760
  %9407 = vmatmul.mubr.f32.gmra.mrb[0].mxu0 %v9406
  %v9408 = vpop.f32.mrb[0].mxu0
  %v9409 = vadd.f32 %v9326, %v9408
  %v9410 = vpop.f32.mrb[0].mxu0
  %v9411 = vadd.f32 %v9328, %v9410
  %9412 = vdwg.mxu0
  %v9413 = vadd.f32 %v8223, %v8862
  %v9414 = vadd.f32 %v8224, %v8864
  %v9415 = vadd.f32 %v8225, %v9402
  %v9416 = vadd.f32 %v8226, %v9404
  %v9417 = vadd.f32 %v8227, %v8869
  %v9418 = vadd.f32 %v8228, %v8871
  %v9419 = vadd.f32 %v8229, %v9409
  %v9420 = vadd.f32 %v8230, %v9411
  %s9421 = scalar_lea.vmem %s3, 32
  %v9422 = vld [vmem:[%s9421] ss:$8 sm:$0xf]
  %v9424 = vlaneseq
  %v9425 = vshrl.u32 %v9424, 7
  %v9426 = vsub.s32 0, %v9425
  %v9427 = vrot.slane %v9422, %v9426
  %v9428 = vlaneseq
  %v9429 = vshrl.u32 %v9428, 7
  %v9430 = vsub.s32 1, %v9429
  %v9431 = vrot.slane %v9422, %v9430
  %v9432 = vlaneseq
  %v9433 = vshrl.u32 %v9432, 7
  %v9434 = vsub.s32 2, %v9433
  %v9435 = vrot.slane %v9422, %v9434
  %v9436 = vlaneseq
  %v9437 = vshrl.u32 %v9436, 7
  %v9438 = vsub.s32 3, %v9437
  %v9439 = vrot.slane %v9422, %v9438
  %9440 = vrot.lane.b32.xlu0 %v9427, 34
  %v9441 = vpop.permute.xlu0 %9440
  %9442 = vrot.lane.b32.xlu0 %v9431, 34
  %v9443 = vpop.permute.xlu0 %9442
  %9444 = vrot.lane.b32.xlu0 %v9435, 34
  %v9445 = vpop.permute.xlu0 %9444
  %9446 = vrot.lane.b32.xlu0 %v9439, 34
  %v9447 = vpop.permute.xlu0 %9446
  %vm9448 = vcmask 277504
  %v9449 = vsel %vm9448, %v9441, %v9443
  %v9450 = vsel %vm9448, %v9443, %v9445
  %v9451 = vsel %vm9448, %v9445, %v9447
  %v9457 = vmul.f32 %v17, %v9441
  %v9458 = vmul.f32 %v18, %v9449
  %v9459 = vmul.f32 %v19, %v9450
  %v9460 = vmul.f32 %v20, %v9451
  %v9461 = vmul.f32 %v57, %v9447
  %v9462 = vmul.f32 %v21, %v9441
  %v9463 = vmul.f32 %v22, %v9449
  %v9464 = vmul.f32 %v23, %v9450
  %v9465 = vmul.f32 %v24, %v9451
  %v9466 = vmul.f32 %v58, %v9447
  %s9467 = scalar_lea.vmem %s1, 128
  %v9468 = vld [vmem:[%s9467] sm:$0xff]
  %v9469 = vld [vmem:[%s9467 + $0x8] sm:$0xff]
  %9480 = vrot.lane.b32.xlu0 %v9457, 94
  %v9481 = vpop.permute.xlu0 %9480
  %9482 = vrot.lane.b32.xlu0 %v9458, 94
  %v9483 = vpop.permute.xlu0 %9482
  %9484 = vrot.lane.b32.xlu0 %v9459, 94
  %v9485 = vpop.permute.xlu0 %9484
  %9486 = vrot.lane.b32.xlu0 %v9460, 94
  %v9487 = vpop.permute.xlu0 %9486
  %9488 = vrot.lane.b32.xlu0 %v9461, 94
  %v9489 = vpop.permute.xlu0 %9488
  %9490 = vrot.lane.b32.xlu0 %v9462, 94
  %v9491 = vpop.permute.xlu0 %9490
  %9492 = vrot.lane.b32.xlu0 %v9463, 94
  %v9493 = vpop.permute.xlu0 %9492
  %9494 = vrot.lane.b32.xlu0 %v9464, 94
  %v9495 = vpop.permute.xlu0 %9494
  %9496 = vrot.lane.b32.xlu0 %v9465, 94
  %v9497 = vpop.permute.xlu0 %9496
  %9498 = vrot.lane.b32.xlu0 %v9466, 94
  %v9499 = vpop.permute.xlu0 %9498
  %vm9500 = vcmask 769024
  %v9501 = vsel %vm9500, %v9481, %v9483
  %v9502 = vsel %vm9500, %v9483, %v9485
  %v9503 = vsel %vm9500, %v9485, %v9487
  %v9504 = vsel %vm9500, %v9487, %v9489
  %v9505 = vsel %vm9500, %v9491, %v9493
  %v9506 = vsel %vm9500, %v9493, %v9495
  %v9507 = vsel %vm9500, %v9495, %v9497
  %v9508 = vsel %vm9500, %v9497, %v9499
  %v9518 = vsel %vm155, %v9468, 0
  %v9521 = vsel %vm155, %v9469, 0
  %v9523 = vand.u32 %v9502, 4294901760
  %9524 = vmatprep.subr.mxu0 %v9523
  %v9525 = vand.u32 %v9501, 4294901760
  %9526 = vmatpush1.msra.mxu0 %v9525
  %v9527 = vand.u32 %v9506, 4294901760
  %9528 = vmatprep.subr.mxu0 %v9527
  %v9529 = vand.u32 %v9505, 4294901760
  %9530 = vmatpush1.msra.mxu0 %v9529
  %9531 = vmatprep.subr.mxu0 0.0
  %9532 = vmatpush1.msra.mxu0 0.0
  %9533 = vmatprep.subr.mxu0 0.0
  %9534 = vmatpush1.msra.mxu0 0.0
  %9535 = vmatprep.subr.mxu0 0.0
  %9536 = vmatpush1.msra.mxu0 0.0
  %9537 = vmatprep.subr.mxu0 0.0
  %9538 = vmatpush1.msra.mxu0 0.0
  %9539 = vmatprep.subr.mxu0 0.0
  %9540 = vmatpush1.msra.mxu0 0.0
  %9541 = vmatprep.subr.mxu0 0.0
  %9542 = vmatpush1.msra.mxu0 0.0
  %9543 = vmatprep.subr.mxu0 0.0
  %9544 = vmatpush1.msra.mxu0 0.0
  %9545 = vmatprep.subr.mxu0 0.0
  %9546 = vmatpush1.msra.mxu0 0.0
  %9547 = vmatprep.subr.mxu0 0.0
  %9548 = vmatpush1.msra.mxu0 0.0
  %9549 = vmatprep.subr.mxu0 0.0
  %9550 = vmatpush1.msra.mxu0 0.0
  %9551 = vmatprep.subr.mxu0 0.0
  %9552 = vmatpush1.msra.mxu0 0.0
  %9553 = vmatprep.subr.mxu0 0.0
  %9554 = vmatpush1.msra.mxu0 0.0
  %9555 = vmatprep.subr.mxu0 0.0
  %9556 = vmatpush1.msra.mxu0 0.0
  %9557 = vmatprep.subr.mxu0 0.0
  %9558 = vmatpush1.msra.mxu0 0.0
  %9559 = vmatprep.subr.mxu0 0.0
  %9560 = vmatpush1.msra.mxu0 0.0
  %9561 = vmatprep.subr.mxu0 0.0
  %9562 = vmatpush1.msra.mxu0 0.0
  %9563 = vmatprep.subr.mxu0 0.0
  %9564 = vmatpush1.msra.mxu0 0.0
  %9565 = vmatprep.subr.mxu0 0.0
  %9566 = vmatpush1.msra.mxu0 0.0
  %9567 = vmatprep.subr.mxu0 0.0
  %9568 = vmatpush1.msra.mxu0 0.0
  %9569 = vmatprep.subr.mxu0 0.0
  %9570 = vmatpush1.msra.mxu0 0.0
  %9571 = vmatprep.subr.mxu0 0.0
  %9572 = vmatpush1.msra.mxu0 0.0
  %9573 = vmatprep.subr.mxu0 0.0
  %9574 = vmatpush1.msra.mxu0 0.0
  %9575 = vmatprep.subr.mxu0 0.0
  %9576 = vmatpush1.msra.mxu0 0.0
  %9577 = vmatprep.subr.mxu0 0.0
  %9578 = vmatpush1.msra.mxu0 0.0
  %9579 = vmatprep.subr.mxu0 0.0
  %9580 = vmatpush1.msra.mxu0 0.0
  %9581 = vmatprep.subr.mxu0 0.0
  %9582 = vmatpush1.msra.mxu0 0.0
  %9583 = vmatprep.subr.mxu0 0.0
  %9584 = vmatpush1.msra.mxu0 0.0
  %9585 = vmatprep.subr.mxu0 0.0
  %9586 = vmatpush1.msra.mxu0 0.0
  %9587 = vmatprep.subr.mxu0 0.0
  %9588 = vmatpush1.msra.mxu0 0.0
  %9589 = vmatprep.subr.mxu0 0.0
  %9590 = vmatpush1.msra.mxu0 0.0
  %9591 = vmatprep.mubr.f32.mxu0 0.0
  %v9592 = vand.u32 %v9518, 4294901760
  %v9593 = vsub.f32 %v9518, %v9592
  %v9594 = vand.u32 %v9593, 4294901760
  %v9595 = vsub.f32 %v9593, %v9594
  %v9596 = vand.u32 %v9595, 4294901760
  %9597 = vmatmul.mubr.f32.gmra.mrb[0].mxu0 %v9596
  %v9598 = vpop.f32.mrb[0].mxu0
  %v9599 = vadd.f32 0.0, %v9598
  %v9600 = vpop.f32.mrb[0].mxu0
  %v9601 = vadd.f32 0.0, %v9600
  %9602 = vmatprep.mubr.f32.mxu0 0.0
  %v9603 = vand.u32 %v9521, 4294901760
  %v9604 = vsub.f32 %v9521, %v9603
  %v9605 = vand.u32 %v9604, 4294901760
  %v9606 = vsub.f32 %v9604, %v9605
  %v9607 = vand.u32 %v9606, 4294901760
  %9608 = vmatmul.mubr.f32.gmra.mrb[0].mxu0 %v9607
  %v9609 = vpop.f32.mrb[0].mxu0
  %v9610 = vadd.f32 0.0, %v9609
  %v9611 = vpop.f32.mrb[0].mxu0
  %v9612 = vadd.f32 0.0, %v9611
  %9613 = vdwg.mxu0
  %v9614 = vand.u32 %v9502, 4294901760
  %v9615 = vsub.f32 %v9502, %v9614
  %v9616 = vand.u32 %v9615, 4294901760
  %v9617 = vsub.f32 %v9615, %v9616
  %v9618 = vand.u32 %v9617, 4294901760
  %9619 = vmatprep.subr.mxu0 %v9618
  %v9620 = vand.u32 %v9501, 4294901760
  %v9621 = vsub.f32 %v9501, %v9620
  %v9622 = vand.u32 %v9621, 4294901760
  %v9623 = vsub.f32 %v9621, %v9622
  %v9624 = vand.u32 %v9623, 4294901760
  %9625 = vmatpush1.msra.mxu0 %v9624
  %v9626 = vand.u32 %v9506, 4294901760
  %v9627 = vsub.f32 %v9506, %v9626
  %v9628 = vand.u32 %v9627, 4294901760
  %v9629 = vsub.f32 %v9627, %v9628
  %v9630 = vand.u32 %v9629, 4294901760
  %9631 = vmatprep.subr.mxu0 %v9630
  %v9632 = vand.u32 %v9505, 4294901760
  %v9633 = vsub.f32 %v9505, %v9632
  %v9634 = vand.u32 %v9633, 4294901760
  %v9635 = vsub.f32 %v9633, %v9634
  %v9636 = vand.u32 %v9635, 4294901760
  %9637 = vmatpush1.msra.mxu0 %v9636
  %9638 = vmatprep.subr.mxu0 0.0
  %9639 = vmatpush1.msra.mxu0 0.0
  %9640 = vmatprep.subr.mxu0 0.0
  %9641 = vmatpush1.msra.mxu0 0.0
  %9642 = vmatprep.subr.mxu0 0.0
  %9643 = vmatpush1.msra.mxu0 0.0
  %9644 = vmatprep.subr.mxu0 0.0
  %9645 = vmatpush1.msra.mxu0 0.0
  %9646 = vmatprep.subr.mxu0 0.0
  %9647 = vmatpush1.msra.mxu0 0.0
  %9648 = vmatprep.subr.mxu0 0.0
  %9649 = vmatpush1.msra.mxu0 0.0
  %9650 = vmatprep.subr.mxu0 0.0
  %9651 = vmatpush1.msra.mxu0 0.0
  %9652 = vmatprep.subr.mxu0 0.0
  %9653 = vmatpush1.msra.mxu0 0.0
  %9654 = vmatprep.subr.mxu0 0.0
  %9655 = vmatpush1.msra.mxu0 0.0
  %9656 = vmatprep.subr.mxu0 0.0
  %9657 = vmatpush1.msra.mxu0 0.0
  %9658 = vmatprep.subr.mxu0 0.0
  %9659 = vmatpush1.msra.mxu0 0.0
  %9660 = vmatprep.subr.mxu0 0.0
  %9661 = vmatpush1.msra.mxu0 0.0
  %9662 = vmatprep.subr.mxu0 0.0
  %9663 = vmatpush1.msra.mxu0 0.0
  %9664 = vmatprep.subr.mxu0 0.0
  %9665 = vmatpush1.msra.mxu0 0.0
  %9666 = vmatprep.subr.mxu0 0.0
  %9667 = vmatpush1.msra.mxu0 0.0
  %9668 = vmatprep.subr.mxu0 0.0
  %9669 = vmatpush1.msra.mxu0 0.0
  %9670 = vmatprep.subr.mxu0 0.0
  %9671 = vmatpush1.msra.mxu0 0.0
  %9672 = vmatprep.subr.mxu0 0.0
  %9673 = vmatpush1.msra.mxu0 0.0
  %9674 = vmatprep.subr.mxu0 0.0
  %9675 = vmatpush1.msra.mxu0 0.0
  %9676 = vmatprep.subr.mxu0 0.0
  %9677 = vmatpush1.msra.mxu0 0.0
  %9678 = vmatprep.subr.mxu0 0.0
  %9679 = vmatpush1.msra.mxu0 0.0
  %9680 = vmatprep.subr.mxu0 0.0
  %9681 = vmatpush1.msra.mxu0 0.0
  %9682 = vmatprep.subr.mxu0 0.0
  %9683 = vmatpush1.msra.mxu0 0.0
  %9684 = vmatprep.subr.mxu0 0.0
  %9685 = vmatpush1.msra.mxu0 0.0
  %9686 = vmatprep.subr.mxu0 0.0
  %9687 = vmatpush1.msra.mxu0 0.0
  %9688 = vmatprep.subr.mxu0 0.0
  %9689 = vmatpush1.msra.mxu0 0.0
  %9690 = vmatprep.subr.mxu0 0.0
  %9691 = vmatpush1.msra.mxu0 0.0
  %9692 = vmatprep.subr.mxu0 0.0
  %9693 = vmatpush1.msra.mxu0 0.0
  %9694 = vmatprep.subr.mxu0 0.0
  %9695 = vmatpush1.msra.mxu0 0.0
  %9696 = vmatprep.subr.mxu0 0.0
  %9697 = vmatpush1.msra.mxu0 0.0
  %9698 = vmatprep.mubr.f32.mxu0 0.0
  %v9699 = vand.u32 %v9518, 4294901760
  %9700 = vmatmul.mubr.f32.gmra.mrb[0].mxu0 %v9699
  %v9701 = vpop.f32.mrb[0].mxu0
  %v9702 = vadd.f32 %v9599, %v9701
  %v9703 = vpop.f32.mrb[0].mxu0
  %v9704 = vadd.f32 %v9601, %v9703
  %9705 = vmatprep.mubr.f32.mxu0 0.0
  %v9706 = vand.u32 %v9521, 4294901760
  %9707 = vmatmul.mubr.f32.gmra.mrb[0].mxu0 %v9706
  %v9708 = vpop.f32.mrb[0].mxu0
  %v9709 = vadd.f32 %v9610, %v9708
  %v9710 = vpop.f32.mrb[0].mxu0
  %v9711 = vadd.f32 %v9612, %v9710
  %9712 = vdwg.mxu0
  %v9713 = vand.u32 %v9502, 4294901760
  %v9714 = vsub.f32 %v9502, %v9713
  %9715 = vmatprep.subr.mxu0 %v9714
  %v9716 = vand.u32 %v9501, 4294901760
  %v9717 = vsub.f32 %v9501, %v9716
  %9718 = vmatpush1.msra.mxu0 %v9717
  %v9719 = vand.u32 %v9506, 4294901760
  %v9720 = vsub.f32 %v9506, %v9719
  %9721 = vmatprep.subr.mxu0 %v9720
  %v9722 = vand.u32 %v9505, 4294901760
  %v9723 = vsub.f32 %v9505, %v9722
  %9724 = vmatpush1.msra.mxu0 %v9723
  %9725 = vmatprep.subr.mxu0 0.0
  %9726 = vmatpush1.msra.mxu0 0.0
  %9727 = vmatprep.subr.mxu0 0.0
  %9728 = vmatpush1.msra.mxu0 0.0
  %9729 = vmatprep.subr.mxu0 0.0
  %9730 = vmatpush1.msra.mxu0 0.0
  %9731 = vmatprep.subr.mxu0 0.0
  %9732 = vmatpush1.msra.mxu0 0.0
  %9733 = vmatprep.subr.mxu0 0.0
  %9734 = vmatpush1.msra.mxu0 0.0
  %9735 = vmatprep.subr.mxu0 0.0
  %9736 = vmatpush1.msra.mxu0 0.0
  %9737 = vmatprep.subr.mxu0 0.0
  %9738 = vmatpush1.msra.mxu0 0.0
  %9739 = vmatprep.subr.mxu0 0.0
  %9740 = vmatpush1.msra.mxu0 0.0
  %9741 = vmatprep.subr.mxu0 0.0
  %9742 = vmatpush1.msra.mxu0 0.0
  %9743 = vmatprep.subr.mxu0 0.0
  %9744 = vmatpush1.msra.mxu0 0.0
  %9745 = vmatprep.subr.mxu0 0.0
  %9746 = vmatpush1.msra.mxu0 0.0
  %9747 = vmatprep.subr.mxu0 0.0
  %9748 = vmatpush1.msra.mxu0 0.0
  %9749 = vmatprep.subr.mxu0 0.0
  %9750 = vmatpush1.msra.mxu0 0.0
  %9751 = vmatprep.subr.mxu0 0.0
  %9752 = vmatpush1.msra.mxu0 0.0
  %9753 = vmatprep.subr.mxu0 0.0
  %9754 = vmatpush1.msra.mxu0 0.0
  %9755 = vmatprep.subr.mxu0 0.0
  %9756 = vmatpush1.msra.mxu0 0.0
  %9757 = vmatprep.subr.mxu0 0.0
  %9758 = vmatpush1.msra.mxu0 0.0
  %9759 = vmatprep.subr.mxu0 0.0
  %9760 = vmatpush1.msra.mxu0 0.0
  %9761 = vmatprep.subr.mxu0 0.0
  %9762 = vmatpush1.msra.mxu0 0.0
  %9763 = vmatprep.subr.mxu0 0.0
  %9764 = vmatpush1.msra.mxu0 0.0
  %9765 = vmatprep.subr.mxu0 0.0
  %9766 = vmatpush1.msra.mxu0 0.0
  %9767 = vmatprep.subr.mxu0 0.0
  %9768 = vmatpush1.msra.mxu0 0.0
  %9769 = vmatprep.subr.mxu0 0.0
  %9770 = vmatpush1.msra.mxu0 0.0
  %9771 = vmatprep.subr.mxu0 0.0
  %9772 = vmatpush1.msra.mxu0 0.0
  %9773 = vmatprep.subr.mxu0 0.0
  %9774 = vmatpush1.msra.mxu0 0.0
  %9775 = vmatprep.subr.mxu0 0.0
  %9776 = vmatpush1.msra.mxu0 0.0
  %9777 = vmatprep.subr.mxu0 0.0
  %9778 = vmatpush1.msra.mxu0 0.0
  %9779 = vmatprep.subr.mxu0 0.0
  %9780 = vmatpush1.msra.mxu0 0.0
  %9781 = vmatprep.subr.mxu0 0.0
  %9782 = vmatpush1.msra.mxu0 0.0
  %9783 = vmatprep.subr.mxu0 0.0
  %9784 = vmatpush1.msra.mxu0 0.0
  %9785 = vmatprep.mubr.f32.mxu0 0.0
  %v9786 = vand.u32 %v9518, 4294901760
  %v9787 = vsub.f32 %v9518, %v9786
  %9788 = vmatmul.mubr.f32.gmra.mrb[0].mxu0 %v9787
  %v9789 = vpop.f32.mrb[0].mxu0
  %v9790 = vadd.f32 %v9702, %v9789
  %v9791 = vpop.f32.mrb[0].mxu0
  %v9792 = vadd.f32 %v9704, %v9791
  %9793 = vmatprep.mubr.f32.mxu0 0.0
  %v9794 = vand.u32 %v9521, 4294901760
  %v9795 = vsub.f32 %v9521, %v9794
  %9796 = vmatmul.mubr.f32.gmra.mrb[0].mxu0 %v9795
  %v9797 = vpop.f32.mrb[0].mxu0
  %v9798 = vadd.f32 %v9709, %v9797
  %v9799 = vpop.f32.mrb[0].mxu0
  %v9800 = vadd.f32 %v9711, %v9799
  %9801 = vdwg.mxu0
  %v9802 = vand.u32 %v9502, 4294901760
  %9803 = vmatprep.subr.mxu0 %v9802
  %v9804 = vand.u32 %v9501, 4294901760
  %9805 = vmatpush1.msra.mxu0 %v9804
  %v9806 = vand.u32 %v9506, 4294901760
  %9807 = vmatprep.subr.mxu0 %v9806
  %v9808 = vand.u32 %v9505, 4294901760
  %9809 = vmatpush1.msra.mxu0 %v9808
  %9810 = vmatprep.subr.mxu0 0.0
  %9811 = vmatpush1.msra.mxu0 0.0
  %9812 = vmatprep.subr.mxu0 0.0
  %9813 = vmatpush1.msra.mxu0 0.0
  %9814 = vmatprep.subr.mxu0 0.0
  %9815 = vmatpush1.msra.mxu0 0.0
  %9816 = vmatprep.subr.mxu0 0.0
  %9817 = vmatpush1.msra.mxu0 0.0
  %9818 = vmatprep.subr.mxu0 0.0
  %9819 = vmatpush1.msra.mxu0 0.0
  %9820 = vmatprep.subr.mxu0 0.0
  %9821 = vmatpush1.msra.mxu0 0.0
  %9822 = vmatprep.subr.mxu0 0.0
  %9823 = vmatpush1.msra.mxu0 0.0
  %9824 = vmatprep.subr.mxu0 0.0
  %9825 = vmatpush1.msra.mxu0 0.0
  %9826 = vmatprep.subr.mxu0 0.0
  %9827 = vmatpush1.msra.mxu0 0.0
  %9828 = vmatprep.subr.mxu0 0.0
  %9829 = vmatpush1.msra.mxu0 0.0
  %9830 = vmatprep.subr.mxu0 0.0
  %9831 = vmatpush1.msra.mxu0 0.0
  %9832 = vmatprep.subr.mxu0 0.0
  %9833 = vmatpush1.msra.mxu0 0.0
  %9834 = vmatprep.subr.mxu0 0.0
  %9835 = vmatpush1.msra.mxu0 0.0
  %9836 = vmatprep.subr.mxu0 0.0
  %9837 = vmatpush1.msra.mxu0 0.0
  %9838 = vmatprep.subr.mxu0 0.0
  %9839 = vmatpush1.msra.mxu0 0.0
  %9840 = vmatprep.subr.mxu0 0.0
  %9841 = vmatpush1.msra.mxu0 0.0
  %9842 = vmatprep.subr.mxu0 0.0
  %9843 = vmatpush1.msra.mxu0 0.0
  %9844 = vmatprep.subr.mxu0 0.0
  %9845 = vmatpush1.msra.mxu0 0.0
  %9846 = vmatprep.subr.mxu0 0.0
  %9847 = vmatpush1.msra.mxu0 0.0
  %9848 = vmatprep.subr.mxu0 0.0
  %9849 = vmatpush1.msra.mxu0 0.0
  %9850 = vmatprep.subr.mxu0 0.0
  %9851 = vmatpush1.msra.mxu0 0.0
  %9852 = vmatprep.subr.mxu0 0.0
  %9853 = vmatpush1.msra.mxu0 0.0
  %9854 = vmatprep.subr.mxu0 0.0
  %9855 = vmatpush1.msra.mxu0 0.0
  %9856 = vmatprep.subr.mxu0 0.0
  %9857 = vmatpush1.msra.mxu0 0.0
  %9858 = vmatprep.subr.mxu0 0.0
  %9859 = vmatpush1.msra.mxu0 0.0
  %9860 = vmatprep.subr.mxu0 0.0
  %9861 = vmatpush1.msra.mxu0 0.0
  %9862 = vmatprep.subr.mxu0 0.0
  %9863 = vmatpush1.msra.mxu0 0.0
  %9864 = vmatprep.subr.mxu0 0.0
  %9865 = vmatpush1.msra.mxu0 0.0
  %9866 = vmatprep.subr.mxu0 0.0
  %9867 = vmatpush1.msra.mxu0 0.0
  %9868 = vmatprep.subr.mxu0 0.0
  %9869 = vmatpush1.msra.mxu0 0.0
  %9870 = vmatprep.mubr.f32.mxu0 0.0
  %v9871 = vand.u32 %v9518, 4294901760
  %v9872 = vsub.f32 %v9518, %v9871
  %v9873 = vand.u32 %v9872, 4294901760
  %9874 = vmatmul.mubr.f32.gmra.mrb[0].mxu0 %v9873
  %v9875 = vpop.f32.mrb[0].mxu0
  %v9876 = vadd.f32 %v9790, %v9875
  %v9877 = vpop.f32.mrb[0].mxu0
  %v9878 = vadd.f32 %v9792, %v9877
  %9879 = vmatprep.mubr.f32.mxu0 0.0
  %v9880 = vand.u32 %v9521, 4294901760
  %v9881 = vsub.f32 %v9521, %v9880
  %v9882 = vand.u32 %v9881, 4294901760
  %9883 = vmatmul.mubr.f32.gmra.mrb[0].mxu0 %v9882
  %v9884 = vpop.f32.mrb[0].mxu0
  %v9885 = vadd.f32 %v9798, %v9884
  %v9886 = vpop.f32.mrb[0].mxu0
  %v9887 = vadd.f32 %v9800, %v9886
  %9888 = vdwg.mxu0
  %v9889 = vand.u32 %v9502, 4294901760
  %v9890 = vsub.f32 %v9502, %v9889
  %v9891 = vand.u32 %v9890, 4294901760
  %9892 = vmatprep.subr.mxu0 %v9891
  %v9893 = vand.u32 %v9501, 4294901760
  %v9894 = vsub.f32 %v9501, %v9893
  %v9895 = vand.u32 %v9894, 4294901760
  %9896 = vmatpush1.msra.mxu0 %v9895
  %v9897 = vand.u32 %v9506, 4294901760
  %v9898 = vsub.f32 %v9506, %v9897
  %v9899 = vand.u32 %v9898, 4294901760
  %9900 = vmatprep.subr.mxu0 %v9899
  %v9901 = vand.u32 %v9505, 4294901760
  %v9902 = vsub.f32 %v9505, %v9901
  %v9903 = vand.u32 %v9902, 4294901760
  %9904 = vmatpush1.msra.mxu0 %v9903
  %9905 = vmatprep.subr.mxu0 0.0
  %9906 = vmatpush1.msra.mxu0 0.0
  %9907 = vmatprep.subr.mxu0 0.0
  %9908 = vmatpush1.msra.mxu0 0.0
  %9909 = vmatprep.subr.mxu0 0.0
  %9910 = vmatpush1.msra.mxu0 0.0
  %9911 = vmatprep.subr.mxu0 0.0
  %9912 = vmatpush1.msra.mxu0 0.0
  %9913 = vmatprep.subr.mxu0 0.0
  %9914 = vmatpush1.msra.mxu0 0.0
  %9915 = vmatprep.subr.mxu0 0.0
  %9916 = vmatpush1.msra.mxu0 0.0
  %9917 = vmatprep.subr.mxu0 0.0
  %9918 = vmatpush1.msra.mxu0 0.0
  %9919 = vmatprep.subr.mxu0 0.0
  %9920 = vmatpush1.msra.mxu0 0.0
  %9921 = vmatprep.subr.mxu0 0.0
  %9922 = vmatpush1.msra.mxu0 0.0
  %9923 = vmatprep.subr.mxu0 0.0
  %9924 = vmatpush1.msra.mxu0 0.0
  %9925 = vmatprep.subr.mxu0 0.0
  %9926 = vmatpush1.msra.mxu0 0.0
  %9927 = vmatprep.subr.mxu0 0.0
  %9928 = vmatpush1.msra.mxu0 0.0
  %9929 = vmatprep.subr.mxu0 0.0
  %9930 = vmatpush1.msra.mxu0 0.0
  %9931 = vmatprep.subr.mxu0 0.0
  %9932 = vmatpush1.msra.mxu0 0.0
  %9933 = vmatprep.subr.mxu0 0.0
  %9934 = vmatpush1.msra.mxu0 0.0
  %9935 = vmatprep.subr.mxu0 0.0
  %9936 = vmatpush1.msra.mxu0 0.0
  %9937 = vmatprep.subr.mxu0 0.0
  %9938 = vmatpush1.msra.mxu0 0.0
  %9939 = vmatprep.subr.mxu0 0.0
  %9940 = vmatpush1.msra.mxu0 0.0
  %9941 = vmatprep.subr.mxu0 0.0
  %9942 = vmatpush1.msra.mxu0 0.0
  %9943 = vmatprep.subr.mxu0 0.0
  %9944 = vmatpush1.msra.mxu0 0.0
  %9945 = vmatprep.subr.mxu0 0.0
  %9946 = vmatpush1.msra.mxu0 0.0
  %9947 = vmatprep.subr.mxu0 0.0
  %9948 = vmatpush1.msra.mxu0 0.0
  %9949 = vmatprep.subr.mxu0 0.0
  %9950 = vmatpush1.msra.mxu0 0.0
  %9951 = vmatprep.subr.mxu0 0.0
  %9952 = vmatpush1.msra.mxu0 0.0
  %9953 = vmatprep.subr.mxu0 0.0
  %9954 = vmatpush1.msra.mxu0 0.0
  %9955 = vmatprep.subr.mxu0 0.0
  %9956 = vmatpush1.msra.mxu0 0.0
  %9957 = vmatprep.subr.mxu0 0.0
  %9958 = vmatpush1.msra.mxu0 0.0
  %9959 = vmatprep.subr.mxu0 0.0
  %9960 = vmatpush1.msra.mxu0 0.0
  %9961 = vmatprep.subr.mxu0 0.0
  %9962 = vmatpush1.msra.mxu0 0.0
  %9963 = vmatprep.subr.mxu0 0.0
  %9964 = vmatpush1.msra.mxu0 0.0
  %9965 = vmatprep.mubr.f32.mxu0 0.0
  %v9966 = vand.u32 %v9518, 4294901760
  %9967 = vmatmul.mubr.f32.gmra.mrb[0].mxu0 %v9966
  %v9968 = vpop.f32.mrb[0].mxu0
  %v9969 = vadd.f32 %v9876, %v9968
  %v9970 = vpop.f32.mrb[0].mxu0
  %v9971 = vadd.f32 %v9878, %v9970
  %9972 = vmatprep.mubr.f32.mxu0 0.0
  %v9973 = vand.u32 %v9521, 4294901760
  %9974 = vmatmul.mubr.f32.gmra.mrb[0].mxu0 %v9973
  %v9975 = vpop.f32.mrb[0].mxu0
  %v9976 = vadd.f32 %v9885, %v9975
  %v9977 = vpop.f32.mrb[0].mxu0
  %v9978 = vadd.f32 %v9887, %v9977
  %9979 = vdwg.mxu0
  %v9980 = vand.u32 %v9502, 4294901760
  %9981 = vmatprep.subr.mxu0 %v9980
  %v9982 = vand.u32 %v9501, 4294901760
  %9983 = vmatpush1.msra.mxu0 %v9982
  %v9984 = vand.u32 %v9506, 4294901760
  %9985 = vmatprep.subr.mxu0 %v9984
  %v9986 = vand.u32 %v9505, 4294901760
  %9987 = vmatpush1.msra.mxu0 %v9986
  %9988 = vmatprep.subr.mxu0 0.0
  %9989 = vmatpush1.msra.mxu0 0.0
  %9990 = vmatprep.subr.mxu0 0.0
  %9991 = vmatpush1.msra.mxu0 0.0
  %9992 = vmatprep.subr.mxu0 0.0
  %9993 = vmatpush1.msra.mxu0 0.0
  %9994 = vmatprep.subr.mxu0 0.0
  %9995 = vmatpush1.msra.mxu0 0.0
  %9996 = vmatprep.subr.mxu0 0.0
  %9997 = vmatpush1.msra.mxu0 0.0
  %9998 = vmatprep.subr.mxu0 0.0
  %9999 = vmatpush1.msra.mxu0 0.0
  %10000 = vmatprep.subr.mxu0 0.0
  %10001 = vmatpush1.msra.mxu0 0.0
  %10002 = vmatprep.subr.mxu0 0.0
  %10003 = vmatpush1.msra.mxu0 0.0
  %10004 = vmatprep.subr.mxu0 0.0
  %10005 = vmatpush1.msra.mxu0 0.0
  %10006 = vmatprep.subr.mxu0 0.0
  %10007 = vmatpush1.msra.mxu0 0.0
  %10008 = vmatprep.subr.mxu0 0.0
  %10009 = vmatpush1.msra.mxu0 0.0
  %10010 = vmatprep.subr.mxu0 0.0
  %10011 = vmatpush1.msra.mxu0 0.0
  %10012 = vmatprep.subr.mxu0 0.0
  %10013 = vmatpush1.msra.mxu0 0.0
  %10014 = vmatprep.subr.mxu0 0.0
  %10015 = vmatpush1.msra.mxu0 0.0
  %10016 = vmatprep.subr.mxu0 0.0
  %10017 = vmatpush1.msra.mxu0 0.0
  %10018 = vmatprep.subr.mxu0 0.0
  %10019 = vmatpush1.msra.mxu0 0.0
  %10020 = vmatprep.subr.mxu0 0.0
  %10021 = vmatpush1.msra.mxu0 0.0
  %10022 = vmatprep.subr.mxu0 0.0
  %10023 = vmatpush1.msra.mxu0 0.0
  %10024 = vmatprep.subr.mxu0 0.0
  %10025 = vmatpush1.msra.mxu0 0.0
  %10026 = vmatprep.subr.mxu0 0.0
  %10027 = vmatpush1.msra.mxu0 0.0
  %10028 = vmatprep.subr.mxu0 0.0
  %10029 = vmatpush1.msra.mxu0 0.0
  %10030 = vmatprep.subr.mxu0 0.0
  %10031 = vmatpush1.msra.mxu0 0.0
  %10032 = vmatprep.subr.mxu0 0.0
  %10033 = vmatpush1.msra.mxu0 0.0
  %10034 = vmatprep.subr.mxu0 0.0
  %10035 = vmatpush1.msra.mxu0 0.0
  %10036 = vmatprep.subr.mxu0 0.0
  %10037 = vmatpush1.msra.mxu0 0.0
  %10038 = vmatprep.subr.mxu0 0.0
  %10039 = vmatpush1.msra.mxu0 0.0
  %10040 = vmatprep.subr.mxu0 0.0
  %10041 = vmatpush1.msra.mxu0 0.0
  %10042 = vmatprep.subr.mxu0 0.0
  %10043 = vmatpush1.msra.mxu0 0.0
  %10044 = vmatprep.subr.mxu0 0.0
  %10045 = vmatpush1.msra.mxu0 0.0
  %10046 = vmatprep.subr.mxu0 0.0
  %10047 = vmatpush1.msra.mxu0 0.0
  %10048 = vmatprep.mubr.f32.mxu0 0.0
  %v10049 = vand.u32 %v9518, 4294901760
  %10050 = vmatmul.mubr.f32.gmra.mrb[0].mxu0 %v10049
  %v10051 = vpop.f32.mrb[0].mxu0
  %v10052 = vadd.f32 %v9969, %v10051
  %v10053 = vpop.f32.mrb[0].mxu0
  %v10054 = vadd.f32 %v9971, %v10053
  %10055 = vmatprep.mubr.f32.mxu0 0.0
  %v10056 = vand.u32 %v9521, 4294901760
  %10057 = vmatmul.mubr.f32.gmra.mrb[0].mxu0 %v10056
  %v10058 = vpop.f32.mrb[0].mxu0
  %v10059 = vadd.f32 %v9976, %v10058
  %v10060 = vpop.f32.mrb[0].mxu0
  %v10061 = vadd.f32 %v9978, %v10060
  %10062 = vdwg.mxu0
  %v10063 = vand.u32 %v9504, 4294901760
  %10064 = vmatprep.subr.mxu0 %v10063
  %v10065 = vand.u32 %v9503, 4294901760
  %10066 = vmatpush1.msra.mxu0 %v10065
  %v10067 = vand.u32 %v9508, 4294901760
  %10068 = vmatprep.subr.mxu0 %v10067
  %v10069 = vand.u32 %v9507, 4294901760
  %10070 = vmatpush1.msra.mxu0 %v10069
  %10071 = vmatprep.subr.mxu0 0.0
  %10072 = vmatpush1.msra.mxu0 0.0
  %10073 = vmatprep.subr.mxu0 0.0
  %10074 = vmatpush1.msra.mxu0 0.0
  %10075 = vmatprep.subr.mxu0 0.0
  %10076 = vmatpush1.msra.mxu0 0.0
  %10077 = vmatprep.subr.mxu0 0.0
  %10078 = vmatpush1.msra.mxu0 0.0
  %10079 = vmatprep.subr.mxu0 0.0
  %10080 = vmatpush1.msra.mxu0 0.0
  %10081 = vmatprep.subr.mxu0 0.0
  %10082 = vmatpush1.msra.mxu0 0.0
  %10083 = vmatprep.subr.mxu0 0.0
  %10084 = vmatpush1.msra.mxu0 0.0
  %10085 = vmatprep.subr.mxu0 0.0
  %10086 = vmatpush1.msra.mxu0 0.0
  %10087 = vmatprep.subr.mxu0 0.0
  %10088 = vmatpush1.msra.mxu0 0.0
  %10089 = vmatprep.subr.mxu0 0.0
  %10090 = vmatpush1.msra.mxu0 0.0
  %10091 = vmatprep.subr.mxu0 0.0
  %10092 = vmatpush1.msra.mxu0 0.0
  %10093 = vmatprep.subr.mxu0 0.0
  %10094 = vmatpush1.msra.mxu0 0.0
  %10095 = vmatprep.subr.mxu0 0.0
  %10096 = vmatpush1.msra.mxu0 0.0
  %10097 = vmatprep.subr.mxu0 0.0
  %10098 = vmatpush1.msra.mxu0 0.0
  %10099 = vmatprep.subr.mxu0 0.0
  %10100 = vmatpush1.msra.mxu0 0.0
  %10101 = vmatprep.subr.mxu0 0.0
  %10102 = vmatpush1.msra.mxu0 0.0
  %10103 = vmatprep.subr.mxu0 0.0
  %10104 = vmatpush1.msra.mxu0 0.0
  %10105 = vmatprep.subr.mxu0 0.0
  %10106 = vmatpush1.msra.mxu0 0.0
  %10107 = vmatprep.subr.mxu0 0.0
  %10108 = vmatpush1.msra.mxu0 0.0
  %10109 = vmatprep.subr.mxu0 0.0
  %10110 = vmatpush1.msra.mxu0 0.0
  %10111 = vmatprep.subr.mxu0 0.0
  %10112 = vmatpush1.msra.mxu0 0.0
  %10113 = vmatprep.subr.mxu0 0.0
  %10114 = vmatpush1.msra.mxu0 0.0
  %10115 = vmatprep.subr.mxu0 0.0
  %10116 = vmatpush1.msra.mxu0 0.0
  %10117 = vmatprep.subr.mxu0 0.0
  %10118 = vmatpush1.msra.mxu0 0.0
  %10119 = vmatprep.subr.mxu0 0.0
  %10120 = vmatpush1.msra.mxu0 0.0
  %10121 = vmatprep.subr.mxu0 0.0
  %10122 = vmatpush1.msra.mxu0 0.0
  %10123 = vmatprep.subr.mxu0 0.0
  %10124 = vmatpush1.msra.mxu0 0.0
  %10125 = vmatprep.subr.mxu0 0.0
  %10126 = vmatpush1.msra.mxu0 0.0
  %10127 = vmatprep.subr.mxu0 0.0
  %10128 = vmatpush1.msra.mxu0 0.0
  %10129 = vmatprep.subr.mxu0 0.0
  %10130 = vmatpush1.msra.mxu0 0.0
  %10131 = vmatprep.mubr.f32.mxu0 0.0
  %v10132 = vand.u32 %v9518, 4294901760
  %v10133 = vsub.f32 %v9518, %v10132
  %v10134 = vand.u32 %v10133, 4294901760
  %v10135 = vsub.f32 %v10133, %v10134
  %v10136 = vand.u32 %v10135, 4294901760
  %10137 = vmatmul.mubr.f32.gmra.mrb[0].mxu0 %v10136
  %v10138 = vpop.f32.mrb[0].mxu0
  %v10139 = vadd.f32 0.0, %v10138
  %v10140 = vpop.f32.mrb[0].mxu0
  %v10141 = vadd.f32 0.0, %v10140
  %10142 = vmatprep.mubr.f32.mxu0 0.0
  %v10143 = vand.u32 %v9521, 4294901760
  %v10144 = vsub.f32 %v9521, %v10143
  %v10145 = vand.u32 %v10144, 4294901760
  %v10146 = vsub.f32 %v10144, %v10145
  %v10147 = vand.u32 %v10146, 4294901760
  %10148 = vmatmul.mubr.f32.gmra.mrb[0].mxu0 %v10147
  %v10149 = vpop.f32.mrb[0].mxu0
  %v10150 = vadd.f32 0.0, %v10149
  %v10151 = vpop.f32.mrb[0].mxu0
  %v10152 = vadd.f32 0.0, %v10151
  %10153 = vdwg.mxu0
  %v10154 = vand.u32 %v9504, 4294901760
  %v10155 = vsub.f32 %v9504, %v10154
  %v10156 = vand.u32 %v10155, 4294901760
  %v10157 = vsub.f32 %v10155, %v10156
  %v10158 = vand.u32 %v10157, 4294901760
  %10159 = vmatprep.subr.mxu0 %v10158
  %v10160 = vand.u32 %v9503, 4294901760
  %v10161 = vsub.f32 %v9503, %v10160
  %v10162 = vand.u32 %v10161, 4294901760
  %v10163 = vsub.f32 %v10161, %v10162
  %v10164 = vand.u32 %v10163, 4294901760
  %10165 = vmatpush1.msra.mxu0 %v10164
  %v10166 = vand.u32 %v9508, 4294901760
  %v10167 = vsub.f32 %v9508, %v10166
  %v10168 = vand.u32 %v10167, 4294901760
  %v10169 = vsub.f32 %v10167, %v10168
  %v10170 = vand.u32 %v10169, 4294901760
  %10171 = vmatprep.subr.mxu0 %v10170
  %v10172 = vand.u32 %v9507, 4294901760
  %v10173 = vsub.f32 %v9507, %v10172
  %v10174 = vand.u32 %v10173, 4294901760
  %v10175 = vsub.f32 %v10173, %v10174
  %v10176 = vand.u32 %v10175, 4294901760
  %10177 = vmatpush1.msra.mxu0 %v10176
  %10178 = vmatprep.subr.mxu0 0.0
  %10179 = vmatpush1.msra.mxu0 0.0
  %10180 = vmatprep.subr.mxu0 0.0
  %10181 = vmatpush1.msra.mxu0 0.0
  %10182 = vmatprep.subr.mxu0 0.0
  %10183 = vmatpush1.msra.mxu0 0.0
  %10184 = vmatprep.subr.mxu0 0.0
  %10185 = vmatpush1.msra.mxu0 0.0
  %10186 = vmatprep.subr.mxu0 0.0
  %10187 = vmatpush1.msra.mxu0 0.0
  %10188 = vmatprep.subr.mxu0 0.0
  %10189 = vmatpush1.msra.mxu0 0.0
  %10190 = vmatprep.subr.mxu0 0.0
  %10191 = vmatpush1.msra.mxu0 0.0
  %10192 = vmatprep.subr.mxu0 0.0
  %10193 = vmatpush1.msra.mxu0 0.0
  %10194 = vmatprep.subr.mxu0 0.0
  %10195 = vmatpush1.msra.mxu0 0.0
  %10196 = vmatprep.subr.mxu0 0.0
  %10197 = vmatpush1.msra.mxu0 0.0
  %10198 = vmatprep.subr.mxu0 0.0
  %10199 = vmatpush1.msra.mxu0 0.0
  %10200 = vmatprep.subr.mxu0 0.0
  %10201 = vmatpush1.msra.mxu0 0.0
  %10202 = vmatprep.subr.mxu0 0.0
  %10203 = vmatpush1.msra.mxu0 0.0
  %10204 = vmatprep.subr.mxu0 0.0
  %10205 = vmatpush1.msra.mxu0 0.0
  %10206 = vmatprep.subr.mxu0 0.0
  %10207 = vmatpush1.msra.mxu0 0.0
  %10208 = vmatprep.subr.mxu0 0.0
  %10209 = vmatpush1.msra.mxu0 0.0
  %10210 = vmatprep.subr.mxu0 0.0
  %10211 = vmatpush1.msra.mxu0 0.0
  %10212 = vmatprep.subr.mxu0 0.0
  %10213 = vmatpush1.msra.mxu0 0.0
  %10214 = vmatprep.subr.mxu0 0.0
  %10215 = vmatpush1.msra.mxu0 0.0
  %10216 = vmatprep.subr.mxu0 0.0
  %10217 = vmatpush1.msra.mxu0 0.0
  %10218 = vmatprep.subr.mxu0 0.0
  %10219 = vmatpush1.msra.mxu0 0.0
  %10220 = vmatprep.subr.mxu0 0.0
  %10221 = vmatpush1.msra.mxu0 0.0
  %10222 = vmatprep.subr.mxu0 0.0
  %10223 = vmatpush1.msra.mxu0 0.0
  %10224 = vmatprep.subr.mxu0 0.0
  %10225 = vmatpush1.msra.mxu0 0.0
  %10226 = vmatprep.subr.mxu0 0.0
  %10227 = vmatpush1.msra.mxu0 0.0
  %10228 = vmatprep.subr.mxu0 0.0
  %10229 = vmatpush1.msra.mxu0 0.0
  %10230 = vmatprep.subr.mxu0 0.0
  %10231 = vmatpush1.msra.mxu0 0.0
  %10232 = vmatprep.subr.mxu0 0.0
  %10233 = vmatpush1.msra.mxu0 0.0
  %10234 = vmatprep.subr.mxu0 0.0
  %10235 = vmatpush1.msra.mxu0 0.0
  %10236 = vmatprep.subr.mxu0 0.0
  %10237 = vmatpush1.msra.mxu0 0.0
  %10238 = vmatprep.mubr.f32.mxu0 0.0
  %v10239 = vand.u32 %v9518, 4294901760
  %10240 = vmatmul.mubr.f32.gmra.mrb[0].mxu0 %v10239
  %v10241 = vpop.f32.mrb[0].mxu0
  %v10242 = vadd.f32 %v10139, %v10241
  %v10243 = vpop.f32.mrb[0].mxu0
  %v10244 = vadd.f32 %v10141, %v10243
  %10245 = vmatprep.mubr.f32.mxu0 0.0
  %v10246 = vand.u32 %v9521, 4294901760
  %10247 = vmatmul.mubr.f32.gmra.mrb[0].mxu0 %v10246
  %v10248 = vpop.f32.mrb[0].mxu0
  %v10249 = vadd.f32 %v10150, %v10248
  %v10250 = vpop.f32.mrb[0].mxu0
  %v10251 = vadd.f32 %v10152, %v10250
  %10252 = vdwg.mxu0
  %v10253 = vand.u32 %v9504, 4294901760
  %v10254 = vsub.f32 %v9504, %v10253
  %10255 = vmatprep.subr.mxu0 %v10254
  %v10256 = vand.u32 %v9503, 4294901760
  %v10257 = vsub.f32 %v9503, %v10256
  %10258 = vmatpush1.msra.mxu0 %v10257
  %v10259 = vand.u32 %v9508, 4294901760
  %v10260 = vsub.f32 %v9508, %v10259
  %10261 = vmatprep.subr.mxu0 %v10260
  %v10262 = vand.u32 %v9507, 4294901760
  %v10263 = vsub.f32 %v9507, %v10262
  %10264 = vmatpush1.msra.mxu0 %v10263
  %10265 = vmatprep.subr.mxu0 0.0
  %10266 = vmatpush1.msra.mxu0 0.0
  %10267 = vmatprep.subr.mxu0 0.0
  %10268 = vmatpush1.msra.mxu0 0.0
  %10269 = vmatprep.subr.mxu0 0.0
  %10270 = vmatpush1.msra.mxu0 0.0
  %10271 = vmatprep.subr.mxu0 0.0
  %10272 = vmatpush1.msra.mxu0 0.0
  %10273 = vmatprep.subr.mxu0 0.0
  %10274 = vmatpush1.msra.mxu0 0.0
  %10275 = vmatprep.subr.mxu0 0.0
  %10276 = vmatpush1.msra.mxu0 0.0
  %10277 = vmatprep.subr.mxu0 0.0
  %10278 = vmatpush1.msra.mxu0 0.0
  %10279 = vmatprep.subr.mxu0 0.0
  %10280 = vmatpush1.msra.mxu0 0.0
  %10281 = vmatprep.subr.mxu0 0.0
  %10282 = vmatpush1.msra.mxu0 0.0
  %10283 = vmatprep.subr.mxu0 0.0
  %10284 = vmatpush1.msra.mxu0 0.0
  %10285 = vmatprep.subr.mxu0 0.0
  %10286 = vmatpush1.msra.mxu0 0.0
  %10287 = vmatprep.subr.mxu0 0.0
  %10288 = vmatpush1.msra.mxu0 0.0
  %10289 = vmatprep.subr.mxu0 0.0
  %10290 = vmatpush1.msra.mxu0 0.0
  %10291 = vmatprep.subr.mxu0 0.0
  %10292 = vmatpush1.msra.mxu0 0.0
  %10293 = vmatprep.subr.mxu0 0.0
  %10294 = vmatpush1.msra.mxu0 0.0
  %10295 = vmatprep.subr.mxu0 0.0
  %10296 = vmatpush1.msra.mxu0 0.0
  %10297 = vmatprep.subr.mxu0 0.0
  %10298 = vmatpush1.msra.mxu0 0.0
  %10299 = vmatprep.subr.mxu0 0.0
  %10300 = vmatpush1.msra.mxu0 0.0
  %10301 = vmatprep.subr.mxu0 0.0
  %10302 = vmatpush1.msra.mxu0 0.0
  %10303 = vmatprep.subr.mxu0 0.0
  %10304 = vmatpush1.msra.mxu0 0.0
  %10305 = vmatprep.subr.mxu0 0.0
  %10306 = vmatpush1.msra.mxu0 0.0
  %10307 = vmatprep.subr.mxu0 0.0
  %10308 = vmatpush1.msra.mxu0 0.0
  %10309 = vmatprep.subr.mxu0 0.0
  %10310 = vmatpush1.msra.mxu0 0.0
  %10311 = vmatprep.subr.mxu0 0.0
  %10312 = vmatpush1.msra.mxu0 0.0
  %10313 = vmatprep.subr.mxu0 0.0
  %10314 = vmatpush1.msra.mxu0 0.0
  %10315 = vmatprep.subr.mxu0 0.0
  %10316 = vmatpush1.msra.mxu0 0.0
  %10317 = vmatprep.subr.mxu0 0.0
  %10318 = vmatpush1.msra.mxu0 0.0
  %10319 = vmatprep.subr.mxu0 0.0
  %10320 = vmatpush1.msra.mxu0 0.0
  %10321 = vmatprep.subr.mxu0 0.0
  %10322 = vmatpush1.msra.mxu0 0.0
  %10323 = vmatprep.subr.mxu0 0.0
  %10324 = vmatpush1.msra.mxu0 0.0
  %10325 = vmatprep.mubr.f32.mxu0 0.0
  %v10326 = vand.u32 %v9518, 4294901760
  %v10327 = vsub.f32 %v9518, %v10326
  %10328 = vmatmul.mubr.f32.gmra.mrb[0].mxu0 %v10327
  %v10329 = vpop.f32.mrb[0].mxu0
  %v10330 = vadd.f32 %v10242, %v10329
  %v10331 = vpop.f32.mrb[0].mxu0
  %v10332 = vadd.f32 %v10244, %v10331
  %10333 = vmatprep.mubr.f32.mxu0 0.0
  %v10334 = vand.u32 %v9521, 4294901760
  %v10335 = vsub.f32 %v9521, %v10334
  %10336 = vmatmul.mubr.f32.gmra.mrb[0].mxu0 %v10335
  %v10337 = vpop.f32.mrb[0].mxu0
  %v10338 = vadd.f32 %v10249, %v10337
  %v10339 = vpop.f32.mrb[0].mxu0
  %v10340 = vadd.f32 %v10251, %v10339
  %10341 = vdwg.mxu0
  %v10342 = vand.u32 %v9504, 4294901760
  %10343 = vmatprep.subr.mxu0 %v10342
  %v10344 = vand.u32 %v9503, 4294901760
  %10345 = vmatpush1.msra.mxu0 %v10344
  %v10346 = vand.u32 %v9508, 4294901760
  %10347 = vmatprep.subr.mxu0 %v10346
  %v10348 = vand.u32 %v9507, 4294901760
  %10349 = vmatpush1.msra.mxu0 %v10348
  %10350 = vmatprep.subr.mxu0 0.0
  %10351 = vmatpush1.msra.mxu0 0.0
  %10352 = vmatprep.subr.mxu0 0.0
  %10353 = vmatpush1.msra.mxu0 0.0
  %10354 = vmatprep.subr.mxu0 0.0
  %10355 = vmatpush1.msra.mxu0 0.0
  %10356 = vmatprep.subr.mxu0 0.0
  %10357 = vmatpush1.msra.mxu0 0.0
  %10358 = vmatprep.subr.mxu0 0.0
  %10359 = vmatpush1.msra.mxu0 0.0
  %10360 = vmatprep.subr.mxu0 0.0
  %10361 = vmatpush1.msra.mxu0 0.0
  %10362 = vmatprep.subr.mxu0 0.0
  %10363 = vmatpush1.msra.mxu0 0.0
  %10364 = vmatprep.subr.mxu0 0.0
  %10365 = vmatpush1.msra.mxu0 0.0
  %10366 = vmatprep.subr.mxu0 0.0
  %10367 = vmatpush1.msra.mxu0 0.0
  %10368 = vmatprep.subr.mxu0 0.0
  %10369 = vmatpush1.msra.mxu0 0.0
  %10370 = vmatprep.subr.mxu0 0.0
  %10371 = vmatpush1.msra.mxu0 0.0
  %10372 = vmatprep.subr.mxu0 0.0
  %10373 = vmatpush1.msra.mxu0 0.0
  %10374 = vmatprep.subr.mxu0 0.0
  %10375 = vmatpush1.msra.mxu0 0.0
  %10376 = vmatprep.subr.mxu0 0.0
  %10377 = vmatpush1.msra.mxu0 0.0
  %10378 = vmatprep.subr.mxu0 0.0
  %10379 = vmatpush1.msra.mxu0 0.0
  %10380 = vmatprep.subr.mxu0 0.0
  %10381 = vmatpush1.msra.mxu0 0.0
  %10382 = vmatprep.subr.mxu0 0.0
  %10383 = vmatpush1.msra.mxu0 0.0
  %10384 = vmatprep.subr.mxu0 0.0
  %10385 = vmatpush1.msra.mxu0 0.0
  %10386 = vmatprep.subr.mxu0 0.0
  %10387 = vmatpush1.msra.mxu0 0.0
  %10388 = vmatprep.subr.mxu0 0.0
  %10389 = vmatpush1.msra.mxu0 0.0
  %10390 = vmatprep.subr.mxu0 0.0
  %10391 = vmatpush1.msra.mxu0 0.0
  %10392 = vmatprep.subr.mxu0 0.0
  %10393 = vmatpush1.msra.mxu0 0.0
  %10394 = vmatprep.subr.mxu0 0.0
  %10395 = vmatpush1.msra.mxu0 0.0
  %10396 = vmatprep.subr.mxu0 0.0
  %10397 = vmatpush1.msra.mxu0 0.0
  %10398 = vmatprep.subr.mxu0 0.0
  %10399 = vmatpush1.msra.mxu0 0.0
  %10400 = vmatprep.subr.mxu0 0.0
  %10401 = vmatpush1.msra.mxu0 0.0
  %10402 = vmatprep.subr.mxu0 0.0
  %10403 = vmatpush1.msra.mxu0 0.0
  %10404 = vmatprep.subr.mxu0 0.0
  %10405 = vmatpush1.msra.mxu0 0.0
  %10406 = vmatprep.subr.mxu0 0.0
  %10407 = vmatpush1.msra.mxu0 0.0
  %10408 = vmatprep.subr.mxu0 0.0
  %10409 = vmatpush1.msra.mxu0 0.0
  %10410 = vmatprep.mubr.f32.mxu0 0.0
  %v10411 = vand.u32 %v9518, 4294901760
  %v10412 = vsub.f32 %v9518, %v10411
  %v10413 = vand.u32 %v10412, 4294901760
  %10414 = vmatmul.mubr.f32.gmra.mrb[0].mxu0 %v10413
  %v10415 = vpop.f32.mrb[0].mxu0
  %v10416 = vadd.f32 %v10330, %v10415
  %v10417 = vpop.f32.mrb[0].mxu0
  %v10418 = vadd.f32 %v10332, %v10417
  %10419 = vmatprep.mubr.f32.mxu0 0.0
  %v10420 = vand.u32 %v9521, 4294901760
  %v10421 = vsub.f32 %v9521, %v10420
  %v10422 = vand.u32 %v10421, 4294901760
  %10423 = vmatmul.mubr.f32.gmra.mrb[0].mxu0 %v10422
  %v10424 = vpop.f32.mrb[0].mxu0
  %v10425 = vadd.f32 %v10338, %v10424
  %v10426 = vpop.f32.mrb[0].mxu0
  %v10427 = vadd.f32 %v10340, %v10426
  %10428 = vdwg.mxu0
  %v10429 = vand.u32 %v9504, 4294901760
  %v10430 = vsub.f32 %v9504, %v10429
  %v10431 = vand.u32 %v10430, 4294901760
  %10432 = vmatprep.subr.mxu0 %v10431
  %v10433 = vand.u32 %v9503, 4294901760
  %v10434 = vsub.f32 %v9503, %v10433
  %v10435 = vand.u32 %v10434, 4294901760
  %10436 = vmatpush1.msra.mxu0 %v10435
  %v10437 = vand.u32 %v9508, 4294901760
  %v10438 = vsub.f32 %v9508, %v10437
  %v10439 = vand.u32 %v10438, 4294901760
  %10440 = vmatprep.subr.mxu0 %v10439
  %v10441 = vand.u32 %v9507, 4294901760
  %v10442 = vsub.f32 %v9507, %v10441
  %v10443 = vand.u32 %v10442, 4294901760
  %10444 = vmatpush1.msra.mxu0 %v10443
  %10445 = vmatprep.subr.mxu0 0.0
  %10446 = vmatpush1.msra.mxu0 0.0
  %10447 = vmatprep.subr.mxu0 0.0
  %10448 = vmatpush1.msra.mxu0 0.0
  %10449 = vmatprep.subr.mxu0 0.0
  %10450 = vmatpush1.msra.mxu0 0.0
  %10451 = vmatprep.subr.mxu0 0.0
  %10452 = vmatpush1.msra.mxu0 0.0
  %10453 = vmatprep.subr.mxu0 0.0
  %10454 = vmatpush1.msra.mxu0 0.0
  %10455 = vmatprep.subr.mxu0 0.0
  %10456 = vmatpush1.msra.mxu0 0.0
  %10457 = vmatprep.subr.mxu0 0.0
  %10458 = vmatpush1.msra.mxu0 0.0
  %10459 = vmatprep.subr.mxu0 0.0
  %10460 = vmatpush1.msra.mxu0 0.0
  %10461 = vmatprep.subr.mxu0 0.0
  %10462 = vmatpush1.msra.mxu0 0.0
  %10463 = vmatprep.subr.mxu0 0.0
  %10464 = vmatpush1.msra.mxu0 0.0
  %10465 = vmatprep.subr.mxu0 0.0
  %10466 = vmatpush1.msra.mxu0 0.0
  %10467 = vmatprep.subr.mxu0 0.0
  %10468 = vmatpush1.msra.mxu0 0.0
  %10469 = vmatprep.subr.mxu0 0.0
  %10470 = vmatpush1.msra.mxu0 0.0
  %10471 = vmatprep.subr.mxu0 0.0
  %10472 = vmatpush1.msra.mxu0 0.0
  %10473 = vmatprep.subr.mxu0 0.0
  %10474 = vmatpush1.msra.mxu0 0.0
  %10475 = vmatprep.subr.mxu0 0.0
  %10476 = vmatpush1.msra.mxu0 0.0
  %10477 = vmatprep.subr.mxu0 0.0
  %10478 = vmatpush1.msra.mxu0 0.0
  %10479 = vmatprep.subr.mxu0 0.0
  %10480 = vmatpush1.msra.mxu0 0.0
  %10481 = vmatprep.subr.mxu0 0.0
  %10482 = vmatpush1.msra.mxu0 0.0
  %10483 = vmatprep.subr.mxu0 0.0
  %10484 = vmatpush1.msra.mxu0 0.0
  %10485 = vmatprep.subr.mxu0 0.0
  %10486 = vmatpush1.msra.mxu0 0.0
  %10487 = vmatprep.subr.mxu0 0.0
  %10488 = vmatpush1.msra.mxu0 0.0
  %10489 = vmatprep.subr.mxu0 0.0
  %10490 = vmatpush1.msra.mxu0 0.0
  %10491 = vmatprep.subr.mxu0 0.0
  %10492 = vmatpush1.msra.mxu0 0.0
  %10493 = vmatprep.subr.mxu0 0.0
  %10494 = vmatpush1.msra.mxu0 0.0
  %10495 = vmatprep.subr.mxu0 0.0
  %10496 = vmatpush1.msra.mxu0 0.0
  %10497 = vmatprep.subr.mxu0 0.0
  %10498 = vmatpush1.msra.mxu0 0.0
  %10499 = vmatprep.subr.mxu0 0.0
  %10500 = vmatpush1.msra.mxu0 0.0
  %10501 = vmatprep.subr.mxu0 0.0
  %10502 = vmatpush1.msra.mxu0 0.0
  %10503 = vmatprep.subr.mxu0 0.0
  %10504 = vmatpush1.msra.mxu0 0.0
  %10505 = vmatprep.mubr.f32.mxu0 0.0
  %v10506 = vand.u32 %v9518, 4294901760
  %10507 = vmatmul.mubr.f32.gmra.mrb[0].mxu0 %v10506
  %v10508 = vpop.f32.mrb[0].mxu0
  %v10509 = vadd.f32 %v10416, %v10508
  %v10510 = vpop.f32.mrb[0].mxu0
  %v10511 = vadd.f32 %v10418, %v10510
  %10512 = vmatprep.mubr.f32.mxu0 0.0
  %v10513 = vand.u32 %v9521, 4294901760
  %10514 = vmatmul.mubr.f32.gmra.mrb[0].mxu0 %v10513
  %v10515 = vpop.f32.mrb[0].mxu0
  %v10516 = vadd.f32 %v10425, %v10515
  %v10517 = vpop.f32.mrb[0].mxu0
  %v10518 = vadd.f32 %v10427, %v10517
  %10519 = vdwg.mxu0
  %v10520 = vand.u32 %v9504, 4294901760
  %10521 = vmatprep.subr.mxu0 %v10520
  %v10522 = vand.u32 %v9503, 4294901760
  %10523 = vmatpush1.msra.mxu0 %v10522
  %v10524 = vand.u32 %v9508, 4294901760
  %10525 = vmatprep.subr.mxu0 %v10524
  %v10526 = vand.u32 %v9507, 4294901760
  %10527 = vmatpush1.msra.mxu0 %v10526
  %10528 = vmatprep.subr.mxu0 0.0
  %10529 = vmatpush1.msra.mxu0 0.0
  %10530 = vmatprep.subr.mxu0 0.0
  %10531 = vmatpush1.msra.mxu0 0.0
  %10532 = vmatprep.subr.mxu0 0.0
  %10533 = vmatpush1.msra.mxu0 0.0
  %10534 = vmatprep.subr.mxu0 0.0
  %10535 = vmatpush1.msra.mxu0 0.0
  %10536 = vmatprep.subr.mxu0 0.0
  %10537 = vmatpush1.msra.mxu0 0.0
  %10538 = vmatprep.subr.mxu0 0.0
  %10539 = vmatpush1.msra.mxu0 0.0
  %10540 = vmatprep.subr.mxu0 0.0
  %10541 = vmatpush1.msra.mxu0 0.0
  %10542 = vmatprep.subr.mxu0 0.0
  %10543 = vmatpush1.msra.mxu0 0.0
  %10544 = vmatprep.subr.mxu0 0.0
  %10545 = vmatpush1.msra.mxu0 0.0
  %10546 = vmatprep.subr.mxu0 0.0
  %10547 = vmatpush1.msra.mxu0 0.0
  %10548 = vmatprep.subr.mxu0 0.0
  %10549 = vmatpush1.msra.mxu0 0.0
  %10550 = vmatprep.subr.mxu0 0.0
  %10551 = vmatpush1.msra.mxu0 0.0
  %10552 = vmatprep.subr.mxu0 0.0
  %10553 = vmatpush1.msra.mxu0 0.0
  %10554 = vmatprep.subr.mxu0 0.0
  %10555 = vmatpush1.msra.mxu0 0.0
  %10556 = vmatprep.subr.mxu0 0.0
  %10557 = vmatpush1.msra.mxu0 0.0
  %10558 = vmatprep.subr.mxu0 0.0
  %10559 = vmatpush1.msra.mxu0 0.0
  %10560 = vmatprep.subr.mxu0 0.0
  %10561 = vmatpush1.msra.mxu0 0.0
  %10562 = vmatprep.subr.mxu0 0.0
  %10563 = vmatpush1.msra.mxu0 0.0
  %10564 = vmatprep.subr.mxu0 0.0
  %10565 = vmatpush1.msra.mxu0 0.0
  %10566 = vmatprep.subr.mxu0 0.0
  %10567 = vmatpush1.msra.mxu0 0.0
  %10568 = vmatprep.subr.mxu0 0.0
  %10569 = vmatpush1.msra.mxu0 0.0
  %10570 = vmatprep.subr.mxu0 0.0
  %10571 = vmatpush1.msra.mxu0 0.0
  %10572 = vmatprep.subr.mxu0 0.0
  %10573 = vmatpush1.msra.mxu0 0.0
  %10574 = vmatprep.subr.mxu0 0.0
  %10575 = vmatpush1.msra.mxu0 0.0
  %10576 = vmatprep.subr.mxu0 0.0
  %10577 = vmatpush1.msra.mxu0 0.0
  %10578 = vmatprep.subr.mxu0 0.0
  %10579 = vmatpush1.msra.mxu0 0.0
  %10580 = vmatprep.subr.mxu0 0.0
  %10581 = vmatpush1.msra.mxu0 0.0
  %10582 = vmatprep.subr.mxu0 0.0
  %10583 = vmatpush1.msra.mxu0 0.0
  %10584 = vmatprep.subr.mxu0 0.0
  %10585 = vmatpush1.msra.mxu0 0.0
  %10586 = vmatprep.subr.mxu0 0.0
  %10587 = vmatpush1.msra.mxu0 0.0
  %10588 = vmatprep.mubr.f32.mxu0 0.0
  %v10589 = vand.u32 %v9518, 4294901760
  %10590 = vmatmul.mubr.f32.gmra.mrb[0].mxu0 %v10589
  %v10591 = vpop.f32.mrb[0].mxu0
  %v10592 = vadd.f32 %v10509, %v10591
  %v10593 = vpop.f32.mrb[0].mxu0
  %v10594 = vadd.f32 %v10511, %v10593
  %10595 = vmatprep.mubr.f32.mxu0 0.0
  %v10596 = vand.u32 %v9521, 4294901760
  %10597 = vmatmul.mubr.f32.gmra.mrb[0].mxu0 %v10596
  %v10598 = vpop.f32.mrb[0].mxu0
  %v10599 = vadd.f32 %v10516, %v10598
  %v10600 = vpop.f32.mrb[0].mxu0
  %v10601 = vadd.f32 %v10518, %v10600
  %10602 = vdwg.mxu0
  %v10603 = vadd.f32 %v9413, %v10052
  %v10604 = vadd.f32 %v9414, %v10054
  %v10605 = vadd.f32 %v9415, %v10592
  %v10606 = vadd.f32 %v9416, %v10594
  %v10607 = vadd.f32 %v9417, %v10059
  %v10608 = vadd.f32 %v9418, %v10061
  %v10609 = vadd.f32 %v9419, %v10599
  %v10610 = vadd.f32 %v9420, %v10601
  %v10611 = vld [vmem:[%s2] sm:$0xff]
  %v10612 = vld [vmem:[%s2 + $0x8] sm:$0xff]
  %10614 = vset.pattern.permute.xlu0 0
  %10615 = vperm.xlu0 %10614, %v10611
  %v10616 = vpop.permute.xlu0 %10615
  %10619 = vset.pattern.permute.xlu0 0
  %10620 = vperm.xlu0 %10619, %v10612
  %v10621 = vpop.permute.xlu0 %10620
  %v10623 = vadd.f32 %v10603, %v10616
  %v10624 = vadd.f32 %v10604, %v10616
  %v10625 = vadd.f32 %v10605, %v10616
  %v10626 = vadd.f32 %v10606, %v10616
  %v10627 = vadd.f32 %v10607, %v10621
  %v10628 = vadd.f32 %v10608, %v10621
  %v10629 = vadd.f32 %v10609, %v10621
  %v10630 = vadd.f32 %v10610, %v10621
  %v10631 = vtanh.pop %v10623
  %v10632 = vtanh.pop %v10624
  %v10633 = vtanh.pop %v10625
  %v10634 = vtanh.pop %v10626
  %v10635 = vtanh.pop %v10627
  %v10636 = vtanh.pop %v10628
  %v10637 = vtanh.pop %v10629
  %v10638 = vtanh.pop %v10630
  %v10639 = vmul.f32 %v10631, 1.442695
  %v10640 = vpow.pop %v10639
  %v10641 = vmul.f32 %v10632, 1.442695
  %v10642 = vpow.pop %v10641
  %v10643 = vmul.f32 %v10635, 1.442695
  %v10644 = vpow.pop %v10643
  %v10645 = vmul.f32 %v10636, 1.442695
  %v10646 = vpow.pop %v10645
  %v10647 = vmul.f32 %v10633, 1.442695
  %v10648 = vpow.pop %v10647
  %v10649 = vmul.f32 %v10634, 1.442695
  %v10650 = vpow.pop %v10649
  %v10651 = vmul.f32 %v10637, 1.442695
  %v10652 = vpow.pop %v10651
  %v10653 = vmul.f32 %v10638, 1.442695
  %v10654 = vpow.pop %v10653
  %v10655 = vadd.f32 %v10640, %v10648
  %v10656 = vadd.f32 %v10642, %v10650
  %v10657 = vadd.f32 %v10644, %v10652
  %v10658 = vadd.f32 %v10646, %v10654
  %v10659 = vrcp.pop %v10655
  %v10660 = vmul.f32 1.0, %v10659
  %v10661 = vrcp.pop %v10656
  %v10662 = vmul.f32 1.0, %v10661
  %v10663 = vrcp.pop %v10657
  %v10664 = vmul.f32 1.0, %v10663
  %v10665 = vrcp.pop %v10658
  %v10666 = vmul.f32 1.0, %v10665
  %v10667 = vmul.f32 %v10640, %v10660
  %v10668 = vmul.f32 %v10642, %v10662
  %v10669 = vmul.f32 %v10644, %v10664
  %v10670 = vmul.f32 %v10646, %v10666
  %v10671 = vadd.f32 %v10667, %v10631
  %v10672 = vadd.f32 %v10668, %v10632
  %v10673 = vadd.f32 %v10669, %v10635
  %v10674 = vadd.f32 %v10670, %v10636
  %v10675 = vtanh.pop %v10671
  %v10676 = vtanh.pop %v10672
  %v10677 = vtanh.pop %v10673
  %v10678 = vtanh.pop %v10674
  %10679 = vst [vmem:[%s4] sm:$0xff] %v10675
  %10680 = vst [vmem:[%s4 + $0x8] sm:$0xff] %v10676
  %10681 = vst [vmem:[%s4 + $0x10] sm:$0xff] %v10677
  %10682 = vst [vmem:[%s4 + $0x18] sm:$0xff] %v10678
  %v10683 = vmul.f32 %v10648, %v10660
  %v10684 = vmul.f32 %v10650, %v10662
  %v10685 = vmul.f32 %v10652, %v10664
  %v10686 = vmul.f32 %v10654, %v10666
  %v10687 = vadd.f32 %v10683, %v10633
  %v10688 = vadd.f32 %v10684, %v10634
  %v10689 = vadd.f32 %v10685, %v10637
  %v10690 = vadd.f32 %v10686, %v10638
  %v10691 = vtanh.pop %v10687
  %v10692 = vtanh.pop %v10688
  %v10693 = vtanh.pop %v10689
  %v10694 = vtanh.pop %v10690
  %s10695 = scalar_lea.vmem %s4, 32
  %10696 = vst [vmem:[%s10695] sm:$0xff] %v10691
  %10697 = vst [vmem:[%s10695 + $0x8] sm:$0xff] %v10692
  %10698 = vst [vmem:[%s10695 + $0x10] sm:$0xff] %v10693
  %10699 = vst [vmem:[%s10695 + $0x18] sm:$0xff] %v10694
  // Predicated region
  $region18: #{model_forward.1} parent=0 // pred_check
    _
  $region19: #{model_forward.1} parent=0 // pred_check_branch
    %10701 = sbr.rel (0) target = $region21
  $region20: #{model_forward.1} parent=0 // pred_region
    _
  $region21: #{model_forward.1} parent=0 // pred_fallthru
    _
  // Predicated region
  $region22: #{model_forward.1} parent=0 // pred_check
    _
  $region23: #{model_forward.1} parent=0 // pred_check_branch
    %10703 = sbr.rel (0) target = $region25
  $region24: #{model_forward.1} parent=0 // pred_region
    _
  $region25: #{model_forward.1} parent=0 // pred_fallthru
    _

</llo_original>
